<compile_context>
chip_gen: v7x
topology: tpu7x:2x2x1
jax: 0.10.0
libtpu: 0.0.40
codegen_flags: <defaults>
</compile_context>

<pallas_src>
import functools

import jax
import jax.numpy as jnp
import numpy as np
from jax import lax
from jax.experimental import pallas as pl
from jax.experimental.pallas import tpu as pltpu

C_PAD = 128                      # lane-dense channel count for stored activations
VMEM_LIMIT = 32 * 1024 * 1024    # explicit scoped-VMEM budget (fits all gens)


# ----------------------------------------------------------------------------
# Pallas kernels: one output row of a 3x3 conv per grid step.
# 9-tap MXU accumulation in f32, fused bias + ReLU epilogue, bf16 store.
# ----------------------------------------------------------------------------
def _conv_row_s1_kernel(x0_ref, x1_ref, x2_ref, w_ref, b_ref, o_ref):
    """Stride 1.  x{ky}_ref: padded input row (h+ky), shape (Wp, Ci) bf16.
    w_ref: (3, 3, Ci, Co) bf16.  b_ref: (1, Co) f32.  o_ref: (Wo, Co) bf16."""
    wo = o_ref.shape[0]
    acc = jnp.zeros(o_ref.shape, jnp.float32)
    rows = (x0_ref[...], x1_ref[...], x2_ref[...])
    for ky in range(3):
        r = rows[ky]
        for kx in range(3):
            acc += jnp.dot(r[kx:kx + wo, :], w_ref[ky, kx],
                           preferred_element_type=jnp.float32)
    acc = jnp.maximum(acc + b_ref[...], 0.0)          # f32 epilogue (v5e-safe)
    o_ref[...] = acc.astype(o_ref.dtype)


def _conv_row_s2_kernel(x0_ref, x1_ref, x2_ref, w_ref, b_ref, o_ref):
    """Stride 2 with W-taps pre-gathered along channels.
    x{ky}_ref: padded input row (2h+ky), shape (Wo, 3*Ci) bf16.
    w_ref: (3, 3*Ci, Co) bf16.  b_ref: (1, Co) f32.  o_ref: (Wo, Co) bf16."""
    acc = jnp.zeros(o_ref.shape, jnp.float32)
    rows = (x0_ref[...], x1_ref[...], x2_ref[...])
    for ky in range(3):
        acc += jnp.dot(rows[ky], w_ref[ky], preferred_element_type=jnp.float32)
    acc = jnp.maximum(acc + b_ref[...], 0.0)
    o_ref[...] = acc.astype(o_ref.dtype)


def _row_spec(width, channels, stride, ky):
    """Input row tap ky: one padded row (h*stride + ky) of the activation."""
    return pl.BlockSpec((None, None, width, channels),
                        lambda n, h: (n, h * stride + ky, 0, 0))


def _compiler_params():
    return pltpu.CompilerParams(
        dimension_semantics=("parallel", "parallel"),
        vmem_limit_bytes=VMEM_LIMIT)


def _cost(n, ho, wo, k, co, in_bytes, w_bytes):
    flops = 2 * n * ho * wo * k * co
    out_bytes = n * ho * wo * co * 2
    return pl.CostEstimate(flops=int(flops), transcendentals=0,
                           bytes_accessed=int(in_bytes + w_bytes + out_bytes))


# ----------------------------------------------------------------------------
# conv3x3 (pad=1) + ReLU wrappers
# ----------------------------------------------------------------------------
def conv3x3_relu_s1(x, w, b):
    """x: (N,H,W,Ci) bf16, w: (3,3,Ci,Co) bf16, b: (1,Co) f32 -> (N,H,W,Co) bf16."""
    N, H, W, Ci = x.shape
    Co = w.shape[-1]
    Ho, Wo = H, W
    xp = jnp.pad(x, ((0, 0), (1, 1), (1, 1), (0, 0)))
    Hp, Wp = H + 2, W + 2
    cost = _cost(N, Ho, Wo, 9 * Ci, Co,
                 in_bytes=3 * N * Hp * Wp * Ci * 2, w_bytes=w.size * 2)
    return pl.pallas_call(
        _conv_row_s1_kernel,
        grid=(N, Ho),
        in_specs=[_row_spec(Wp, Ci, 1, 0),
                  _row_spec(Wp, Ci, 1, 1),
                  _row_spec(Wp, Ci, 1, 2),
                  pl.BlockSpec((3, 3, Ci, Co), lambda n, h: (0, 0, 0, 0)),
                  pl.BlockSpec((1, Co), lambda n, h: (0, 0))],
        out_specs=pl.BlockSpec((None, None, Wo, Co), lambda n, h: (n, h, 0, 0)),
        out_shape=jax.ShapeDtypeStruct((N, Ho, Wo, Co), jnp.bfloat16),
        compiler_params=_compiler_params(),
        cost_estimate=cost,
    )(xp, xp, xp, w, b)


def conv3x3_relu_s2(x, w, b):
    """Stride-2 conv.  W-taps are pre-gathered in XLA so the kernel only does
    contiguous reads; H-taps/stride are handled by the BlockSpec index_map."""
    N, H, W, Ci = x.shape
    Co = w.shape[-1]
    Ho, Wo = (H - 1) // 2 + 1, (W - 1) // 2 + 1
    xp = jnp.pad(x, ((0, 0), (1, 1), (1, 1), (0, 0)))
    Hp = H + 2
    cols = [lax.slice(xp, (0, 0, kx, 0),
                      (N, Hp, kx + 2 * (Wo - 1) + 1, Ci),
                      (1, 1, 2, 1)) for kx in range(3)]
    xcol = jnp.concatenate(cols, axis=-1)                         # (N,Hp,Wo,3*Ci)
    w2 = jnp.concatenate([w[:, kx] for kx in range(3)], axis=1)   # (3,3*Ci,Co)
    cost = _cost(N, Ho, Wo, 9 * Ci, Co,
                 in_bytes=3 * xcol.size * 2, w_bytes=w2.size * 2)
    return pl.pallas_call(
        _conv_row_s2_kernel,
        grid=(N, Ho),
        in_specs=[_row_spec(Wo, 3 * Ci, 2, 0),
                  _row_spec(Wo, 3 * Ci, 2, 1),
                  _row_spec(Wo, 3 * Ci, 2, 2),
                  pl.BlockSpec((3, 3 * Ci, Co), lambda n, h: (0, 0, 0)),
                  pl.BlockSpec((1, Co), lambda n, h: (0, 0))],
        out_specs=pl.BlockSpec((None, None, Wo, Co), lambda n, h: (n, h, 0, 0)),
        out_shape=jax.ShapeDtypeStruct((N, Ho, Wo, Co), jnp.bfloat16),
        compiler_params=_compiler_params(),
        cost_estimate=cost,
    )(xcol, xcol, xcol, w2, b)


# ----------------------------------------------------------------------------
# Encoder parameters (deterministic synthetic init, PyTorch-like shapes, HWIO)
# ----------------------------------------------------------------------------
def make_encoder_params(key, in_channels=3, hidden_channels=32):
    assert hidden_channels <= 128, "small-config branch of the module"
    cfg = [
        (in_channels, 32, 1),                    # init_conv1
        (32, 32, 1),                             # init_conv2
        (32, 32, 1),                             # init_conv3
        (32, 64, 2),                             # down1_conv
        (64, 64, 1),                             # mid_conv1
        (64, 64, 1),                             # mid_conv2
        (64, 64, 1),                             # mid_conv3
        (64, 128, 2),                            # down2_conv
        (128, 128, 1),                           # deep_conv1
        (128, hidden_channels, 1),               # final_conv1
        (hidden_channels, hidden_channels, 1),   # final_conv2
    ]
    params = []
    for cin, cout, stride in cfg:
        key, kw, kb = jax.random.split(key, 3)
        bound = 1.0 / np.sqrt(cin * 9)
        w = jax.random.uniform(kw, (3, 3, cin, cout), jnp.float32, -bound, bound)
        b = jax.random.uniform(kb, (cout,), jnp.float32, -bound, bound)
        params.append((w, b, stride))
    return params


# ----------------------------------------------------------------------------
# Forward pass
# ----------------------------------------------------------------------------
@functools.partial(jax.jit, static_argnums=(2,))
def _encoder_forward_impl(x_nchw, wb, strides):
    # NCHW -> NHWC, bf16, lane-dense channel padding.
    x = jnp.transpose(x_nchw, (0, 2, 3, 1)).astype(jnp.bfloat16)
    N, H, W, C = x.shape
    x = jnp.pad(x, ((0, 0), (0, 0), (0, 0), (0, C_PAD - C)))
    for (w, b), stride in zip(wb, strides):
        cin, cout = w.shape[2], w.shape[3]
        w_p = jnp.zeros((3, 3, C_PAD, C_PAD), jnp.float32)
        w_p = w_p.at[:, :, :cin, :cout].set(w).astype(jnp.bfloat16)
        b_p = jnp.zeros((1, C_PAD), jnp.float32).at[0, :cout].set(b)
        if stride == 1:
            x = conv3x3_relu_s1(x, w_p, b_p)
        else:
            x = conv3x3_relu_s2(x, w_p, b_p)
    cout_true = wb[-1][0].shape[-1]
    x = x[..., :cout_true].astype(jnp.float32)
    return jnp.transpose(x, (0, 3, 1, 2))        # NHWC -> NCHW


def encoder_forward(x_nchw, params):
    wb = tuple((w, b) for (w, b, _) in params)
    strides = tuple(int(s) for (_, _, s) in params)
    return _encoder_forward_impl(x_nchw, wb, strides)


# ----------------------------------------------------------------------------
# Reference: lax.conv with the SAME precision policy (bf16 MXU inputs,
# f32 accumulation, bf16 inter-layer storage) as the Pallas kernels.
# ----------------------------------------------------------------------------
def encoder_reference(x_nchw, params):
    x = jnp.transpose(x_nchw, (0, 2, 3, 1)).astype(jnp.bfloat16)
    dn = lax.conv_dimension_numbers(x.shape, (3, 3, 1, 1),
                                    ("NHWC", "HWIO", "NHWC"))
    for w, b, stride in params:
        y = lax.conv_general_dilated(
            x, w.astype(jnp.bfloat16), window_strides=(stride, stride),
            padding=((1, 1), (1, 1)), dimension_numbers=dn,
            preferred_element_type=jnp.float32)
        x = jnp.maximum(y + b, 0.0).astype(jnp.bfloat16)
    return jnp.transpose(x, (0, 3, 1, 2)).astype(jnp.float32)


if __name__ == "__main__":
    key = jax.random.PRNGKey(0)
    k_params, k_x = jax.random.split(key)

    in_channels, hidden_channels = 3, 32
    batch, spatial = 2, 16

    params = make_encoder_params(k_params, in_channels, hidden_channels)
    x = jax.random.normal(k_x, (batch, in_channels, spatial, spatial), jnp.float32)

    out = jax.block_until_ready(encoder_forward(x, params))
    ref = jax.block_until_ready(encoder_reference(x, params))

    # output: (batch, hidden_channels, spatial/4, spatial/4)
    assert out.shape == (batch, hidden_channels, spatial // 4, spatial // 4), out.shape
    np.testing.assert_allclose(np.asarray(out), np.asarray(ref), rtol=1e-2, atol=1e-2)

    print("KERNEL_OK")
</pallas_src>

<mosaic_0001>
module attributes {stable_mosaic.version = 11 : i64} {
  func.func @_conv_row_s1_kernel(%arg0: i32, %arg1: i32, %arg2: memref<1x1x18x128xbf16, #tpu.memory_space<vmem>>, %arg3: memref<1x1x18x128xbf16, #tpu.memory_space<vmem>>, %arg4: memref<1x1x18x128xbf16, #tpu.memory_space<vmem>>, %arg5: memref<3x3x128x128xbf16, #tpu.memory_space<vmem>>, %arg6: memref<1x128xf32, #tpu.memory_space<vmem>>, %arg7: memref<1x1x16x128xbf16, #tpu.memory_space<vmem>>) attributes {dimension_semantics = [#tpu.dimension_semantics<parallel>, #tpu.dimension_semantics<parallel>], iteration_bounds = array<i64: 2, 16>, scalar_prefetch = 0 : i64, scratch_operands = 0 : i64, tpu.core_type = #tpu.core_type<tc>, window_params = [{transform_indices = @transform_0, window_bounds = array<i64: 1, 1, 18, 128>}, {transform_indices = @transform_1, window_bounds = array<i64: 1, 1, 18, 128>}, {transform_indices = @transform_2, window_bounds = array<i64: 1, 1, 18, 128>}, {pipeline_mode = #tpu.pipeline_mode<synchronous>, transform_indices = @transform_3, window_bounds = array<i64: 3, 3, 128, 128>}, {pipeline_mode = #tpu.pipeline_mode<synchronous>, transform_indices = @transform_4, window_bounds = array<i64: 1, 128>}, {transform_indices = @transform_5, window_bounds = array<i64: 1, 1, 16, 128>}]} {
    %cst = arith.constant 0.000000e+00 : f32
    %0 = vector.broadcast %cst : f32 to vector<16x128xf32>
    %c0 = arith.constant 0 : index
    %c0_0 = arith.constant 0 : index
    %c0_1 = arith.constant 0 : index
    %c0_2 = arith.constant 0 : index
    %1 = vector.load %arg2[%c0, %c0_0, %c0_1, %c0_2] : memref<1x1x18x128xbf16, #tpu.memory_space<vmem>>, vector<1x1x18x128xbf16>
    %2 = vector.shape_cast %1 : vector<1x1x18x128xbf16> to vector<18x128xbf16>
    %c0_3 = arith.constant 0 : index
    %c0_4 = arith.constant 0 : index
    %c0_5 = arith.constant 0 : index
    %c0_6 = arith.constant 0 : index
    %3 = vector.load %arg3[%c0_3, %c0_4, %c0_5, %c0_6] : memref<1x1x18x128xbf16, #tpu.memory_space<vmem>>, vector<1x1x18x128xbf16>
    %4 = vector.shape_cast %3 : vector<1x1x18x128xbf16> to vector<18x128xbf16>
    %c0_7 = arith.constant 0 : index
    %c0_8 = arith.constant 0 : index
    %c0_9 = arith.constant 0 : index
    %c0_10 = arith.constant 0 : index
    %5 = vector.load %arg4[%c0_7, %c0_8, %c0_9, %c0_10] : memref<1x1x18x128xbf16, #tpu.memory_space<vmem>>, vector<1x1x18x128xbf16>
    %6 = vector.shape_cast %5 : vector<1x1x18x128xbf16> to vector<18x128xbf16>
    %7 = vector.extract_strided_slice %2 {offsets = [0, 0], sizes = [16, 128], strides = [1, 1]} : vector<18x128xbf16> to vector<16x128xbf16>
    %c0_11 = arith.constant 0 : index
    %c0_12 = arith.constant 0 : index
    %c0_13 = arith.constant 0 : index
    %c0_14 = arith.constant 0 : index
    %8 = vector.load %arg5[%c0_11, %c0_12, %c0_13, %c0_14] : memref<3x3x128x128xbf16, #tpu.memory_space<vmem>>, vector<1x1x128x128xbf16>
    %9 = vector.shape_cast %8 : vector<1x1x128x128xbf16> to vector<128x128xbf16>
    %cst_15 = arith.constant dense<0.000000e+00> : vector<16x128xf32>
    %10 = tpu.matmul %7, %9, %cst_15 {dimension_numbers = #tpu.dot_dimension_numbers<[1], [0], [0], [1], [0, 0, 1, 1], [], []>} : vector<16x128xbf16>, vector<128x128xbf16>, vector<16x128xf32> -> vector<16x128xf32>
    %11 = arith.addf %0, %10 : vector<16x128xf32>
    %12 = vector.extract_strided_slice %2 {offsets = [1, 0], sizes = [16, 128], strides = [1, 1]} : vector<18x128xbf16> to vector<16x128xbf16>
    %c0_16 = arith.constant 0 : index
    %c1 = arith.constant 1 : index
    %c0_17 = arith.constant 0 : index
    %c0_18 = arith.constant 0 : index
    %13 = vector.load %arg5[%c0_16, %c1, %c0_17, %c0_18] : memref<3x3x128x128xbf16, #tpu.memory_space<vmem>>, vector<1x1x128x128xbf16>
    %14 = vector.shape_cast %13 : vector<1x1x128x128xbf16> to vector<128x128xbf16>
    %cst_19 = arith.constant dense<0.000000e+00> : vector<16x128xf32>
    %15 = tpu.matmul %12, %14, %cst_19 {dimension_numbers = #tpu.dot_dimension_numbers<[1], [0], [0], [1], [0, 0, 1, 1], [], []>} : vector<16x128xbf16>, vector<128x128xbf16>, vector<16x128xf32> -> vector<16x128xf32>
    %16 = arith.addf %11, %15 : vector<16x128xf32>
    %17 = vector.extract_strided_slice %2 {offsets = [2, 0], sizes = [16, 128], strides = [1, 1]} : vector<18x128xbf16> to vector<16x128xbf16>
    %c0_20 = arith.constant 0 : index
    %c2 = arith.constant 2 : index
    %c0_21 = arith.constant 0 : index
    %c0_22 = arith.constant 0 : index
    %18 = vector.load %arg5[%c0_20, %c2, %c0_21, %c0_22] : memref<3x3x128x128xbf16, #tpu.memory_space<vmem>>, vector<1x1x128x128xbf16>
    %19 = vector.shape_cast %18 : vector<1x1x128x128xbf16> to vector<128x128xbf16>
    %cst_23 = arith.constant dense<0.000000e+00> : vector<16x128xf32>
    %20 = tpu.matmul %17, %19, %cst_23 {dimension_numbers = #tpu.dot_dimension_numbers<[1], [0], [0], [1], [0, 0, 1, 1], [], []>} : vector<16x128xbf16>, vector<128x128xbf16>, vector<16x128xf32> -> vector<16x128xf32>
    %21 = arith.addf %16, %20 : vector<16x128xf32>
    %22 = vector.extract_strided_slice %4 {offsets = [0, 0], sizes = [16, 128], strides = [1, 1]} : vector<18x128xbf16> to vector<16x128xbf16>
    %c1_24 = arith.constant 1 : index
    %c0_25 = arith.constant 0 : index
    %c0_26 = arith.constant 0 : index
    %c0_27 = arith.constant 0 : index
    %23 = vector.load %arg5[%c1_24, %c0_25, %c0_26, %c0_27] : memref<3x3x128x128xbf16, #tpu.memory_space<vmem>>, vector<1x1x128x128xbf16>
    %24 = vector.shape_cast %23 : vector<1x1x128x128xbf16> to vector<128x128xbf16>
    %cst_28 = arith.constant dense<0.000000e+00> : vector<16x128xf32>
    %25 = tpu.matmul %22, %24, %cst_28 {dimension_numbers = #tpu.dot_dimension_numbers<[1], [0], [0], [1], [0, 0, 1, 1], [], []>} : vector<16x128xbf16>, vector<128x128xbf16>, vector<16x128xf32> -> vector<16x128xf32>
    %26 = arith.addf %21, %25 : vector<16x128xf32>
    %27 = vector.extract_strided_slice %4 {offsets = [1, 0], sizes = [16, 128], strides = [1, 1]} : vector<18x128xbf16> to vector<16x128xbf16>
    %c1_29 = arith.constant 1 : index
    %c1_30 = arith.constant 1 : index
    %c0_31 = arith.constant 0 : index
    %c0_32 = arith.constant 0 : index
    %28 = vector.load %arg5[%c1_29, %c1_30, %c0_31, %c0_32] : memref<3x3x128x128xbf16, #tpu.memory_space<vmem>>, vector<1x1x128x128xbf16>
    %29 = vector.shape_cast %28 : vector<1x1x128x128xbf16> to vector<128x128xbf16>
    %cst_33 = arith.constant dense<0.000000e+00> : vector<16x128xf32>
    %30 = tpu.matmul %27, %29, %cst_33 {dimension_numbers = #tpu.dot_dimension_numbers<[1], [0], [0], [1], [0, 0, 1, 1], [], []>} : vector<16x128xbf16>, vector<128x128xbf16>, vector<16x128xf32> -> vector<16x128xf32>
    %31 = arith.addf %26, %30 : vector<16x128xf32>
    %32 = vector.extract_strided_slice %4 {offsets = [2, 0], sizes = [16, 128], strides = [1, 1]} : vector<18x128xbf16> to vector<16x128xbf16>
    %c1_34 = arith.constant 1 : index
    %c2_35 = arith.constant 2 : index
    %c0_36 = arith.constant 0 : index
    %c0_37 = arith.constant 0 : index
    %33 = vector.load %arg5[%c1_34, %c2_35, %c0_36, %c0_37] : memref<3x3x128x128xbf16, #tpu.memory_space<vmem>>, vector<1x1x128x128xbf16>
    %34 = vector.shape_cast %33 : vector<1x1x128x128xbf16> to vector<128x128xbf16>
    %cst_38 = arith.constant dense<0.000000e+00> : vector<16x128xf32>
    %35 = tpu.matmul %32, %34, %cst_38 {dimension_numbers = #tpu.dot_dimension_numbers<[1], [0], [0], [1], [0, 0, 1, 1], [], []>} : vector<16x128xbf16>, vector<128x128xbf16>, vector<16x128xf32> -> vector<16x128xf32>
    %36 = arith.addf %31, %35 : vector<16x128xf32>
    %37 = vector.extract_strided_slice %6 {offsets = [0, 0], sizes = [16, 128], strides = [1, 1]} : vector<18x128xbf16> to vector<16x128xbf16>
    %c2_39 = arith.constant 2 : index
    %c0_40 = arith.constant 0 : index
    %c0_41 = arith.constant 0 : index
    %c0_42 = arith.constant 0 : index
    %38 = vector.load %arg5[%c2_39, %c0_40, %c0_41, %c0_42] : memref<3x3x128x128xbf16, #tpu.memory_space<vmem>>, vector<1x1x128x128xbf16>
    %39 = vector.shape_cast %38 : vector<1x1x128x128xbf16> to vector<128x128xbf16>
    %cst_43 = arith.constant dense<0.000000e+00> : vector<16x128xf32>
    %40 = tpu.matmul %37, %39, %cst_43 {dimension_numbers = #tpu.dot_dimension_numbers<[1], [0], [0], [1], [0, 0, 1, 1], [], []>} : vector<16x128xbf16>, vector<128x128xbf16>, vector<16x128xf32> -> vector<16x128xf32>
    %41 = arith.addf %36, %40 : vector<16x128xf32>
    %42 = vector.extract_strided_slice %6 {offsets = [1, 0], sizes = [16, 128], strides = [1, 1]} : vector<18x128xbf16> to vector<16x128xbf16>
    %c2_44 = arith.constant 2 : index
    %c1_45 = arith.constant 1 : index
    %c0_46 = arith.constant 0 : index
    %c0_47 = arith.constant 0 : index
    %43 = vector.load %arg5[%c2_44, %c1_45, %c0_46, %c0_47] : memref<3x3x128x128xbf16, #tpu.memory_space<vmem>>, vector<1x1x128x128xbf16>
    %44 = vector.shape_cast %43 : vector<1x1x128x128xbf16> to vector<128x128xbf16>
    %cst_48 = arith.constant dense<0.000000e+00> : vector<16x128xf32>
    %45 = tpu.matmul %42, %44, %cst_48 {dimension_numbers = #tpu.dot_dimension_numbers<[1], [0], [0], [1], [0, 0, 1, 1], [], []>} : vector<16x128xbf16>, vector<128x128xbf16>, vector<16x128xf32> -> vector<16x128xf32>
    %46 = arith.addf %41, %45 : vector<16x128xf32>
    %47 = vector.extract_strided_slice %6 {offsets = [2, 0], sizes = [16, 128], strides = [1, 1]} : vector<18x128xbf16> to vector<16x128xbf16>
    %c2_49 = arith.constant 2 : index
    %c2_50 = arith.constant 2 : index
    %c0_51 = arith.constant 0 : index
    %c0_52 = arith.constant 0 : index
    %48 = vector.load %arg5[%c2_49, %c2_50, %c0_51, %c0_52] : memref<3x3x128x128xbf16, #tpu.memory_space<vmem>>, vector<1x1x128x128xbf16>
    %49 = vector.shape_cast %48 : vector<1x1x128x128xbf16> to vector<128x128xbf16>
    %cst_53 = arith.constant dense<0.000000e+00> : vector<16x128xf32>
    %50 = tpu.matmul %47, %49, %cst_53 {dimension_numbers = #tpu.dot_dimension_numbers<[1], [0], [0], [1], [0, 0, 1, 1], [], []>} : vector<16x128xbf16>, vector<128x128xbf16>, vector<16x128xf32> -> vector<16x128xf32>
    %51 = arith.addf %46, %50 : vector<16x128xf32>
    %c0_54 = arith.constant 0 : index
    %c0_55 = arith.constant 0 : index
    %52 = vector.load %arg6[%c0_54, %c0_55] : memref<1x128xf32, #tpu.memory_space<vmem>>, vector<1x128xf32>
    %53 = vector.broadcast %52 : vector<1x128xf32> to vector<16x128xf32>
    %54 = arith.addf %51, %53 : vector<16x128xf32>
    %cst_56 = arith.constant 0.000000e+00 : f32
    %55 = vector.broadcast %cst_56 : f32 to vector<16x128xf32>
    %56 = arith.maximumf %54, %55 : vector<16x128xf32>
    %57 = arith.truncf %56 : vector<16x128xf32> to vector<16x128xbf16>
    %c0_57 = arith.constant 0 : index
    %c0_58 = arith.constant 0 : index
    %c0_59 = arith.constant 0 : index
    %c0_60 = arith.constant 0 : index
    %58 = vector.load %arg7[%c0_57, %c0_58, %c0_59, %c0_60] : memref<1x1x16x128xbf16, #tpu.memory_space<vmem>>, vector<1x1x16x128xbf16>
    %59 = vector.shape_cast %58 : vector<1x1x16x128xbf16> to vector<16x128xbf16>
    %60 = vector.shape_cast %57 : vector<16x128xbf16> to vector<1x1x16x128xbf16>
    tpu.vector_store %arg7[%c0_57, %c0_58, %c0_59, %c0_60], %60 {strides = array<i32>} : memref<1x1x16x128xbf16, #tpu.memory_space<vmem>>, vector<1x1x16x128xbf16>,
    return
  }
  func.func @transform_0(%arg0: i32, %arg1: i32) -> (i32, i32, i32, i32) {
    %c1_i32 = arith.constant 1 : i32
    %0 = arith.muli %arg1, %c1_i32 : i32
    %c0_i32 = arith.constant 0 : i32
    %1 = arith.addi %0, %c0_i32 : i32
    %c0_i32_0 = arith.constant 0 : i32
    %c0_i32_1 = arith.constant 0 : i32
    %c0_i32_2 = arith.constant 0 : i32
    return %arg0, %1, %c0_i32_0, %c0_i32_1 : i32, i32, i32, i32
  }
  func.func @transform_1(%arg0: i32, %arg1: i32) -> (i32, i32, i32, i32) {
    %c1_i32 = arith.constant 1 : i32
    %0 = arith.muli %arg1, %c1_i32 : i32
    %c1_i32_0 = arith.constant 1 : i32
    %1 = arith.addi %0, %c1_i32_0 : i32
    %c0_i32 = arith.constant 0 : i32
    %c0_i32_1 = arith.constant 0 : i32
    %c0_i32_2 = arith.constant 0 : i32
    return %arg0, %1, %c0_i32, %c0_i32_1 : i32, i32, i32, i32
  }
  func.func @transform_2(%arg0: i32, %arg1: i32) -> (i32, i32, i32, i32) {
    %c1_i32 = arith.constant 1 : i32
    %0 = arith.muli %arg1, %c1_i32 : i32
    %c2_i32 = arith.constant 2 : i32
    %1 = arith.addi %0, %c2_i32 : i32
    %c0_i32 = arith.constant 0 : i32
    %c0_i32_0 = arith.constant 0 : i32
    %c0_i32_1 = arith.constant 0 : i32
    return %arg0, %1, %c0_i32, %c0_i32_0 : i32, i32, i32, i32
  }
  func.func @transform_3(%arg0: i32, %arg1: i32) -> (i32, i32, i32, i32) {
    %c0_i32 = arith.constant 0 : i32
    %c0_i32_0 = arith.constant 0 : i32
    %c0_i32_1 = arith.constant 0 : i32
    %c0_i32_2 = arith.constant 0 : i32
    %c0_i32_3 = arith.constant 0 : i32
    return %c0_i32, %c0_i32_0, %c0_i32_1, %c0_i32_2 : i32, i32, i32, i32
  }
  func.func @transform_4(%arg0: i32, %arg1: i32) -> (i32, i32) {
    %c0_i32 = arith.constant 0 : i32
    %c0_i32_0 = arith.constant 0 : i32
    %c0_i32_1 = arith.constant 0 : i32
    return %c0_i32, %c0_i32_0 : i32, i32
  }
  func.func @transform_5(%arg0: i32, %arg1: i32) -> (i32, i32, i32, i32) {
    %c0_i32 = arith.constant 0 : i32
    %c0_i32_0 = arith.constant 0 : i32
    %c0_i32_1 = arith.constant 0 : i32
    return %arg0, %arg1, %c0_i32, %c0_i32_0 : i32, i32, i32, i32
  }
}

module attributes {stable_mosaic.version = 11 : i64} {
  func.func @_conv_row_s2_kernel(%arg0: i32, %arg1: i32, %arg2: memref<1x1x8x384xbf16, #tpu.memory_space<vmem>>, %arg3: memref<1x1x8x384xbf16, #tpu.memory_space<vmem>>, %arg4: memref<1x1x8x384xbf16, #tpu.memory_space<vmem>>, %arg5: memref<3x384x128xbf16, #tpu.memory_space<vmem>>, %arg6: memref<1x128xf32, #tpu.memory_space<vmem>>, %arg7: memref<1x1x8x128xbf16, #tpu.memory_space<vmem>>) attributes {dimension_semantics = [#tpu.dimension_semantics<parallel>, #tpu.dimension_semantics<parallel>], iteration_bounds = array<i64: 2, 8>, scalar_prefetch = 0 : i64, scratch_operands = 0 : i64, tpu.core_type = #tpu.core_type<tc>, window_params = [{transform_indices = @transform_0, window_bounds = array<i64: 1, 1, 8, 384>}, {transform_indices = @transform_1, window_bounds = array<i64: 1, 1, 8, 384>}, {transform_indices = @transform_2, window_bounds = array<i64: 1, 1, 8, 384>}, {pipeline_mode = #tpu.pipeline_mode<synchronous>, transform_indices = @transform_3, window_bounds = array<i64: 3, 384, 128>}, {pipeline_mode = #tpu.pipeline_mode<synchronous>, transform_indices = @transform_4, window_bounds = array<i64: 1, 128>}, {transform_indices = @transform_5, window_bounds = array<i64: 1, 1, 8, 128>}]} {
    %cst = arith.constant 0.000000e+00 : f32
    %0 = vector.broadcast %cst : f32 to vector<8x128xf32>
    %c0 = arith.constant 0 : index
    %c0_0 = arith.constant 0 : index
    %c0_1 = arith.constant 0 : index
    %c0_2 = arith.constant 0 : index
    %1 = vector.load %arg2[%c0, %c0_0, %c0_1, %c0_2] : memref<1x1x8x384xbf16, #tpu.memory_space<vmem>>, vector<1x1x8x384xbf16>
    %2 = vector.shape_cast %1 : vector<1x1x8x384xbf16> to vector<8x384xbf16>
    %c0_3 = arith.constant 0 : index
    %c0_4 = arith.constant 0 : index
    %c0_5 = arith.constant 0 : index
    %c0_6 = arith.constant 0 : index
    %3 = vector.load %arg3[%c0_3, %c0_4, %c0_5, %c0_6] : memref<1x1x8x384xbf16, #tpu.memory_space<vmem>>, vector<1x1x8x384xbf16>
    %4 = vector.shape_cast %3 : vector<1x1x8x384xbf16> to vector<8x384xbf16>
    %c0_7 = arith.constant 0 : index
    %c0_8 = arith.constant 0 : index
    %c0_9 = arith.constant 0 : index
    %c0_10 = arith.constant 0 : index
    %5 = vector.load %arg4[%c0_7, %c0_8, %c0_9, %c0_10] : memref<1x1x8x384xbf16, #tpu.memory_space<vmem>>, vector<1x1x8x384xbf16>
    %6 = vector.shape_cast %5 : vector<1x1x8x384xbf16> to vector<8x384xbf16>
    %c0_11 = arith.constant 0 : index
    %c0_12 = arith.constant 0 : index
    %c0_13 = arith.constant 0 : index
    %7 = vector.load %arg5[%c0_11, %c0_12, %c0_13] : memref<3x384x128xbf16, #tpu.memory_space<vmem>>, vector<1x384x128xbf16>
    %8 = vector.shape_cast %7 : vector<1x384x128xbf16> to vector<384x128xbf16>
    %cst_14 = arith.constant dense<0.000000e+00> : vector<8x128xf32>
    %9 = tpu.matmul %2, %8, %cst_14 {dimension_numbers = #tpu.dot_dimension_numbers<[1], [0], [0], [1], [0, 0, 1, 1], [], []>} : vector<8x384xbf16>, vector<384x128xbf16>, vector<8x128xf32> -> vector<8x128xf32>
    %10 = arith.addf %0, %9 : vector<8x128xf32>
    %c1 = arith.constant 1 : index
    %c0_15 = arith.constant 0 : index
    %c0_16 = arith.constant 0 : index
    %11 = vector.load %arg5[%c1, %c0_15, %c0_16] : memref<3x384x128xbf16, #tpu.memory_space<vmem>>, vector<1x384x128xbf16>
    %12 = vector.shape_cast %11 : vector<1x384x128xbf16> to vector<384x128xbf16>
    %cst_17 = arith.constant dense<0.000000e+00> : vector<8x128xf32>
    %13 = tpu.matmul %4, %12, %cst_17 {dimension_numbers = #tpu.dot_dimension_numbers<[1], [0], [0], [1], [0, 0, 1, 1], [], []>} : vector<8x384xbf16>, vector<384x128xbf16>, vector<8x128xf32> -> vector<8x128xf32>
    %14 = arith.addf %10, %13 : vector<8x128xf32>
    %c2 = arith.constant 2 : index
    %c0_18 = arith.constant 0 : index
    %c0_19 = arith.constant 0 : index
    %15 = vector.load %arg5[%c2, %c0_18, %c0_19] : memref<3x384x128xbf16, #tpu.memory_space<vmem>>, vector<1x384x128xbf16>
    %16 = vector.shape_cast %15 : vector<1x384x128xbf16> to vector<384x128xbf16>
    %cst_20 = arith.constant dense<0.000000e+00> : vector<8x128xf32>
    %17 = tpu.matmul %6, %16, %cst_20 {dimension_numbers = #tpu.dot_dimension_numbers<[1], [0], [0], [1], [0, 0, 1, 1], [], []>} : vector<8x384xbf16>, vector<384x128xbf16>, vector<8x128xf32> -> vector<8x128xf32>
    %18 = arith.addf %14, %17 : vector<8x128xf32>
    %c0_21 = arith.constant 0 : index
    %c0_22 = arith.constant 0 : index
    %19 = vector.load %arg6[%c0_21, %c0_22] : memref<1x128xf32, #tpu.memory_space<vmem>>, vector<1x128xf32>
    %20 = vector.broadcast %19 : vector<1x128xf32> to vector<8x128xf32>
    %21 = arith.addf %18, %20 : vector<8x128xf32>
    %cst_23 = arith.constant 0.000000e+00 : f32
    %22 = vector.broadcast %cst_23 : f32 to vector<8x128xf32>
    %23 = arith.maximumf %21, %22 : vector<8x128xf32>
    %24 = arith.truncf %23 : vector<8x128xf32> to vector<8x128xbf16>
    %c0_24 = arith.constant 0 : index
    %c0_25 = arith.constant 0 : index
    %c0_26 = arith.constant 0 : index
    %c0_27 = arith.constant 0 : index
    %25 = vector.load %arg7[%c0_24, %c0_25, %c0_26, %c0_27] : memref<1x1x8x128xbf16, #tpu.memory_space<vmem>>, vector<1x1x8x128xbf16>
    %26 = vector.shape_cast %25 : vector<1x1x8x128xbf16> to vector<8x128xbf16>
    %27 = vector.shape_cast %24 : vector<8x128xbf16> to vector<1x1x8x128xbf16>
    tpu.vector_store %arg7[%c0_24, %c0_25, %c0_26, %c0_27], %27 {strides = array<i32>} : memref<1x1x8x128xbf16, #tpu.memory_space<vmem>>, vector<1x1x8x128xbf16>,
    return
  }
  func.func @transform_0(%arg0: i32, %arg1: i32) -> (i32, i32, i32, i32) {
    %c2_i32 = arith.constant 2 : i32
    %0 = arith.muli %arg1, %c2_i32 : i32
    %c0_i32 = arith.constant 0 : i32
    %1 = arith.addi %0, %c0_i32 : i32
    %c0_i32_0 = arith.constant 0 : i32
    %c0_i32_1 = arith.constant 0 : i32
    %c0_i32_2 = arith.constant 0 : i32
    return %arg0, %1, %c0_i32_0, %c0_i32_1 : i32, i32, i32, i32
  }
  func.func @transform_1(%arg0: i32, %arg1: i32) -> (i32, i32, i32, i32) {
    %c2_i32 = arith.constant 2 : i32
    %0 = arith.muli %arg1, %c2_i32 : i32
    %c1_i32 = arith.constant 1 : i32
    %1 = arith.addi %0, %c1_i32 : i32
    %c0_i32 = arith.constant 0 : i32
    %c0_i32_0 = arith.constant 0 : i32
    %c0_i32_1 = arith.constant 0 : i32
    return %arg0, %1, %c0_i32, %c0_i32_0 : i32, i32, i32, i32
  }
  func.func @transform_2(%arg0: i32, %arg1: i32) -> (i32, i32, i32, i32) {
    %c2_i32 = arith.constant 2 : i32
    %0 = arith.muli %arg1, %c2_i32 : i32
    %c2_i32_0 = arith.constant 2 : i32
    %1 = arith.addi %0, %c2_i32_0 : i32
    %c0_i32 = arith.constant 0 : i32
    %c0_i32_1 = arith.constant 0 : i32
    %c0_i32_2 = arith.constant 0 : i32
    return %arg0, %1, %c0_i32, %c0_i32_1 : i32, i32, i32, i32
  }
  func.func @transform_3(%arg0: i32, %arg1: i32) -> (i32, i32, i32) {
    %c0_i32 = arith.constant 0 : i32
    %c0_i32_0 = arith.constant 0 : i32
    %c0_i32_1 = arith.constant 0 : i32
    %c0_i32_2 = arith.constant 0 : i32
    return %c0_i32, %c0_i32_0, %c0_i32_1 : i32, i32, i32
  }
  func.func @transform_4(%arg0: i32, %arg1: i32) -> (i32, i32) {
    %c0_i32 = arith.constant 0 : i32
    %c0_i32_0 = arith.constant 0 : i32
    %c0_i32_1 = arith.constant 0 : i32
    return %c0_i32, %c0_i32_0 : i32, i32
  }
  func.func @transform_5(%arg0: i32, %arg1: i32) -> (i32, i32, i32, i32) {
    %c0_i32 = arith.constant 0 : i32
    %c0_i32_0 = arith.constant 0 : i32
    %c0_i32_1 = arith.constant 0 : i32
    return %arg0, %arg1, %c0_i32, %c0_i32_0 : i32, i32, i32, i32
  }
}

module attributes {stable_mosaic.version = 11 : i64} {
  func.func @_conv_row_s1_kernel(%arg0: i32, %arg1: i32, %arg2: memref<1x1x10x128xbf16, #tpu.memory_space<vmem>>, %arg3: memref<1x1x10x128xbf16, #tpu.memory_space<vmem>>, %arg4: memref<1x1x10x128xbf16, #tpu.memory_space<vmem>>, %arg5: memref<3x3x128x128xbf16, #tpu.memory_space<vmem>>, %arg6: memref<1x128xf32, #tpu.memory_space<vmem>>, %arg7: memref<1x1x8x128xbf16, #tpu.memory_space<vmem>>) attributes {dimension_semantics = [#tpu.dimension_semantics<parallel>, #tpu.dimension_semantics<parallel>], iteration_bounds = array<i64: 2, 8>, scalar_prefetch = 0 : i64, scratch_operands = 0 : i64, tpu.core_type = #tpu.core_type<tc>, window_params = [{transform_indices = @transform_0, window_bounds = array<i64: 1, 1, 10, 128>}, {transform_indices = @transform_1, window_bounds = array<i64: 1, 1, 10, 128>}, {transform_indices = @transform_2, window_bounds = array<i64: 1, 1, 10, 128>}, {pipeline_mode = #tpu.pipeline_mode<synchronous>, transform_indices = @transform_3, window_bounds = array<i64: 3, 3, 128, 128>}, {pipeline_mode = #tpu.pipeline_mode<synchronous>, transform_indices = @transform_4, window_bounds = array<i64: 1, 128>}, {transform_indices = @transform_5, window_bounds = array<i64: 1, 1, 8, 128>}]} {
    %cst = arith.constant 0.000000e+00 : f32
    %0 = vector.broadcast %cst : f32 to vector<8x128xf32>
    %c0 = arith.constant 0 : index
    %c0_0 = arith.constant 0 : index
    %c0_1 = arith.constant 0 : index
    %c0_2 = arith.constant 0 : index
    %1 = vector.load %arg2[%c0, %c0_0, %c0_1, %c0_2] : memref<1x1x10x128xbf16, #tpu.memory_space<vmem>>, vector<1x1x10x128xbf16>
    %2 = vector.shape_cast %1 : vector<1x1x10x128xbf16> to vector<10x128xbf16>
    %c0_3 = arith.constant 0 : index
    %c0_4 = arith.constant 0 : index
    %c0_5 = arith.constant 0 : index
    %c0_6 = arith.constant 0 : index
    %3 = vector.load %arg3[%c0_3, %c0_4, %c0_5, %c0_6] : memref<1x1x10x128xbf16, #tpu.memory_space<vmem>>, vector<1x1x10x128xbf16>
    %4 = vector.shape_cast %3 : vector<1x1x10x128xbf16> to vector<10x128xbf16>
    %c0_7 = arith.constant 0 : index
    %c0_8 = arith.constant 0 : index
    %c0_9 = arith.constant 0 : index
    %c0_10 = arith.constant 0 : index
    %5 = vector.load %arg4[%c0_7, %c0_8, %c0_9, %c0_10] : memref<1x1x10x128xbf16, #tpu.memory_space<vmem>>, vector<1x1x10x128xbf16>
    %6 = vector.shape_cast %5 : vector<1x1x10x128xbf16> to vector<10x128xbf16>
    %7 = vector.extract_strided_slice %2 {offsets = [0, 0], sizes = [8, 128], strides = [1, 1]} : vector<10x128xbf16> to vector<8x128xbf16>
    %c0_11 = arith.constant 0 : index
    %c0_12 = arith.constant 0 : index
    %c0_13 = arith.constant 0 : index
    %c0_14 = arith.constant 0 : index
    %8 = vector.load %arg5[%c0_11, %c0_12, %c0_13, %c0_14] : memref<3x3x128x128xbf16, #tpu.memory_space<vmem>>, vector<1x1x128x128xbf16>
    %9 = vector.shape_cast %8 : vector<1x1x128x128xbf16> to vector<128x128xbf16>
    %cst_15 = arith.constant dense<0.000000e+00> : vector<8x128xf32>
    %10 = tpu.matmul %7, %9, %cst_15 {dimension_numbers = #tpu.dot_dimension_numbers<[1], [0], [0], [1], [0, 0, 1, 1], [], []>} : vector<8x128xbf16>, vector<128x128xbf16>, vector<8x128xf32> -> vector<8x128xf32>
    %11 = arith.addf %0, %10 : vector<8x128xf32>
    %12 = vector.extract_strided_slice %2 {offsets = [1, 0], sizes = [8, 128], strides = [1, 1]} : vector<10x128xbf16> to vector<8x128xbf16>
    %c0_16 = arith.constant 0 : index
    %c1 = arith.constant 1 : index
    %c0_17 = arith.constant 0 : index
    %c0_18 = arith.constant 0 : index
    %13 = vector.load %arg5[%c0_16, %c1, %c0_17, %c0_18] : memref<3x3x128x128xbf16, #tpu.memory_space<vmem>>, vector<1x1x128x128xbf16>
    %14 = vector.shape_cast %13 : vector<1x1x128x128xbf16> to vector<128x128xbf16>
    %cst_19 = arith.constant dense<0.000000e+00> : vector<8x128xf32>
    %15 = tpu.matmul %12, %14, %cst_19 {dimension_numbers = #tpu.dot_dimension_numbers<[1], [0], [0], [1], [0, 0, 1, 1], [], []>} : vector<8x128xbf16>, vector<128x128xbf16>, vector<8x128xf32> -> vector<8x128xf32>
    %16 = arith.addf %11, %15 : vector<8x128xf32>
    %17 = vector.extract_strided_slice %2 {offsets = [2, 0], sizes = [8, 128], strides = [1, 1]} : vector<10x128xbf16> to vector<8x128xbf16>
    %c0_20 = arith.constant 0 : index
    %c2 = arith.constant 2 : index
    %c0_21 = arith.constant 0 : index
    %c0_22 = arith.constant 0 : index
    %18 = vector.load %arg5[%c0_20, %c2, %c0_21, %c0_22] : memref<3x3x128x128xbf16, #tpu.memory_space<vmem>>, vector<1x1x128x128xbf16>
    %19 = vector.shape_cast %18 : vector<1x1x128x128xbf16> to vector<128x128xbf16>
    %cst_23 = arith.constant dense<0.000000e+00> : vector<8x128xf32>
    %20 = tpu.matmul %17, %19, %cst_23 {dimension_numbers = #tpu.dot_dimension_numbers<[1], [0], [0], [1], [0, 0, 1, 1], [], []>} : vector<8x128xbf16>, vector<128x128xbf16>, vector<8x128xf32> -> vector<8x128xf32>
    %21 = arith.addf %16, %20 : vector<8x128xf32>
    %22 = vector.extract_strided_slice %4 {offsets = [0, 0], sizes = [8, 128], strides = [1, 1]} : vector<10x128xbf16> to vector<8x128xbf16>
    %c1_24 = arith.constant 1 : index
    %c0_25 = arith.constant 0 : index
    %c0_26 = arith.constant 0 : index
    %c0_27 = arith.constant 0 : index
    %23 = vector.load %arg5[%c1_24, %c0_25, %c0_26, %c0_27] : memref<3x3x128x128xbf16, #tpu.memory_space<vmem>>, vector<1x1x128x128xbf16>
    %24 = vector.shape_cast %23 : vector<1x1x128x128xbf16> to vector<128x128xbf16>
    %cst_28 = arith.constant dense<0.000000e+00> : vector<8x128xf32>
    %25 = tpu.matmul %22, %24, %cst_28 {dimension_numbers = #tpu.dot_dimension_numbers<[1], [0], [0], [1], [0, 0, 1, 1], [], []>} : vector<8x128xbf16>, vector<128x128xbf16>, vector<8x128xf32> -> vector<8x128xf32>
    %26 = arith.addf %21, %25 : vector<8x128xf32>
    %27 = vector.extract_strided_slice %4 {offsets = [1, 0], sizes = [8, 128], strides = [1, 1]} : vector<10x128xbf16> to vector<8x128xbf16>
    %c1_29 = arith.constant 1 : index
    %c1_30 = arith.constant 1 : index
    %c0_31 = arith.constant 0 : index
    %c0_32 = arith.constant 0 : index
    %28 = vector.load %arg5[%c1_29, %c1_30, %c0_31, %c0_32] : memref<3x3x128x128xbf16, #tpu.memory_space<vmem>>, vector<1x1x128x128xbf16>
    %29 = vector.shape_cast %28 : vector<1x1x128x128xbf16> to vector<128x128xbf16>
    %cst_33 = arith.constant dense<0.000000e+00> : vector<8x128xf32>
    %30 = tpu.matmul %27, %29, %cst_33 {dimension_numbers = #tpu.dot_dimension_numbers<[1], [0], [0], [1], [0, 0, 1, 1], [], []>} : vector<8x128xbf16>, vector<128x128xbf16>, vector<8x128xf32> -> vector<8x128xf32>
    %31 = arith.addf %26, %30 : vector<8x128xf32>
    %32 = vector.extract_strided_slice %4 {offsets = [2, 0], sizes = [8, 128], strides = [1, 1]} : vector<10x128xbf16> to vector<8x128xbf16>
    %c1_34 = arith.constant 1 : index
    %c2_35 = arith.constant 2 : index
    %c0_36 = arith.constant 0 : index
    %c0_37 = arith.constant 0 : index
    %33 = vector.load %arg5[%c1_34, %c2_35, %c0_36, %c0_37] : memref<3x3x128x128xbf16, #tpu.memory_space<vmem>>, vector<1x1x128x128xbf16>
    %34 = vector.shape_cast %33 : vector<1x1x128x128xbf16> to vector<128x128xbf16>
    %cst_38 = arith.constant dense<0.000000e+00> : vector<8x128xf32>
    %35 = tpu.matmul %32, %34, %cst_38 {dimension_numbers = #tpu.dot_dimension_numbers<[1], [0], [0], [1], [0, 0, 1, 1], [], []>} : vector<8x128xbf16>, vector<128x128xbf16>, vector<8x128xf32> -> vector<8x128xf32>
    %36 = arith.addf %31, %35 : vector<8x128xf32>
    %37 = vector.extract_strided_slice %6 {offsets = [0, 0], sizes = [8, 128], strides = [1, 1]} : vector<10x128xbf16> to vector<8x128xbf16>
    %c2_39 = arith.constant 2 : index
    %c0_40 = arith.constant 0 : index
    %c0_41 = arith.constant 0 : index
    %c0_42 = arith.constant 0 : index
    %38 = vector.load %arg5[%c2_39, %c0_40, %c0_41, %c0_42] : memref<3x3x128x128xbf16, #tpu.memory_space<vmem>>, vector<1x1x128x128xbf16>
    %39 = vector.shape_cast %38 : vector<1x1x128x128xbf16> to vector<128x128xbf16>
    %cst_43 = arith.constant dense<0.000000e+00> : vector<8x128xf32>
    %40 = tpu.matmul %37, %39, %cst_43 {dimension_numbers = #tpu.dot_dimension_numbers<[1], [0], [0], [1], [0, 0, 1, 1], [], []>} : vector<8x128xbf16>, vector<128x128xbf16>, vector<8x128xf32> -> vector<8x128xf32>
    %41 = arith.addf %36, %40 : vector<8x128xf32>
    %42 = vector.extract_strided_slice %6 {offsets = [1, 0], sizes = [8, 128], strides = [1, 1]} : vector<10x128xbf16> to vector<8x128xbf16>
    %c2_44 = arith.constant 2 : index
    %c1_45 = arith.constant 1 : index
    %c0_46 = arith.constant 0 : index
    %c0_47 = arith.constant 0 : index
    %43 = vector.load %arg5[%c2_44, %c1_45, %c0_46, %c0_47] : memref<3x3x128x128xbf16, #tpu.memory_space<vmem>>, vector<1x1x128x128xbf16>
    %44 = vector.shape_cast %43 : vector<1x1x128x128xbf16> to vector<128x128xbf16>
    %cst_48 = arith.constant dense<0.000000e+00> : vector<8x128xf32>
    %45 = tpu.matmul %42, %44, %cst_48 {dimension_numbers = #tpu.dot_dimension_numbers<[1], [0], [0], [1], [0, 0, 1, 1], [], []>} : vector<8x128xbf16>, vector<128x128xbf16>, vector<8x128xf32> -> vector<8x128xf32>
    %46 = arith.addf %41, %45 : vector<8x128xf32>
    %47 = vector.extract_strided_slice %6 {offsets = [2, 0], sizes = [8, 128], strides = [1, 1]} : vector<10x128xbf16> to vector<8x128xbf16>
    %c2_49 = arith.constant 2 : index
    %c2_50 = arith.constant 2 : index
    %c0_51 = arith.constant 0 : index
    %c0_52 = arith.constant 0 : index
    %48 = vector.load %arg5[%c2_49, %c2_50, %c0_51, %c0_52] : memref<3x3x128x128xbf16, #tpu.memory_space<vmem>>, vector<1x1x128x128xbf16>
    %49 = vector.shape_cast %48 : vector<1x1x128x128xbf16> to vector<128x128xbf16>
    %cst_53 = arith.constant dense<0.000000e+00> : vector<8x128xf32>
    %50 = tpu.matmul %47, %49, %cst_53 {dimension_numbers = #tpu.dot_dimension_numbers<[1], [0], [0], [1], [0, 0, 1, 1], [], []>} : vector<8x128xbf16>, vector<128x128xbf16>, vector<8x128xf32> -> vector<8x128xf32>
    %51 = arith.addf %46, %50 : vector<8x128xf32>
    %c0_54 = arith.constant 0 : index
    %c0_55 = arith.constant 0 : index
    %52 = vector.load %arg6[%c0_54, %c0_55] : memref<1x128xf32, #tpu.memory_space<vmem>>, vector<1x128xf32>
    %53 = vector.broadcast %52 : vector<1x128xf32> to vector<8x128xf32>
    %54 = arith.addf %51, %53 : vector<8x128xf32>
    %cst_56 = arith.constant 0.000000e+00 : f32
    %55 = vector.broadcast %cst_56 : f32 to vector<8x128xf32>
    %56 = arith.maximumf %54, %55 : vector<8x128xf32>
    %57 = arith.truncf %56 : vector<8x128xf32> to vector<8x128xbf16>
    %c0_57 = arith.constant 0 : index
    %c0_58 = arith.constant 0 : index
    %c0_59 = arith.constant 0 : index
    %c0_60 = arith.constant 0 : index
    %58 = vector.load %arg7[%c0_57, %c0_58, %c0_59, %c0_60] : memref<1x1x8x128xbf16, #tpu.memory_space<vmem>>, vector<1x1x8x128xbf16>
    %59 = vector.shape_cast %58 : vector<1x1x8x128xbf16> to vector<8x128xbf16>
    %60 = vector.shape_cast %57 : vector<8x128xbf16> to vector<1x1x8x128xbf16>
    tpu.vector_store %arg7[%c0_57, %c0_58, %c0_59, %c0_60], %60 {strides = array<i32>} : memref<1x1x8x128xbf16, #tpu.memory_space<vmem>>, vector<1x1x8x128xbf16>,
    return
  }
  func.func @transform_0(%arg0: i32, %arg1: i32) -> (i32, i32, i32, i32) {
    %c1_i32 = arith.constant 1 : i32
    %0 = arith.muli %arg1, %c1_i32 : i32
    %c0_i32 = arith.constant 0 : i32
    %1 = arith.addi %0, %c0_i32 : i32
    %c0_i32_0 = arith.constant 0 : i32
    %c0_i32_1 = arith.constant 0 : i32
    %c0_i32_2 = arith.constant 0 : i32
    return %arg0, %1, %c0_i32_0, %c0_i32_1 : i32, i32, i32, i32
  }
  func.func @transform_1(%arg0: i32, %arg1: i32) -> (i32, i32, i32, i32) {
    %c1_i32 = arith.constant 1 : i32
    %0 = arith.muli %arg1, %c1_i32 : i32
    %c1_i32_0 = arith.constant 1 : i32
    %1 = arith.addi %0, %c1_i32_0 : i32
    %c0_i32 = arith.constant 0 : i32
    %c0_i32_1 = arith.constant 0 : i32
    %c0_i32_2 = arith.constant 0 : i32
    return %arg0, %1, %c0_i32, %c0_i32_1 : i32, i32, i32, i32
  }
  func.func @transform_2(%arg0: i32, %arg1: i32) -> (i32, i32, i32, i32) {
    %c1_i32 = arith.constant 1 : i32
    %0 = arith.muli %arg1, %c1_i32 : i32
    %c2_i32 = arith.constant 2 : i32
    %1 = arith.addi %0, %c2_i32 : i32
    %c0_i32 = arith.constant 0 : i32
    %c0_i32_0 = arith.constant 0 : i32
    %c0_i32_1 = arith.constant 0 : i32
    return %arg0, %1, %c0_i32, %c0_i32_0 : i32, i32, i32, i32
  }
  func.func @transform_3(%arg0: i32, %arg1: i32) -> (i32, i32, i32, i32) {
    %c0_i32 = arith.constant 0 : i32
    %c0_i32_0 = arith.constant 0 : i32
    %c0_i32_1 = arith.constant 0 : i32
    %c0_i32_2 = arith.constant 0 : i32
    %c0_i32_3 = arith.constant 0 : i32
    return %c0_i32, %c0_i32_0, %c0_i32_1, %c0_i32_2 : i32, i32, i32, i32
  }
  func.func @transform_4(%arg0: i32, %arg1: i32) -> (i32, i32) {
    %c0_i32 = arith.constant 0 : i32
    %c0_i32_0 = arith.constant 0 : i32
    %c0_i32_1 = arith.constant 0 : i32
    return %c0_i32, %c0_i32_0 : i32, i32
  }
  func.func @transform_5(%arg0: i32, %arg1: i32) -> (i32, i32, i32, i32) {
    %c0_i32 = arith.constant 0 : i32
    %c0_i32_0 = arith.constant 0 : i32
    %c0_i32_1 = arith.constant 0 : i32
    return %arg0, %arg1, %c0_i32, %c0_i32_0 : i32, i32, i32, i32
  }
}

module attributes {stable_mosaic.version = 11 : i64} {
  func.func @_conv_row_s2_kernel(%arg0: i32, %arg1: i32, %arg2: memref<1x1x4x384xbf16, #tpu.memory_space<vmem>>, %arg3: memref<1x1x4x384xbf16, #tpu.memory_space<vmem>>, %arg4: memref<1x1x4x384xbf16, #tpu.memory_space<vmem>>, %arg5: memref<3x384x128xbf16, #tpu.memory_space<vmem>>, %arg6: memref<1x128xf32, #tpu.memory_space<vmem>>, %arg7: memref<1x1x4x128xbf16, #tpu.memory_space<vmem>>) attributes {dimension_semantics = [#tpu.dimension_semantics<parallel>, #tpu.dimension_semantics<parallel>], iteration_bounds = array<i64: 2, 4>, scalar_prefetch = 0 : i64, scratch_operands = 0 : i64, tpu.core_type = #tpu.core_type<tc>, window_params = [{transform_indices = @transform_0, window_bounds = array<i64: 1, 1, 4, 384>}, {transform_indices = @transform_1, window_bounds = array<i64: 1, 1, 4, 384>}, {transform_indices = @transform_2, window_bounds = array<i64: 1, 1, 4, 384>}, {pipeline_mode = #tpu.pipeline_mode<synchronous>, transform_indices = @transform_3, window_bounds = array<i64: 3, 384, 128>}, {pipeline_mode = #tpu.pipeline_mode<synchronous>, transform_indices = @transform_4, window_bounds = array<i64: 1, 128>}, {transform_indices = @transform_5, window_bounds = array<i64: 1, 1, 4, 128>}]} {
    %cst = arith.constant 0.000000e+00 : f32
    %0 = vector.broadcast %cst : f32 to vector<4x128xf32>
    %c0 = arith.constant 0 : index
    %c0_0 = arith.constant 0 : index
    %c0_1 = arith.constant 0 : index
    %c0_2 = arith.constant 0 : index
    %1 = vector.load %arg2[%c0, %c0_0, %c0_1, %c0_2] : memref<1x1x4x384xbf16, #tpu.memory_space<vmem>>, vector<1x1x4x384xbf16>
    %2 = vector.shape_cast %1 : vector<1x1x4x384xbf16> to vector<4x384xbf16>
    %c0_3 = arith.constant 0 : index
    %c0_4 = arith.constant 0 : index
    %c0_5 = arith.constant 0 : index
    %c0_6 = arith.constant 0 : index
    %3 = vector.load %arg3[%c0_3, %c0_4, %c0_5, %c0_6] : memref<1x1x4x384xbf16, #tpu.memory_space<vmem>>, vector<1x1x4x384xbf16>
    %4 = vector.shape_cast %3 : vector<1x1x4x384xbf16> to vector<4x384xbf16>
    %c0_7 = arith.constant 0 : index
    %c0_8 = arith.constant 0 : index
    %c0_9 = arith.constant 0 : index
    %c0_10 = arith.constant 0 : index
    %5 = vector.load %arg4[%c0_7, %c0_8, %c0_9, %c0_10] : memref<1x1x4x384xbf16, #tpu.memory_space<vmem>>, vector<1x1x4x384xbf16>
    %6 = vector.shape_cast %5 : vector<1x1x4x384xbf16> to vector<4x384xbf16>
    %c0_11 = arith.constant 0 : index
    %c0_12 = arith.constant 0 : index
    %c0_13 = arith.constant 0 : index
    %7 = vector.load %arg5[%c0_11, %c0_12, %c0_13] : memref<3x384x128xbf16, #tpu.memory_space<vmem>>, vector<1x384x128xbf16>
    %8 = vector.shape_cast %7 : vector<1x384x128xbf16> to vector<384x128xbf16>
    %cst_14 = arith.constant dense<0.000000e+00> : vector<4x128xf32>
    %9 = tpu.matmul %2, %8, %cst_14 {dimension_numbers = #tpu.dot_dimension_numbers<[1], [0], [0], [1], [0, 0, 1, 1], [], []>} : vector<4x384xbf16>, vector<384x128xbf16>, vector<4x128xf32> -> vector<4x128xf32>
    %10 = arith.addf %0, %9 : vector<4x128xf32>
    %c1 = arith.constant 1 : index
    %c0_15 = arith.constant 0 : index
    %c0_16 = arith.constant 0 : index
    %11 = vector.load %arg5[%c1, %c0_15, %c0_16] : memref<3x384x128xbf16, #tpu.memory_space<vmem>>, vector<1x384x128xbf16>
    %12 = vector.shape_cast %11 : vector<1x384x128xbf16> to vector<384x128xbf16>
    %cst_17 = arith.constant dense<0.000000e+00> : vector<4x128xf32>
    %13 = tpu.matmul %4, %12, %cst_17 {dimension_numbers = #tpu.dot_dimension_numbers<[1], [0], [0], [1], [0, 0, 1, 1], [], []>} : vector<4x384xbf16>, vector<384x128xbf16>, vector<4x128xf32> -> vector<4x128xf32>
    %14 = arith.addf %10, %13 : vector<4x128xf32>
    %c2 = arith.constant 2 : index
    %c0_18 = arith.constant 0 : index
    %c0_19 = arith.constant 0 : index
    %15 = vector.load %arg5[%c2, %c0_18, %c0_19] : memref<3x384x128xbf16, #tpu.memory_space<vmem>>, vector<1x384x128xbf16>
    %16 = vector.shape_cast %15 : vector<1x384x128xbf16> to vector<384x128xbf16>
    %cst_20 = arith.constant dense<0.000000e+00> : vector<4x128xf32>
    %17 = tpu.matmul %6, %16, %cst_20 {dimension_numbers = #tpu.dot_dimension_numbers<[1], [0], [0], [1], [0, 0, 1, 1], [], []>} : vector<4x384xbf16>, vector<384x128xbf16>, vector<4x128xf32> -> vector<4x128xf32>
    %18 = arith.addf %14, %17 : vector<4x128xf32>
    %c0_21 = arith.constant 0 : index
    %c0_22 = arith.constant 0 : index
    %19 = vector.load %arg6[%c0_21, %c0_22] : memref<1x128xf32, #tpu.memory_space<vmem>>, vector<1x128xf32>
    %20 = vector.broadcast %19 : vector<1x128xf32> to vector<4x128xf32>
    %21 = arith.addf %18, %20 : vector<4x128xf32>
    %cst_23 = arith.constant 0.000000e+00 : f32
    %22 = vector.broadcast %cst_23 : f32 to vector<4x128xf32>
    %23 = arith.maximumf %21, %22 : vector<4x128xf32>
    %24 = arith.truncf %23 : vector<4x128xf32> to vector<4x128xbf16>
    %c0_24 = arith.constant 0 : index
    %c0_25 = arith.constant 0 : index
    %c0_26 = arith.constant 0 : index
    %c0_27 = arith.constant 0 : index
    %25 = vector.load %arg7[%c0_24, %c0_25, %c0_26, %c0_27] : memref<1x1x4x128xbf16, #tpu.memory_space<vmem>>, vector<1x1x4x128xbf16>
    %26 = vector.shape_cast %25 : vector<1x1x4x128xbf16> to vector<4x128xbf16>
    %27 = vector.shape_cast %24 : vector<4x128xbf16> to vector<1x1x4x128xbf16>
    tpu.vector_store %arg7[%c0_24, %c0_25, %c0_26, %c0_27], %27 {strides = array<i32>} : memref<1x1x4x128xbf16, #tpu.memory_space<vmem>>, vector<1x1x4x128xbf16>,
    return
  }
  func.func @transform_0(%arg0: i32, %arg1: i32) -> (i32, i32, i32, i32) {
    %c2_i32 = arith.constant 2 : i32
    %0 = arith.muli %arg1, %c2_i32 : i32
    %c0_i32 = arith.constant 0 : i32
    %1 = arith.addi %0, %c0_i32 : i32
    %c0_i32_0 = arith.constant 0 : i32
    %c0_i32_1 = arith.constant 0 : i32
    %c0_i32_2 = arith.constant 0 : i32
    return %arg0, %1, %c0_i32_0, %c0_i32_1 : i32, i32, i32, i32
  }
  func.func @transform_1(%arg0: i32, %arg1: i32) -> (i32, i32, i32, i32) {
    %c2_i32 = arith.constant 2 : i32
    %0 = arith.muli %arg1, %c2_i32 : i32
    %c1_i32 = arith.constant 1 : i32
    %1 = arith.addi %0, %c1_i32 : i32
    %c0_i32 = arith.constant 0 : i32
    %c0_i32_0 = arith.constant 0 : i32
    %c0_i32_1 = arith.constant 0 : i32
    return %arg0, %1, %c0_i32, %c0_i32_0 : i32, i32, i32, i32
  }
  func.func @transform_2(%arg0: i32, %arg1: i32) -> (i32, i32, i32, i32) {
    %c2_i32 = arith.constant 2 : i32
    %0 = arith.muli %arg1, %c2_i32 : i32
    %c2_i32_0 = arith.constant 2 : i32
    %1 = arith.addi %0, %c2_i32_0 : i32
    %c0_i32 = arith.constant 0 : i32
    %c0_i32_1 = arith.constant 0 : i32
    %c0_i32_2 = arith.constant 0 : i32
    return %arg0, %1, %c0_i32, %c0_i32_1 : i32, i32, i32, i32
  }
  func.func @transform_3(%arg0: i32, %arg1: i32) -> (i32, i32, i32) {
    %c0_i32 = arith.constant 0 : i32
    %c0_i32_0 = arith.constant 0 : i32
    %c0_i32_1 = arith.constant 0 : i32
    %c0_i32_2 = arith.constant 0 : i32
    return %c0_i32, %c0_i32_0, %c0_i32_1 : i32, i32, i32
  }
  func.func @transform_4(%arg0: i32, %arg1: i32) -> (i32, i32) {
    %c0_i32 = arith.constant 0 : i32
    %c0_i32_0 = arith.constant 0 : i32
    %c0_i32_1 = arith.constant 0 : i32
    return %c0_i32, %c0_i32_0 : i32, i32
  }
  func.func @transform_5(%arg0: i32, %arg1: i32) -> (i32, i32, i32, i32) {
    %c0_i32 = arith.constant 0 : i32
    %c0_i32_0 = arith.constant 0 : i32
    %c0_i32_1 = arith.constant 0 : i32
    return %arg0, %arg1, %c0_i32, %c0_i32_0 : i32, i32, i32, i32
  }
}

module attributes {stable_mosaic.version = 11 : i64} {
  func.func @_conv_row_s1_kernel(%arg0: i32, %arg1: i32, %arg2: memref<1x1x6x128xbf16, #tpu.memory_space<vmem>>, %arg3: memref<1x1x6x128xbf16, #tpu.memory_space<vmem>>, %arg4: memref<1x1x6x128xbf16, #tpu.memory_space<vmem>>, %arg5: memref<3x3x128x128xbf16, #tpu.memory_space<vmem>>, %arg6: memref<1x128xf32, #tpu.memory_space<vmem>>, %arg7: memref<1x1x4x128xbf16, #tpu.memory_space<vmem>>) attributes {dimension_semantics = [#tpu.dimension_semantics<parallel>, #tpu.dimension_semantics<parallel>], iteration_bounds = array<i64: 2, 4>, scalar_prefetch = 0 : i64, scratch_operands = 0 : i64, tpu.core_type = #tpu.core_type<tc>, window_params = [{transform_indices = @transform_0, window_bounds = array<i64: 1, 1, 6, 128>}, {transform_indices = @transform_1, window_bounds = array<i64: 1, 1, 6, 128>}, {transform_indices = @transform_2, window_bounds = array<i64: 1, 1, 6, 128>}, {pipeline_mode = #tpu.pipeline_mode<synchronous>, transform_indices = @transform_3, window_bounds = array<i64: 3, 3, 128, 128>}, {pipeline_mode = #tpu.pipeline_mode<synchronous>, transform_indices = @transform_4, window_bounds = array<i64: 1, 128>}, {transform_indices = @transform_5, window_bounds = array<i64: 1, 1, 4, 128>}]} {
    %cst = arith.constant 0.000000e+00 : f32
    %0 = vector.broadcast %cst : f32 to vector<4x128xf32>
    %c0 = arith.constant 0 : index
    %c0_0 = arith.constant 0 : index
    %c0_1 = arith.constant 0 : index
    %c0_2 = arith.constant 0 : index
    %1 = vector.load %arg2[%c0, %c0_0, %c0_1, %c0_2] : memref<1x1x6x128xbf16, #tpu.memory_space<vmem>>, vector<1x1x6x128xbf16>
    %2 = vector.shape_cast %1 : vector<1x1x6x128xbf16> to vector<6x128xbf16>
    %c0_3 = arith.constant 0 : index
    %c0_4 = arith.constant 0 : index
    %c0_5 = arith.constant 0 : index
    %c0_6 = arith.constant 0 : index
    %3 = vector.load %arg3[%c0_3, %c0_4, %c0_5, %c0_6] : memref<1x1x6x128xbf16, #tpu.memory_space<vmem>>, vector<1x1x6x128xbf16>
    %4 = vector.shape_cast %3 : vector<1x1x6x128xbf16> to vector<6x128xbf16>
    %c0_7 = arith.constant 0 : index
    %c0_8 = arith.constant 0 : index
    %c0_9 = arith.constant 0 : index
    %c0_10 = arith.constant 0 : index
    %5 = vector.load %arg4[%c0_7, %c0_8, %c0_9, %c0_10] : memref<1x1x6x128xbf16, #tpu.memory_space<vmem>>, vector<1x1x6x128xbf16>
    %6 = vector.shape_cast %5 : vector<1x1x6x128xbf16> to vector<6x128xbf16>
    %7 = vector.extract_strided_slice %2 {offsets = [0, 0], sizes = [4, 128], strides = [1, 1]} : vector<6x128xbf16> to vector<4x128xbf16>
    %c0_11 = arith.constant 0 : index
    %c0_12 = arith.constant 0 : index
    %c0_13 = arith.constant 0 : index
    %c0_14 = arith.constant 0 : index
    %8 = vector.load %arg5[%c0_11, %c0_12, %c0_13, %c0_14] : memref<3x3x128x128xbf16, #tpu.memory_space<vmem>>, vector<1x1x128x128xbf16>
    %9 = vector.shape_cast %8 : vector<1x1x128x128xbf16> to vector<128x128xbf16>
    %cst_15 = arith.constant dense<0.000000e+00> : vector<4x128xf32>
    %10 = tpu.matmul %7, %9, %cst_15 {dimension_numbers = #tpu.dot_dimension_numbers<[1], [0], [0], [1], [0, 0, 1, 1], [], []>} : vector<4x128xbf16>, vector<128x128xbf16>, vector<4x128xf32> -> vector<4x128xf32>
    %11 = arith.addf %0, %10 : vector<4x128xf32>
    %12 = vector.extract_strided_slice %2 {offsets = [1, 0], sizes = [4, 128], strides = [1, 1]} : vector<6x128xbf16> to vector<4x128xbf16>
    %c0_16 = arith.constant 0 : index
    %c1 = arith.constant 1 : index
    %c0_17 = arith.constant 0 : index
    %c0_18 = arith.constant 0 : index
    %13 = vector.load %arg5[%c0_16, %c1, %c0_17, %c0_18] : memref<3x3x128x128xbf16, #tpu.memory_space<vmem>>, vector<1x1x128x128xbf16>
    %14 = vector.shape_cast %13 : vector<1x1x128x128xbf16> to vector<128x128xbf16>
    %cst_19 = arith.constant dense<0.000000e+00> : vector<4x128xf32>
    %15 = tpu.matmul %12, %14, %cst_19 {dimension_numbers = #tpu.dot_dimension_numbers<[1], [0], [0], [1], [0, 0, 1, 1], [], []>} : vector<4x128xbf16>, vector<128x128xbf16>, vector<4x128xf32> -> vector<4x128xf32>
    %16 = arith.addf %11, %15 : vector<4x128xf32>
    %17 = vector.extract_strided_slice %2 {offsets = [2, 0], sizes = [4, 128], strides = [1, 1]} : vector<6x128xbf16> to vector<4x128xbf16>
    %c0_20 = arith.constant 0 : index
    %c2 = arith.constant 2 : index
    %c0_21 = arith.constant 0 : index
    %c0_22 = arith.constant 0 : index
    %18 = vector.load %arg5[%c0_20, %c2, %c0_21, %c0_22] : memref<3x3x128x128xbf16, #tpu.memory_space<vmem>>, vector<1x1x128x128xbf16>
    %19 = vector.shape_cast %18 : vector<1x1x128x128xbf16> to vector<128x128xbf16>
    %cst_23 = arith.constant dense<0.000000e+00> : vector<4x128xf32>
    %20 = tpu.matmul %17, %19, %cst_23 {dimension_numbers = #tpu.dot_dimension_numbers<[1], [0], [0], [1], [0, 0, 1, 1], [], []>} : vector<4x128xbf16>, vector<128x128xbf16>, vector<4x128xf32> -> vector<4x128xf32>
    %21 = arith.addf %16, %20 : vector<4x128xf32>
    %22 = vector.extract_strided_slice %4 {offsets = [0, 0], sizes = [4, 128], strides = [1, 1]} : vector<6x128xbf16> to vector<4x128xbf16>
    %c1_24 = arith.constant 1 : index
    %c0_25 = arith.constant 0 : index
    %c0_26 = arith.constant 0 : index
    %c0_27 = arith.constant 0 : index
    %23 = vector.load %arg5[%c1_24, %c0_25, %c0_26, %c0_27] : memref<3x3x128x128xbf16, #tpu.memory_space<vmem>>, vector<1x1x128x128xbf16>
    %24 = vector.shape_cast %23 : vector<1x1x128x128xbf16> to vector<128x128xbf16>
    %cst_28 = arith.constant dense<0.000000e+00> : vector<4x128xf32>
    %25 = tpu.matmul %22, %24, %cst_28 {dimension_numbers = #tpu.dot_dimension_numbers<[1], [0], [0], [1], [0, 0, 1, 1], [], []>} : vector<4x128xbf16>, vector<128x128xbf16>, vector<4x128xf32> -> vector<4x128xf32>
    %26 = arith.addf %21, %25 : vector<4x128xf32>
    %27 = vector.extract_strided_slice %4 {offsets = [1, 0], sizes = [4, 128], strides = [1, 1]} : vector<6x128xbf16> to vector<4x128xbf16>
    %c1_29 = arith.constant 1 : index
    %c1_30 = arith.constant 1 : index
    %c0_31 = arith.constant 0 : index
    %c0_32 = arith.constant 0 : index
    %28 = vector.load %arg5[%c1_29, %c1_30, %c0_31, %c0_32] : memref<3x3x128x128xbf16, #tpu.memory_space<vmem>>, vector<1x1x128x128xbf16>
    %29 = vector.shape_cast %28 : vector<1x1x128x128xbf16> to vector<128x128xbf16>
    %cst_33 = arith.constant dense<0.000000e+00> : vector<4x128xf32>
    %30 = tpu.matmul %27, %29, %cst_33 {dimension_numbers = #tpu.dot_dimension_numbers<[1], [0], [0], [1], [0, 0, 1, 1], [], []>} : vector<4x128xbf16>, vector<128x128xbf16>, vector<4x128xf32> -> vector<4x128xf32>
    %31 = arith.addf %26, %30 : vector<4x128xf32>
    %32 = vector.extract_strided_slice %4 {offsets = [2, 0], sizes = [4, 128], strides = [1, 1]} : vector<6x128xbf16> to vector<4x128xbf16>
    %c1_34 = arith.constant 1 : index
    %c2_35 = arith.constant 2 : index
    %c0_36 = arith.constant 0 : index
    %c0_37 = arith.constant 0 : index
    %33 = vector.load %arg5[%c1_34, %c2_35, %c0_36, %c0_37] : memref<3x3x128x128xbf16, #tpu.memory_space<vmem>>, vector<1x1x128x128xbf16>
    %34 = vector.shape_cast %33 : vector<1x1x128x128xbf16> to vector<128x128xbf16>
    %cst_38 = arith.constant dense<0.000000e+00> : vector<4x128xf32>
    %35 = tpu.matmul %32, %34, %cst_38 {dimension_numbers = #tpu.dot_dimension_numbers<[1], [0], [0], [1], [0, 0, 1, 1], [], []>} : vector<4x128xbf16>, vector<128x128xbf16>, vector<4x128xf32> -> vector<4x128xf32>
    %36 = arith.addf %31, %35 : vector<4x128xf32>
    %37 = vector.extract_strided_slice %6 {offsets = [0, 0], sizes = [4, 128], strides = [1, 1]} : vector<6x128xbf16> to vector<4x128xbf16>
    %c2_39 = arith.constant 2 : index
    %c0_40 = arith.constant 0 : index
    %c0_41 = arith.constant 0 : index
    %c0_42 = arith.constant 0 : index
    %38 = vector.load %arg5[%c2_39, %c0_40, %c0_41, %c0_42] : memref<3x3x128x128xbf16, #tpu.memory_space<vmem>>, vector<1x1x128x128xbf16>
    %39 = vector.shape_cast %38 : vector<1x1x128x128xbf16> to vector<128x128xbf16>
    %cst_43 = arith.constant dense<0.000000e+00> : vector<4x128xf32>
    %40 = tpu.matmul %37, %39, %cst_43 {dimension_numbers = #tpu.dot_dimension_numbers<[1], [0], [0], [1], [0, 0, 1, 1], [], []>} : vector<4x128xbf16>, vector<128x128xbf16>, vector<4x128xf32> -> vector<4x128xf32>
    %41 = arith.addf %36, %40 : vector<4x128xf32>
    %42 = vector.extract_strided_slice %6 {offsets = [1, 0], sizes = [4, 128], strides = [1, 1]} : vector<6x128xbf16> to vector<4x128xbf16>
    %c2_44 = arith.constant 2 : index
    %c1_45 = arith.constant 1 : index
    %c0_46 = arith.constant 0 : index
    %c0_47 = arith.constant 0 : index
    %43 = vector.load %arg5[%c2_44, %c1_45, %c0_46, %c0_47] : memref<3x3x128x128xbf16, #tpu.memory_space<vmem>>, vector<1x1x128x128xbf16>
    %44 = vector.shape_cast %43 : vector<1x1x128x128xbf16> to vector<128x128xbf16>
    %cst_48 = arith.constant dense<0.000000e+00> : vector<4x128xf32>
    %45 = tpu.matmul %42, %44, %cst_48 {dimension_numbers = #tpu.dot_dimension_numbers<[1], [0], [0], [1], [0, 0, 1, 1], [], []>} : vector<4x128xbf16>, vector<128x128xbf16>, vector<4x128xf32> -> vector<4x128xf32>
    %46 = arith.addf %41, %45 : vector<4x128xf32>
    %47 = vector.extract_strided_slice %6 {offsets = [2, 0], sizes = [4, 128], strides = [1, 1]} : vector<6x128xbf16> to vector<4x128xbf16>
    %c2_49 = arith.constant 2 : index
    %c2_50 = arith.constant 2 : index
    %c0_51 = arith.constant 0 : index
    %c0_52 = arith.constant 0 : index
    %48 = vector.load %arg5[%c2_49, %c2_50, %c0_51, %c0_52] : memref<3x3x128x128xbf16, #tpu.memory_space<vmem>>, vector<1x1x128x128xbf16>
    %49 = vector.shape_cast %48 : vector<1x1x128x128xbf16> to vector<128x128xbf16>
    %cst_53 = arith.constant dense<0.000000e+00> : vector<4x128xf32>
    %50 = tpu.matmul %47, %49, %cst_53 {dimension_numbers = #tpu.dot_dimension_numbers<[1], [0], [0], [1], [0, 0, 1, 1], [], []>} : vector<4x128xbf16>, vector<128x128xbf16>, vector<4x128xf32> -> vector<4x128xf32>
    %51 = arith.addf %46, %50 : vector<4x128xf32>
    %c0_54 = arith.constant 0 : index
    %c0_55 = arith.constant 0 : index
    %52 = vector.load %arg6[%c0_54, %c0_55] : memref<1x128xf32, #tpu.memory_space<vmem>>, vector<1x128xf32>
    %53 = vector.broadcast %52 : vector<1x128xf32> to vector<4x128xf32>
    %54 = arith.addf %51, %53 : vector<4x128xf32>
    %cst_56 = arith.constant 0.000000e+00 : f32
    %55 = vector.broadcast %cst_56 : f32 to vector<4x128xf32>
    %56 = arith.maximumf %54, %55 : vector<4x128xf32>
    %57 = arith.truncf %56 : vector<4x128xf32> to vector<4x128xbf16>
    %c0_57 = arith.constant 0 : index
    %c0_58 = arith.constant 0 : index
    %c0_59 = arith.constant 0 : index
    %c0_60 = arith.constant 0 : index
    %58 = vector.load %arg7[%c0_57, %c0_58, %c0_59, %c0_60] : memref<1x1x4x128xbf16, #tpu.memory_space<vmem>>, vector<1x1x4x128xbf16>
    %59 = vector.shape_cast %58 : vector<1x1x4x128xbf16> to vector<4x128xbf16>
    %60 = vector.shape_cast %57 : vector<4x128xbf16> to vector<1x1x4x128xbf16>
    tpu.vector_store %arg7[%c0_57, %c0_58, %c0_59, %c0_60], %60 {strides = array<i32>} : memref<1x1x4x128xbf16, #tpu.memory_space<vmem>>, vector<1x1x4x128xbf16>,
    return
  }
  func.func @transform_0(%arg0: i32, %arg1: i32) -> (i32, i32, i32, i32) {
    %c1_i32 = arith.constant 1 : i32
    %0 = arith.muli %arg1, %c1_i32 : i32
    %c0_i32 = arith.constant 0 : i32
    %1 = arith.addi %0, %c0_i32 : i32
    %c0_i32_0 = arith.constant 0 : i32
    %c0_i32_1 = arith.constant 0 : i32
    %c0_i32_2 = arith.constant 0 : i32
    return %arg0, %1, %c0_i32_0, %c0_i32_1 : i32, i32, i32, i32
  }
  func.func @transform_1(%arg0: i32, %arg1: i32) -> (i32, i32, i32, i32) {
    %c1_i32 = arith.constant 1 : i32
    %0 = arith.muli %arg1, %c1_i32 : i32
    %c1_i32_0 = arith.constant 1 : i32
    %1 = arith.addi %0, %c1_i32_0 : i32
    %c0_i32 = arith.constant 0 : i32
    %c0_i32_1 = arith.constant 0 : i32
    %c0_i32_2 = arith.constant 0 : i32
    return %arg0, %1, %c0_i32, %c0_i32_1 : i32, i32, i32, i32
  }
  func.func @transform_2(%arg0: i32, %arg1: i32) -> (i32, i32, i32, i32) {
    %c1_i32 = arith.constant 1 : i32
    %0 = arith.muli %arg1, %c1_i32 : i32
    %c2_i32 = arith.constant 2 : i32
    %1 = arith.addi %0, %c2_i32 : i32
    %c0_i32 = arith.constant 0 : i32
    %c0_i32_0 = arith.constant 0 : i32
    %c0_i32_1 = arith.constant 0 : i32
    return %arg0, %1, %c0_i32, %c0_i32_0 : i32, i32, i32, i32
  }
  func.func @transform_3(%arg0: i32, %arg1: i32) -> (i32, i32, i32, i32) {
    %c0_i32 = arith.constant 0 : i32
    %c0_i32_0 = arith.constant 0 : i32
    %c0_i32_1 = arith.constant 0 : i32
    %c0_i32_2 = arith.constant 0 : i32
    %c0_i32_3 = arith.constant 0 : i32
    return %c0_i32, %c0_i32_0, %c0_i32_1, %c0_i32_2 : i32, i32, i32, i32
  }
  func.func @transform_4(%arg0: i32, %arg1: i32) -> (i32, i32) {
    %c0_i32 = arith.constant 0 : i32
    %c0_i32_0 = arith.constant 0 : i32
    %c0_i32_1 = arith.constant 0 : i32
    return %c0_i32, %c0_i32_0 : i32, i32
  }
  func.func @transform_5(%arg0: i32, %arg1: i32) -> (i32, i32, i32, i32) {
    %c0_i32 = arith.constant 0 : i32
    %c0_i32_0 = arith.constant 0 : i32
    %c0_i32_1 = arith.constant 0 : i32
    return %arg0, %arg1, %c0_i32, %c0_i32_0 : i32, i32, i32, i32
  }
}

</mosaic_0001>

<llo_original>
// kernel: _encoder_forward_impl.11
$region0: #{_encoder_forward_impl.11}
  #allocation0 [shape = 'u32[]', space=smem, size = 0x4, offset = 0x4, fixed_abs, tag = 'smem constant byte address 0x4 - core index']
  #allocation1 [shape = 'u32[144,128]{1,0:T(1,128)}', space=vmem, size = 0x12000, scoped, tag = 'internal scratch']
  %s0 = inlined_call_operand.vmem [shape: bf16[2,18,18,128], index: 0, kind: input, shape index: {}, may-alias: {0,1,2}]
  %s1 = inlined_call_operand.vmem [shape: bf16[2,18,18,128], index: 1, kind: input, shape index: {}, may-alias: {0,1,2}]
  %s2 = inlined_call_operand.vmem [shape: bf16[2,18,18,128], index: 2, kind: input, shape index: {}, may-alias: {0,1,2}]
  %s3 = inlined_call_operand.vmem [shape: bf16[3,3,128,128], index: 3, kind: input, shape index: {}]
  %s4 = inlined_call_operand.vmem [shape: f32[1,128], index: 4, kind: input, shape index: {}]
  %s5 = inlined_call_operand.vmem [shape: bf16[2,16,16,128], index: 5, kind: output, shape index: {}]
  %s6 = sld [smem:[#allocation0]]
  $region53: #{_encoder_forward_impl.11} parent=0
    _
  %s8 = ssub.s32 1, %s6
  %s9 = scalar_select 0, %s8, %s6
  loop: start=0, step=1, limit=34
  $region2: #{_encoder_forward_impl.11} parent=0 // loop_pre_header
    _
  $region3: #{_encoder_forward_impl.11} parent=0 // loop_header
    %s11 = sphi 0, %s15
    %p12 = scmp.ge.s32.totalorder %s11, 34
    %s18 = sphi 0, %s30
    %s19 = sphi 0, %s26
    %s20 = sphi 0, %s18
    %s21 = sphi 0, %s19
    %s22 = sphi 0, %s20
    %s23 = sphi 0, %s21
    %s35 = sphi 0, %s37
    %s38 = sphi 0, %s35
    %s39 = sphi 0, %s38
    %s55 = sphi 0, %s39
    %s65 = sphi 0, %s67
    %s68 = sphi 0, %s65
    %s69 = sphi 0, %s68
    %s85 = sphi 0, %s69
    %s95 = sphi 0, %s97
    %s98 = sphi 0, %s95
    %s99 = sphi 0, %s98
    %s115 = sphi 0, %s99
    %s119 = sphi 0, %s119
    %s121 = sphi 0, %s119
    %s122 = sphi 0, %s121
    %s136 = sphi 0, %s122
    %s140 = sphi 0, %s140
    %s142 = sphi 0, %s140
    %s143 = sphi 0, %s142
    %s157 = sphi 0, %s143
    %s165 = sphi 0, %s167
    %s168 = sphi 0, %s165
    %s169 = sphi 0, %s168
    %s185 = sphi 0, %s169
  $region4: #{_encoder_forward_impl.11} parent=0 // loop_header_branch
    %14 = sbr.rel (%p12) target = $region8
  $region5: #{_encoder_forward_impl.11} parent=0 // loop_body
    %s16 = ssub.s32 %s11, 1
    %s17 = ssub.s32 %s11, 2
    %s24 = sadd.s32 1, %s19
    %p25 = scmp.ge.s32.totalorder %s24, 16
    %s26 = scalar_select %p25, 0, %s24
    %s27 = sadd.s32 1, %s18
    %s28 = scalar_select %p25, %s27, %s18
    %p29 = scmp.ge.s32.totalorder %s28, 2
    %s30 = scalar_select %p29, 0, %s28
    %s31 = ssub.s32 %s18, %s30
    %s32 = ssub.s32 %s19, %s26
    %s33 = sor.u32 %s31, %s32
    %p34 = scmp.eq.s32.totalorder %s33, 0
    %s36 = sadd.s32 %s35, 1
    %s37 = scalar_select %p34, %s35, %s36
    %p40 = pneg %p34
    %p41 = scmp.eq.s32.totalorder %s11, 31
    %p42 = por %p40, %p41
    %p43 = scmp.ne.s32.totalorder %s35, %s38
    %p44 = scmp.eq.s32.totalorder %s11, 0
    %p45 = por %p43, %p44
    %p46 = scmp.ne.s32.totalorder %s35, %s38
    %p47 = scmp.eq.s32.totalorder %s16, 31
    %p48 = por %p46, %p47
    %p49 = scmp.ne.s32.totalorder %s38, %s39
    %p50 = scmp.eq.s32.totalorder %s16, 0
    %p51 = por %p49, %p50
    %p52 = scmp.ne.s32.totalorder %s38, %s39
    %p53 = scmp.eq.s32.totalorder %s17, 31
    %p54 = por %p52, %p53
    %p56 = scmp.ne.s32.totalorder %s39, %s55
    %p57 = scmp.eq.s32.totalorder %s17, 0
    %p58 = por %p56, %p57
    %s59 = sadd.s32 %s19, 1
    %s60 = sadd.s32 %s26, 1
    %s61 = ssub.s32 %s18, %s30
    %s62 = ssub.s32 %s59, %s60
    %s63 = sor.u32 %s61, %s62
    %p64 = scmp.eq.s32.totalorder %s63, 0
    %s66 = sadd.s32 %s65, 1
    %s67 = scalar_select %p64, %s65, %s66
    %p70 = pneg %p64
    %p71 = scmp.eq.s32.totalorder %s11, 31
    %p72 = por %p70, %p71
    %p73 = scmp.ne.s32.totalorder %s65, %s68
    %p74 = scmp.eq.s32.totalorder %s11, 0
    %p75 = por %p73, %p74
    %p76 = scmp.ne.s32.totalorder %s65, %s68
    %p77 = scmp.eq.s32.totalorder %s16, 31
    %p78 = por %p76, %p77
    %p79 = scmp.ne.s32.totalorder %s68, %s69
    %p80 = scmp.eq.s32.totalorder %s16, 0
    %p81 = por %p79, %p80
    %p82 = scmp.ne.s32.totalorder %s68, %s69
    %p83 = scmp.eq.s32.totalorder %s17, 31
    %p84 = por %p82, %p83
    %p86 = scmp.ne.s32.totalorder %s69, %s85
    %p87 = scmp.eq.s32.totalorder %s17, 0
    %p88 = por %p86, %p87
    %s89 = sadd.s32 %s19, 2
    %s90 = sadd.s32 %s26, 2
    %s91 = ssub.s32 %s18, %s30
    %s92 = ssub.s32 %s89, %s90
    %s93 = sor.u32 %s91, %s92
    %p94 = scmp.eq.s32.totalorder %s93, 0
    %s96 = sadd.s32 %s95, 1
    %s97 = scalar_select %p94, %s95, %s96
    %p100 = pneg %p94
    %p101 = scmp.eq.s32.totalorder %s11, 31
    %p102 = por %p100, %p101
    %p103 = scmp.ne.s32.totalorder %s95, %s98
    %p104 = scmp.eq.s32.totalorder %s11, 0
    %p105 = por %p103, %p104
    %p106 = scmp.ne.s32.totalorder %s95, %s98
    %p107 = scmp.eq.s32.totalorder %s16, 31
    %p108 = por %p106, %p107
    %p109 = scmp.ne.s32.totalorder %s98, %s99
    %p110 = scmp.eq.s32.totalorder %s16, 0
    %p111 = por %p109, %p110
    %p112 = scmp.ne.s32.totalorder %s98, %s99
    %p113 = scmp.eq.s32.totalorder %s17, 31
    %p114 = por %p112, %p113
    %p116 = scmp.ne.s32.totalorder %s99, %s115
    %p117 = scmp.eq.s32.totalorder %s17, 0
    %p118 = por %p116, %p117
    %s120 = sadd.s32 %s119, 1
    %p123 = scmp.eq.s32.totalorder %s11, 31
    %p124 = scmp.ne.s32.totalorder %s119, %s121
    %p125 = scmp.eq.s32.totalorder %s11, 0
    %p126 = por %p124, %p125
    %p127 = scmp.ne.s32.totalorder %s119, %s121
    %p128 = scmp.eq.s32.totalorder %s16, 31
    %p129 = por %p127, %p128
    %p130 = scmp.ne.s32.totalorder %s121, %s122
    %p131 = scmp.eq.s32.totalorder %s16, 0
    %p132 = por %p130, %p131
    %p133 = scmp.ne.s32.totalorder %s121, %s122
    %p134 = scmp.eq.s32.totalorder %s17, 31
    %p135 = por %p133, %p134
    %p137 = scmp.ne.s32.totalorder %s122, %s136
    %p138 = scmp.eq.s32.totalorder %s17, 0
    %p139 = por %p137, %p138
    %s141 = sadd.s32 %s140, 1
    %p144 = scmp.eq.s32.totalorder %s11, 31
    %p145 = scmp.ne.s32.totalorder %s140, %s142
    %p146 = scmp.eq.s32.totalorder %s11, 0
    %p147 = por %p145, %p146
    %p148 = scmp.ne.s32.totalorder %s140, %s142
    %p149 = scmp.eq.s32.totalorder %s16, 31
    %p150 = por %p148, %p149
    %p151 = scmp.ne.s32.totalorder %s142, %s143
    %p152 = scmp.eq.s32.totalorder %s16, 0
    %p153 = por %p151, %p152
    %p154 = scmp.ne.s32.totalorder %s142, %s143
    %p155 = scmp.eq.s32.totalorder %s17, 31
    %p156 = por %p154, %p155
    %p158 = scmp.ne.s32.totalorder %s143, %s157
    %p159 = scmp.eq.s32.totalorder %s17, 0
    %p160 = por %p158, %p159
    %s161 = ssub.s32 %s18, %s30
    %s162 = ssub.s32 %s19, %s26
    %s163 = sor.u32 %s161, %s162
    %p164 = scmp.eq.s32.totalorder %s163, 0
    %s166 = sadd.s32 %s165, 1
    %s167 = scalar_select %p164, %s165, %s166
    %p170 = pneg %p164
    %p171 = scmp.eq.s32.totalorder %s11, 31
    %p172 = por %p170, %p171
    %p173 = scmp.ne.s32.totalorder %s165, %s168
    %p174 = scmp.eq.s32.totalorder %s11, 0
    %p175 = por %p173, %p174
    %p176 = scmp.ne.s32.totalorder %s165, %s168
    %p177 = scmp.eq.s32.totalorder %s16, 31
    %p178 = por %p176, %p177
    %p179 = scmp.ne.s32.totalorder %s168, %s169
    %p180 = scmp.eq.s32.totalorder %s16, 0
    %p181 = por %p179, %p180
    %p182 = scmp.ne.s32.totalorder %s168, %s169
    %p183 = scmp.eq.s32.totalorder %s17, 31
    %p184 = por %p182, %p183
    %p186 = scmp.ne.s32.totalorder %s169, %s185
    %p187 = scmp.eq.s32.totalorder %s17, 0
    %p188 = por %p186, %p187
    %p189 = scmp.le.s32.totalorder 1, %s11
    %p190 = scmp.lt.s32.totalorder %s11, 33
    %p191 = pnand %p189, %p190
    %p192 = pneg %p191
    // Predicated region
    $region9: #{_encoder_forward_impl.11} parent=5 // pred_check
      _
    $region10: #{_encoder_forward_impl.11} parent=5 // pred_check_branch
      %194 = sbr.rel (%p191) target = $region12
    $region11: #{_encoder_forward_impl.11} parent=5 // pred_region
      %s195 = ssub.s32 %s11, 1
      // Predicated region
      $region13: #{_encoder_forward_impl.11} parent=11 // pred_check
        %p196 = pneg %p132
      $region14: #{_encoder_forward_impl.11} parent=11 // pred_check_branch
        %198 = sbr.rel (%p196) target = $region16
      $region15: #{_encoder_forward_impl.11} parent=11 // pred_region
        _
      $region16: #{_encoder_forward_impl.11} parent=11 // pred_fallthru
        _
      // Predicated region
      $region17: #{_encoder_forward_impl.11} parent=11 // pred_check
        %p199 = pneg %p153
      $region18: #{_encoder_forward_impl.11} parent=11 // pred_check_branch
        %201 = sbr.rel (%p199) target = $region20
      $region19: #{_encoder_forward_impl.11} parent=11 // pred_region
        _
      $region20: #{_encoder_forward_impl.11} parent=11 // pred_fallthru
        _
    $region12: #{_encoder_forward_impl.11} parent=5 // pred_fallthru
      _
    %p202 = scmp.lt.s32.totalorder %s11, 32
    // Predicated region
    $region21: #{_encoder_forward_impl.11} parent=5 // pred_check
      %p203 = pneg %p202
    $region22: #{_encoder_forward_impl.11} parent=5 // pred_check_branch
      %205 = sbr.rel (%p203) target = $region24
    $region23: #{_encoder_forward_impl.11} parent=5 // pred_region
      // Predicated region
      $region25: #{_encoder_forward_impl.11} parent=23 // pred_check
        %p206 = pneg %p45
      $region26: #{_encoder_forward_impl.11} parent=23 // pred_check_branch
        %208 = sbr.rel (%p206) target = $region28
      $region27: #{_encoder_forward_impl.11} parent=23 // pred_region
        %p209 = scmp.lt.s32.totalorder %s18, 1
        %s210 = scalar_select %p209, %s18, 1
        %p211 = scmp.lt.s32.totalorder %s19, 17
        %s212 = scalar_select %p211, %s19, 17
        %s213 = smul.addr %s212, 3
        %s214 = smul.addr %s210, 54
        %s215 = sadd.s32 %s213, %s214
        %s216 = smul.addr %s215, 4
        %s217 = scalar_lea.vmem %s0, %s216
      $region28: #{_encoder_forward_impl.11} parent=23 // pred_fallthru
        _
      // Predicated region
      $region29: #{_encoder_forward_impl.11} parent=23 // pred_check
        %p218 = pneg %p75
      $region30: #{_encoder_forward_impl.11} parent=23 // pred_check_branch
        %220 = sbr.rel (%p218) target = $region32
      $region31: #{_encoder_forward_impl.11} parent=23 // pred_region
        %s221 = sadd.s32 %s19, 1
        %p222 = scmp.lt.s32.totalorder %s18, 1
        %s223 = scalar_select %p222, %s18, 1
        %p224 = scmp.lt.s32.totalorder %s221, 17
        %s225 = scalar_select %p224, %s221, 17
        %s226 = smul.addr %s225, 3
        %s227 = smul.addr %s223, 54
        %s228 = sadd.s32 %s226, %s227
        %s229 = smul.addr %s228, 4
        %s230 = scalar_lea.vmem %s1, %s229
        %s231 = sadd.s32 %s19, 1
      $region32: #{_encoder_forward_impl.11} parent=23 // pred_fallthru
        _
      // Predicated region
      $region33: #{_encoder_forward_impl.11} parent=23 // pred_check
        %p232 = pneg %p105
      $region34: #{_encoder_forward_impl.11} parent=23 // pred_check_branch
        %234 = sbr.rel (%p232) target = $region36
      $region35: #{_encoder_forward_impl.11} parent=23 // pred_region
        %s235 = sadd.s32 %s19, 2
        %p236 = scmp.lt.s32.totalorder %s18, 1
        %s237 = scalar_select %p236, %s18, 1
        %p238 = scmp.lt.s32.totalorder %s235, 17
        %s239 = scalar_select %p238, %s235, 17
        %s240 = smul.addr %s239, 3
        %s241 = smul.addr %s237, 54
        %s242 = sadd.s32 %s240, %s241
        %s243 = smul.addr %s242, 4
        %s244 = scalar_lea.vmem %s2, %s243
        %s245 = sadd.s32 %s19, 2
      $region36: #{_encoder_forward_impl.11} parent=23 // pred_fallthru
        _
    $region24: #{_encoder_forward_impl.11} parent=5 // pred_fallthru
      _
    %p246 = scmp.le.s32.totalorder 1, %s11
    %p247 = scmp.lt.s32.totalorder %s11, 33
    %p248 = pnand %p246, %p247
    %p249 = pneg %p248
    // Predicated region
    $region37: #{_encoder_forward_impl.11} parent=5 // pred_check
      _
    $region38: #{_encoder_forward_impl.11} parent=5 // pred_check_branch
      %251 = sbr.rel (%p248) target = $region40
    $region39: #{_encoder_forward_impl.11} parent=5 // pred_region
      %s252 = ssub.s32 %s11, 1
      %p253 = scmp.lt.s32.totalorder %s20, 1
      %s254 = scalar_select %p253, %s20, 1
      %p255 = scmp.lt.s32.totalorder %s21, 17
      %s256 = scalar_select %p255, %s21, 17
      %s257 = smul.addr %s256, 3
      %s258 = smul.addr %s254, 54
      %s259 = sadd.s32 %s257, %s258
      %s260 = smul.addr %s259, 4
      %s261 = scalar_lea.vmem %s0, %s260
      %p262 = pneg %p51
      %p263 = pneg %p48
      %s264 = sadd.s32 %s21, 1
      %p265 = scmp.lt.s32.totalorder %s20, 1
      %s266 = scalar_select %p265, %s20, 1
      %p267 = scmp.lt.s32.totalorder %s264, 17
      %s268 = scalar_select %p267, %s264, 17
      %s269 = smul.addr %s268, 3
      %s270 = smul.addr %s266, 54
      %s271 = sadd.s32 %s269, %s270
      %s272 = smul.addr %s271, 4
      %s273 = scalar_lea.vmem %s1, %s272
      %p274 = pneg %p81
      %p275 = pneg %p78
      %s276 = sadd.s32 %s21, 2
      %p277 = scmp.lt.s32.totalorder %s20, 1
      %s278 = scalar_select %p277, %s20, 1
      %p279 = scmp.lt.s32.totalorder %s276, 17
      %s280 = scalar_select %p279, %s276, 17
      %s281 = smul.addr %s280, 3
      %s282 = smul.addr %s278, 54
      %s283 = sadd.s32 %s281, %s282
      %s284 = smul.addr %s283, 4
      %s285 = scalar_lea.vmem %s2, %s284
      %p286 = pneg %p111
      %p287 = pneg %p108
      %p288 = pneg %p132
      %p289 = pneg %p129
      %p290 = pneg %p153
      %p291 = pneg %p150
      %p292 = pneg %p181
      %p293 = pneg %p178
      %p294 = scmp.lt.s32.totalorder %s20, 1
      %s295 = scalar_select %p294, %s20, 1
      %p296 = scmp.lt.s32.totalorder %s21, 15
      %s297 = scalar_select %p296, %s21, 15
      %s298 = smul.addr %s297, 2
      %s299 = smul.addr %s295, 32
      %s300 = sadd.s32 %s298, %s299
      %s301 = smul.addr %s300, 4
      %s302 = scalar_lea.vmem %s5, %s301
      %p303 = scmp.lt.s32.totalorder %s20, 1
      %s304 = scalar_select %p303, %s20, 1
      %p305 = scmp.lt.s32.totalorder %s21, 17
      %s306 = scalar_select %p305, %s21, 17
      %s307 = smul.addr %s306, 3
      %s308 = smul.addr %s304, 54
      %s309 = sadd.s32 %s307, %s308
      %s310 = smul.addr %s309, 4
      %s311 = scalar_lea.vmem %s0, %s310
      %s312 = sadd.s32 %s21, 1
      %p313 = scmp.lt.s32.totalorder %s20, 1
      %s314 = scalar_select %p313, %s20, 1
      %p315 = scmp.lt.s32.totalorder %s312, 17
      %s316 = scalar_select %p315, %s312, 17
      %s317 = smul.addr %s316, 3
      %s318 = smul.addr %s314, 54
      %s319 = sadd.s32 %s317, %s318
      %s320 = smul.addr %s319, 4
      %s321 = scalar_lea.vmem %s1, %s320
      %s322 = sadd.s32 %s21, 1
      %s323 = sadd.s32 %s21, 2
      %p324 = scmp.lt.s32.totalorder %s20, 1
      %s325 = scalar_select %p324, %s20, 1
      %p326 = scmp.lt.s32.totalorder %s323, 17
      %s327 = scalar_select %p326, %s323, 17
      %s328 = smul.addr %s327, 3
      %s329 = smul.addr %s325, 54
      %s330 = sadd.s32 %s328, %s329
      %s331 = smul.addr %s330, 4
      %s332 = scalar_lea.vmem %s2, %s331
      %s333 = sadd.s32 %s21, 2
      %p334 = scmp.lt.s32.totalorder %s20, 1
      %s335 = scalar_select %p334, %s20, 1
      %p336 = scmp.lt.s32.totalorder %s21, 15
      %s337 = scalar_select %p336, %s21, 15
      %s338 = smul.addr %s337, 2
      %s339 = smul.addr %s335, 32
      %s340 = sadd.s32 %s338, %s339
      %s341 = smul.addr %s340, 4
      %s342 = scalar_lea.vmem %s5, %s341
      %v344 = vld [vmem:[%s311] sm:$0xf]
      %v345 = vld [vmem:[%s311 + $0x4] sm:$0xf]
      %v346 = vld [vmem:[%s311 + $0x8] sm:$0x1]
      %v347 = vld [vmem:[%s321] sm:$0xf]
      %v348 = vld [vmem:[%s321 + $0x4] sm:$0xf]
      %v349 = vld [vmem:[%s321 + $0x8] sm:$0x1]
      %v350 = vld [vmem:[%s332] sm:$0xf]
      %v351 = vld [vmem:[%s332 + $0x4] sm:$0xf]
      %v352 = vld [vmem:[%s332 + $0x8] sm:$0x1]
      %v353 = vld [vmem:[%s3] sm:$0xf]
      %v354 = vld [vmem:[%s3 + $0x4] sm:$0xf]
      %v355 = vld [vmem:[%s3 + $0x8] sm:$0xf]
      %v356 = vld [vmem:[%s3 + $0xc] sm:$0xf]
      %v357 = vld [vmem:[%s3 + $0x10] sm:$0xf]
      %v358 = vld [vmem:[%s3 + $0x14] sm:$0xf]
      %v359 = vld [vmem:[%s3 + $0x18] sm:$0xf]
      %v360 = vld [vmem:[%s3 + $0x1c] sm:$0xf]
      %v361 = vld [vmem:[%s3 + $0x20] sm:$0xf]
      %v362 = vld [vmem:[%s3 + $0x24] sm:$0xf]
      %v363 = vld [vmem:[%s3 + $0x28] sm:$0xf]
      %v364 = vld [vmem:[%s3 + $0x2c] sm:$0xf]
      %v365 = vld [vmem:[%s3 + $0x30] sm:$0xf]
      %v366 = vld [vmem:[%s3 + $0x34] sm:$0xf]
      %v367 = vld [vmem:[%s3 + $0x38] sm:$0xf]
      %v368 = vld [vmem:[%s3 + $0x3c] sm:$0xf]
      %s369 = scalar_lea.vmem %s3, 64
      %v370 = vld [vmem:[%s369] sm:$0xf]
      %v371 = vld [vmem:[%s369 + $0x4] sm:$0xf]
      %v372 = vld [vmem:[%s369 + $0x8] sm:$0xf]
      %v373 = vld [vmem:[%s369 + $0xc] sm:$0xf]
      %v374 = vld [vmem:[%s369 + $0x10] sm:$0xf]
      %v375 = vld [vmem:[%s369 + $0x14] sm:$0xf]
      %v376 = vld [vmem:[%s369 + $0x18] sm:$0xf]
      %v377 = vld [vmem:[%s369 + $0x1c] sm:$0xf]
      %v378 = vld [vmem:[%s369 + $0x20] sm:$0xf]
      %v379 = vld [vmem:[%s369 + $0x24] sm:$0xf]
      %v380 = vld [vmem:[%s369 + $0x28] sm:$0xf]
      %v381 = vld [vmem:[%s369 + $0x2c] sm:$0xf]
      %v382 = vld [vmem:[%s369 + $0x30] sm:$0xf]
      %v383 = vld [vmem:[%s369 + $0x34] sm:$0xf]
      %v384 = vld [vmem:[%s369 + $0x38] sm:$0xf]
      %v385 = vld [vmem:[%s369 + $0x3c] sm:$0xf]
      %v389 = vunpack.c.l.b16 %v344
      %v390 = vunpack.c.l.b16 %v345
      %v391 = vunpack.c.l.b16 %v346
      %v392 = vpack.c.b16 %v390, %v389
      %v393 = vpack.c.b16 %v391, %v391
      %vm394 = vsmask.f32 7424
      %v396 = vshrl.u32 %v392, 16
      %v398 = vshll.u32 %v392, 16
      %v400 = vrot.slane %v398, 1
      %v401 = vor.u32 %v396, %v400
      %v403 = vshll.u32 %v393, 16
      %v405 = vrot.slane %v403, 1
      %v406 = vsel %vm394, %v401, %v405
      %v424 = vunpack.c.l.b16 %v370
      %v425 = vunpack.c.l.b16 %v371
      %v426 = vunpack.c.l.b16 %v372
      %v427 = vunpack.c.l.b16 %v373
      %v428 = vunpack.c.l.b16 %v374
      %v429 = vunpack.c.l.b16 %v375
      %v430 = vunpack.c.l.b16 %v376
      %v431 = vunpack.c.l.b16 %v377
      %v432 = vunpack.c.l.b16 %v378
      %v433 = vunpack.c.l.b16 %v379
      %v434 = vunpack.c.l.b16 %v380
      %v435 = vunpack.c.l.b16 %v381
      %v436 = vunpack.c.l.b16 %v382
      %v437 = vunpack.c.l.b16 %v383
      %v438 = vunpack.c.l.b16 %v384
      %v439 = vunpack.c.l.b16 %v385
      %v440 = vpack.c.b16 %v425, %v424
      %v441 = vpack.c.b16 %v427, %v426
      %v442 = vpack.c.b16 %v429, %v428
      %v443 = vpack.c.b16 %v431, %v430
      %v444 = vpack.c.b16 %v433, %v432
      %v445 = vpack.c.b16 %v435, %v434
      %v446 = vpack.c.b16 %v437, %v436
      %v447 = vpack.c.b16 %v439, %v438
      %456 = vmatprep.subr.bf16.mxu0 0
      %457 = vmatpush1.bf16.msra.mxu0 %v440
      %458 = vmatprep.subr.bf16.mxu0 0
      %459 = vmatpush1.bf16.msra.mxu0 %v441
      %460 = vmatprep.subr.bf16.mxu0 0
      %461 = vmatpush1.bf16.msra.mxu0 %v442
      %462 = vmatprep.subr.bf16.mxu0 0
      %463 = vmatpush1.bf16.msra.mxu0 %v443
      %464 = vmatprep.subr.bf16.mxu0 0
      %465 = vmatpush1.bf16.msra.mxu0 %v444
      %466 = vmatprep.subr.bf16.mxu0 0
      %467 = vmatpush1.bf16.msra.mxu0 %v445
      %468 = vmatprep.subr.bf16.mxu0 0
      %469 = vmatpush1.bf16.msra.mxu0 %v446
      %470 = vmatprep.subr.bf16.mxu0 0
      %471 = vmatpush1.bf16.msra.mxu0 %v447
      %472 = vmatprep.subr.bf16.mxu0 0
      %473 = vmatpush1.bf16.msra.mxu0 0
      %474 = vmatprep.subr.bf16.mxu0 0
      %475 = vmatpush1.bf16.msra.mxu0 0
      %476 = vmatprep.subr.bf16.mxu0 0
      %477 = vmatpush1.bf16.msra.mxu0 0
      %478 = vmatprep.subr.bf16.mxu0 0
      %479 = vmatpush1.bf16.msra.mxu0 0
      %480 = vmatprep.subr.bf16.mxu0 0
      %481 = vmatpush1.bf16.msra.mxu0 0
      %482 = vmatprep.subr.bf16.mxu0 0
      %483 = vmatpush1.bf16.msra.mxu0 0
      %484 = vmatprep.subr.bf16.mxu0 0
      %485 = vmatpush1.bf16.msra.mxu0 0
      %486 = vmatprep.subr.bf16.mxu0 0
      %487 = vmatpush1.bf16.msra.mxu0 0
      %488 = vmatprep.mubr.bf16.mxu0 0
      %489 = vmatmul.mubr.bf16.gmra.mrb[0].mxu0 %v406
      %v490 = vpop.f32.mrb[0].mxu0
      %v491 = vadd.f32 0.0, %v490
      %v492 = vpop.f32.mrb[0].mxu0
      %v493 = vpop.f32.mrb[0].mxu0
      %v494 = vadd.f32 0.0, %v493
      %v495 = vpop.f32.mrb[0].mxu0
      %496 = vdwg.mxu0
      %v514 = vunpack.c.l.b16 %v353
      %v515 = vunpack.c.l.b16 %v354
      %v516 = vunpack.c.l.b16 %v355
      %v517 = vunpack.c.l.b16 %v356
      %v518 = vunpack.c.l.b16 %v357
      %v519 = vunpack.c.l.b16 %v358
      %v520 = vunpack.c.l.b16 %v359
      %v521 = vunpack.c.l.b16 %v360
      %v522 = vunpack.c.l.b16 %v361
      %v523 = vunpack.c.l.b16 %v362
      %v524 = vunpack.c.l.b16 %v363
      %v525 = vunpack.c.l.b16 %v364
      %v526 = vunpack.c.l.b16 %v365
      %v527 = vunpack.c.l.b16 %v366
      %v528 = vunpack.c.l.b16 %v367
      %v529 = vunpack.c.l.b16 %v368
      %v530 = vpack.c.b16 %v515, %v514
      %v531 = vpack.c.b16 %v517, %v516
      %v532 = vpack.c.b16 %v519, %v518
      %v533 = vpack.c.b16 %v521, %v520
      %v534 = vpack.c.b16 %v523, %v522
      %v535 = vpack.c.b16 %v525, %v524
      %v536 = vpack.c.b16 %v527, %v526
      %v537 = vpack.c.b16 %v529, %v528
      %546 = vmatprep.subr.bf16.mxu0 0
      %547 = vmatpush1.bf16.msra.mxu0 %v530
      %548 = vmatprep.subr.bf16.mxu0 0
      %549 = vmatpush1.bf16.msra.mxu0 %v531
      %550 = vmatprep.subr.bf16.mxu0 0
      %551 = vmatpush1.bf16.msra.mxu0 %v532
      %552 = vmatprep.subr.bf16.mxu0 0
      %553 = vmatpush1.bf16.msra.mxu0 %v533
      %554 = vmatprep.subr.bf16.mxu0 0
      %555 = vmatpush1.bf16.msra.mxu0 %v534
      %556 = vmatprep.subr.bf16.mxu0 0
      %557 = vmatpush1.bf16.msra.mxu0 %v535
      %558 = vmatprep.subr.bf16.mxu0 0
      %559 = vmatpush1.bf16.msra.mxu0 %v536
      %560 = vmatprep.subr.bf16.mxu0 0
      %561 = vmatpush1.bf16.msra.mxu0 %v537
      %562 = vmatprep.subr.bf16.mxu0 0
      %563 = vmatpush1.bf16.msra.mxu0 0
      %564 = vmatprep.subr.bf16.mxu0 0
      %565 = vmatpush1.bf16.msra.mxu0 0
      %566 = vmatprep.subr.bf16.mxu0 0
      %567 = vmatpush1.bf16.msra.mxu0 0
      %568 = vmatprep.subr.bf16.mxu0 0
      %569 = vmatpush1.bf16.msra.mxu0 0
      %570 = vmatprep.subr.bf16.mxu0 0
      %571 = vmatpush1.bf16.msra.mxu0 0
      %572 = vmatprep.subr.bf16.mxu0 0
      %573 = vmatpush1.bf16.msra.mxu0 0
      %574 = vmatprep.subr.bf16.mxu0 0
      %575 = vmatpush1.bf16.msra.mxu0 0
      %576 = vmatprep.subr.bf16.mxu0 0
      %577 = vmatpush1.bf16.msra.mxu0 0
      %578 = vmatprep.mubr.bf16.mxu0 0
      %579 = vmatmul.mubr.bf16.gmra.mrb[0].mxu0 %v392
      %v580 = vpop.f32.mrb[0].mxu0
      %v581 = vadd.f32 %v491, %v580
      %v582 = vpop.f32.mrb[0].mxu0
      %v583 = vpop.f32.mrb[0].mxu0
      %v584 = vadd.f32 %v494, %v583
      %v585 = vpop.f32.mrb[0].mxu0
      %586 = vdwg.mxu0
      %s587 = scalar_lea.vmem %s3, 128
      %v588 = vld [vmem:[%s587] sm:$0xf]
      %v589 = vld [vmem:[%s587 + $0x4] sm:$0xf]
      %v590 = vld [vmem:[%s587 + $0x8] sm:$0xf]
      %v591 = vld [vmem:[%s587 + $0xc] sm:$0xf]
      %v592 = vld [vmem:[%s587 + $0x10] sm:$0xf]
      %v593 = vld [vmem:[%s587 + $0x14] sm:$0xf]
      %v594 = vld [vmem:[%s587 + $0x18] sm:$0xf]
      %v595 = vld [vmem:[%s587 + $0x1c] sm:$0xf]
      %v596 = vld [vmem:[%s587 + $0x20] sm:$0xf]
      %v597 = vld [vmem:[%s587 + $0x24] sm:$0xf]
      %v598 = vld [vmem:[%s587 + $0x28] sm:$0xf]
      %v599 = vld [vmem:[%s587 + $0x2c] sm:$0xf]
      %v600 = vld [vmem:[%s587 + $0x30] sm:$0xf]
      %v601 = vld [vmem:[%s587 + $0x34] sm:$0xf]
      %v602 = vld [vmem:[%s587 + $0x38] sm:$0xf]
      %v603 = vld [vmem:[%s587 + $0x3c] sm:$0xf]
      %vm604 = vcmask 1046528
      %v605 = vrot.slane %v392, 1
      %v606 = vrot.slane %v393, 1
      %v607 = vsel %vm604, %v605, %v606
      %v625 = vunpack.c.l.b16 %v588
      %v626 = vunpack.c.l.b16 %v589
      %v627 = vunpack.c.l.b16 %v590
      %v628 = vunpack.c.l.b16 %v591
      %v629 = vunpack.c.l.b16 %v592
      %v630 = vunpack.c.l.b16 %v593
      %v631 = vunpack.c.l.b16 %v594
      %v632 = vunpack.c.l.b16 %v595
      %v633 = vunpack.c.l.b16 %v596
      %v634 = vunpack.c.l.b16 %v597
      %v635 = vunpack.c.l.b16 %v598
      %v636 = vunpack.c.l.b16 %v599
      %v637 = vunpack.c.l.b16 %v600
      %v638 = vunpack.c.l.b16 %v601
      %v639 = vunpack.c.l.b16 %v602
      %v640 = vunpack.c.l.b16 %v603
      %v641 = vpack.c.b16 %v626, %v625
      %v642 = vpack.c.b16 %v628, %v627
      %v643 = vpack.c.b16 %v630, %v629
      %v644 = vpack.c.b16 %v632, %v631
      %v645 = vpack.c.b16 %v634, %v633
      %v646 = vpack.c.b16 %v636, %v635
      %v647 = vpack.c.b16 %v638, %v637
      %v648 = vpack.c.b16 %v640, %v639
      %657 = vmatprep.subr.bf16.mxu0 0
      %658 = vmatpush1.bf16.msra.mxu0 %v641
      %659 = vmatprep.subr.bf16.mxu0 0
      %660 = vmatpush1.bf16.msra.mxu0 %v642
      %661 = vmatprep.subr.bf16.mxu0 0
      %662 = vmatpush1.bf16.msra.mxu0 %v643
      %663 = vmatprep.subr.bf16.mxu0 0
      %664 = vmatpush1.bf16.msra.mxu0 %v644
      %665 = vmatprep.subr.bf16.mxu0 0
      %666 = vmatpush1.bf16.msra.mxu0 %v645
      %667 = vmatprep.subr.bf16.mxu0 0
      %668 = vmatpush1.bf16.msra.mxu0 %v646
      %669 = vmatprep.subr.bf16.mxu0 0
      %670 = vmatpush1.bf16.msra.mxu0 %v647
      %671 = vmatprep.subr.bf16.mxu0 0
      %672 = vmatpush1.bf16.msra.mxu0 %v648
      %673 = vmatprep.subr.bf16.mxu0 0
      %674 = vmatpush1.bf16.msra.mxu0 0
      %675 = vmatprep.subr.bf16.mxu0 0
      %676 = vmatpush1.bf16.msra.mxu0 0
      %677 = vmatprep.subr.bf16.mxu0 0
      %678 = vmatpush1.bf16.msra.mxu0 0
      %679 = vmatprep.subr.bf16.mxu0 0
      %680 = vmatpush1.bf16.msra.mxu0 0
      %681 = vmatprep.subr.bf16.mxu0 0
      %682 = vmatpush1.bf16.msra.mxu0 0
      %683 = vmatprep.subr.bf16.mxu0 0
      %684 = vmatpush1.bf16.msra.mxu0 0
      %685 = vmatprep.subr.bf16.mxu0 0
      %686 = vmatpush1.bf16.msra.mxu0 0
      %687 = vmatprep.subr.bf16.mxu0 0
      %688 = vmatpush1.bf16.msra.mxu0 0
      %689 = vmatprep.mubr.bf16.mxu0 0
      %690 = vmatmul.mubr.bf16.gmra.mrb[0].mxu0 %v607
      %v691 = vpop.f32.mrb[0].mxu0
      %v692 = vadd.f32 0.0, %v691
      %v693 = vpop.f32.mrb[0].mxu0
      %v694 = vpop.f32.mrb[0].mxu0
      %v695 = vadd.f32 0.0, %v694
      %v696 = vpop.f32.mrb[0].mxu0
      %697 = vdwg.mxu0
      %v698 = vadd.f32 %v581, %v692
      %v699 = vadd.f32 %v584, %v695
      %s700 = scalar_lea.vmem %s3, 192
      %v701 = vld [vmem:[%s700] sm:$0xf]
      %v702 = vld [vmem:[%s700 + $0x4] sm:$0xf]
      %v703 = vld [vmem:[%s700 + $0x8] sm:$0xf]
      %v704 = vld [vmem:[%s700 + $0xc] sm:$0xf]
      %v705 = vld [vmem:[%s700 + $0x10] sm:$0xf]
      %v706 = vld [vmem:[%s700 + $0x14] sm:$0xf]
      %v707 = vld [vmem:[%s700 + $0x18] sm:$0xf]
      %v708 = vld [vmem:[%s700 + $0x1c] sm:$0xf]
      %v709 = vld [vmem:[%s700 + $0x20] sm:$0xf]
      %v710 = vld [vmem:[%s700 + $0x24] sm:$0xf]
      %v711 = vld [vmem:[%s700 + $0x28] sm:$0xf]
      %v712 = vld [vmem:[%s700 + $0x2c] sm:$0xf]
      %v713 = vld [vmem:[%s700 + $0x30] sm:$0xf]
      %v714 = vld [vmem:[%s700 + $0x34] sm:$0xf]
      %v715 = vld [vmem:[%s700 + $0x38] sm:$0xf]
      %v716 = vld [vmem:[%s700 + $0x3c] sm:$0xf]
      %v719 = vunpack.c.l.b16 %v347
      %v720 = vunpack.c.l.b16 %v348
      %v721 = vpack.c.b16 %v720, %v719
      %v739 = vunpack.c.l.b16 %v701
      %v740 = vunpack.c.l.b16 %v702
      %v741 = vunpack.c.l.b16 %v703
      %v742 = vunpack.c.l.b16 %v704
      %v743 = vunpack.c.l.b16 %v705
      %v744 = vunpack.c.l.b16 %v706
      %v745 = vunpack.c.l.b16 %v707
      %v746 = vunpack.c.l.b16 %v708
      %v747 = vunpack.c.l.b16 %v709
      %v748 = vunpack.c.l.b16 %v710
      %v749 = vunpack.c.l.b16 %v711
      %v750 = vunpack.c.l.b16 %v712
      %v751 = vunpack.c.l.b16 %v713
      %v752 = vunpack.c.l.b16 %v714
      %v753 = vunpack.c.l.b16 %v715
      %v754 = vunpack.c.l.b16 %v716
      %v755 = vpack.c.b16 %v740, %v739
      %v756 = vpack.c.b16 %v742, %v741
      %v757 = vpack.c.b16 %v744, %v743
      %v758 = vpack.c.b16 %v746, %v745
      %v759 = vpack.c.b16 %v748, %v747
      %v760 = vpack.c.b16 %v750, %v749
      %v761 = vpack.c.b16 %v752, %v751
      %v762 = vpack.c.b16 %v754, %v753
      %771 = vmatprep.subr.bf16.mxu0 0
      %772 = vmatpush1.bf16.msra.mxu0 %v755
      %773 = vmatprep.subr.bf16.mxu0 0
      %774 = vmatpush1.bf16.msra.mxu0 %v756
      %775 = vmatprep.subr.bf16.mxu0 0
      %776 = vmatpush1.bf16.msra.mxu0 %v757
      %777 = vmatprep.subr.bf16.mxu0 0
      %778 = vmatpush1.bf16.msra.mxu0 %v758
      %779 = vmatprep.subr.bf16.mxu0 0
      %780 = vmatpush1.bf16.msra.mxu0 %v759
      %781 = vmatprep.subr.bf16.mxu0 0
      %782 = vmatpush1.bf16.msra.mxu0 %v760
      %783 = vmatprep.subr.bf16.mxu0 0
      %784 = vmatpush1.bf16.msra.mxu0 %v761
      %785 = vmatprep.subr.bf16.mxu0 0
      %786 = vmatpush1.bf16.msra.mxu0 %v762
      %787 = vmatprep.subr.bf16.mxu0 0
      %788 = vmatpush1.bf16.msra.mxu0 0
      %789 = vmatprep.subr.bf16.mxu0 0
      %790 = vmatpush1.bf16.msra.mxu0 0
      %791 = vmatprep.subr.bf16.mxu0 0
      %792 = vmatpush1.bf16.msra.mxu0 0
      %793 = vmatprep.subr.bf16.mxu0 0
      %794 = vmatpush1.bf16.msra.mxu0 0
      %795 = vmatprep.subr.bf16.mxu0 0
      %796 = vmatpush1.bf16.msra.mxu0 0
      %797 = vmatprep.subr.bf16.mxu0 0
      %798 = vmatpush1.bf16.msra.mxu0 0
      %799 = vmatprep.subr.bf16.mxu0 0
      %800 = vmatpush1.bf16.msra.mxu0 0
      %801 = vmatprep.subr.bf16.mxu0 0
      %802 = vmatpush1.bf16.msra.mxu0 0
      %803 = vmatprep.mubr.bf16.mxu0 0
      %804 = vmatmul.mubr.bf16.gmra.mrb[0].mxu0 %v721
      %v805 = vpop.f32.mrb[0].mxu0
      %v806 = vadd.f32 0.0, %v805
      %v807 = vpop.f32.mrb[0].mxu0
      %v808 = vpop.f32.mrb[0].mxu0
      %v809 = vadd.f32 0.0, %v808
      %v810 = vpop.f32.mrb[0].mxu0
      %811 = vdwg.mxu0
      %v812 = vadd.f32 %v698, %v806
      %v813 = vadd.f32 %v699, %v809
      %s814 = scalar_lea.vmem %s3, 256
      %v815 = vld [vmem:[%s814] sm:$0xf]
      %v816 = vld [vmem:[%s814 + $0x4] sm:$0xf]
      %v817 = vld [vmem:[%s814 + $0x8] sm:$0xf]
      %v818 = vld [vmem:[%s814 + $0xc] sm:$0xf]
      %v819 = vld [vmem:[%s814 + $0x10] sm:$0xf]
      %v820 = vld [vmem:[%s814 + $0x14] sm:$0xf]
      %v821 = vld [vmem:[%s814 + $0x18] sm:$0xf]
      %v822 = vld [vmem:[%s814 + $0x1c] sm:$0xf]
      %v823 = vld [vmem:[%s814 + $0x20] sm:$0xf]
      %v824 = vld [vmem:[%s814 + $0x24] sm:$0xf]
      %v825 = vld [vmem:[%s814 + $0x28] sm:$0xf]
      %v826 = vld [vmem:[%s814 + $0x2c] sm:$0xf]
      %v827 = vld [vmem:[%s814 + $0x30] sm:$0xf]
      %v828 = vld [vmem:[%s814 + $0x34] sm:$0xf]
      %v829 = vld [vmem:[%s814 + $0x38] sm:$0xf]
      %v830 = vld [vmem:[%s814 + $0x3c] sm:$0xf]
      %v832 = vunpack.c.l.b16 %v349
      %v833 = vpack.c.b16 %v832, %v832
      %v835 = vshrl.u32 %v721, 16
      %v837 = vshll.u32 %v721, 16
      %v839 = vrot.slane %v837, 1
      %v840 = vor.u32 %v835, %v839
      %v842 = vshll.u32 %v833, 16
      %v844 = vrot.slane %v842, 1
      %v845 = vsel %vm394, %v840, %v844
      %v863 = vunpack.c.l.b16 %v815
      %v864 = vunpack.c.l.b16 %v816
      %v865 = vunpack.c.l.b16 %v817
      %v866 = vunpack.c.l.b16 %v818
      %v867 = vunpack.c.l.b16 %v819
      %v868 = vunpack.c.l.b16 %v820
      %v869 = vunpack.c.l.b16 %v821
      %v870 = vunpack.c.l.b16 %v822
      %v871 = vunpack.c.l.b16 %v823
      %v872 = vunpack.c.l.b16 %v824
      %v873 = vunpack.c.l.b16 %v825
      %v874 = vunpack.c.l.b16 %v826
      %v875 = vunpack.c.l.b16 %v827
      %v876 = vunpack.c.l.b16 %v828
      %v877 = vunpack.c.l.b16 %v829
      %v878 = vunpack.c.l.b16 %v830
      %v879 = vpack.c.b16 %v864, %v863
      %v880 = vpack.c.b16 %v866, %v865
      %v881 = vpack.c.b16 %v868, %v867
      %v882 = vpack.c.b16 %v870, %v869
      %v883 = vpack.c.b16 %v872, %v871
      %v884 = vpack.c.b16 %v874, %v873
      %v885 = vpack.c.b16 %v876, %v875
      %v886 = vpack.c.b16 %v878, %v877
      %895 = vmatprep.subr.bf16.mxu0 0
      %896 = vmatpush1.bf16.msra.mxu0 %v879
      %897 = vmatprep.subr.bf16.mxu0 0
      %898 = vmatpush1.bf16.msra.mxu0 %v880
      %899 = vmatprep.subr.bf16.mxu0 0
      %900 = vmatpush1.bf16.msra.mxu0 %v881
      %901 = vmatprep.subr.bf16.mxu0 0
      %902 = vmatpush1.bf16.msra.mxu0 %v882
      %903 = vmatprep.subr.bf16.mxu0 0
      %904 = vmatpush1.bf16.msra.mxu0 %v883
      %905 = vmatprep.subr.bf16.mxu0 0
      %906 = vmatpush1.bf16.msra.mxu0 %v884
      %907 = vmatprep.subr.bf16.mxu0 0
      %908 = vmatpush1.bf16.msra.mxu0 %v885
      %909 = vmatprep.subr.bf16.mxu0 0
      %910 = vmatpush1.bf16.msra.mxu0 %v886
      %911 = vmatprep.subr.bf16.mxu0 0
      %912 = vmatpush1.bf16.msra.mxu0 0
      %913 = vmatprep.subr.bf16.mxu0 0
      %914 = vmatpush1.bf16.msra.mxu0 0
      %915 = vmatprep.subr.bf16.mxu0 0
      %916 = vmatpush1.bf16.msra.mxu0 0
      %917 = vmatprep.subr.bf16.mxu0 0
      %918 = vmatpush1.bf16.msra.mxu0 0
      %919 = vmatprep.subr.bf16.mxu0 0
      %920 = vmatpush1.bf16.msra.mxu0 0
      %921 = vmatprep.subr.bf16.mxu0 0
      %922 = vmatpush1.bf16.msra.mxu0 0
      %923 = vmatprep.subr.bf16.mxu0 0
      %924 = vmatpush1.bf16.msra.mxu0 0
      %925 = vmatprep.subr.bf16.mxu0 0
      %926 = vmatpush1.bf16.msra.mxu0 0
      %927 = vmatprep.mubr.bf16.mxu0 0
      %928 = vmatmul.mubr.bf16.gmra.mrb[0].mxu0 %v845
      %v929 = vpop.f32.mrb[0].mxu0
      %v930 = vadd.f32 0.0, %v929
      %v931 = vpop.f32.mrb[0].mxu0
      %v932 = vpop.f32.mrb[0].mxu0
      %v933 = vadd.f32 0.0, %v932
      %v934 = vpop.f32.mrb[0].mxu0
      %935 = vdwg.mxu0
      %v936 = vadd.f32 %v812, %v930
      %v937 = vadd.f32 %v813, %v933
      %s938 = scalar_lea.vmem %s3, 320
      %v939 = vld [vmem:[%s938] sm:$0xf]
      %v940 = vld [vmem:[%s938 + $0x4] sm:$0xf]
      %v941 = vld [vmem:[%s938 + $0x8] sm:$0xf]
      %v942 = vld [vmem:[%s938 + $0xc] sm:$0xf]
      %v943 = vld [vmem:[%s938 + $0x10] sm:$0xf]
      %v944 = vld [vmem:[%s938 + $0x14] sm:$0xf]
      %v945 = vld [vmem:[%s938 + $0x18] sm:$0xf]
      %v946 = vld [vmem:[%s938 + $0x1c] sm:$0xf]
      %v947 = vld [vmem:[%s938 + $0x20] sm:$0xf]
      %v948 = vld [vmem:[%s938 + $0x24] sm:$0xf]
      %v949 = vld [vmem:[%s938 + $0x28] sm:$0xf]
      %v950 = vld [vmem:[%s938 + $0x2c] sm:$0xf]
      %v951 = vld [vmem:[%s938 + $0x30] sm:$0xf]
      %v952 = vld [vmem:[%s938 + $0x34] sm:$0xf]
      %v953 = vld [vmem:[%s938 + $0x38] sm:$0xf]
      %v954 = vld [vmem:[%s938 + $0x3c] sm:$0xf]
      %v955 = vrot.slane %v721, 1
      %v956 = vrot.slane %v833, 1
      %v957 = vsel %vm604, %v955, %v956
      %v975 = vunpack.c.l.b16 %v939
      %v976 = vunpack.c.l.b16 %v940
      %v977 = vunpack.c.l.b16 %v941
      %v978 = vunpack.c.l.b16 %v942
      %v979 = vunpack.c.l.b16 %v943
      %v980 = vunpack.c.l.b16 %v944
      %v981 = vunpack.c.l.b16 %v945
      %v982 = vunpack.c.l.b16 %v946
      %v983 = vunpack.c.l.b16 %v947
      %v984 = vunpack.c.l.b16 %v948
      %v985 = vunpack.c.l.b16 %v949
      %v986 = vunpack.c.l.b16 %v950
      %v987 = vunpack.c.l.b16 %v951
      %v988 = vunpack.c.l.b16 %v952
      %v989 = vunpack.c.l.b16 %v953
      %v990 = vunpack.c.l.b16 %v954
      %v991 = vpack.c.b16 %v976, %v975
      %v992 = vpack.c.b16 %v978, %v977
      %v993 = vpack.c.b16 %v980, %v979
      %v994 = vpack.c.b16 %v982, %v981
      %v995 = vpack.c.b16 %v984, %v983
      %v996 = vpack.c.b16 %v986, %v985
      %v997 = vpack.c.b16 %v988, %v987
      %v998 = vpack.c.b16 %v990, %v989
      %1007 = vmatprep.subr.bf16.mxu0 0
      %1008 = vmatpush1.bf16.msra.mxu0 %v991
      %1009 = vmatprep.subr.bf16.mxu0 0
      %1010 = vmatpush1.bf16.msra.mxu0 %v992
      %1011 = vmatprep.subr.bf16.mxu0 0
      %1012 = vmatpush1.bf16.msra.mxu0 %v993
      %1013 = vmatprep.subr.bf16.mxu0 0
      %1014 = vmatpush1.bf16.msra.mxu0 %v994
      %1015 = vmatprep.subr.bf16.mxu0 0
      %1016 = vmatpush1.bf16.msra.mxu0 %v995
      %1017 = vmatprep.subr.bf16.mxu0 0
      %1018 = vmatpush1.bf16.msra.mxu0 %v996
      %1019 = vmatprep.subr.bf16.mxu0 0
      %1020 = vmatpush1.bf16.msra.mxu0 %v997
      %1021 = vmatprep.subr.bf16.mxu0 0
      %1022 = vmatpush1.bf16.msra.mxu0 %v998
      %1023 = vmatprep.subr.bf16.mxu0 0
      %1024 = vmatpush1.bf16.msra.mxu0 0
      %1025 = vmatprep.subr.bf16.mxu0 0
      %1026 = vmatpush1.bf16.msra.mxu0 0
      %1027 = vmatprep.subr.bf16.mxu0 0
      %1028 = vmatpush1.bf16.msra.mxu0 0
      %1029 = vmatprep.subr.bf16.mxu0 0
      %1030 = vmatpush1.bf16.msra.mxu0 0
      %1031 = vmatprep.subr.bf16.mxu0 0
      %1032 = vmatpush1.bf16.msra.mxu0 0
      %1033 = vmatprep.subr.bf16.mxu0 0
      %1034 = vmatpush1.bf16.msra.mxu0 0
      %1035 = vmatprep.subr.bf16.mxu0 0
      %1036 = vmatpush1.bf16.msra.mxu0 0
      %1037 = vmatprep.subr.bf16.mxu0 0
      %1038 = vmatpush1.bf16.msra.mxu0 0
      %1039 = vmatprep.mubr.bf16.mxu0 0
      %1040 = vmatmul.mubr.bf16.gmra.mrb[0].mxu0 %v957
      %v1041 = vpop.f32.mrb[0].mxu0
      %v1042 = vadd.f32 0.0, %v1041
      %v1043 = vpop.f32.mrb[0].mxu0
      %v1044 = vpop.f32.mrb[0].mxu0
      %v1045 = vadd.f32 0.0, %v1044
      %v1046 = vpop.f32.mrb[0].mxu0
      %1047 = vdwg.mxu0
      %v1048 = vadd.f32 %v936, %v1042
      %v1049 = vadd.f32 %v937, %v1045
      %s1050 = scalar_lea.vmem %s3, 384
      %v1051 = vld [vmem:[%s1050] sm:$0xf]
      %v1052 = vld [vmem:[%s1050 + $0x4] sm:$0xf]
      %v1053 = vld [vmem:[%s1050 + $0x8] sm:$0xf]
      %v1054 = vld [vmem:[%s1050 + $0xc] sm:$0xf]
      %v1055 = vld [vmem:[%s1050 + $0x10] sm:$0xf]
      %v1056 = vld [vmem:[%s1050 + $0x14] sm:$0xf]
      %v1057 = vld [vmem:[%s1050 + $0x18] sm:$0xf]
      %v1058 = vld [vmem:[%s1050 + $0x1c] sm:$0xf]
      %v1059 = vld [vmem:[%s1050 + $0x20] sm:$0xf]
      %v1060 = vld [vmem:[%s1050 + $0x24] sm:$0xf]
      %v1061 = vld [vmem:[%s1050 + $0x28] sm:$0xf]
      %v1062 = vld [vmem:[%s1050 + $0x2c] sm:$0xf]
      %v1063 = vld [vmem:[%s1050 + $0x30] sm:$0xf]
      %v1064 = vld [vmem:[%s1050 + $0x34] sm:$0xf]
      %v1065 = vld [vmem:[%s1050 + $0x38] sm:$0xf]
      %v1066 = vld [vmem:[%s1050 + $0x3c] sm:$0xf]
      %v1069 = vunpack.c.l.b16 %v350
      %v1070 = vunpack.c.l.b16 %v351
      %v1071 = vpack.c.b16 %v1070, %v1069
      %v1089 = vunpack.c.l.b16 %v1051
      %v1090 = vunpack.c.l.b16 %v1052
      %v1091 = vunpack.c.l.b16 %v1053
      %v1092 = vunpack.c.l.b16 %v1054
      %v1093 = vunpack.c.l.b16 %v1055
      %v1094 = vunpack.c.l.b16 %v1056
      %v1095 = vunpack.c.l.b16 %v1057
      %v1096 = vunpack.c.l.b16 %v1058
      %v1097 = vunpack.c.l.b16 %v1059
      %v1098 = vunpack.c.l.b16 %v1060
      %v1099 = vunpack.c.l.b16 %v1061
      %v1100 = vunpack.c.l.b16 %v1062
      %v1101 = vunpack.c.l.b16 %v1063
      %v1102 = vunpack.c.l.b16 %v1064
      %v1103 = vunpack.c.l.b16 %v1065
      %v1104 = vunpack.c.l.b16 %v1066
      %v1105 = vpack.c.b16 %v1090, %v1089
      %v1106 = vpack.c.b16 %v1092, %v1091
      %v1107 = vpack.c.b16 %v1094, %v1093
      %v1108 = vpack.c.b16 %v1096, %v1095
      %v1109 = vpack.c.b16 %v1098, %v1097
      %v1110 = vpack.c.b16 %v1100, %v1099
      %v1111 = vpack.c.b16 %v1102, %v1101
      %v1112 = vpack.c.b16 %v1104, %v1103
      %1121 = vmatprep.subr.bf16.mxu0 0
      %1122 = vmatpush1.bf16.msra.mxu0 %v1105
      %1123 = vmatprep.subr.bf16.mxu0 0
      %1124 = vmatpush1.bf16.msra.mxu0 %v1106
      %1125 = vmatprep.subr.bf16.mxu0 0
      %1126 = vmatpush1.bf16.msra.mxu0 %v1107
      %1127 = vmatprep.subr.bf16.mxu0 0
      %1128 = vmatpush1.bf16.msra.mxu0 %v1108
      %1129 = vmatprep.subr.bf16.mxu0 0
      %1130 = vmatpush1.bf16.msra.mxu0 %v1109
      %1131 = vmatprep.subr.bf16.mxu0 0
      %1132 = vmatpush1.bf16.msra.mxu0 %v1110
      %1133 = vmatprep.subr.bf16.mxu0 0
      %1134 = vmatpush1.bf16.msra.mxu0 %v1111
      %1135 = vmatprep.subr.bf16.mxu0 0
      %1136 = vmatpush1.bf16.msra.mxu0 %v1112
      %1137 = vmatprep.subr.bf16.mxu0 0
      %1138 = vmatpush1.bf16.msra.mxu0 0
      %1139 = vmatprep.subr.bf16.mxu0 0
      %1140 = vmatpush1.bf16.msra.mxu0 0
      %1141 = vmatprep.subr.bf16.mxu0 0
      %1142 = vmatpush1.bf16.msra.mxu0 0
      %1143 = vmatprep.subr.bf16.mxu0 0
      %1144 = vmatpush1.bf16.msra.mxu0 0
      %1145 = vmatprep.subr.bf16.mxu0 0
      %1146 = vmatpush1.bf16.msra.mxu0 0
      %1147 = vmatprep.subr.bf16.mxu0 0
      %1148 = vmatpush1.bf16.msra.mxu0 0
      %1149 = vmatprep.subr.bf16.mxu0 0
      %1150 = vmatpush1.bf16.msra.mxu0 0
      %1151 = vmatprep.subr.bf16.mxu0 0
      %1152 = vmatpush1.bf16.msra.mxu0 0
      %1153 = vmatprep.mubr.bf16.mxu0 0
      %1154 = vmatmul.mubr.bf16.gmra.mrb[0].mxu0 %v1071
      %v1155 = vpop.f32.mrb[0].mxu0
      %v1156 = vadd.f32 0.0, %v1155
      %v1157 = vpop.f32.mrb[0].mxu0
      %v1158 = vpop.f32.mrb[0].mxu0
      %v1159 = vadd.f32 0.0, %v1158
      %v1160 = vpop.f32.mrb[0].mxu0
      %1161 = vdwg.mxu0
      %v1162 = vadd.f32 %v1048, %v1156
      %v1163 = vadd.f32 %v1049, %v1159
      %s1164 = scalar_lea.vmem %s3, 448
      %v1165 = vld [vmem:[%s1164] sm:$0xf]
      %v1166 = vld [vmem:[%s1164 + $0x4] sm:$0xf]
      %v1167 = vld [vmem:[%s1164 + $0x8] sm:$0xf]
      %v1168 = vld [vmem:[%s1164 + $0xc] sm:$0xf]
      %v1169 = vld [vmem:[%s1164 + $0x10] sm:$0xf]
      %v1170 = vld [vmem:[%s1164 + $0x14] sm:$0xf]
      %v1171 = vld [vmem:[%s1164 + $0x18] sm:$0xf]
      %v1172 = vld [vmem:[%s1164 + $0x1c] sm:$0xf]
      %v1173 = vld [vmem:[%s1164 + $0x20] sm:$0xf]
      %v1174 = vld [vmem:[%s1164 + $0x24] sm:$0xf]
      %v1175 = vld [vmem:[%s1164 + $0x28] sm:$0xf]
      %v1176 = vld [vmem:[%s1164 + $0x2c] sm:$0xf]
      %v1177 = vld [vmem:[%s1164 + $0x30] sm:$0xf]
      %v1178 = vld [vmem:[%s1164 + $0x34] sm:$0xf]
      %v1179 = vld [vmem:[%s1164 + $0x38] sm:$0xf]
      %v1180 = vld [vmem:[%s1164 + $0x3c] sm:$0xf]
      %v1182 = vunpack.c.l.b16 %v352
      %v1183 = vpack.c.b16 %v1182, %v1182
      %v1185 = vshrl.u32 %v1071, 16
      %v1187 = vshll.u32 %v1071, 16
      %v1189 = vrot.slane %v1187, 1
      %v1190 = vor.u32 %v1185, %v1189
      %v1192 = vshll.u32 %v1183, 16
      %v1194 = vrot.slane %v1192, 1
      %v1195 = vsel %vm394, %v1190, %v1194
      %v1213 = vunpack.c.l.b16 %v1165
      %v1214 = vunpack.c.l.b16 %v1166
      %v1215 = vunpack.c.l.b16 %v1167
      %v1216 = vunpack.c.l.b16 %v1168
      %v1217 = vunpack.c.l.b16 %v1169
      %v1218 = vunpack.c.l.b16 %v1170
      %v1219 = vunpack.c.l.b16 %v1171
      %v1220 = vunpack.c.l.b16 %v1172
      %v1221 = vunpack.c.l.b16 %v1173
      %v1222 = vunpack.c.l.b16 %v1174
      %v1223 = vunpack.c.l.b16 %v1175
      %v1224 = vunpack.c.l.b16 %v1176
      %v1225 = vunpack.c.l.b16 %v1177
      %v1226 = vunpack.c.l.b16 %v1178
      %v1227 = vunpack.c.l.b16 %v1179
      %v1228 = vunpack.c.l.b16 %v1180
      %v1229 = vpack.c.b16 %v1214, %v1213
      %v1230 = vpack.c.b16 %v1216, %v1215
      %v1231 = vpack.c.b16 %v1218, %v1217
      %v1232 = vpack.c.b16 %v1220, %v1219
      %v1233 = vpack.c.b16 %v1222, %v1221
      %v1234 = vpack.c.b16 %v1224, %v1223
      %v1235 = vpack.c.b16 %v1226, %v1225
      %v1236 = vpack.c.b16 %v1228, %v1227
      %1245 = vmatprep.subr.bf16.mxu0 0
      %1246 = vmatpush1.bf16.msra.mxu0 %v1229
      %1247 = vmatprep.subr.bf16.mxu0 0
      %1248 = vmatpush1.bf16.msra.mxu0 %v1230
      %1249 = vmatprep.subr.bf16.mxu0 0
      %1250 = vmatpush1.bf16.msra.mxu0 %v1231
      %1251 = vmatprep.subr.bf16.mxu0 0
      %1252 = vmatpush1.bf16.msra.mxu0 %v1232
      %1253 = vmatprep.subr.bf16.mxu0 0
      %1254 = vmatpush1.bf16.msra.mxu0 %v1233
      %1255 = vmatprep.subr.bf16.mxu0 0
      %1256 = vmatpush1.bf16.msra.mxu0 %v1234
      %1257 = vmatprep.subr.bf16.mxu0 0
      %1258 = vmatpush1.bf16.msra.mxu0 %v1235
      %1259 = vmatprep.subr.bf16.mxu0 0
      %1260 = vmatpush1.bf16.msra.mxu0 %v1236
      %1261 = vmatprep.subr.bf16.mxu0 0
      %1262 = vmatpush1.bf16.msra.mxu0 0
      %1263 = vmatprep.subr.bf16.mxu0 0
      %1264 = vmatpush1.bf16.msra.mxu0 0
      %1265 = vmatprep.subr.bf16.mxu0 0
      %1266 = vmatpush1.bf16.msra.mxu0 0
      %1267 = vmatprep.subr.bf16.mxu0 0
      %1268 = vmatpush1.bf16.msra.mxu0 0
      %1269 = vmatprep.subr.bf16.mxu0 0
      %1270 = vmatpush1.bf16.msra.mxu0 0
      %1271 = vmatprep.subr.bf16.mxu0 0
      %1272 = vmatpush1.bf16.msra.mxu0 0
      %1273 = vmatprep.subr.bf16.mxu0 0
      %1274 = vmatpush1.bf16.msra.mxu0 0
      %1275 = vmatprep.subr.bf16.mxu0 0
      %1276 = vmatpush1.bf16.msra.mxu0 0
      %1277 = vmatprep.mubr.bf16.mxu0 0
      %1278 = vmatmul.mubr.bf16.gmra.mrb[0].mxu0 %v1195
      %v1279 = vpop.f32.mrb[0].mxu0
      %v1280 = vadd.f32 0.0, %v1279
      %v1281 = vpop.f32.mrb[0].mxu0
      %v1282 = vpop.f32.mrb[0].mxu0
      %v1283 = vadd.f32 0.0, %v1282
      %v1284 = vpop.f32.mrb[0].mxu0
      %1285 = vdwg.mxu0
      %v1286 = vadd.f32 %v1162, %v1280
      %v1287 = vadd.f32 %v1163, %v1283
      %s1288 = scalar_lea.vmem %s3, 512
      %v1289 = vld [vmem:[%s1288] sm:$0xf]
      %v1290 = vld [vmem:[%s1288 + $0x4] sm:$0xf]
      %v1291 = vld [vmem:[%s1288 + $0x8] sm:$0xf]
      %v1292 = vld [vmem:[%s1288 + $0xc] sm:$0xf]
      %v1293 = vld [vmem:[%s1288 + $0x10] sm:$0xf]
      %v1294 = vld [vmem:[%s1288 + $0x14] sm:$0xf]
      %v1295 = vld [vmem:[%s1288 + $0x18] sm:$0xf]
      %v1296 = vld [vmem:[%s1288 + $0x1c] sm:$0xf]
      %v1297 = vld [vmem:[%s1288 + $0x20] sm:$0xf]
      %v1298 = vld [vmem:[%s1288 + $0x24] sm:$0xf]
      %v1299 = vld [vmem:[%s1288 + $0x28] sm:$0xf]
      %v1300 = vld [vmem:[%s1288 + $0x2c] sm:$0xf]
      %v1301 = vld [vmem:[%s1288 + $0x30] sm:$0xf]
      %v1302 = vld [vmem:[%s1288 + $0x34] sm:$0xf]
      %v1303 = vld [vmem:[%s1288 + $0x38] sm:$0xf]
      %v1304 = vld [vmem:[%s1288 + $0x3c] sm:$0xf]
      %v1305 = vrot.slane %v1071, 1
      %v1306 = vrot.slane %v1183, 1
      %v1307 = vsel %vm604, %v1305, %v1306
      %v1325 = vunpack.c.l.b16 %v1289
      %v1326 = vunpack.c.l.b16 %v1290
      %v1327 = vunpack.c.l.b16 %v1291
      %v1328 = vunpack.c.l.b16 %v1292
      %v1329 = vunpack.c.l.b16 %v1293
      %v1330 = vunpack.c.l.b16 %v1294
      %v1331 = vunpack.c.l.b16 %v1295
      %v1332 = vunpack.c.l.b16 %v1296
      %v1333 = vunpack.c.l.b16 %v1297
      %v1334 = vunpack.c.l.b16 %v1298
      %v1335 = vunpack.c.l.b16 %v1299
      %v1336 = vunpack.c.l.b16 %v1300
      %v1337 = vunpack.c.l.b16 %v1301
      %v1338 = vunpack.c.l.b16 %v1302
      %v1339 = vunpack.c.l.b16 %v1303
      %v1340 = vunpack.c.l.b16 %v1304
      %v1341 = vpack.c.b16 %v1326, %v1325
      %v1342 = vpack.c.b16 %v1328, %v1327
      %v1343 = vpack.c.b16 %v1330, %v1329
      %v1344 = vpack.c.b16 %v1332, %v1331
      %v1345 = vpack.c.b16 %v1334, %v1333
      %v1346 = vpack.c.b16 %v1336, %v1335
      %v1347 = vpack.c.b16 %v1338, %v1337
      %v1348 = vpack.c.b16 %v1340, %v1339
      %1357 = vmatprep.subr.bf16.mxu0 0
      %1358 = vmatpush1.bf16.msra.mxu0 %v1341
      %1359 = vmatprep.subr.bf16.mxu0 0
      %1360 = vmatpush1.bf16.msra.mxu0 %v1342
      %1361 = vmatprep.subr.bf16.mxu0 0
      %1362 = vmatpush1.bf16.msra.mxu0 %v1343
      %1363 = vmatprep.subr.bf16.mxu0 0
      %1364 = vmatpush1.bf16.msra.mxu0 %v1344
      %1365 = vmatprep.subr.bf16.mxu0 0
      %1366 = vmatpush1.bf16.msra.mxu0 %v1345
      %1367 = vmatprep.subr.bf16.mxu0 0
      %1368 = vmatpush1.bf16.msra.mxu0 %v1346
      %1369 = vmatprep.subr.bf16.mxu0 0
      %1370 = vmatpush1.bf16.msra.mxu0 %v1347
      %1371 = vmatprep.subr.bf16.mxu0 0
      %1372 = vmatpush1.bf16.msra.mxu0 %v1348
      %1373 = vmatprep.subr.bf16.mxu0 0
      %1374 = vmatpush1.bf16.msra.mxu0 0
      %1375 = vmatprep.subr.bf16.mxu0 0
      %1376 = vmatpush1.bf16.msra.mxu0 0
      %1377 = vmatprep.subr.bf16.mxu0 0
      %1378 = vmatpush1.bf16.msra.mxu0 0
      %1379 = vmatprep.subr.bf16.mxu0 0
      %1380 = vmatpush1.bf16.msra.mxu0 0
      %1381 = vmatprep.subr.bf16.mxu0 0
      %1382 = vmatpush1.bf16.msra.mxu0 0
      %1383 = vmatprep.subr.bf16.mxu0 0
      %1384 = vmatpush1.bf16.msra.mxu0 0
      %1385 = vmatprep.subr.bf16.mxu0 0
      %1386 = vmatpush1.bf16.msra.mxu0 0
      %1387 = vmatprep.subr.bf16.mxu0 0
      %1388 = vmatpush1.bf16.msra.mxu0 0
      %1389 = vmatprep.mubr.bf16.mxu0 0
      %1390 = vmatmul.mubr.bf16.gmra.mrb[0].mxu0 %v1307
      %v1391 = vpop.f32.mrb[0].mxu0
      %v1392 = vadd.f32 0.0, %v1391
      %v1393 = vpop.f32.mrb[0].mxu0
      %v1394 = vpop.f32.mrb[0].mxu0
      %v1395 = vadd.f32 0.0, %v1394
      %v1396 = vpop.f32.mrb[0].mxu0
      %1397 = vdwg.mxu0
      %v1398 = vadd.f32 %v1286, %v1392
      %v1399 = vadd.f32 %v1287, %v1395
      %v1400 = vld [vmem:[%s4] sm:$0x1]
      %v1402 = vlaneseq
      %v1403 = vshrl.u32 %v1402, 7
      %v1404 = vsub.s32 0, %v1403
      %v1405 = vrot.slane %v1400, %v1404
      %v1407 = vadd.f32 %v1398, %v1405
      %v1408 = vadd.f32 %v1399, %v1405
      %v1409 = vmax.f32 %v1407, 0.0
      %v1410 = vmax.f32 %v1408, 0.0
      %v1411 = vpack.c.bf16 %v1410, %v1409
      %v1413 = vunpack.c.l.b16 %v1411
      %v1414 = vunpack.c.h.b16 %v1411
      %v1415 = vpack.c.b16 %v1413, %v1413
      %v1416 = vpack.c.b16 %v1414, %v1414
      %1419 = vst [vmem:[%s342] sm:$0xf] %v1415
      %1420 = vst [vmem:[%s342 + $0x4] sm:$0xf] %v1416
      %p1421 = scmp.lt.s32.totalorder %s20, 1
      %s1422 = scalar_select %p1421, %s20, 1
      %p1423 = scmp.lt.s32.totalorder %s21, 15
      %s1424 = scalar_select %p1423, %s21, 15
      %s1425 = smul.addr %s1424, 2
      %s1426 = smul.addr %s1422, 32
      %s1427 = sadd.s32 %s1425, %s1426
      %s1428 = smul.addr %s1427, 4
      %s1429 = scalar_lea.vmem %s5, %s1428
      // Predicated region
      $region41: #{_encoder_forward_impl.11} parent=39 // pred_check
        %p1430 = pneg %p178
      $region42: #{_encoder_forward_impl.11} parent=39 // pred_check_branch
        %1432 = sbr.rel (%p1430) target = $region44
      $region43: #{_encoder_forward_impl.11} parent=39 // pred_region
        _
      $region44: #{_encoder_forward_impl.11} parent=39 // pred_fallthru
        _
    $region40: #{_encoder_forward_impl.11} parent=5 // pred_fallthru
      _
    %p1433 = scmp.le.s32.totalorder 2, %s11
    // Predicated region
    $region45: #{_encoder_forward_impl.11} parent=5 // pred_check
      %p1434 = pneg %p1433
    $region46: #{_encoder_forward_impl.11} parent=5 // pred_check_branch
      %1436 = sbr.rel (%p1434) target = $region48
    $region47: #{_encoder_forward_impl.11} parent=5 // pred_region
      %s1437 = ssub.s32 %s11, 2
      // Predicated region
      $region49: #{_encoder_forward_impl.11} parent=47 // pred_check
        %p1438 = pneg %p184
      $region50: #{_encoder_forward_impl.11} parent=47 // pred_check_branch
        %1440 = sbr.rel (%p1438) target = $region52
      $region51: #{_encoder_forward_impl.11} parent=47 // pred_region
        %p1441 = scmp.lt.s32.totalorder %s22, 1
        %s1442 = scalar_select %p1441, %s22, 1
        %p1443 = scmp.lt.s32.totalorder %s23, 15
        %s1444 = scalar_select %p1443, %s23, 15
        %s1445 = smul.addr %s1444, 2
        %s1446 = smul.addr %s1442, 32
        %s1447 = sadd.s32 %s1445, %s1446
        %s1448 = smul.addr %s1447, 4
        %s1449 = scalar_lea.vmem %s5, %s1448
      $region52: #{_encoder_forward_impl.11} parent=47 // pred_fallthru
        _
    $region48: #{_encoder_forward_impl.11} parent=5 // pred_fallthru
      _
  $region6: #{_encoder_forward_impl.11} parent=0 // loop_footer
    %s15 = sadd.s32 1, %s11
  $region7: #{_encoder_forward_impl.11} parent=0 // loop_footer_branch
    %10 = sbr.rel target = $region3
  $region8: #{_encoder_forward_impl.11} parent=0 // loop_exit
    _

// kernel: _encoder_forward_impl.14
$region0: #{_encoder_forward_impl.14}
  #allocation0 [shape = 'u32[]', space=smem, size = 0x4, offset = 0x4, fixed_abs, tag = 'smem constant byte address 0x4 - core index']
  #allocation1 [shape = 'u32[144,128]{1,0:T(1,128)}', space=vmem, size = 0x12000, scoped, tag = 'internal scratch']
  %s0 = inlined_call_operand.vmem [shape: bf16[2,18,8,384], index: 0, kind: input, shape index: {}, may-alias: {0,1,2}]
  %s1 = inlined_call_operand.vmem [shape: bf16[2,18,8,384], index: 1, kind: input, shape index: {}, may-alias: {0,1,2}]
  %s2 = inlined_call_operand.vmem [shape: bf16[2,18,8,384], index: 2, kind: input, shape index: {}, may-alias: {0,1,2}]
  %s3 = inlined_call_operand.vmem [shape: bf16[3,384,128], index: 3, kind: input, shape index: {}]
  %s4 = inlined_call_operand.vmem [shape: f32[1,128], index: 4, kind: input, shape index: {}]
  %s5 = inlined_call_operand.vmem [shape: bf16[2,8,8,128], index: 5, kind: output, shape index: {}]
  %s6 = sld [smem:[#allocation0]]
  $region53: #{_encoder_forward_impl.14} parent=0
    _
  %s8 = ssub.s32 1, %s6
  %s9 = scalar_select 0, %s8, %s6
  loop: start=0, step=1, limit=18
  $region2: #{_encoder_forward_impl.14} parent=0 // loop_pre_header
    _
  $region3: #{_encoder_forward_impl.14} parent=0 // loop_header
    %s11 = sphi 0, %s15
    %p12 = scmp.ge.s32.totalorder %s11, 18
    %s18 = sphi 0, %s30
    %s19 = sphi 0, %s26
    %s20 = sphi 0, %s18
    %s21 = sphi 0, %s19
    %s22 = sphi 0, %s20
    %s23 = sphi 0, %s21
    %s37 = sphi 0, %s39
    %s40 = sphi 0, %s37
    %s41 = sphi 0, %s40
    %s57 = sphi 0, %s41
    %s69 = sphi 0, %s71
    %s72 = sphi 0, %s69
    %s73 = sphi 0, %s72
    %s89 = sphi 0, %s73
    %s101 = sphi 0, %s103
    %s104 = sphi 0, %s101
    %s105 = sphi 0, %s104
    %s121 = sphi 0, %s105
    %s125 = sphi 0, %s125
    %s127 = sphi 0, %s125
    %s128 = sphi 0, %s127
    %s142 = sphi 0, %s128
    %s146 = sphi 0, %s146
    %s148 = sphi 0, %s146
    %s149 = sphi 0, %s148
    %s163 = sphi 0, %s149
    %s171 = sphi 0, %s173
    %s174 = sphi 0, %s171
    %s175 = sphi 0, %s174
    %s191 = sphi 0, %s175
  $region4: #{_encoder_forward_impl.14} parent=0 // loop_header_branch
    %14 = sbr.rel (%p12) target = $region8
  $region5: #{_encoder_forward_impl.14} parent=0 // loop_body
    %s16 = ssub.s32 %s11, 1
    %s17 = ssub.s32 %s11, 2
    %s24 = sadd.s32 1, %s19
    %p25 = scmp.ge.s32.totalorder %s24, 8
    %s26 = scalar_select %p25, 0, %s24
    %s27 = sadd.s32 1, %s18
    %s28 = scalar_select %p25, %s27, %s18
    %p29 = scmp.ge.s32.totalorder %s28, 2
    %s30 = scalar_select %p29, 0, %s28
    %s31 = smul.u32 %s19, 2
    %s32 = smul.u32 %s26, 2
    %s33 = ssub.s32 %s18, %s30
    %s34 = ssub.s32 %s31, %s32
    %s35 = sor.u32 %s33, %s34
    %p36 = scmp.eq.s32.totalorder %s35, 0
    %s38 = sadd.s32 %s37, 1
    %s39 = scalar_select %p36, %s37, %s38
    %p42 = pneg %p36
    %p43 = scmp.eq.s32.totalorder %s11, 15
    %p44 = por %p42, %p43
    %p45 = scmp.ne.s32.totalorder %s37, %s40
    %p46 = scmp.eq.s32.totalorder %s11, 0
    %p47 = por %p45, %p46
    %p48 = scmp.ne.s32.totalorder %s37, %s40
    %p49 = scmp.eq.s32.totalorder %s16, 15
    %p50 = por %p48, %p49
    %p51 = scmp.ne.s32.totalorder %s40, %s41
    %p52 = scmp.eq.s32.totalorder %s16, 0
    %p53 = por %p51, %p52
    %p54 = scmp.ne.s32.totalorder %s40, %s41
    %p55 = scmp.eq.s32.totalorder %s17, 15
    %p56 = por %p54, %p55
    %p58 = scmp.ne.s32.totalorder %s41, %s57
    %p59 = scmp.eq.s32.totalorder %s17, 0
    %p60 = por %p58, %p59
    %s61 = smul.u32 %s19, 2
    %s62 = sadd.s32 %s61, 1
    %s63 = smul.u32 %s26, 2
    %s64 = sadd.s32 %s63, 1
    %s65 = ssub.s32 %s18, %s30
    %s66 = ssub.s32 %s62, %s64
    %s67 = sor.u32 %s65, %s66
    %p68 = scmp.eq.s32.totalorder %s67, 0
    %s70 = sadd.s32 %s69, 1
    %s71 = scalar_select %p68, %s69, %s70
    %p74 = pneg %p68
    %p75 = scmp.eq.s32.totalorder %s11, 15
    %p76 = por %p74, %p75
    %p77 = scmp.ne.s32.totalorder %s69, %s72
    %p78 = scmp.eq.s32.totalorder %s11, 0
    %p79 = por %p77, %p78
    %p80 = scmp.ne.s32.totalorder %s69, %s72
    %p81 = scmp.eq.s32.totalorder %s16, 15
    %p82 = por %p80, %p81
    %p83 = scmp.ne.s32.totalorder %s72, %s73
    %p84 = scmp.eq.s32.totalorder %s16, 0
    %p85 = por %p83, %p84
    %p86 = scmp.ne.s32.totalorder %s72, %s73
    %p87 = scmp.eq.s32.totalorder %s17, 15
    %p88 = por %p86, %p87
    %p90 = scmp.ne.s32.totalorder %s73, %s89
    %p91 = scmp.eq.s32.totalorder %s17, 0
    %p92 = por %p90, %p91
    %s93 = smul.u32 %s19, 2
    %s94 = sadd.s32 %s93, 2
    %s95 = smul.u32 %s26, 2
    %s96 = sadd.s32 %s95, 2
    %s97 = ssub.s32 %s18, %s30
    %s98 = ssub.s32 %s94, %s96
    %s99 = sor.u32 %s97, %s98
    %p100 = scmp.eq.s32.totalorder %s99, 0
    %s102 = sadd.s32 %s101, 1
    %s103 = scalar_select %p100, %s101, %s102
    %p106 = pneg %p100
    %p107 = scmp.eq.s32.totalorder %s11, 15
    %p108 = por %p106, %p107
    %p109 = scmp.ne.s32.totalorder %s101, %s104
    %p110 = scmp.eq.s32.totalorder %s11, 0
    %p111 = por %p109, %p110
    %p112 = scmp.ne.s32.totalorder %s101, %s104
    %p113 = scmp.eq.s32.totalorder %s16, 15
    %p114 = por %p112, %p113
    %p115 = scmp.ne.s32.totalorder %s104, %s105
    %p116 = scmp.eq.s32.totalorder %s16, 0
    %p117 = por %p115, %p116
    %p118 = scmp.ne.s32.totalorder %s104, %s105
    %p119 = scmp.eq.s32.totalorder %s17, 15
    %p120 = por %p118, %p119
    %p122 = scmp.ne.s32.totalorder %s105, %s121
    %p123 = scmp.eq.s32.totalorder %s17, 0
    %p124 = por %p122, %p123
    %s126 = sadd.s32 %s125, 1
    %p129 = scmp.eq.s32.totalorder %s11, 15
    %p130 = scmp.ne.s32.totalorder %s125, %s127
    %p131 = scmp.eq.s32.totalorder %s11, 0
    %p132 = por %p130, %p131
    %p133 = scmp.ne.s32.totalorder %s125, %s127
    %p134 = scmp.eq.s32.totalorder %s16, 15
    %p135 = por %p133, %p134
    %p136 = scmp.ne.s32.totalorder %s127, %s128
    %p137 = scmp.eq.s32.totalorder %s16, 0
    %p138 = por %p136, %p137
    %p139 = scmp.ne.s32.totalorder %s127, %s128
    %p140 = scmp.eq.s32.totalorder %s17, 15
    %p141 = por %p139, %p140
    %p143 = scmp.ne.s32.totalorder %s128, %s142
    %p144 = scmp.eq.s32.totalorder %s17, 0
    %p145 = por %p143, %p144
    %s147 = sadd.s32 %s146, 1
    %p150 = scmp.eq.s32.totalorder %s11, 15
    %p151 = scmp.ne.s32.totalorder %s146, %s148
    %p152 = scmp.eq.s32.totalorder %s11, 0
    %p153 = por %p151, %p152
    %p154 = scmp.ne.s32.totalorder %s146, %s148
    %p155 = scmp.eq.s32.totalorder %s16, 15
    %p156 = por %p154, %p155
    %p157 = scmp.ne.s32.totalorder %s148, %s149
    %p158 = scmp.eq.s32.totalorder %s16, 0
    %p159 = por %p157, %p158
    %p160 = scmp.ne.s32.totalorder %s148, %s149
    %p161 = scmp.eq.s32.totalorder %s17, 15
    %p162 = por %p160, %p161
    %p164 = scmp.ne.s32.totalorder %s149, %s163
    %p165 = scmp.eq.s32.totalorder %s17, 0
    %p166 = por %p164, %p165
    %s167 = ssub.s32 %s18, %s30
    %s168 = ssub.s32 %s19, %s26
    %s169 = sor.u32 %s167, %s168
    %p170 = scmp.eq.s32.totalorder %s169, 0
    %s172 = sadd.s32 %s171, 1
    %s173 = scalar_select %p170, %s171, %s172
    %p176 = pneg %p170
    %p177 = scmp.eq.s32.totalorder %s11, 15
    %p178 = por %p176, %p177
    %p179 = scmp.ne.s32.totalorder %s171, %s174
    %p180 = scmp.eq.s32.totalorder %s11, 0
    %p181 = por %p179, %p180
    %p182 = scmp.ne.s32.totalorder %s171, %s174
    %p183 = scmp.eq.s32.totalorder %s16, 15
    %p184 = por %p182, %p183
    %p185 = scmp.ne.s32.totalorder %s174, %s175
    %p186 = scmp.eq.s32.totalorder %s16, 0
    %p187 = por %p185, %p186
    %p188 = scmp.ne.s32.totalorder %s174, %s175
    %p189 = scmp.eq.s32.totalorder %s17, 15
    %p190 = por %p188, %p189
    %p192 = scmp.ne.s32.totalorder %s175, %s191
    %p193 = scmp.eq.s32.totalorder %s17, 0
    %p194 = por %p192, %p193
    %p195 = scmp.le.s32.totalorder 1, %s11
    %p196 = scmp.lt.s32.totalorder %s11, 17
    %p197 = pnand %p195, %p196
    %p198 = pneg %p197
    // Predicated region
    $region9: #{_encoder_forward_impl.14} parent=5 // pred_check
      _
    $region10: #{_encoder_forward_impl.14} parent=5 // pred_check_branch
      %200 = sbr.rel (%p197) target = $region12
    $region11: #{_encoder_forward_impl.14} parent=5 // pred_region
      %s201 = ssub.s32 %s11, 1
      // Predicated region
      $region13: #{_encoder_forward_impl.14} parent=11 // pred_check
        %p202 = pneg %p138
      $region14: #{_encoder_forward_impl.14} parent=11 // pred_check_branch
        %204 = sbr.rel (%p202) target = $region16
      $region15: #{_encoder_forward_impl.14} parent=11 // pred_region
        _
      $region16: #{_encoder_forward_impl.14} parent=11 // pred_fallthru
        _
      // Predicated region
      $region17: #{_encoder_forward_impl.14} parent=11 // pred_check
        %p205 = pneg %p159
      $region18: #{_encoder_forward_impl.14} parent=11 // pred_check_branch
        %207 = sbr.rel (%p205) target = $region20
      $region19: #{_encoder_forward_impl.14} parent=11 // pred_region
        _
      $region20: #{_encoder_forward_impl.14} parent=11 // pred_fallthru
        _
    $region12: #{_encoder_forward_impl.14} parent=5 // pred_fallthru
      _
    %p208 = scmp.lt.s32.totalorder %s11, 16
    // Predicated region
    $region21: #{_encoder_forward_impl.14} parent=5 // pred_check
      %p209 = pneg %p208
    $region22: #{_encoder_forward_impl.14} parent=5 // pred_check_branch
      %211 = sbr.rel (%p209) target = $region24
    $region23: #{_encoder_forward_impl.14} parent=5 // pred_region
      // Predicated region
      $region25: #{_encoder_forward_impl.14} parent=23 // pred_check
        %p212 = pneg %p47
      $region26: #{_encoder_forward_impl.14} parent=23 // pred_check_branch
        %214 = sbr.rel (%p212) target = $region28
      $region27: #{_encoder_forward_impl.14} parent=23 // pred_region
        %s215 = smul.u32 %s19, 2
        %p216 = scmp.lt.s32.totalorder %s18, 1
        %s217 = scalar_select %p216, %s18, 1
        %p218 = scmp.lt.s32.totalorder %s215, 17
        %s219 = scalar_select %p218, %s215, 17
        %s220 = smul.addr %s219, 3
        %s221 = smul.addr %s217, 54
        %s222 = sadd.s32 %s220, %s221
        %s223 = smul.addr %s222, 4
        %s224 = scalar_lea.vmem %s0, %s223
        %s225 = smul.u32 %s19, 2
      $region28: #{_encoder_forward_impl.14} parent=23 // pred_fallthru
        _
      // Predicated region
      $region29: #{_encoder_forward_impl.14} parent=23 // pred_check
        %p226 = pneg %p79
      $region30: #{_encoder_forward_impl.14} parent=23 // pred_check_branch
        %228 = sbr.rel (%p226) target = $region32
      $region31: #{_encoder_forward_impl.14} parent=23 // pred_region
        %s229 = smul.u32 %s19, 2
        %s230 = sadd.s32 %s229, 1
        %p231 = scmp.lt.s32.totalorder %s18, 1
        %s232 = scalar_select %p231, %s18, 1
        %p233 = scmp.lt.s32.totalorder %s230, 17
        %s234 = scalar_select %p233, %s230, 17
        %s235 = smul.addr %s234, 3
        %s236 = smul.addr %s232, 54
        %s237 = sadd.s32 %s235, %s236
        %s238 = smul.addr %s237, 4
        %s239 = scalar_lea.vmem %s1, %s238
        %s240 = smul.u32 %s19, 2
        %s241 = sadd.s32 %s240, 1
      $region32: #{_encoder_forward_impl.14} parent=23 // pred_fallthru
        _
      // Predicated region
      $region33: #{_encoder_forward_impl.14} parent=23 // pred_check
        %p242 = pneg %p111
      $region34: #{_encoder_forward_impl.14} parent=23 // pred_check_branch
        %244 = sbr.rel (%p242) target = $region36
      $region35: #{_encoder_forward_impl.14} parent=23 // pred_region
        %s245 = smul.u32 %s19, 2
        %s246 = sadd.s32 %s245, 2
        %p247 = scmp.lt.s32.totalorder %s18, 1
        %s248 = scalar_select %p247, %s18, 1
        %p249 = scmp.lt.s32.totalorder %s246, 17
        %s250 = scalar_select %p249, %s246, 17
        %s251 = smul.addr %s250, 3
        %s252 = smul.addr %s248, 54
        %s253 = sadd.s32 %s251, %s252
        %s254 = smul.addr %s253, 4
        %s255 = scalar_lea.vmem %s2, %s254
        %s256 = smul.u32 %s19, 2
        %s257 = sadd.s32 %s256, 2
      $region36: #{_encoder_forward_impl.14} parent=23 // pred_fallthru
        _
    $region24: #{_encoder_forward_impl.14} parent=5 // pred_fallthru
      _
    %p258 = scmp.le.s32.totalorder 1, %s11
    %p259 = scmp.lt.s32.totalorder %s11, 17
    %p260 = pnand %p258, %p259
    %p261 = pneg %p260
    // Predicated region
    $region37: #{_encoder_forward_impl.14} parent=5 // pred_check
      _
    $region38: #{_encoder_forward_impl.14} parent=5 // pred_check_branch
      %263 = sbr.rel (%p260) target = $region40
    $region39: #{_encoder_forward_impl.14} parent=5 // pred_region
      %s264 = ssub.s32 %s11, 1
      %s265 = smul.u32 %s21, 2
      %p266 = scmp.lt.s32.totalorder %s20, 1
      %s267 = scalar_select %p266, %s20, 1
      %p268 = scmp.lt.s32.totalorder %s265, 17
      %s269 = scalar_select %p268, %s265, 17
      %s270 = smul.addr %s269, 3
      %s271 = smul.addr %s267, 54
      %s272 = sadd.s32 %s270, %s271
      %s273 = smul.addr %s272, 4
      %s274 = scalar_lea.vmem %s0, %s273
      %p275 = pneg %p53
      %p276 = pneg %p50
      %s277 = smul.u32 %s21, 2
      %s278 = sadd.s32 %s277, 1
      %p279 = scmp.lt.s32.totalorder %s20, 1
      %s280 = scalar_select %p279, %s20, 1
      %p281 = scmp.lt.s32.totalorder %s278, 17
      %s282 = scalar_select %p281, %s278, 17
      %s283 = smul.addr %s282, 3
      %s284 = smul.addr %s280, 54
      %s285 = sadd.s32 %s283, %s284
      %s286 = smul.addr %s285, 4
      %s287 = scalar_lea.vmem %s1, %s286
      %p288 = pneg %p85
      %p289 = pneg %p82
      %s290 = smul.u32 %s21, 2
      %s291 = sadd.s32 %s290, 2
      %p292 = scmp.lt.s32.totalorder %s20, 1
      %s293 = scalar_select %p292, %s20, 1
      %p294 = scmp.lt.s32.totalorder %s291, 17
      %s295 = scalar_select %p294, %s291, 17
      %s296 = smul.addr %s295, 3
      %s297 = smul.addr %s293, 54
      %s298 = sadd.s32 %s296, %s297
      %s299 = smul.addr %s298, 4
      %s300 = scalar_lea.vmem %s2, %s299
      %p301 = pneg %p117
      %p302 = pneg %p114
      %p303 = pneg %p138
      %p304 = pneg %p135
      %p305 = pneg %p159
      %p306 = pneg %p156
      %p307 = pneg %p187
      %p308 = pneg %p184
      %p309 = scmp.lt.s32.totalorder %s20, 1
      %s310 = scalar_select %p309, %s20, 1
      %p311 = scmp.lt.s32.totalorder %s21, 7
      %s312 = scalar_select %p311, %s21, 7
      %s313 = smul.addr %s310, 8
      %s314 = sadd.s32 %s312, %s313
      %s315 = smul.addr %s314, 4
      %s316 = scalar_lea.vmem %s5, %s315
      %s317 = smul.u32 %s21, 2
      %p318 = scmp.lt.s32.totalorder %s20, 1
      %s319 = scalar_select %p318, %s20, 1
      %p320 = scmp.lt.s32.totalorder %s317, 17
      %s321 = scalar_select %p320, %s317, 17
      %s322 = smul.addr %s321, 3
      %s323 = smul.addr %s319, 54
      %s324 = sadd.s32 %s322, %s323
      %s325 = smul.addr %s324, 4
      %s326 = scalar_lea.vmem %s0, %s325
      %s327 = smul.u32 %s21, 2
      %s328 = smul.u32 %s21, 2
      %s329 = sadd.s32 %s328, 1
      %p330 = scmp.lt.s32.totalorder %s20, 1
      %s331 = scalar_select %p330, %s20, 1
      %p332 = scmp.lt.s32.totalorder %s329, 17
      %s333 = scalar_select %p332, %s329, 17
      %s334 = smul.addr %s333, 3
      %s335 = smul.addr %s331, 54
      %s336 = sadd.s32 %s334, %s335
      %s337 = smul.addr %s336, 4
      %s338 = scalar_lea.vmem %s1, %s337
      %s339 = smul.u32 %s21, 2
      %s340 = sadd.s32 %s339, 1
      %s341 = smul.u32 %s21, 2
      %s342 = sadd.s32 %s341, 2
      %p343 = scmp.lt.s32.totalorder %s20, 1
      %s344 = scalar_select %p343, %s20, 1
      %p345 = scmp.lt.s32.totalorder %s342, 17
      %s346 = scalar_select %p345, %s342, 17
      %s347 = smul.addr %s346, 3
      %s348 = smul.addr %s344, 54
      %s349 = sadd.s32 %s347, %s348
      %s350 = smul.addr %s349, 4
      %s351 = scalar_lea.vmem %s2, %s350
      %s352 = smul.u32 %s21, 2
      %s353 = sadd.s32 %s352, 2
      %p354 = scmp.lt.s32.totalorder %s20, 1
      %s355 = scalar_select %p354, %s20, 1
      %p356 = scmp.lt.s32.totalorder %s21, 7
      %s357 = scalar_select %p356, %s21, 7
      %s358 = smul.addr %s355, 8
      %s359 = sadd.s32 %s357, %s358
      %s360 = smul.addr %s359, 4
      %s361 = scalar_lea.vmem %s5, %s360
      %v363 = vld [vmem:[%s326] sm:$0xff]
      %v364 = vld [vmem:[%s326 + $0x8] sm:$0xf]
      %v365 = vld [vmem:[%s338] sm:$0xff]
      %v366 = vld [vmem:[%s338 + $0x8] sm:$0xf]
      %v367 = vld [vmem:[%s351] sm:$0xff]
      %v368 = vld [vmem:[%s351 + $0x8] sm:$0xf]
      %v369 = vld [vmem:[%s3] sm:$0xf]
      %v370 = vld [vmem:[%s3 + $0x4] sm:$0xf]
      %v371 = vld [vmem:[%s3 + $0x8] sm:$0xf]
      %v372 = vld [vmem:[%s3 + $0xc] sm:$0xf]
      %v373 = vld [vmem:[%s3 + $0x10] sm:$0xf]
      %v374 = vld [vmem:[%s3 + $0x14] sm:$0xf]
      %v375 = vld [vmem:[%s3 + $0x18] sm:$0xf]
      %v376 = vld [vmem:[%s3 + $0x1c] sm:$0xf]
      %v377 = vld [vmem:[%s3 + $0x20] sm:$0xf]
      %v378 = vld [vmem:[%s3 + $0x24] sm:$0xf]
      %v379 = vld [vmem:[%s3 + $0x28] sm:$0xf]
      %v380 = vld [vmem:[%s3 + $0x2c] sm:$0xf]
      %v381 = vld [vmem:[%s3 + $0x30] sm:$0xf]
      %v382 = vld [vmem:[%s3 + $0x34] sm:$0xf]
      %v383 = vld [vmem:[%s3 + $0x38] sm:$0xf]
      %v384 = vld [vmem:[%s3 + $0x3c] sm:$0xf]
      %v385 = vld [vmem:[%s3 + $0x40] sm:$0xf]
      %v386 = vld [vmem:[%s3 + $0x44] sm:$0xf]
      %v387 = vld [vmem:[%s3 + $0x48] sm:$0xf]
      %v388 = vld [vmem:[%s3 + $0x4c] sm:$0xf]
      %v389 = vld [vmem:[%s3 + $0x50] sm:$0xf]
      %v390 = vld [vmem:[%s3 + $0x54] sm:$0xf]
      %v391 = vld [vmem:[%s3 + $0x58] sm:$0xf]
      %v392 = vld [vmem:[%s3 + $0x5c] sm:$0xf]
      %v393 = vld [vmem:[%s3 + $0x60] sm:$0xf]
      %v394 = vld [vmem:[%s3 + $0x64] sm:$0xf]
      %v395 = vld [vmem:[%s3 + $0x68] sm:$0xf]
      %v396 = vld [vmem:[%s3 + $0x6c] sm:$0xf]
      %v397 = vld [vmem:[%s3 + $0x70] sm:$0xf]
      %v398 = vld [vmem:[%s3 + $0x74] sm:$0xf]
      %v399 = vld [vmem:[%s3 + $0x78] sm:$0xf]
      %v400 = vld [vmem:[%s3 + $0x7c] sm:$0xf]
      %v401 = vld [vmem:[%s3 + $0x80] sm:$0xf]
      %v402 = vld [vmem:[%s3 + $0x84] sm:$0xf]
      %v403 = vld [vmem:[%s3 + $0x88] sm:$0xf]
      %v404 = vld [vmem:[%s3 + $0x8c] sm:$0xf]
      %v405 = vld [vmem:[%s3 + $0x90] sm:$0xf]
      %v406 = vld [vmem:[%s3 + $0x94] sm:$0xf]
      %v407 = vld [vmem:[%s3 + $0x98] sm:$0xf]
      %v408 = vld [vmem:[%s3 + $0x9c] sm:$0xf]
      %v409 = vld [vmem:[%s3 + $0xa0] sm:$0xf]
      %v410 = vld [vmem:[%s3 + $0xa4] sm:$0xf]
      %v411 = vld [vmem:[%s3 + $0xa8] sm:$0xf]
      %v412 = vld [vmem:[%s3 + $0xac] sm:$0xf]
      %v413 = vld [vmem:[%s3 + $0xb0] sm:$0xf]
      %v414 = vld [vmem:[%s3 + $0xb4] sm:$0xf]
      %v415 = vld [vmem:[%s3 + $0xb8] sm:$0xf]
      %v416 = vld [vmem:[%s3 + $0xbc] sm:$0xf]
      %s417 = scalar_lea.vmem %s3, 192
      %v418 = vld [vmem:[%s417] sm:$0xf]
      %v419 = vld [vmem:[%s417 + $0x4] sm:$0xf]
      %v420 = vld [vmem:[%s417 + $0x8] sm:$0xf]
      %v421 = vld [vmem:[%s417 + $0xc] sm:$0xf]
      %v422 = vld [vmem:[%s417 + $0x10] sm:$0xf]
      %v423 = vld [vmem:[%s417 + $0x14] sm:$0xf]
      %v424 = vld [vmem:[%s417 + $0x18] sm:$0xf]
      %v425 = vld [vmem:[%s417 + $0x1c] sm:$0xf]
      %v426 = vld [vmem:[%s417 + $0x20] sm:$0xf]
      %v427 = vld [vmem:[%s417 + $0x24] sm:$0xf]
      %v428 = vld [vmem:[%s417 + $0x28] sm:$0xf]
      %v429 = vld [vmem:[%s417 + $0x2c] sm:$0xf]
      %v430 = vld [vmem:[%s417 + $0x30] sm:$0xf]
      %v431 = vld [vmem:[%s417 + $0x34] sm:$0xf]
      %v432 = vld [vmem:[%s417 + $0x38] sm:$0xf]
      %v433 = vld [vmem:[%s417 + $0x3c] sm:$0xf]
      %v434 = vld [vmem:[%s417 + $0x40] sm:$0xf]
      %v435 = vld [vmem:[%s417 + $0x44] sm:$0xf]
      %v436 = vld [vmem:[%s417 + $0x48] sm:$0xf]
      %v437 = vld [vmem:[%s417 + $0x4c] sm:$0xf]
      %v438 = vld [vmem:[%s417 + $0x50] sm:$0xf]
      %v439 = vld [vmem:[%s417 + $0x54] sm:$0xf]
      %v440 = vld [vmem:[%s417 + $0x58] sm:$0xf]
      %v441 = vld [vmem:[%s417 + $0x5c] sm:$0xf]
      %v442 = vld [vmem:[%s417 + $0x60] sm:$0xf]
      %v443 = vld [vmem:[%s417 + $0x64] sm:$0xf]
      %v444 = vld [vmem:[%s417 + $0x68] sm:$0xf]
      %v445 = vld [vmem:[%s417 + $0x6c] sm:$0xf]
      %v446 = vld [vmem:[%s417 + $0x70] sm:$0xf]
      %v447 = vld [vmem:[%s417 + $0x74] sm:$0xf]
      %v448 = vld [vmem:[%s417 + $0x78] sm:$0xf]
      %v449 = vld [vmem:[%s417 + $0x7c] sm:$0xf]
      %v450 = vld [vmem:[%s417 + $0x80] sm:$0xf]
      %v451 = vld [vmem:[%s417 + $0x84] sm:$0xf]
      %v452 = vld [vmem:[%s417 + $0x88] sm:$0xf]
      %v453 = vld [vmem:[%s417 + $0x8c] sm:$0xf]
      %v454 = vld [vmem:[%s417 + $0x90] sm:$0xf]
      %v455 = vld [vmem:[%s417 + $0x94] sm:$0xf]
      %v456 = vld [vmem:[%s417 + $0x98] sm:$0xf]
      %v457 = vld [vmem:[%s417 + $0x9c] sm:$0xf]
      %v458 = vld [vmem:[%s417 + $0xa0] sm:$0xf]
      %v459 = vld [vmem:[%s417 + $0xa4] sm:$0xf]
      %v460 = vld [vmem:[%s417 + $0xa8] sm:$0xf]
      %v461 = vld [vmem:[%s417 + $0xac] sm:$0xf]
      %v462 = vld [vmem:[%s417 + $0xb0] sm:$0xf]
      %v463 = vld [vmem:[%s417 + $0xb4] sm:$0xf]
      %v464 = vld [vmem:[%s417 + $0xb8] sm:$0xf]
      %v465 = vld [vmem:[%s417 + $0xbc] sm:$0xf]
      %v468 = vunpack.c.l.b16 %v365
      %v469 = vunpack.c.h.b16 %v365
      %v470 = vunpack.c.l.b16 %v366
      %v471 = vpack.c.b16 %v468, %v468
      %v472 = vpack.c.b16 %v469, %v469
      %v473 = vpack.c.b16 %v470, %v470
      %v525 = vunpack.c.l.b16 %v418
      %v526 = vunpack.c.l.b16 %v419
      %v527 = vunpack.c.l.b16 %v420
      %v528 = vunpack.c.l.b16 %v421
      %v529 = vunpack.c.l.b16 %v422
      %v530 = vunpack.c.l.b16 %v423
      %v531 = vunpack.c.l.b16 %v424
      %v532 = vunpack.c.l.b16 %v425
      %v533 = vunpack.c.l.b16 %v426
      %v534 = vunpack.c.l.b16 %v427
      %v535 = vunpack.c.l.b16 %v428
      %v536 = vunpack.c.l.b16 %v429
      %v537 = vunpack.c.l.b16 %v430
      %v538 = vunpack.c.l.b16 %v431
      %v539 = vunpack.c.l.b16 %v432
      %v540 = vunpack.c.l.b16 %v433
      %v541 = vunpack.c.l.b16 %v434
      %v542 = vunpack.c.l.b16 %v435
      %v543 = vunpack.c.l.b16 %v436
      %v544 = vunpack.c.l.b16 %v437
      %v545 = vunpack.c.l.b16 %v438
      %v546 = vunpack.c.l.b16 %v439
      %v547 = vunpack.c.l.b16 %v440
      %v548 = vunpack.c.l.b16 %v441
      %v549 = vunpack.c.l.b16 %v442
      %v550 = vunpack.c.l.b16 %v443
      %v551 = vunpack.c.l.b16 %v444
      %v552 = vunpack.c.l.b16 %v445
      %v553 = vunpack.c.l.b16 %v446
      %v554 = vunpack.c.l.b16 %v447
      %v555 = vunpack.c.l.b16 %v448
      %v556 = vunpack.c.l.b16 %v449
      %v557 = vunpack.c.l.b16 %v450
      %v558 = vunpack.c.l.b16 %v451
      %v559 = vunpack.c.l.b16 %v452
      %v560 = vunpack.c.l.b16 %v453
      %v561 = vunpack.c.l.b16 %v454
      %v562 = vunpack.c.l.b16 %v455
      %v563 = vunpack.c.l.b16 %v456
      %v564 = vunpack.c.l.b16 %v457
      %v565 = vunpack.c.l.b16 %v458
      %v566 = vunpack.c.l.b16 %v459
      %v567 = vunpack.c.l.b16 %v460
      %v568 = vunpack.c.l.b16 %v461
      %v569 = vunpack.c.l.b16 %v462
      %v570 = vunpack.c.l.b16 %v463
      %v571 = vunpack.c.l.b16 %v464
      %v572 = vunpack.c.l.b16 %v465
      %v573 = vpack.c.b16 %v526, %v525
      %v574 = vpack.c.b16 %v528, %v527
      %v575 = vpack.c.b16 %v530, %v529
      %v576 = vpack.c.b16 %v532, %v531
      %v577 = vpack.c.b16 %v534, %v533
      %v578 = vpack.c.b16 %v536, %v535
      %v579 = vpack.c.b16 %v538, %v537
      %v580 = vpack.c.b16 %v540, %v539
      %v581 = vpack.c.b16 %v542, %v541
      %v582 = vpack.c.b16 %v544, %v543
      %v583 = vpack.c.b16 %v546, %v545
      %v584 = vpack.c.b16 %v548, %v547
      %v585 = vpack.c.b16 %v550, %v549
      %v586 = vpack.c.b16 %v552, %v551
      %v587 = vpack.c.b16 %v554, %v553
      %v588 = vpack.c.b16 %v556, %v555
      %v589 = vpack.c.b16 %v558, %v557
      %v590 = vpack.c.b16 %v560, %v559
      %v591 = vpack.c.b16 %v562, %v561
      %v592 = vpack.c.b16 %v564, %v563
      %v593 = vpack.c.b16 %v566, %v565
      %v594 = vpack.c.b16 %v568, %v567
      %v595 = vpack.c.b16 %v570, %v569
      %v596 = vpack.c.b16 %v572, %v571
      %621 = vmatprep.subr.bf16.mxu0 0
      %622 = vmatpush1.bf16.msra.mxu0 %v573
      %623 = vmatprep.subr.bf16.mxu0 0
      %624 = vmatpush1.bf16.msra.mxu0 %v574
      %625 = vmatprep.subr.bf16.mxu0 0
      %626 = vmatpush1.bf16.msra.mxu0 %v575
      %627 = vmatprep.subr.bf16.mxu0 0
      %628 = vmatpush1.bf16.msra.mxu0 %v576
      %629 = vmatprep.subr.bf16.mxu0 0
      %630 = vmatpush1.bf16.msra.mxu0 %v577
      %631 = vmatprep.subr.bf16.mxu0 0
      %632 = vmatpush1.bf16.msra.mxu0 %v578
      %633 = vmatprep.subr.bf16.mxu0 0
      %634 = vmatpush1.bf16.msra.mxu0 %v579
      %635 = vmatprep.subr.bf16.mxu0 0
      %636 = vmatpush1.bf16.msra.mxu0 %v580
      %637 = vmatprep.subr.bf16.mxu0 0
      %638 = vmatpush1.bf16.msra.mxu0 %v581
      %639 = vmatprep.subr.bf16.mxu0 0
      %640 = vmatpush1.bf16.msra.mxu0 %v582
      %641 = vmatprep.subr.bf16.mxu0 0
      %642 = vmatpush1.bf16.msra.mxu0 %v583
      %643 = vmatprep.subr.bf16.mxu0 0
      %644 = vmatpush1.bf16.msra.mxu0 %v584
      %645 = vmatprep.subr.bf16.mxu0 0
      %646 = vmatpush1.bf16.msra.mxu0 %v585
      %647 = vmatprep.subr.bf16.mxu0 0
      %648 = vmatpush1.bf16.msra.mxu0 %v586
      %649 = vmatprep.subr.bf16.mxu0 0
      %650 = vmatpush1.bf16.msra.mxu0 %v587
      %651 = vmatprep.subr.bf16.mxu0 0
      %652 = vmatpush1.bf16.msra.mxu0 %v588
      %653 = vmatprep.mubr.bf16.mxu0 %v472
      %654 = vmatmul.mubr.bf16.gmra.mrb[0].mxu0 %v471
      %v655 = vpop.f32.mrb[0].mxu0
      %v656 = vadd.f32 0.0, %v655
      %v657 = vpop.f32.mrb[0].mxu0
      %v658 = vpop.f32.mrb[0].mxu0
      %v659 = vpop.f32.mrb[0].mxu0
      %660 = vdwg.mxu0
      %661 = vmatprep.subr.bf16.mxu0 0
      %662 = vmatpush1.bf16.msra.mxu0 %v589
      %663 = vmatprep.subr.bf16.mxu0 0
      %664 = vmatpush1.bf16.msra.mxu0 %v590
      %665 = vmatprep.subr.bf16.mxu0 0
      %666 = vmatpush1.bf16.msra.mxu0 %v591
      %667 = vmatprep.subr.bf16.mxu0 0
      %668 = vmatpush1.bf16.msra.mxu0 %v592
      %669 = vmatprep.subr.bf16.mxu0 0
      %670 = vmatpush1.bf16.msra.mxu0 %v593
      %671 = vmatprep.subr.bf16.mxu0 0
      %672 = vmatpush1.bf16.msra.mxu0 %v594
      %673 = vmatprep.subr.bf16.mxu0 0
      %674 = vmatpush1.bf16.msra.mxu0 %v595
      %675 = vmatprep.subr.bf16.mxu0 0
      %676 = vmatpush1.bf16.msra.mxu0 %v596
      %677 = vmatprep.subr.bf16.mxu0 0
      %678 = vmatpush1.bf16.msra.mxu0 0
      %679 = vmatprep.subr.bf16.mxu0 0
      %680 = vmatpush1.bf16.msra.mxu0 0
      %681 = vmatprep.subr.bf16.mxu0 0
      %682 = vmatpush1.bf16.msra.mxu0 0
      %683 = vmatprep.subr.bf16.mxu0 0
      %684 = vmatpush1.bf16.msra.mxu0 0
      %685 = vmatprep.subr.bf16.mxu0 0
      %686 = vmatpush1.bf16.msra.mxu0 0
      %687 = vmatprep.subr.bf16.mxu0 0
      %688 = vmatpush1.bf16.msra.mxu0 0
      %689 = vmatprep.subr.bf16.mxu0 0
      %690 = vmatpush1.bf16.msra.mxu0 0
      %691 = vmatprep.subr.bf16.mxu0 0
      %692 = vmatpush1.bf16.msra.mxu0 0
      %693 = vmatprep.mubr.bf16.mxu0 0
      %694 = vmatmul.mubr.bf16.gmra.mrb[0].mxu0 %v473
      %v695 = vpop.f32.mrb[0].mxu0
      %v696 = vadd.f32 %v656, %v695
      %v697 = vpop.f32.mrb[0].mxu0
      %v698 = vpop.f32.mrb[0].mxu0
      %v699 = vpop.f32.mrb[0].mxu0
      %700 = vdwg.mxu0
      %v703 = vunpack.c.l.b16 %v363
      %v704 = vunpack.c.h.b16 %v363
      %v705 = vunpack.c.l.b16 %v364
      %v706 = vpack.c.b16 %v703, %v703
      %v707 = vpack.c.b16 %v704, %v704
      %v708 = vpack.c.b16 %v705, %v705
      %v760 = vunpack.c.l.b16 %v369
      %v761 = vunpack.c.l.b16 %v370
      %v762 = vunpack.c.l.b16 %v371
      %v763 = vunpack.c.l.b16 %v372
      %v764 = vunpack.c.l.b16 %v373
      %v765 = vunpack.c.l.b16 %v374
      %v766 = vunpack.c.l.b16 %v375
      %v767 = vunpack.c.l.b16 %v376
      %v768 = vunpack.c.l.b16 %v377
      %v769 = vunpack.c.l.b16 %v378
      %v770 = vunpack.c.l.b16 %v379
      %v771 = vunpack.c.l.b16 %v380
      %v772 = vunpack.c.l.b16 %v381
      %v773 = vunpack.c.l.b16 %v382
      %v774 = vunpack.c.l.b16 %v383
      %v775 = vunpack.c.l.b16 %v384
      %v776 = vunpack.c.l.b16 %v385
      %v777 = vunpack.c.l.b16 %v386
      %v778 = vunpack.c.l.b16 %v387
      %v779 = vunpack.c.l.b16 %v388
      %v780 = vunpack.c.l.b16 %v389
      %v781 = vunpack.c.l.b16 %v390
      %v782 = vunpack.c.l.b16 %v391
      %v783 = vunpack.c.l.b16 %v392
      %v784 = vunpack.c.l.b16 %v393
      %v785 = vunpack.c.l.b16 %v394
      %v786 = vunpack.c.l.b16 %v395
      %v787 = vunpack.c.l.b16 %v396
      %v788 = vunpack.c.l.b16 %v397
      %v789 = vunpack.c.l.b16 %v398
      %v790 = vunpack.c.l.b16 %v399
      %v791 = vunpack.c.l.b16 %v400
      %v792 = vunpack.c.l.b16 %v401
      %v793 = vunpack.c.l.b16 %v402
      %v794 = vunpack.c.l.b16 %v403
      %v795 = vunpack.c.l.b16 %v404
      %v796 = vunpack.c.l.b16 %v405
      %v797 = vunpack.c.l.b16 %v406
      %v798 = vunpack.c.l.b16 %v407
      %v799 = vunpack.c.l.b16 %v408
      %v800 = vunpack.c.l.b16 %v409
      %v801 = vunpack.c.l.b16 %v410
      %v802 = vunpack.c.l.b16 %v411
      %v803 = vunpack.c.l.b16 %v412
      %v804 = vunpack.c.l.b16 %v413
      %v805 = vunpack.c.l.b16 %v414
      %v806 = vunpack.c.l.b16 %v415
      %v807 = vunpack.c.l.b16 %v416
      %v808 = vpack.c.b16 %v761, %v760
      %v809 = vpack.c.b16 %v763, %v762
      %v810 = vpack.c.b16 %v765, %v764
      %v811 = vpack.c.b16 %v767, %v766
      %v812 = vpack.c.b16 %v769, %v768
      %v813 = vpack.c.b16 %v771, %v770
      %v814 = vpack.c.b16 %v773, %v772
      %v815 = vpack.c.b16 %v775, %v774
      %v816 = vpack.c.b16 %v777, %v776
      %v817 = vpack.c.b16 %v779, %v778
      %v818 = vpack.c.b16 %v781, %v780
      %v819 = vpack.c.b16 %v783, %v782
      %v820 = vpack.c.b16 %v785, %v784
      %v821 = vpack.c.b16 %v787, %v786
      %v822 = vpack.c.b16 %v789, %v788
      %v823 = vpack.c.b16 %v791, %v790
      %v824 = vpack.c.b16 %v793, %v792
      %v825 = vpack.c.b16 %v795, %v794
      %v826 = vpack.c.b16 %v797, %v796
      %v827 = vpack.c.b16 %v799, %v798
      %v828 = vpack.c.b16 %v801, %v800
      %v829 = vpack.c.b16 %v803, %v802
      %v830 = vpack.c.b16 %v805, %v804
      %v831 = vpack.c.b16 %v807, %v806
      %856 = vmatprep.subr.bf16.mxu0 0
      %857 = vmatpush1.bf16.msra.mxu0 %v808
      %858 = vmatprep.subr.bf16.mxu0 0
      %859 = vmatpush1.bf16.msra.mxu0 %v809
      %860 = vmatprep.subr.bf16.mxu0 0
      %861 = vmatpush1.bf16.msra.mxu0 %v810
      %862 = vmatprep.subr.bf16.mxu0 0
      %863 = vmatpush1.bf16.msra.mxu0 %v811
      %864 = vmatprep.subr.bf16.mxu0 0
      %865 = vmatpush1.bf16.msra.mxu0 %v812
      %866 = vmatprep.subr.bf16.mxu0 0
      %867 = vmatpush1.bf16.msra.mxu0 %v813
      %868 = vmatprep.subr.bf16.mxu0 0
      %869 = vmatpush1.bf16.msra.mxu0 %v814
      %870 = vmatprep.subr.bf16.mxu0 0
      %871 = vmatpush1.bf16.msra.mxu0 %v815
      %872 = vmatprep.subr.bf16.mxu0 0
      %873 = vmatpush1.bf16.msra.mxu0 %v816
      %874 = vmatprep.subr.bf16.mxu0 0
      %875 = vmatpush1.bf16.msra.mxu0 %v817
      %876 = vmatprep.subr.bf16.mxu0 0
      %877 = vmatpush1.bf16.msra.mxu0 %v818
      %878 = vmatprep.subr.bf16.mxu0 0
      %879 = vmatpush1.bf16.msra.mxu0 %v819
      %880 = vmatprep.subr.bf16.mxu0 0
      %881 = vmatpush1.bf16.msra.mxu0 %v820
      %882 = vmatprep.subr.bf16.mxu0 0
      %883 = vmatpush1.bf16.msra.mxu0 %v821
      %884 = vmatprep.subr.bf16.mxu0 0
      %885 = vmatpush1.bf16.msra.mxu0 %v822
      %886 = vmatprep.subr.bf16.mxu0 0
      %887 = vmatpush1.bf16.msra.mxu0 %v823
      %888 = vmatprep.mubr.bf16.mxu0 %v707
      %889 = vmatmul.mubr.bf16.gmra.mrb[0].mxu0 %v706
      %v890 = vpop.f32.mrb[0].mxu0
      %v891 = vadd.f32 %v696, %v890
      %v892 = vpop.f32.mrb[0].mxu0
      %v893 = vpop.f32.mrb[0].mxu0
      %v894 = vpop.f32.mrb[0].mxu0
      %895 = vdwg.mxu0
      %896 = vmatprep.subr.bf16.mxu0 0
      %897 = vmatpush1.bf16.msra.mxu0 %v824
      %898 = vmatprep.subr.bf16.mxu0 0
      %899 = vmatpush1.bf16.msra.mxu0 %v825
      %900 = vmatprep.subr.bf16.mxu0 0
      %901 = vmatpush1.bf16.msra.mxu0 %v826
      %902 = vmatprep.subr.bf16.mxu0 0
      %903 = vmatpush1.bf16.msra.mxu0 %v827
      %904 = vmatprep.subr.bf16.mxu0 0
      %905 = vmatpush1.bf16.msra.mxu0 %v828
      %906 = vmatprep.subr.bf16.mxu0 0
      %907 = vmatpush1.bf16.msra.mxu0 %v829
      %908 = vmatprep.subr.bf16.mxu0 0
      %909 = vmatpush1.bf16.msra.mxu0 %v830
      %910 = vmatprep.subr.bf16.mxu0 0
      %911 = vmatpush1.bf16.msra.mxu0 %v831
      %912 = vmatprep.subr.bf16.mxu0 0
      %913 = vmatpush1.bf16.msra.mxu0 0
      %914 = vmatprep.subr.bf16.mxu0 0
      %915 = vmatpush1.bf16.msra.mxu0 0
      %916 = vmatprep.subr.bf16.mxu0 0
      %917 = vmatpush1.bf16.msra.mxu0 0
      %918 = vmatprep.subr.bf16.mxu0 0
      %919 = vmatpush1.bf16.msra.mxu0 0
      %920 = vmatprep.subr.bf16.mxu0 0
      %921 = vmatpush1.bf16.msra.mxu0 0
      %922 = vmatprep.subr.bf16.mxu0 0
      %923 = vmatpush1.bf16.msra.mxu0 0
      %924 = vmatprep.subr.bf16.mxu0 0
      %925 = vmatpush1.bf16.msra.mxu0 0
      %926 = vmatprep.subr.bf16.mxu0 0
      %927 = vmatpush1.bf16.msra.mxu0 0
      %928 = vmatprep.mubr.bf16.mxu0 0
      %929 = vmatmul.mubr.bf16.gmra.mrb[0].mxu0 %v708
      %v930 = vpop.f32.mrb[0].mxu0
      %v931 = vadd.f32 %v891, %v930
      %v932 = vpop.f32.mrb[0].mxu0
      %v933 = vpop.f32.mrb[0].mxu0
      %v934 = vpop.f32.mrb[0].mxu0
      %935 = vdwg.mxu0
      %s936 = scalar_lea.vmem %s3, 384
      %v937 = vld [vmem:[%s936] sm:$0xf]
      %v938 = vld [vmem:[%s936 + $0x4] sm:$0xf]
      %v939 = vld [vmem:[%s936 + $0x8] sm:$0xf]
      %v940 = vld [vmem:[%s936 + $0xc] sm:$0xf]
      %v941 = vld [vmem:[%s936 + $0x10] sm:$0xf]
      %v942 = vld [vmem:[%s936 + $0x14] sm:$0xf]
      %v943 = vld [vmem:[%s936 + $0x18] sm:$0xf]
      %v944 = vld [vmem:[%s936 + $0x1c] sm:$0xf]
      %v945 = vld [vmem:[%s936 + $0x20] sm:$0xf]
      %v946 = vld [vmem:[%s936 + $0x24] sm:$0xf]
      %v947 = vld [vmem:[%s936 + $0x28] sm:$0xf]
      %v948 = vld [vmem:[%s936 + $0x2c] sm:$0xf]
      %v949 = vld [vmem:[%s936 + $0x30] sm:$0xf]
      %v950 = vld [vmem:[%s936 + $0x34] sm:$0xf]
      %v951 = vld [vmem:[%s936 + $0x38] sm:$0xf]
      %v952 = vld [vmem:[%s936 + $0x3c] sm:$0xf]
      %v953 = vld [vmem:[%s936 + $0x40] sm:$0xf]
      %v954 = vld [vmem:[%s936 + $0x44] sm:$0xf]
      %v955 = vld [vmem:[%s936 + $0x48] sm:$0xf]
      %v956 = vld [vmem:[%s936 + $0x4c] sm:$0xf]
      %v957 = vld [vmem:[%s936 + $0x50] sm:$0xf]
      %v958 = vld [vmem:[%s936 + $0x54] sm:$0xf]
      %v959 = vld [vmem:[%s936 + $0x58] sm:$0xf]
      %v960 = vld [vmem:[%s936 + $0x5c] sm:$0xf]
      %v961 = vld [vmem:[%s936 + $0x60] sm:$0xf]
      %v962 = vld [vmem:[%s936 + $0x64] sm:$0xf]
      %v963 = vld [vmem:[%s936 + $0x68] sm:$0xf]
      %v964 = vld [vmem:[%s936 + $0x6c] sm:$0xf]
      %v965 = vld [vmem:[%s936 + $0x70] sm:$0xf]
      %v966 = vld [vmem:[%s936 + $0x74] sm:$0xf]
      %v967 = vld [vmem:[%s936 + $0x78] sm:$0xf]
      %v968 = vld [vmem:[%s936 + $0x7c] sm:$0xf]
      %v969 = vld [vmem:[%s936 + $0x80] sm:$0xf]
      %v970 = vld [vmem:[%s936 + $0x84] sm:$0xf]
      %v971 = vld [vmem:[%s936 + $0x88] sm:$0xf]
      %v972 = vld [vmem:[%s936 + $0x8c] sm:$0xf]
      %v973 = vld [vmem:[%s936 + $0x90] sm:$0xf]
      %v974 = vld [vmem:[%s936 + $0x94] sm:$0xf]
      %v975 = vld [vmem:[%s936 + $0x98] sm:$0xf]
      %v976 = vld [vmem:[%s936 + $0x9c] sm:$0xf]
      %v977 = vld [vmem:[%s936 + $0xa0] sm:$0xf]
      %v978 = vld [vmem:[%s936 + $0xa4] sm:$0xf]
      %v979 = vld [vmem:[%s936 + $0xa8] sm:$0xf]
      %v980 = vld [vmem:[%s936 + $0xac] sm:$0xf]
      %v981 = vld [vmem:[%s936 + $0xb0] sm:$0xf]
      %v982 = vld [vmem:[%s936 + $0xb4] sm:$0xf]
      %v983 = vld [vmem:[%s936 + $0xb8] sm:$0xf]
      %v984 = vld [vmem:[%s936 + $0xbc] sm:$0xf]
      %v987 = vunpack.c.l.b16 %v367
      %v988 = vunpack.c.h.b16 %v367
      %v989 = vunpack.c.l.b16 %v368
      %v990 = vpack.c.b16 %v987, %v987
      %v991 = vpack.c.b16 %v988, %v988
      %v992 = vpack.c.b16 %v989, %v989
      %v1044 = vunpack.c.l.b16 %v937
      %v1045 = vunpack.c.l.b16 %v938
      %v1046 = vunpack.c.l.b16 %v939
      %v1047 = vunpack.c.l.b16 %v940
      %v1048 = vunpack.c.l.b16 %v941
      %v1049 = vunpack.c.l.b16 %v942
      %v1050 = vunpack.c.l.b16 %v943
      %v1051 = vunpack.c.l.b16 %v944
      %v1052 = vunpack.c.l.b16 %v945
      %v1053 = vunpack.c.l.b16 %v946
      %v1054 = vunpack.c.l.b16 %v947
      %v1055 = vunpack.c.l.b16 %v948
      %v1056 = vunpack.c.l.b16 %v949
      %v1057 = vunpack.c.l.b16 %v950
      %v1058 = vunpack.c.l.b16 %v951
      %v1059 = vunpack.c.l.b16 %v952
      %v1060 = vunpack.c.l.b16 %v953
      %v1061 = vunpack.c.l.b16 %v954
      %v1062 = vunpack.c.l.b16 %v955
      %v1063 = vunpack.c.l.b16 %v956
      %v1064 = vunpack.c.l.b16 %v957
      %v1065 = vunpack.c.l.b16 %v958
      %v1066 = vunpack.c.l.b16 %v959
      %v1067 = vunpack.c.l.b16 %v960
      %v1068 = vunpack.c.l.b16 %v961
      %v1069 = vunpack.c.l.b16 %v962
      %v1070 = vunpack.c.l.b16 %v963
      %v1071 = vunpack.c.l.b16 %v964
      %v1072 = vunpack.c.l.b16 %v965
      %v1073 = vunpack.c.l.b16 %v966
      %v1074 = vunpack.c.l.b16 %v967
      %v1075 = vunpack.c.l.b16 %v968
      %v1076 = vunpack.c.l.b16 %v969
      %v1077 = vunpack.c.l.b16 %v970
      %v1078 = vunpack.c.l.b16 %v971
      %v1079 = vunpack.c.l.b16 %v972
      %v1080 = vunpack.c.l.b16 %v973
      %v1081 = vunpack.c.l.b16 %v974
      %v1082 = vunpack.c.l.b16 %v975
      %v1083 = vunpack.c.l.b16 %v976
      %v1084 = vunpack.c.l.b16 %v977
      %v1085 = vunpack.c.l.b16 %v978
      %v1086 = vunpack.c.l.b16 %v979
      %v1087 = vunpack.c.l.b16 %v980
      %v1088 = vunpack.c.l.b16 %v981
      %v1089 = vunpack.c.l.b16 %v982
      %v1090 = vunpack.c.l.b16 %v983
      %v1091 = vunpack.c.l.b16 %v984
      %v1092 = vpack.c.b16 %v1045, %v1044
      %v1093 = vpack.c.b16 %v1047, %v1046
      %v1094 = vpack.c.b16 %v1049, %v1048
      %v1095 = vpack.c.b16 %v1051, %v1050
      %v1096 = vpack.c.b16 %v1053, %v1052
      %v1097 = vpack.c.b16 %v1055, %v1054
      %v1098 = vpack.c.b16 %v1057, %v1056
      %v1099 = vpack.c.b16 %v1059, %v1058
      %v1100 = vpack.c.b16 %v1061, %v1060
      %v1101 = vpack.c.b16 %v1063, %v1062
      %v1102 = vpack.c.b16 %v1065, %v1064
      %v1103 = vpack.c.b16 %v1067, %v1066
      %v1104 = vpack.c.b16 %v1069, %v1068
      %v1105 = vpack.c.b16 %v1071, %v1070
      %v1106 = vpack.c.b16 %v1073, %v1072
      %v1107 = vpack.c.b16 %v1075, %v1074
      %v1108 = vpack.c.b16 %v1077, %v1076
      %v1109 = vpack.c.b16 %v1079, %v1078
      %v1110 = vpack.c.b16 %v1081, %v1080
      %v1111 = vpack.c.b16 %v1083, %v1082
      %v1112 = vpack.c.b16 %v1085, %v1084
      %v1113 = vpack.c.b16 %v1087, %v1086
      %v1114 = vpack.c.b16 %v1089, %v1088
      %v1115 = vpack.c.b16 %v1091, %v1090
      %1140 = vmatprep.subr.bf16.mxu0 0
      %1141 = vmatpush1.bf16.msra.mxu0 %v1092
      %1142 = vmatprep.subr.bf16.mxu0 0
      %1143 = vmatpush1.bf16.msra.mxu0 %v1093
      %1144 = vmatprep.subr.bf16.mxu0 0
      %1145 = vmatpush1.bf16.msra.mxu0 %v1094
      %1146 = vmatprep.subr.bf16.mxu0 0
      %1147 = vmatpush1.bf16.msra.mxu0 %v1095
      %1148 = vmatprep.subr.bf16.mxu0 0
      %1149 = vmatpush1.bf16.msra.mxu0 %v1096
      %1150 = vmatprep.subr.bf16.mxu0 0
      %1151 = vmatpush1.bf16.msra.mxu0 %v1097
      %1152 = vmatprep.subr.bf16.mxu0 0
      %1153 = vmatpush1.bf16.msra.mxu0 %v1098
      %1154 = vmatprep.subr.bf16.mxu0 0
      %1155 = vmatpush1.bf16.msra.mxu0 %v1099
      %1156 = vmatprep.subr.bf16.mxu0 0
      %1157 = vmatpush1.bf16.msra.mxu0 %v1100
      %1158 = vmatprep.subr.bf16.mxu0 0
      %1159 = vmatpush1.bf16.msra.mxu0 %v1101
      %1160 = vmatprep.subr.bf16.mxu0 0
      %1161 = vmatpush1.bf16.msra.mxu0 %v1102
      %1162 = vmatprep.subr.bf16.mxu0 0
      %1163 = vmatpush1.bf16.msra.mxu0 %v1103
      %1164 = vmatprep.subr.bf16.mxu0 0
      %1165 = vmatpush1.bf16.msra.mxu0 %v1104
      %1166 = vmatprep.subr.bf16.mxu0 0
      %1167 = vmatpush1.bf16.msra.mxu0 %v1105
      %1168 = vmatprep.subr.bf16.mxu0 0
      %1169 = vmatpush1.bf16.msra.mxu0 %v1106
      %1170 = vmatprep.subr.bf16.mxu0 0
      %1171 = vmatpush1.bf16.msra.mxu0 %v1107
      %1172 = vmatprep.mubr.bf16.mxu0 %v991
      %1173 = vmatmul.mubr.bf16.gmra.mrb[0].mxu0 %v990
      %v1174 = vpop.f32.mrb[0].mxu0
      %v1175 = vadd.f32 0.0, %v1174
      %v1176 = vpop.f32.mrb[0].mxu0
      %v1177 = vpop.f32.mrb[0].mxu0
      %v1178 = vpop.f32.mrb[0].mxu0
      %1179 = vdwg.mxu0
      %1180 = vmatprep.subr.bf16.mxu0 0
      %1181 = vmatpush1.bf16.msra.mxu0 %v1108
      %1182 = vmatprep.subr.bf16.mxu0 0
      %1183 = vmatpush1.bf16.msra.mxu0 %v1109
      %1184 = vmatprep.subr.bf16.mxu0 0
      %1185 = vmatpush1.bf16.msra.mxu0 %v1110
      %1186 = vmatprep.subr.bf16.mxu0 0
      %1187 = vmatpush1.bf16.msra.mxu0 %v1111
      %1188 = vmatprep.subr.bf16.mxu0 0
      %1189 = vmatpush1.bf16.msra.mxu0 %v1112
      %1190 = vmatprep.subr.bf16.mxu0 0
      %1191 = vmatpush1.bf16.msra.mxu0 %v1113
      %1192 = vmatprep.subr.bf16.mxu0 0
      %1193 = vmatpush1.bf16.msra.mxu0 %v1114
      %1194 = vmatprep.subr.bf16.mxu0 0
      %1195 = vmatpush1.bf16.msra.mxu0 %v1115
      %1196 = vmatprep.subr.bf16.mxu0 0
      %1197 = vmatpush1.bf16.msra.mxu0 0
      %1198 = vmatprep.subr.bf16.mxu0 0
      %1199 = vmatpush1.bf16.msra.mxu0 0
      %1200 = vmatprep.subr.bf16.mxu0 0
      %1201 = vmatpush1.bf16.msra.mxu0 0
      %1202 = vmatprep.subr.bf16.mxu0 0
      %1203 = vmatpush1.bf16.msra.mxu0 0
      %1204 = vmatprep.subr.bf16.mxu0 0
      %1205 = vmatpush1.bf16.msra.mxu0 0
      %1206 = vmatprep.subr.bf16.mxu0 0
      %1207 = vmatpush1.bf16.msra.mxu0 0
      %1208 = vmatprep.subr.bf16.mxu0 0
      %1209 = vmatpush1.bf16.msra.mxu0 0
      %1210 = vmatprep.subr.bf16.mxu0 0
      %1211 = vmatpush1.bf16.msra.mxu0 0
      %1212 = vmatprep.mubr.bf16.mxu0 0
      %1213 = vmatmul.mubr.bf16.gmra.mrb[0].mxu0 %v992
      %v1214 = vpop.f32.mrb[0].mxu0
      %v1215 = vadd.f32 %v1175, %v1214
      %v1216 = vpop.f32.mrb[0].mxu0
      %v1217 = vpop.f32.mrb[0].mxu0
      %v1218 = vpop.f32.mrb[0].mxu0
      %1219 = vdwg.mxu0
      %v1220 = vadd.f32 %v931, %v1215
      %v1221 = vld [vmem:[%s4] sm:$0x1]
      %v1223 = vlaneseq
      %v1224 = vshrl.u32 %v1223, 7
      %v1225 = vsub.s32 0, %v1224
      %v1226 = vrot.slane %v1221, %v1225
      %v1228 = vadd.f32 %v1220, %v1226
      %v1229 = vmax.f32 %v1228, 0.0
      %v1230 = vpack.c.bf16 %v1229, %v1229
      %1231 = vst [vmem:[%s361] sm:$0xf] %v1230
      %p1232 = scmp.lt.s32.totalorder %s20, 1
      %s1233 = scalar_select %p1232, %s20, 1
      %p1234 = scmp.lt.s32.totalorder %s21, 7
      %s1235 = scalar_select %p1234, %s21, 7
      %s1236 = smul.addr %s1233, 8
      %s1237 = sadd.s32 %s1235, %s1236
      %s1238 = smul.addr %s1237, 4
      %s1239 = scalar_lea.vmem %s5, %s1238
      // Predicated region
      $region41: #{_encoder_forward_impl.14} parent=39 // pred_check
        %p1240 = pneg %p184
      $region42: #{_encoder_forward_impl.14} parent=39 // pred_check_branch
        %1242 = sbr.rel (%p1240) target = $region44
      $region43: #{_encoder_forward_impl.14} parent=39 // pred_region
        _
      $region44: #{_encoder_forward_impl.14} parent=39 // pred_fallthru
        _
    $region40: #{_encoder_forward_impl.14} parent=5 // pred_fallthru
      _
    %p1243 = scmp.le.s32.totalorder 2, %s11
    // Predicated region
    $region45: #{_encoder_forward_impl.14} parent=5 // pred_check
      %p1244 = pneg %p1243
    $region46: #{_encoder_forward_impl.14} parent=5 // pred_check_branch
      %1246 = sbr.rel (%p1244) target = $region48
    $region47: #{_encoder_forward_impl.14} parent=5 // pred_region
      %s1247 = ssub.s32 %s11, 2
      // Predicated region
      $region49: #{_encoder_forward_impl.14} parent=47 // pred_check
        %p1248 = pneg %p190
      $region50: #{_encoder_forward_impl.14} parent=47 // pred_check_branch
        %1250 = sbr.rel (%p1248) target = $region52
      $region51: #{_encoder_forward_impl.14} parent=47 // pred_region
        %p1251 = scmp.lt.s32.totalorder %s22, 1
        %s1252 = scalar_select %p1251, %s22, 1
        %p1253 = scmp.lt.s32.totalorder %s23, 7
        %s1254 = scalar_select %p1253, %s23, 7
        %s1255 = smul.addr %s1252, 8
        %s1256 = sadd.s32 %s1254, %s1255
        %s1257 = smul.addr %s1256, 4
        %s1258 = scalar_lea.vmem %s5, %s1257
      $region52: #{_encoder_forward_impl.14} parent=47 // pred_fallthru
        _
    $region48: #{_encoder_forward_impl.14} parent=5 // pred_fallthru
      _
  $region6: #{_encoder_forward_impl.14} parent=0 // loop_footer
    %s15 = sadd.s32 1, %s11
  $region7: #{_encoder_forward_impl.14} parent=0 // loop_footer_branch
    %10 = sbr.rel target = $region3
  $region8: #{_encoder_forward_impl.14} parent=0 // loop_exit
    _

// kernel: _encoder_forward_impl.18
$region0: #{_encoder_forward_impl.18}
  #allocation0 [shape = 'u32[]', space=smem, size = 0x4, offset = 0x4, fixed_abs, tag = 'smem constant byte address 0x4 - core index']
  #allocation1 [shape = 'u32[144,128]{1,0:T(1,128)}', space=vmem, size = 0x12000, scoped, tag = 'internal scratch']
  %s0 = inlined_call_operand.vmem [shape: bf16[2,10,4,384], index: 0, kind: input, shape index: {}, may-alias: {0,1,2}]
  %s1 = inlined_call_operand.vmem [shape: bf16[2,10,4,384], index: 1, kind: input, shape index: {}, may-alias: {0,1,2}]
  %s2 = inlined_call_operand.vmem [shape: bf16[2,10,4,384], index: 2, kind: input, shape index: {}, may-alias: {0,1,2}]
  %s3 = inlined_call_operand.vmem [shape: bf16[3,384,128], index: 3, kind: input, shape index: {}]
  %s4 = inlined_call_operand.vmem [shape: f32[1,128], index: 4, kind: input, shape index: {}]
  %s5 = inlined_call_operand.vmem [shape: bf16[2,4,4,128], index: 5, kind: output, shape index: {}]
  %s6 = sld [smem:[#allocation0]]
  $region53: #{_encoder_forward_impl.18} parent=0
    _
  %s8 = ssub.s32 1, %s6
  %s9 = scalar_select 0, %s8, %s6
  loop: start=0, step=1, limit=10
  $region2: #{_encoder_forward_impl.18} parent=0 // loop_pre_header
    _
  $region3: #{_encoder_forward_impl.18} parent=0 // loop_header
    %s11 = sphi 0, %s15
    %p12 = scmp.ge.s32.totalorder %s11, 10
    %s18 = sphi 0, %s30
    %s19 = sphi 0, %s26
    %s20 = sphi 0, %s18
    %s21 = sphi 0, %s19
    %s22 = sphi 0, %s20
    %s23 = sphi 0, %s21
    %s37 = sphi 0, %s39
    %s40 = sphi 0, %s37
    %s41 = sphi 0, %s40
    %s57 = sphi 0, %s41
    %s69 = sphi 0, %s71
    %s72 = sphi 0, %s69
    %s73 = sphi 0, %s72
    %s89 = sphi 0, %s73
    %s101 = sphi 0, %s103
    %s104 = sphi 0, %s101
    %s105 = sphi 0, %s104
    %s121 = sphi 0, %s105
    %s125 = sphi 0, %s125
    %s127 = sphi 0, %s125
    %s128 = sphi 0, %s127
    %s142 = sphi 0, %s128
    %s146 = sphi 0, %s146
    %s148 = sphi 0, %s146
    %s149 = sphi 0, %s148
    %s163 = sphi 0, %s149
    %s171 = sphi 0, %s173
    %s174 = sphi 0, %s171
    %s175 = sphi 0, %s174
    %s191 = sphi 0, %s175
  $region4: #{_encoder_forward_impl.18} parent=0 // loop_header_branch
    %14 = sbr.rel (%p12) target = $region8
  $region5: #{_encoder_forward_impl.18} parent=0 // loop_body
    %s16 = ssub.s32 %s11, 1
    %s17 = ssub.s32 %s11, 2
    %s24 = sadd.s32 1, %s19
    %p25 = scmp.ge.s32.totalorder %s24, 4
    %s26 = scalar_select %p25, 0, %s24
    %s27 = sadd.s32 1, %s18
    %s28 = scalar_select %p25, %s27, %s18
    %p29 = scmp.ge.s32.totalorder %s28, 2
    %s30 = scalar_select %p29, 0, %s28
    %s31 = smul.u32 %s19, 2
    %s32 = smul.u32 %s26, 2
    %s33 = ssub.s32 %s18, %s30
    %s34 = ssub.s32 %s31, %s32
    %s35 = sor.u32 %s33, %s34
    %p36 = scmp.eq.s32.totalorder %s35, 0
    %s38 = sadd.s32 %s37, 1
    %s39 = scalar_select %p36, %s37, %s38
    %p42 = pneg %p36
    %p43 = scmp.eq.s32.totalorder %s11, 7
    %p44 = por %p42, %p43
    %p45 = scmp.ne.s32.totalorder %s37, %s40
    %p46 = scmp.eq.s32.totalorder %s11, 0
    %p47 = por %p45, %p46
    %p48 = scmp.ne.s32.totalorder %s37, %s40
    %p49 = scmp.eq.s32.totalorder %s16, 7
    %p50 = por %p48, %p49
    %p51 = scmp.ne.s32.totalorder %s40, %s41
    %p52 = scmp.eq.s32.totalorder %s16, 0
    %p53 = por %p51, %p52
    %p54 = scmp.ne.s32.totalorder %s40, %s41
    %p55 = scmp.eq.s32.totalorder %s17, 7
    %p56 = por %p54, %p55
    %p58 = scmp.ne.s32.totalorder %s41, %s57
    %p59 = scmp.eq.s32.totalorder %s17, 0
    %p60 = por %p58, %p59
    %s61 = smul.u32 %s19, 2
    %s62 = sadd.s32 %s61, 1
    %s63 = smul.u32 %s26, 2
    %s64 = sadd.s32 %s63, 1
    %s65 = ssub.s32 %s18, %s30
    %s66 = ssub.s32 %s62, %s64
    %s67 = sor.u32 %s65, %s66
    %p68 = scmp.eq.s32.totalorder %s67, 0
    %s70 = sadd.s32 %s69, 1
    %s71 = scalar_select %p68, %s69, %s70
    %p74 = pneg %p68
    %p75 = scmp.eq.s32.totalorder %s11, 7
    %p76 = por %p74, %p75
    %p77 = scmp.ne.s32.totalorder %s69, %s72
    %p78 = scmp.eq.s32.totalorder %s11, 0
    %p79 = por %p77, %p78
    %p80 = scmp.ne.s32.totalorder %s69, %s72
    %p81 = scmp.eq.s32.totalorder %s16, 7
    %p82 = por %p80, %p81
    %p83 = scmp.ne.s32.totalorder %s72, %s73
    %p84 = scmp.eq.s32.totalorder %s16, 0
    %p85 = por %p83, %p84
    %p86 = scmp.ne.s32.totalorder %s72, %s73
    %p87 = scmp.eq.s32.totalorder %s17, 7
    %p88 = por %p86, %p87
    %p90 = scmp.ne.s32.totalorder %s73, %s89
    %p91 = scmp.eq.s32.totalorder %s17, 0
    %p92 = por %p90, %p91
    %s93 = smul.u32 %s19, 2
    %s94 = sadd.s32 %s93, 2
    %s95 = smul.u32 %s26, 2
    %s96 = sadd.s32 %s95, 2
    %s97 = ssub.s32 %s18, %s30
    %s98 = ssub.s32 %s94, %s96
    %s99 = sor.u32 %s97, %s98
    %p100 = scmp.eq.s32.totalorder %s99, 0
    %s102 = sadd.s32 %s101, 1
    %s103 = scalar_select %p100, %s101, %s102
    %p106 = pneg %p100
    %p107 = scmp.eq.s32.totalorder %s11, 7
    %p108 = por %p106, %p107
    %p109 = scmp.ne.s32.totalorder %s101, %s104
    %p110 = scmp.eq.s32.totalorder %s11, 0
    %p111 = por %p109, %p110
    %p112 = scmp.ne.s32.totalorder %s101, %s104
    %p113 = scmp.eq.s32.totalorder %s16, 7
    %p114 = por %p112, %p113
    %p115 = scmp.ne.s32.totalorder %s104, %s105
    %p116 = scmp.eq.s32.totalorder %s16, 0
    %p117 = por %p115, %p116
    %p118 = scmp.ne.s32.totalorder %s104, %s105
    %p119 = scmp.eq.s32.totalorder %s17, 7
    %p120 = por %p118, %p119
    %p122 = scmp.ne.s32.totalorder %s105, %s121
    %p123 = scmp.eq.s32.totalorder %s17, 0
    %p124 = por %p122, %p123
    %s126 = sadd.s32 %s125, 1
    %p129 = scmp.eq.s32.totalorder %s11, 7
    %p130 = scmp.ne.s32.totalorder %s125, %s127
    %p131 = scmp.eq.s32.totalorder %s11, 0
    %p132 = por %p130, %p131
    %p133 = scmp.ne.s32.totalorder %s125, %s127
    %p134 = scmp.eq.s32.totalorder %s16, 7
    %p135 = por %p133, %p134
    %p136 = scmp.ne.s32.totalorder %s127, %s128
    %p137 = scmp.eq.s32.totalorder %s16, 0
    %p138 = por %p136, %p137
    %p139 = scmp.ne.s32.totalorder %s127, %s128
    %p140 = scmp.eq.s32.totalorder %s17, 7
    %p141 = por %p139, %p140
    %p143 = scmp.ne.s32.totalorder %s128, %s142
    %p144 = scmp.eq.s32.totalorder %s17, 0
    %p145 = por %p143, %p144
    %s147 = sadd.s32 %s146, 1
    %p150 = scmp.eq.s32.totalorder %s11, 7
    %p151 = scmp.ne.s32.totalorder %s146, %s148
    %p152 = scmp.eq.s32.totalorder %s11, 0
    %p153 = por %p151, %p152
    %p154 = scmp.ne.s32.totalorder %s146, %s148
    %p155 = scmp.eq.s32.totalorder %s16, 7
    %p156 = por %p154, %p155
    %p157 = scmp.ne.s32.totalorder %s148, %s149
    %p158 = scmp.eq.s32.totalorder %s16, 0
    %p159 = por %p157, %p158
    %p160 = scmp.ne.s32.totalorder %s148, %s149
    %p161 = scmp.eq.s32.totalorder %s17, 7
    %p162 = por %p160, %p161
    %p164 = scmp.ne.s32.totalorder %s149, %s163
    %p165 = scmp.eq.s32.totalorder %s17, 0
    %p166 = por %p164, %p165
    %s167 = ssub.s32 %s18, %s30
    %s168 = ssub.s32 %s19, %s26
    %s169 = sor.u32 %s167, %s168
    %p170 = scmp.eq.s32.totalorder %s169, 0
    %s172 = sadd.s32 %s171, 1
    %s173 = scalar_select %p170, %s171, %s172
    %p176 = pneg %p170
    %p177 = scmp.eq.s32.totalorder %s11, 7
    %p178 = por %p176, %p177
    %p179 = scmp.ne.s32.totalorder %s171, %s174
    %p180 = scmp.eq.s32.totalorder %s11, 0
    %p181 = por %p179, %p180
    %p182 = scmp.ne.s32.totalorder %s171, %s174
    %p183 = scmp.eq.s32.totalorder %s16, 7
    %p184 = por %p182, %p183
    %p185 = scmp.ne.s32.totalorder %s174, %s175
    %p186 = scmp.eq.s32.totalorder %s16, 0
    %p187 = por %p185, %p186
    %p188 = scmp.ne.s32.totalorder %s174, %s175
    %p189 = scmp.eq.s32.totalorder %s17, 7
    %p190 = por %p188, %p189
    %p192 = scmp.ne.s32.totalorder %s175, %s191
    %p193 = scmp.eq.s32.totalorder %s17, 0
    %p194 = por %p192, %p193
    %p195 = scmp.le.s32.totalorder 1, %s11
    %p196 = scmp.lt.s32.totalorder %s11, 9
    %p197 = pnand %p195, %p196
    %p198 = pneg %p197
    // Predicated region
    $region9: #{_encoder_forward_impl.18} parent=5 // pred_check
      _
    $region10: #{_encoder_forward_impl.18} parent=5 // pred_check_branch
      %200 = sbr.rel (%p197) target = $region12
    $region11: #{_encoder_forward_impl.18} parent=5 // pred_region
      %s201 = ssub.s32 %s11, 1
      // Predicated region
      $region13: #{_encoder_forward_impl.18} parent=11 // pred_check
        %p202 = pneg %p138
      $region14: #{_encoder_forward_impl.18} parent=11 // pred_check_branch
        %204 = sbr.rel (%p202) target = $region16
      $region15: #{_encoder_forward_impl.18} parent=11 // pred_region
        _
      $region16: #{_encoder_forward_impl.18} parent=11 // pred_fallthru
        _
      // Predicated region
      $region17: #{_encoder_forward_impl.18} parent=11 // pred_check
        %p205 = pneg %p159
      $region18: #{_encoder_forward_impl.18} parent=11 // pred_check_branch
        %207 = sbr.rel (%p205) target = $region20
      $region19: #{_encoder_forward_impl.18} parent=11 // pred_region
        _
      $region20: #{_encoder_forward_impl.18} parent=11 // pred_fallthru
        _
    $region12: #{_encoder_forward_impl.18} parent=5 // pred_fallthru
      _
    %p208 = scmp.lt.s32.totalorder %s11, 8
    // Predicated region
    $region21: #{_encoder_forward_impl.18} parent=5 // pred_check
      %p209 = pneg %p208
    $region22: #{_encoder_forward_impl.18} parent=5 // pred_check_branch
      %211 = sbr.rel (%p209) target = $region24
    $region23: #{_encoder_forward_impl.18} parent=5 // pred_region
      // Predicated region
      $region25: #{_encoder_forward_impl.18} parent=23 // pred_check
        %p212 = pneg %p47
      $region26: #{_encoder_forward_impl.18} parent=23 // pred_check_branch
        %214 = sbr.rel (%p212) target = $region28
      $region27: #{_encoder_forward_impl.18} parent=23 // pred_region
        %s215 = smul.u32 %s19, 2
        %p216 = scmp.lt.s32.totalorder %s18, 1
        %s217 = scalar_select %p216, %s18, 1
        %p218 = scmp.lt.s32.totalorder %s215, 9
        %s219 = scalar_select %p218, %s215, 9
        %s220 = smul.addr %s219, 3
        %s221 = smul.addr %s217, 30
        %s222 = sadd.s32 %s220, %s221
        %s223 = smul.addr %s222, 2
        %s224 = scalar_lea.vmem %s0, %s223
        %s225 = smul.u32 %s19, 2
      $region28: #{_encoder_forward_impl.18} parent=23 // pred_fallthru
        _
      // Predicated region
      $region29: #{_encoder_forward_impl.18} parent=23 // pred_check
        %p226 = pneg %p79
      $region30: #{_encoder_forward_impl.18} parent=23 // pred_check_branch
        %228 = sbr.rel (%p226) target = $region32
      $region31: #{_encoder_forward_impl.18} parent=23 // pred_region
        %s229 = smul.u32 %s19, 2
        %s230 = sadd.s32 %s229, 1
        %p231 = scmp.lt.s32.totalorder %s18, 1
        %s232 = scalar_select %p231, %s18, 1
        %p233 = scmp.lt.s32.totalorder %s230, 9
        %s234 = scalar_select %p233, %s230, 9
        %s235 = smul.addr %s234, 3
        %s236 = smul.addr %s232, 30
        %s237 = sadd.s32 %s235, %s236
        %s238 = smul.addr %s237, 2
        %s239 = scalar_lea.vmem %s1, %s238
        %s240 = smul.u32 %s19, 2
        %s241 = sadd.s32 %s240, 1
      $region32: #{_encoder_forward_impl.18} parent=23 // pred_fallthru
        _
      // Predicated region
      $region33: #{_encoder_forward_impl.18} parent=23 // pred_check
        %p242 = pneg %p111
      $region34: #{_encoder_forward_impl.18} parent=23 // pred_check_branch
        %244 = sbr.rel (%p242) target = $region36
      $region35: #{_encoder_forward_impl.18} parent=23 // pred_region
        %s245 = smul.u32 %s19, 2
        %s246 = sadd.s32 %s245, 2
        %p247 = scmp.lt.s32.totalorder %s18, 1
        %s248 = scalar_select %p247, %s18, 1
        %p249 = scmp.lt.s32.totalorder %s246, 9
        %s250 = scalar_select %p249, %s246, 9
        %s251 = smul.addr %s250, 3
        %s252 = smul.addr %s248, 30
        %s253 = sadd.s32 %s251, %s252
        %s254 = smul.addr %s253, 2
        %s255 = scalar_lea.vmem %s2, %s254
        %s256 = smul.u32 %s19, 2
        %s257 = sadd.s32 %s256, 2
      $region36: #{_encoder_forward_impl.18} parent=23 // pred_fallthru
        _
    $region24: #{_encoder_forward_impl.18} parent=5 // pred_fallthru
      _
    %p258 = scmp.le.s32.totalorder 1, %s11
    %p259 = scmp.lt.s32.totalorder %s11, 9
    %p260 = pnand %p258, %p259
    %p261 = pneg %p260
    // Predicated region
    $region37: #{_encoder_forward_impl.18} parent=5 // pred_check
      _
    $region38: #{_encoder_forward_impl.18} parent=5 // pred_check_branch
      %263 = sbr.rel (%p260) target = $region40
    $region39: #{_encoder_forward_impl.18} parent=5 // pred_region
      %s264 = ssub.s32 %s11, 1
      %s265 = smul.u32 %s21, 2
      %p266 = scmp.lt.s32.totalorder %s20, 1
      %s267 = scalar_select %p266, %s20, 1
      %p268 = scmp.lt.s32.totalorder %s265, 9
      %s269 = scalar_select %p268, %s265, 9
      %s270 = smul.addr %s269, 3
      %s271 = smul.addr %s267, 30
      %s272 = sadd.s32 %s270, %s271
      %s273 = smul.addr %s272, 2
      %s274 = scalar_lea.vmem %s0, %s273
      %p275 = pneg %p53
      %p276 = pneg %p50
      %s277 = smul.u32 %s21, 2
      %s278 = sadd.s32 %s277, 1
      %p279 = scmp.lt.s32.totalorder %s20, 1
      %s280 = scalar_select %p279, %s20, 1
      %p281 = scmp.lt.s32.totalorder %s278, 9
      %s282 = scalar_select %p281, %s278, 9
      %s283 = smul.addr %s282, 3
      %s284 = smul.addr %s280, 30
      %s285 = sadd.s32 %s283, %s284
      %s286 = smul.addr %s285, 2
      %s287 = scalar_lea.vmem %s1, %s286
      %p288 = pneg %p85
      %p289 = pneg %p82
      %s290 = smul.u32 %s21, 2
      %s291 = sadd.s32 %s290, 2
      %p292 = scmp.lt.s32.totalorder %s20, 1
      %s293 = scalar_select %p292, %s20, 1
      %p294 = scmp.lt.s32.totalorder %s291, 9
      %s295 = scalar_select %p294, %s291, 9
      %s296 = smul.addr %s295, 3
      %s297 = smul.addr %s293, 30
      %s298 = sadd.s32 %s296, %s297
      %s299 = smul.addr %s298, 2
      %s300 = scalar_lea.vmem %s2, %s299
      %p301 = pneg %p117
      %p302 = pneg %p114
      %p303 = pneg %p138
      %p304 = pneg %p135
      %p305 = pneg %p159
      %p306 = pneg %p156
      %p307 = pneg %p187
      %p308 = pneg %p184
      %p309 = scmp.lt.s32.totalorder %s20, 1
      %s310 = scalar_select %p309, %s20, 1
      %p311 = scmp.lt.s32.totalorder %s21, 3
      %s312 = scalar_select %p311, %s21, 3
      %s313 = smul.addr %s310, 4
      %s314 = sadd.s32 %s312, %s313
      %s315 = smul.addr %s314, 2
      %s316 = scalar_lea.vmem %s5, %s315
      %s317 = smul.u32 %s21, 2
      %p318 = scmp.lt.s32.totalorder %s20, 1
      %s319 = scalar_select %p318, %s20, 1
      %p320 = scmp.lt.s32.totalorder %s317, 9
      %s321 = scalar_select %p320, %s317, 9
      %s322 = smul.addr %s321, 3
      %s323 = smul.addr %s319, 30
      %s324 = sadd.s32 %s322, %s323
      %s325 = smul.addr %s324, 2
      %s326 = scalar_lea.vmem %s0, %s325
      %s327 = smul.u32 %s21, 2
      %s328 = smul.u32 %s21, 2
      %s329 = sadd.s32 %s328, 1
      %p330 = scmp.lt.s32.totalorder %s20, 1
      %s331 = scalar_select %p330, %s20, 1
      %p332 = scmp.lt.s32.totalorder %s329, 9
      %s333 = scalar_select %p332, %s329, 9
      %s334 = smul.addr %s333, 3
      %s335 = smul.addr %s331, 30
      %s336 = sadd.s32 %s334, %s335
      %s337 = smul.addr %s336, 2
      %s338 = scalar_lea.vmem %s1, %s337
      %s339 = smul.u32 %s21, 2
      %s340 = sadd.s32 %s339, 1
      %s341 = smul.u32 %s21, 2
      %s342 = sadd.s32 %s341, 2
      %p343 = scmp.lt.s32.totalorder %s20, 1
      %s344 = scalar_select %p343, %s20, 1
      %p345 = scmp.lt.s32.totalorder %s342, 9
      %s346 = scalar_select %p345, %s342, 9
      %s347 = smul.addr %s346, 3
      %s348 = smul.addr %s344, 30
      %s349 = sadd.s32 %s347, %s348
      %s350 = smul.addr %s349, 2
      %s351 = scalar_lea.vmem %s2, %s350
      %s352 = smul.u32 %s21, 2
      %s353 = sadd.s32 %s352, 2
      %p354 = scmp.lt.s32.totalorder %s20, 1
      %s355 = scalar_select %p354, %s20, 1
      %p356 = scmp.lt.s32.totalorder %s21, 3
      %s357 = scalar_select %p356, %s21, 3
      %s358 = smul.addr %s355, 4
      %s359 = sadd.s32 %s357, %s358
      %s360 = smul.addr %s359, 2
      %s361 = scalar_lea.vmem %s5, %s360
      %v363 = vld [vmem:[%s326] sm:$0x3f]
      %v364 = vld [vmem:[%s338] sm:$0x3f]
      %v365 = vld [vmem:[%s351] sm:$0x3f]
      %v366 = vld [vmem:[%s3] sm:$0xf]
      %v367 = vld [vmem:[%s3 + $0x4] sm:$0xf]
      %v368 = vld [vmem:[%s3 + $0x8] sm:$0xf]
      %v369 = vld [vmem:[%s3 + $0xc] sm:$0xf]
      %v370 = vld [vmem:[%s3 + $0x10] sm:$0xf]
      %v371 = vld [vmem:[%s3 + $0x14] sm:$0xf]
      %v372 = vld [vmem:[%s3 + $0x18] sm:$0xf]
      %v373 = vld [vmem:[%s3 + $0x1c] sm:$0xf]
      %v374 = vld [vmem:[%s3 + $0x20] sm:$0xf]
      %v375 = vld [vmem:[%s3 + $0x24] sm:$0xf]
      %v376 = vld [vmem:[%s3 + $0x28] sm:$0xf]
      %v377 = vld [vmem:[%s3 + $0x2c] sm:$0xf]
      %v378 = vld [vmem:[%s3 + $0x30] sm:$0xf]
      %v379 = vld [vmem:[%s3 + $0x34] sm:$0xf]
      %v380 = vld [vmem:[%s3 + $0x38] sm:$0xf]
      %v381 = vld [vmem:[%s3 + $0x3c] sm:$0xf]
      %v382 = vld [vmem:[%s3 + $0x40] sm:$0xf]
      %v383 = vld [vmem:[%s3 + $0x44] sm:$0xf]
      %v384 = vld [vmem:[%s3 + $0x48] sm:$0xf]
      %v385 = vld [vmem:[%s3 + $0x4c] sm:$0xf]
      %v386 = vld [vmem:[%s3 + $0x50] sm:$0xf]
      %v387 = vld [vmem:[%s3 + $0x54] sm:$0xf]
      %v388 = vld [vmem:[%s3 + $0x58] sm:$0xf]
      %v389 = vld [vmem:[%s3 + $0x5c] sm:$0xf]
      %v390 = vld [vmem:[%s3 + $0x60] sm:$0xf]
      %v391 = vld [vmem:[%s3 + $0x64] sm:$0xf]
      %v392 = vld [vmem:[%s3 + $0x68] sm:$0xf]
      %v393 = vld [vmem:[%s3 + $0x6c] sm:$0xf]
      %v394 = vld [vmem:[%s3 + $0x70] sm:$0xf]
      %v395 = vld [vmem:[%s3 + $0x74] sm:$0xf]
      %v396 = vld [vmem:[%s3 + $0x78] sm:$0xf]
      %v397 = vld [vmem:[%s3 + $0x7c] sm:$0xf]
      %v398 = vld [vmem:[%s3 + $0x80] sm:$0xf]
      %v399 = vld [vmem:[%s3 + $0x84] sm:$0xf]
      %v400 = vld [vmem:[%s3 + $0x88] sm:$0xf]
      %v401 = vld [vmem:[%s3 + $0x8c] sm:$0xf]
      %v402 = vld [vmem:[%s3 + $0x90] sm:$0xf]
      %v403 = vld [vmem:[%s3 + $0x94] sm:$0xf]
      %v404 = vld [vmem:[%s3 + $0x98] sm:$0xf]
      %v405 = vld [vmem:[%s3 + $0x9c] sm:$0xf]
      %v406 = vld [vmem:[%s3 + $0xa0] sm:$0xf]
      %v407 = vld [vmem:[%s3 + $0xa4] sm:$0xf]
      %v408 = vld [vmem:[%s3 + $0xa8] sm:$0xf]
      %v409 = vld [vmem:[%s3 + $0xac] sm:$0xf]
      %v410 = vld [vmem:[%s3 + $0xb0] sm:$0xf]
      %v411 = vld [vmem:[%s3 + $0xb4] sm:$0xf]
      %v412 = vld [vmem:[%s3 + $0xb8] sm:$0xf]
      %v413 = vld [vmem:[%s3 + $0xbc] sm:$0xf]
      %s414 = scalar_lea.vmem %s3, 192
      %v415 = vld [vmem:[%s414] sm:$0xf]
      %v416 = vld [vmem:[%s414 + $0x4] sm:$0xf]
      %v417 = vld [vmem:[%s414 + $0x8] sm:$0xf]
      %v418 = vld [vmem:[%s414 + $0xc] sm:$0xf]
      %v419 = vld [vmem:[%s414 + $0x10] sm:$0xf]
      %v420 = vld [vmem:[%s414 + $0x14] sm:$0xf]
      %v421 = vld [vmem:[%s414 + $0x18] sm:$0xf]
      %v422 = vld [vmem:[%s414 + $0x1c] sm:$0xf]
      %v423 = vld [vmem:[%s414 + $0x20] sm:$0xf]
      %v424 = vld [vmem:[%s414 + $0x24] sm:$0xf]
      %v425 = vld [vmem:[%s414 + $0x28] sm:$0xf]
      %v426 = vld [vmem:[%s414 + $0x2c] sm:$0xf]
      %v427 = vld [vmem:[%s414 + $0x30] sm:$0xf]
      %v428 = vld [vmem:[%s414 + $0x34] sm:$0xf]
      %v429 = vld [vmem:[%s414 + $0x38] sm:$0xf]
      %v430 = vld [vmem:[%s414 + $0x3c] sm:$0xf]
      %v431 = vld [vmem:[%s414 + $0x40] sm:$0xf]
      %v432 = vld [vmem:[%s414 + $0x44] sm:$0xf]
      %v433 = vld [vmem:[%s414 + $0x48] sm:$0xf]
      %v434 = vld [vmem:[%s414 + $0x4c] sm:$0xf]
      %v435 = vld [vmem:[%s414 + $0x50] sm:$0xf]
      %v436 = vld [vmem:[%s414 + $0x54] sm:$0xf]
      %v437 = vld [vmem:[%s414 + $0x58] sm:$0xf]
      %v438 = vld [vmem:[%s414 + $0x5c] sm:$0xf]
      %v439 = vld [vmem:[%s414 + $0x60] sm:$0xf]
      %v440 = vld [vmem:[%s414 + $0x64] sm:$0xf]
      %v441 = vld [vmem:[%s414 + $0x68] sm:$0xf]
      %v442 = vld [vmem:[%s414 + $0x6c] sm:$0xf]
      %v443 = vld [vmem:[%s414 + $0x70] sm:$0xf]
      %v444 = vld [vmem:[%s414 + $0x74] sm:$0xf]
      %v445 = vld [vmem:[%s414 + $0x78] sm:$0xf]
      %v446 = vld [vmem:[%s414 + $0x7c] sm:$0xf]
      %v447 = vld [vmem:[%s414 + $0x80] sm:$0xf]
      %v448 = vld [vmem:[%s414 + $0x84] sm:$0xf]
      %v449 = vld [vmem:[%s414 + $0x88] sm:$0xf]
      %v450 = vld [vmem:[%s414 + $0x8c] sm:$0xf]
      %v451 = vld [vmem:[%s414 + $0x90] sm:$0xf]
      %v452 = vld [vmem:[%s414 + $0x94] sm:$0xf]
      %v453 = vld [vmem:[%s414 + $0x98] sm:$0xf]
      %v454 = vld [vmem:[%s414 + $0x9c] sm:$0xf]
      %v455 = vld [vmem:[%s414 + $0xa0] sm:$0xf]
      %v456 = vld [vmem:[%s414 + $0xa4] sm:$0xf]
      %v457 = vld [vmem:[%s414 + $0xa8] sm:$0xf]
      %v458 = vld [vmem:[%s414 + $0xac] sm:$0xf]
      %v459 = vld [vmem:[%s414 + $0xb0] sm:$0xf]
      %v460 = vld [vmem:[%s414 + $0xb4] sm:$0xf]
      %v461 = vld [vmem:[%s414 + $0xb8] sm:$0xf]
      %v462 = vld [vmem:[%s414 + $0xbc] sm:$0xf]
      %v464 = vcombine.high %v364, %v364
      %v466 = vunpack.c.l.s4 1983009808
      %v467 = vunpack.c.0.s8 %v466
      %v468 = vlaneseq
      %v469 = vshrl.u32 %v468, 7
      %v470 = vsub.s32 %v467, %v469
      %v471 = vrot.slane %v364, %v470
      %v473 = vunpack.c.l.s4 1983009808
      %v474 = vunpack.c.0.s8 %v473
      %v475 = vlaneseq
      %v476 = vshrl.u32 %v475, 7
      %v477 = vsub.s32 %v474, %v476
      %v478 = vrot.slane %v464, %v477
      %v479 = vcombine.high %v471, %v471
      %v531 = vunpack.c.l.b16 %v415
      %v532 = vunpack.c.l.b16 %v416
      %v533 = vunpack.c.l.b16 %v417
      %v534 = vunpack.c.l.b16 %v418
      %v535 = vunpack.c.l.b16 %v419
      %v536 = vunpack.c.l.b16 %v420
      %v537 = vunpack.c.l.b16 %v421
      %v538 = vunpack.c.l.b16 %v422
      %v539 = vunpack.c.l.b16 %v423
      %v540 = vunpack.c.l.b16 %v424
      %v541 = vunpack.c.l.b16 %v425
      %v542 = vunpack.c.l.b16 %v426
      %v543 = vunpack.c.l.b16 %v427
      %v544 = vunpack.c.l.b16 %v428
      %v545 = vunpack.c.l.b16 %v429
      %v546 = vunpack.c.l.b16 %v430
      %v547 = vunpack.c.l.b16 %v431
      %v548 = vunpack.c.l.b16 %v432
      %v549 = vunpack.c.l.b16 %v433
      %v550 = vunpack.c.l.b16 %v434
      %v551 = vunpack.c.l.b16 %v435
      %v552 = vunpack.c.l.b16 %v436
      %v553 = vunpack.c.l.b16 %v437
      %v554 = vunpack.c.l.b16 %v438
      %v555 = vunpack.c.l.b16 %v439
      %v556 = vunpack.c.l.b16 %v440
      %v557 = vunpack.c.l.b16 %v441
      %v558 = vunpack.c.l.b16 %v442
      %v559 = vunpack.c.l.b16 %v443
      %v560 = vunpack.c.l.b16 %v444
      %v561 = vunpack.c.l.b16 %v445
      %v562 = vunpack.c.l.b16 %v446
      %v563 = vunpack.c.l.b16 %v447
      %v564 = vunpack.c.l.b16 %v448
      %v565 = vunpack.c.l.b16 %v449
      %v566 = vunpack.c.l.b16 %v450
      %v567 = vunpack.c.l.b16 %v451
      %v568 = vunpack.c.l.b16 %v452
      %v569 = vunpack.c.l.b16 %v453
      %v570 = vunpack.c.l.b16 %v454
      %v571 = vunpack.c.l.b16 %v455
      %v572 = vunpack.c.l.b16 %v456
      %v573 = vunpack.c.l.b16 %v457
      %v574 = vunpack.c.l.b16 %v458
      %v575 = vunpack.c.l.b16 %v459
      %v576 = vunpack.c.l.b16 %v460
      %v577 = vunpack.c.l.b16 %v461
      %v578 = vunpack.c.l.b16 %v462
      %v579 = vpack.c.b16 %v532, %v531
      %v580 = vpack.c.b16 %v534, %v533
      %v581 = vpack.c.b16 %v536, %v535
      %v582 = vpack.c.b16 %v538, %v537
      %v583 = vpack.c.b16 %v540, %v539
      %v584 = vpack.c.b16 %v542, %v541
      %v585 = vpack.c.b16 %v544, %v543
      %v586 = vpack.c.b16 %v546, %v545
      %v587 = vpack.c.b16 %v548, %v547
      %v588 = vpack.c.b16 %v550, %v549
      %v589 = vpack.c.b16 %v552, %v551
      %v590 = vpack.c.b16 %v554, %v553
      %v591 = vpack.c.b16 %v556, %v555
      %v592 = vpack.c.b16 %v558, %v557
      %v593 = vpack.c.b16 %v560, %v559
      %v594 = vpack.c.b16 %v562, %v561
      %v595 = vpack.c.b16 %v564, %v563
      %v596 = vpack.c.b16 %v566, %v565
      %v597 = vpack.c.b16 %v568, %v567
      %v598 = vpack.c.b16 %v570, %v569
      %v599 = vpack.c.b16 %v572, %v571
      %v600 = vpack.c.b16 %v574, %v573
      %v601 = vpack.c.b16 %v576, %v575
      %v602 = vpack.c.b16 %v578, %v577
      %627 = vmatprep.subr.bf16.mxu0 0
      %628 = vmatpush1.bf16.msra.mxu0 %v579
      %629 = vmatprep.subr.bf16.mxu0 0
      %630 = vmatpush1.bf16.msra.mxu0 %v580
      %631 = vmatprep.subr.bf16.mxu0 0
      %632 = vmatpush1.bf16.msra.mxu0 %v581
      %633 = vmatprep.subr.bf16.mxu0 0
      %634 = vmatpush1.bf16.msra.mxu0 %v582
      %635 = vmatprep.subr.bf16.mxu0 0
      %636 = vmatpush1.bf16.msra.mxu0 %v583
      %637 = vmatprep.subr.bf16.mxu0 0
      %638 = vmatpush1.bf16.msra.mxu0 %v584
      %639 = vmatprep.subr.bf16.mxu0 0
      %640 = vmatpush1.bf16.msra.mxu0 %v585
      %641 = vmatprep.subr.bf16.mxu0 0
      %642 = vmatpush1.bf16.msra.mxu0 %v586
      %643 = vmatprep.subr.bf16.mxu0 0
      %644 = vmatpush1.bf16.msra.mxu0 %v587
      %645 = vmatprep.subr.bf16.mxu0 0
      %646 = vmatpush1.bf16.msra.mxu0 %v588
      %647 = vmatprep.subr.bf16.mxu0 0
      %648 = vmatpush1.bf16.msra.mxu0 %v589
      %649 = vmatprep.subr.bf16.mxu0 0
      %650 = vmatpush1.bf16.msra.mxu0 %v590
      %651 = vmatprep.subr.bf16.mxu0 0
      %652 = vmatpush1.bf16.msra.mxu0 %v591
      %653 = vmatprep.subr.bf16.mxu0 0
      %654 = vmatpush1.bf16.msra.mxu0 %v592
      %655 = vmatprep.subr.bf16.mxu0 0
      %656 = vmatpush1.bf16.msra.mxu0 %v593
      %657 = vmatprep.subr.bf16.mxu0 0
      %658 = vmatpush1.bf16.msra.mxu0 %v594
      %659 = vmatprep.mubr.bf16.mxu0 %v479
      %660 = vmatmul.mubr.bf16.gmra.mrb[0].mxu0 %v471
      %v661 = vpop.f32.mrb[0].mxu0
      %v662 = vadd.f32 0.0, %v661
      %v663 = vpop.f32.mrb[0].mxu0
      %v664 = vpop.f32.mrb[0].mxu0
      %v665 = vpop.f32.mrb[0].mxu0
      %666 = vdwg.mxu0
      %667 = vmatprep.subr.bf16.mxu0 0
      %668 = vmatpush1.bf16.msra.mxu0 %v595
      %669 = vmatprep.subr.bf16.mxu0 0
      %670 = vmatpush1.bf16.msra.mxu0 %v596
      %671 = vmatprep.subr.bf16.mxu0 0
      %672 = vmatpush1.bf16.msra.mxu0 %v597
      %673 = vmatprep.subr.bf16.mxu0 0
      %674 = vmatpush1.bf16.msra.mxu0 %v598
      %675 = vmatprep.subr.bf16.mxu0 0
      %676 = vmatpush1.bf16.msra.mxu0 %v599
      %677 = vmatprep.subr.bf16.mxu0 0
      %678 = vmatpush1.bf16.msra.mxu0 %v600
      %679 = vmatprep.subr.bf16.mxu0 0
      %680 = vmatpush1.bf16.msra.mxu0 %v601
      %681 = vmatprep.subr.bf16.mxu0 0
      %682 = vmatpush1.bf16.msra.mxu0 %v602
      %683 = vmatprep.subr.bf16.mxu0 0
      %684 = vmatpush1.bf16.msra.mxu0 0
      %685 = vmatprep.subr.bf16.mxu0 0
      %686 = vmatpush1.bf16.msra.mxu0 0
      %687 = vmatprep.subr.bf16.mxu0 0
      %688 = vmatpush1.bf16.msra.mxu0 0
      %689 = vmatprep.subr.bf16.mxu0 0
      %690 = vmatpush1.bf16.msra.mxu0 0
      %691 = vmatprep.subr.bf16.mxu0 0
      %692 = vmatpush1.bf16.msra.mxu0 0
      %693 = vmatprep.subr.bf16.mxu0 0
      %694 = vmatpush1.bf16.msra.mxu0 0
      %695 = vmatprep.subr.bf16.mxu0 0
      %696 = vmatpush1.bf16.msra.mxu0 0
      %697 = vmatprep.subr.bf16.mxu0 0
      %698 = vmatpush1.bf16.msra.mxu0 0
      %699 = vmatprep.mubr.bf16.mxu0 0
      %700 = vmatmul.mubr.bf16.gmra.mrb[0].mxu0 %v478
      %v701 = vpop.f32.mrb[0].mxu0
      %v702 = vadd.f32 %v662, %v701
      %v703 = vpop.f32.mrb[0].mxu0
      %v704 = vpop.f32.mrb[0].mxu0
      %v705 = vpop.f32.mrb[0].mxu0
      %706 = vdwg.mxu0
      %v708 = vcombine.high %v363, %v363
      %v710 = vunpack.c.l.s4 1983009808
      %v711 = vunpack.c.0.s8 %v710
      %v712 = vlaneseq
      %v713 = vshrl.u32 %v712, 7
      %v714 = vsub.s32 %v711, %v713
      %v715 = vrot.slane %v363, %v714
      %v717 = vunpack.c.l.s4 1983009808
      %v718 = vunpack.c.0.s8 %v717
      %v719 = vlaneseq
      %v720 = vshrl.u32 %v719, 7
      %v721 = vsub.s32 %v718, %v720
      %v722 = vrot.slane %v708, %v721
      %v723 = vcombine.high %v715, %v715
      %v775 = vunpack.c.l.b16 %v366
      %v776 = vunpack.c.l.b16 %v367
      %v777 = vunpack.c.l.b16 %v368
      %v778 = vunpack.c.l.b16 %v369
      %v779 = vunpack.c.l.b16 %v370
      %v780 = vunpack.c.l.b16 %v371
      %v781 = vunpack.c.l.b16 %v372
      %v782 = vunpack.c.l.b16 %v373
      %v783 = vunpack.c.l.b16 %v374
      %v784 = vunpack.c.l.b16 %v375
      %v785 = vunpack.c.l.b16 %v376
      %v786 = vunpack.c.l.b16 %v377
      %v787 = vunpack.c.l.b16 %v378
      %v788 = vunpack.c.l.b16 %v379
      %v789 = vunpack.c.l.b16 %v380
      %v790 = vunpack.c.l.b16 %v381
      %v791 = vunpack.c.l.b16 %v382
      %v792 = vunpack.c.l.b16 %v383
      %v793 = vunpack.c.l.b16 %v384
      %v794 = vunpack.c.l.b16 %v385
      %v795 = vunpack.c.l.b16 %v386
      %v796 = vunpack.c.l.b16 %v387
      %v797 = vunpack.c.l.b16 %v388
      %v798 = vunpack.c.l.b16 %v389
      %v799 = vunpack.c.l.b16 %v390
      %v800 = vunpack.c.l.b16 %v391
      %v801 = vunpack.c.l.b16 %v392
      %v802 = vunpack.c.l.b16 %v393
      %v803 = vunpack.c.l.b16 %v394
      %v804 = vunpack.c.l.b16 %v395
      %v805 = vunpack.c.l.b16 %v396
      %v806 = vunpack.c.l.b16 %v397
      %v807 = vunpack.c.l.b16 %v398
      %v808 = vunpack.c.l.b16 %v399
      %v809 = vunpack.c.l.b16 %v400
      %v810 = vunpack.c.l.b16 %v401
      %v811 = vunpack.c.l.b16 %v402
      %v812 = vunpack.c.l.b16 %v403
      %v813 = vunpack.c.l.b16 %v404
      %v814 = vunpack.c.l.b16 %v405
      %v815 = vunpack.c.l.b16 %v406
      %v816 = vunpack.c.l.b16 %v407
      %v817 = vunpack.c.l.b16 %v408
      %v818 = vunpack.c.l.b16 %v409
      %v819 = vunpack.c.l.b16 %v410
      %v820 = vunpack.c.l.b16 %v411
      %v821 = vunpack.c.l.b16 %v412
      %v822 = vunpack.c.l.b16 %v413
      %v823 = vpack.c.b16 %v776, %v775
      %v824 = vpack.c.b16 %v778, %v777
      %v825 = vpack.c.b16 %v780, %v779
      %v826 = vpack.c.b16 %v782, %v781
      %v827 = vpack.c.b16 %v784, %v783
      %v828 = vpack.c.b16 %v786, %v785
      %v829 = vpack.c.b16 %v788, %v787
      %v830 = vpack.c.b16 %v790, %v789
      %v831 = vpack.c.b16 %v792, %v791
      %v832 = vpack.c.b16 %v794, %v793
      %v833 = vpack.c.b16 %v796, %v795
      %v834 = vpack.c.b16 %v798, %v797
      %v835 = vpack.c.b16 %v800, %v799
      %v836 = vpack.c.b16 %v802, %v801
      %v837 = vpack.c.b16 %v804, %v803
      %v838 = vpack.c.b16 %v806, %v805
      %v839 = vpack.c.b16 %v808, %v807
      %v840 = vpack.c.b16 %v810, %v809
      %v841 = vpack.c.b16 %v812, %v811
      %v842 = vpack.c.b16 %v814, %v813
      %v843 = vpack.c.b16 %v816, %v815
      %v844 = vpack.c.b16 %v818, %v817
      %v845 = vpack.c.b16 %v820, %v819
      %v846 = vpack.c.b16 %v822, %v821
      %871 = vmatprep.subr.bf16.mxu0 0
      %872 = vmatpush1.bf16.msra.mxu0 %v823
      %873 = vmatprep.subr.bf16.mxu0 0
      %874 = vmatpush1.bf16.msra.mxu0 %v824
      %875 = vmatprep.subr.bf16.mxu0 0
      %876 = vmatpush1.bf16.msra.mxu0 %v825
      %877 = vmatprep.subr.bf16.mxu0 0
      %878 = vmatpush1.bf16.msra.mxu0 %v826
      %879 = vmatprep.subr.bf16.mxu0 0
      %880 = vmatpush1.bf16.msra.mxu0 %v827
      %881 = vmatprep.subr.bf16.mxu0 0
      %882 = vmatpush1.bf16.msra.mxu0 %v828
      %883 = vmatprep.subr.bf16.mxu0 0
      %884 = vmatpush1.bf16.msra.mxu0 %v829
      %885 = vmatprep.subr.bf16.mxu0 0
      %886 = vmatpush1.bf16.msra.mxu0 %v830
      %887 = vmatprep.subr.bf16.mxu0 0
      %888 = vmatpush1.bf16.msra.mxu0 %v831
      %889 = vmatprep.subr.bf16.mxu0 0
      %890 = vmatpush1.bf16.msra.mxu0 %v832
      %891 = vmatprep.subr.bf16.mxu0 0
      %892 = vmatpush1.bf16.msra.mxu0 %v833
      %893 = vmatprep.subr.bf16.mxu0 0
      %894 = vmatpush1.bf16.msra.mxu0 %v834
      %895 = vmatprep.subr.bf16.mxu0 0
      %896 = vmatpush1.bf16.msra.mxu0 %v835
      %897 = vmatprep.subr.bf16.mxu0 0
      %898 = vmatpush1.bf16.msra.mxu0 %v836
      %899 = vmatprep.subr.bf16.mxu0 0
      %900 = vmatpush1.bf16.msra.mxu0 %v837
      %901 = vmatprep.subr.bf16.mxu0 0
      %902 = vmatpush1.bf16.msra.mxu0 %v838
      %903 = vmatprep.mubr.bf16.mxu0 %v723
      %904 = vmatmul.mubr.bf16.gmra.mrb[0].mxu0 %v715
      %v905 = vpop.f32.mrb[0].mxu0
      %v906 = vadd.f32 %v702, %v905
      %v907 = vpop.f32.mrb[0].mxu0
      %v908 = vpop.f32.mrb[0].mxu0
      %v909 = vpop.f32.mrb[0].mxu0
      %910 = vdwg.mxu0
      %911 = vmatprep.subr.bf16.mxu0 0
      %912 = vmatpush1.bf16.msra.mxu0 %v839
      %913 = vmatprep.subr.bf16.mxu0 0
      %914 = vmatpush1.bf16.msra.mxu0 %v840
      %915 = vmatprep.subr.bf16.mxu0 0
      %916 = vmatpush1.bf16.msra.mxu0 %v841
      %917 = vmatprep.subr.bf16.mxu0 0
      %918 = vmatpush1.bf16.msra.mxu0 %v842
      %919 = vmatprep.subr.bf16.mxu0 0
      %920 = vmatpush1.bf16.msra.mxu0 %v843
      %921 = vmatprep.subr.bf16.mxu0 0
      %922 = vmatpush1.bf16.msra.mxu0 %v844
      %923 = vmatprep.subr.bf16.mxu0 0
      %924 = vmatpush1.bf16.msra.mxu0 %v845
      %925 = vmatprep.subr.bf16.mxu0 0
      %926 = vmatpush1.bf16.msra.mxu0 %v846
      %927 = vmatprep.subr.bf16.mxu0 0
      %928 = vmatpush1.bf16.msra.mxu0 0
      %929 = vmatprep.subr.bf16.mxu0 0
      %930 = vmatpush1.bf16.msra.mxu0 0
      %931 = vmatprep.subr.bf16.mxu0 0
      %932 = vmatpush1.bf16.msra.mxu0 0
      %933 = vmatprep.subr.bf16.mxu0 0
      %934 = vmatpush1.bf16.msra.mxu0 0
      %935 = vmatprep.subr.bf16.mxu0 0
      %936 = vmatpush1.bf16.msra.mxu0 0
      %937 = vmatprep.subr.bf16.mxu0 0
      %938 = vmatpush1.bf16.msra.mxu0 0
      %939 = vmatprep.subr.bf16.mxu0 0
      %940 = vmatpush1.bf16.msra.mxu0 0
      %941 = vmatprep.subr.bf16.mxu0 0
      %942 = vmatpush1.bf16.msra.mxu0 0
      %943 = vmatprep.mubr.bf16.mxu0 0
      %944 = vmatmul.mubr.bf16.gmra.mrb[0].mxu0 %v722
      %v945 = vpop.f32.mrb[0].mxu0
      %v946 = vadd.f32 %v906, %v945
      %v947 = vpop.f32.mrb[0].mxu0
      %v948 = vpop.f32.mrb[0].mxu0
      %v949 = vpop.f32.mrb[0].mxu0
      %950 = vdwg.mxu0
      %s951 = scalar_lea.vmem %s3, 384
      %v952 = vld [vmem:[%s951] sm:$0xf]
      %v953 = vld [vmem:[%s951 + $0x4] sm:$0xf]
      %v954 = vld [vmem:[%s951 + $0x8] sm:$0xf]
      %v955 = vld [vmem:[%s951 + $0xc] sm:$0xf]
      %v956 = vld [vmem:[%s951 + $0x10] sm:$0xf]
      %v957 = vld [vmem:[%s951 + $0x14] sm:$0xf]
      %v958 = vld [vmem:[%s951 + $0x18] sm:$0xf]
      %v959 = vld [vmem:[%s951 + $0x1c] sm:$0xf]
      %v960 = vld [vmem:[%s951 + $0x20] sm:$0xf]
      %v961 = vld [vmem:[%s951 + $0x24] sm:$0xf]
      %v962 = vld [vmem:[%s951 + $0x28] sm:$0xf]
      %v963 = vld [vmem:[%s951 + $0x2c] sm:$0xf]
      %v964 = vld [vmem:[%s951 + $0x30] sm:$0xf]
      %v965 = vld [vmem:[%s951 + $0x34] sm:$0xf]
      %v966 = vld [vmem:[%s951 + $0x38] sm:$0xf]
      %v967 = vld [vmem:[%s951 + $0x3c] sm:$0xf]
      %v968 = vld [vmem:[%s951 + $0x40] sm:$0xf]
      %v969 = vld [vmem:[%s951 + $0x44] sm:$0xf]
      %v970 = vld [vmem:[%s951 + $0x48] sm:$0xf]
      %v971 = vld [vmem:[%s951 + $0x4c] sm:$0xf]
      %v972 = vld [vmem:[%s951 + $0x50] sm:$0xf]
      %v973 = vld [vmem:[%s951 + $0x54] sm:$0xf]
      %v974 = vld [vmem:[%s951 + $0x58] sm:$0xf]
      %v975 = vld [vmem:[%s951 + $0x5c] sm:$0xf]
      %v976 = vld [vmem:[%s951 + $0x60] sm:$0xf]
      %v977 = vld [vmem:[%s951 + $0x64] sm:$0xf]
      %v978 = vld [vmem:[%s951 + $0x68] sm:$0xf]
      %v979 = vld [vmem:[%s951 + $0x6c] sm:$0xf]
      %v980 = vld [vmem:[%s951 + $0x70] sm:$0xf]
      %v981 = vld [vmem:[%s951 + $0x74] sm:$0xf]
      %v982 = vld [vmem:[%s951 + $0x78] sm:$0xf]
      %v983 = vld [vmem:[%s951 + $0x7c] sm:$0xf]
      %v984 = vld [vmem:[%s951 + $0x80] sm:$0xf]
      %v985 = vld [vmem:[%s951 + $0x84] sm:$0xf]
      %v986 = vld [vmem:[%s951 + $0x88] sm:$0xf]
      %v987 = vld [vmem:[%s951 + $0x8c] sm:$0xf]
      %v988 = vld [vmem:[%s951 + $0x90] sm:$0xf]
      %v989 = vld [vmem:[%s951 + $0x94] sm:$0xf]
      %v990 = vld [vmem:[%s951 + $0x98] sm:$0xf]
      %v991 = vld [vmem:[%s951 + $0x9c] sm:$0xf]
      %v992 = vld [vmem:[%s951 + $0xa0] sm:$0xf]
      %v993 = vld [vmem:[%s951 + $0xa4] sm:$0xf]
      %v994 = vld [vmem:[%s951 + $0xa8] sm:$0xf]
      %v995 = vld [vmem:[%s951 + $0xac] sm:$0xf]
      %v996 = vld [vmem:[%s951 + $0xb0] sm:$0xf]
      %v997 = vld [vmem:[%s951 + $0xb4] sm:$0xf]
      %v998 = vld [vmem:[%s951 + $0xb8] sm:$0xf]
      %v999 = vld [vmem:[%s951 + $0xbc] sm:$0xf]
      %v1001 = vcombine.high %v365, %v365
      %v1003 = vunpack.c.l.s4 1983009808
      %v1004 = vunpack.c.0.s8 %v1003
      %v1005 = vlaneseq
      %v1006 = vshrl.u32 %v1005, 7
      %v1007 = vsub.s32 %v1004, %v1006
      %v1008 = vrot.slane %v365, %v1007
      %v1010 = vunpack.c.l.s4 1983009808
      %v1011 = vunpack.c.0.s8 %v1010
      %v1012 = vlaneseq
      %v1013 = vshrl.u32 %v1012, 7
      %v1014 = vsub.s32 %v1011, %v1013
      %v1015 = vrot.slane %v1001, %v1014
      %v1016 = vcombine.high %v1008, %v1008
      %v1068 = vunpack.c.l.b16 %v952
      %v1069 = vunpack.c.l.b16 %v953
      %v1070 = vunpack.c.l.b16 %v954
      %v1071 = vunpack.c.l.b16 %v955
      %v1072 = vunpack.c.l.b16 %v956
      %v1073 = vunpack.c.l.b16 %v957
      %v1074 = vunpack.c.l.b16 %v958
      %v1075 = vunpack.c.l.b16 %v959
      %v1076 = vunpack.c.l.b16 %v960
      %v1077 = vunpack.c.l.b16 %v961
      %v1078 = vunpack.c.l.b16 %v962
      %v1079 = vunpack.c.l.b16 %v963
      %v1080 = vunpack.c.l.b16 %v964
      %v1081 = vunpack.c.l.b16 %v965
      %v1082 = vunpack.c.l.b16 %v966
      %v1083 = vunpack.c.l.b16 %v967
      %v1084 = vunpack.c.l.b16 %v968
      %v1085 = vunpack.c.l.b16 %v969
      %v1086 = vunpack.c.l.b16 %v970
      %v1087 = vunpack.c.l.b16 %v971
      %v1088 = vunpack.c.l.b16 %v972
      %v1089 = vunpack.c.l.b16 %v973
      %v1090 = vunpack.c.l.b16 %v974
      %v1091 = vunpack.c.l.b16 %v975
      %v1092 = vunpack.c.l.b16 %v976
      %v1093 = vunpack.c.l.b16 %v977
      %v1094 = vunpack.c.l.b16 %v978
      %v1095 = vunpack.c.l.b16 %v979
      %v1096 = vunpack.c.l.b16 %v980
      %v1097 = vunpack.c.l.b16 %v981
      %v1098 = vunpack.c.l.b16 %v982
      %v1099 = vunpack.c.l.b16 %v983
      %v1100 = vunpack.c.l.b16 %v984
      %v1101 = vunpack.c.l.b16 %v985
      %v1102 = vunpack.c.l.b16 %v986
      %v1103 = vunpack.c.l.b16 %v987
      %v1104 = vunpack.c.l.b16 %v988
      %v1105 = vunpack.c.l.b16 %v989
      %v1106 = vunpack.c.l.b16 %v990
      %v1107 = vunpack.c.l.b16 %v991
      %v1108 = vunpack.c.l.b16 %v992
      %v1109 = vunpack.c.l.b16 %v993
      %v1110 = vunpack.c.l.b16 %v994
      %v1111 = vunpack.c.l.b16 %v995
      %v1112 = vunpack.c.l.b16 %v996
      %v1113 = vunpack.c.l.b16 %v997
      %v1114 = vunpack.c.l.b16 %v998
      %v1115 = vunpack.c.l.b16 %v999
      %v1116 = vpack.c.b16 %v1069, %v1068
      %v1117 = vpack.c.b16 %v1071, %v1070
      %v1118 = vpack.c.b16 %v1073, %v1072
      %v1119 = vpack.c.b16 %v1075, %v1074
      %v1120 = vpack.c.b16 %v1077, %v1076
      %v1121 = vpack.c.b16 %v1079, %v1078
      %v1122 = vpack.c.b16 %v1081, %v1080
      %v1123 = vpack.c.b16 %v1083, %v1082
      %v1124 = vpack.c.b16 %v1085, %v1084
      %v1125 = vpack.c.b16 %v1087, %v1086
      %v1126 = vpack.c.b16 %v1089, %v1088
      %v1127 = vpack.c.b16 %v1091, %v1090
      %v1128 = vpack.c.b16 %v1093, %v1092
      %v1129 = vpack.c.b16 %v1095, %v1094
      %v1130 = vpack.c.b16 %v1097, %v1096
      %v1131 = vpack.c.b16 %v1099, %v1098
      %v1132 = vpack.c.b16 %v1101, %v1100
      %v1133 = vpack.c.b16 %v1103, %v1102
      %v1134 = vpack.c.b16 %v1105, %v1104
      %v1135 = vpack.c.b16 %v1107, %v1106
      %v1136 = vpack.c.b16 %v1109, %v1108
      %v1137 = vpack.c.b16 %v1111, %v1110
      %v1138 = vpack.c.b16 %v1113, %v1112
      %v1139 = vpack.c.b16 %v1115, %v1114
      %1164 = vmatprep.subr.bf16.mxu0 0
      %1165 = vmatpush1.bf16.msra.mxu0 %v1116
      %1166 = vmatprep.subr.bf16.mxu0 0
      %1167 = vmatpush1.bf16.msra.mxu0 %v1117
      %1168 = vmatprep.subr.bf16.mxu0 0
      %1169 = vmatpush1.bf16.msra.mxu0 %v1118
      %1170 = vmatprep.subr.bf16.mxu0 0
      %1171 = vmatpush1.bf16.msra.mxu0 %v1119
      %1172 = vmatprep.subr.bf16.mxu0 0
      %1173 = vmatpush1.bf16.msra.mxu0 %v1120
      %1174 = vmatprep.subr.bf16.mxu0 0
      %1175 = vmatpush1.bf16.msra.mxu0 %v1121
      %1176 = vmatprep.subr.bf16.mxu0 0
      %1177 = vmatpush1.bf16.msra.mxu0 %v1122
      %1178 = vmatprep.subr.bf16.mxu0 0
      %1179 = vmatpush1.bf16.msra.mxu0 %v1123
      %1180 = vmatprep.subr.bf16.mxu0 0
      %1181 = vmatpush1.bf16.msra.mxu0 %v1124
      %1182 = vmatprep.subr.bf16.mxu0 0
      %1183 = vmatpush1.bf16.msra.mxu0 %v1125
      %1184 = vmatprep.subr.bf16.mxu0 0
      %1185 = vmatpush1.bf16.msra.mxu0 %v1126
      %1186 = vmatprep.subr.bf16.mxu0 0
      %1187 = vmatpush1.bf16.msra.mxu0 %v1127
      %1188 = vmatprep.subr.bf16.mxu0 0
      %1189 = vmatpush1.bf16.msra.mxu0 %v1128
      %1190 = vmatprep.subr.bf16.mxu0 0
      %1191 = vmatpush1.bf16.msra.mxu0 %v1129
      %1192 = vmatprep.subr.bf16.mxu0 0
      %1193 = vmatpush1.bf16.msra.mxu0 %v1130
      %1194 = vmatprep.subr.bf16.mxu0 0
      %1195 = vmatpush1.bf16.msra.mxu0 %v1131
      %1196 = vmatprep.mubr.bf16.mxu0 %v1016
      %1197 = vmatmul.mubr.bf16.gmra.mrb[0].mxu0 %v1008
      %v1198 = vpop.f32.mrb[0].mxu0
      %v1199 = vadd.f32 0.0, %v1198
      %v1200 = vpop.f32.mrb[0].mxu0
      %v1201 = vpop.f32.mrb[0].mxu0
      %v1202 = vpop.f32.mrb[0].mxu0
      %1203 = vdwg.mxu0
      %1204 = vmatprep.subr.bf16.mxu0 0
      %1205 = vmatpush1.bf16.msra.mxu0 %v1132
      %1206 = vmatprep.subr.bf16.mxu0 0
      %1207 = vmatpush1.bf16.msra.mxu0 %v1133
      %1208 = vmatprep.subr.bf16.mxu0 0
      %1209 = vmatpush1.bf16.msra.mxu0 %v1134
      %1210 = vmatprep.subr.bf16.mxu0 0
      %1211 = vmatpush1.bf16.msra.mxu0 %v1135
      %1212 = vmatprep.subr.bf16.mxu0 0
      %1213 = vmatpush1.bf16.msra.mxu0 %v1136
      %1214 = vmatprep.subr.bf16.mxu0 0
      %1215 = vmatpush1.bf16.msra.mxu0 %v1137
      %1216 = vmatprep.subr.bf16.mxu0 0
      %1217 = vmatpush1.bf16.msra.mxu0 %v1138
      %1218 = vmatprep.subr.bf16.mxu0 0
      %1219 = vmatpush1.bf16.msra.mxu0 %v1139
      %1220 = vmatprep.subr.bf16.mxu0 0
      %1221 = vmatpush1.bf16.msra.mxu0 0
      %1222 = vmatprep.subr.bf16.mxu0 0
      %1223 = vmatpush1.bf16.msra.mxu0 0
      %1224 = vmatprep.subr.bf16.mxu0 0
      %1225 = vmatpush1.bf16.msra.mxu0 0
      %1226 = vmatprep.subr.bf16.mxu0 0
      %1227 = vmatpush1.bf16.msra.mxu0 0
      %1228 = vmatprep.subr.bf16.mxu0 0
      %1229 = vmatpush1.bf16.msra.mxu0 0
      %1230 = vmatprep.subr.bf16.mxu0 0
      %1231 = vmatpush1.bf16.msra.mxu0 0
      %1232 = vmatprep.subr.bf16.mxu0 0
      %1233 = vmatpush1.bf16.msra.mxu0 0
      %1234 = vmatprep.subr.bf16.mxu0 0
      %1235 = vmatpush1.bf16.msra.mxu0 0
      %1236 = vmatprep.mubr.bf16.mxu0 0
      %1237 = vmatmul.mubr.bf16.gmra.mrb[0].mxu0 %v1015
      %v1238 = vpop.f32.mrb[0].mxu0
      %v1239 = vadd.f32 %v1199, %v1238
      %v1240 = vpop.f32.mrb[0].mxu0
      %v1241 = vpop.f32.mrb[0].mxu0
      %v1242 = vpop.f32.mrb[0].mxu0
      %1243 = vdwg.mxu0
      %v1244 = vadd.f32 %v946, %v1239
      %v1245 = vld [vmem:[%s4] sm:$0x1]
      %v1247 = vlaneseq
      %v1248 = vshrl.u32 %v1247, 7
      %v1249 = vsub.s32 0, %v1248
      %v1250 = vrot.slane %v1245, %v1249
      %v1252 = vadd.f32 %v1244, %v1250
      %v1253 = vmax.f32 %v1252, 0.0
      %v1254 = vpack.c.bf16 %v1253, %v1253
      %1255 = vst [vmem:[%s361] sm:$0x3] %v1254
      %p1256 = scmp.lt.s32.totalorder %s20, 1
      %s1257 = scalar_select %p1256, %s20, 1
      %p1258 = scmp.lt.s32.totalorder %s21, 3
      %s1259 = scalar_select %p1258, %s21, 3
      %s1260 = smul.addr %s1257, 4
      %s1261 = sadd.s32 %s1259, %s1260
      %s1262 = smul.addr %s1261, 2
      %s1263 = scalar_lea.vmem %s5, %s1262
      // Predicated region
      $region41: #{_encoder_forward_impl.18} parent=39 // pred_check
        %p1264 = pneg %p184
      $region42: #{_encoder_forward_impl.18} parent=39 // pred_check_branch
        %1266 = sbr.rel (%p1264) target = $region44
      $region43: #{_encoder_forward_impl.18} parent=39 // pred_region
        _
      $region44: #{_encoder_forward_impl.18} parent=39 // pred_fallthru
        _
    $region40: #{_encoder_forward_impl.18} parent=5 // pred_fallthru
      _
    %p1267 = scmp.le.s32.totalorder 2, %s11
    // Predicated region
    $region45: #{_encoder_forward_impl.18} parent=5 // pred_check
      %p1268 = pneg %p1267
    $region46: #{_encoder_forward_impl.18} parent=5 // pred_check_branch
      %1270 = sbr.rel (%p1268) target = $region48
    $region47: #{_encoder_forward_impl.18} parent=5 // pred_region
      %s1271 = ssub.s32 %s11, 2
      // Predicated region
      $region49: #{_encoder_forward_impl.18} parent=47 // pred_check
        %p1272 = pneg %p190
      $region50: #{_encoder_forward_impl.18} parent=47 // pred_check_branch
        %1274 = sbr.rel (%p1272) target = $region52
      $region51: #{_encoder_forward_impl.18} parent=47 // pred_region
        %p1275 = scmp.lt.s32.totalorder %s22, 1
        %s1276 = scalar_select %p1275, %s22, 1
        %p1277 = scmp.lt.s32.totalorder %s23, 3
        %s1278 = scalar_select %p1277, %s23, 3
        %s1279 = smul.addr %s1276, 4
        %s1280 = sadd.s32 %s1278, %s1279
        %s1281 = smul.addr %s1280, 2
        %s1282 = scalar_lea.vmem %s5, %s1281
      $region52: #{_encoder_forward_impl.18} parent=47 // pred_fallthru
        _
    $region48: #{_encoder_forward_impl.18} parent=5 // pred_fallthru
      _
  $region6: #{_encoder_forward_impl.18} parent=0 // loop_footer
    %s15 = sadd.s32 1, %s11
  $region7: #{_encoder_forward_impl.18} parent=0 // loop_footer_branch
    %10 = sbr.rel target = $region3
  $region8: #{_encoder_forward_impl.18} parent=0 // loop_exit
    _

// kernel: _encoder_forward_impl.15
$region0: #{_encoder_forward_impl.15}
  #allocation0 [shape = 'u32[]', space=smem, size = 0x4, offset = 0x4, fixed_abs, tag = 'smem constant byte address 0x4 - core index']
  #allocation1 [shape = 'u32[144,128]{1,0:T(1,128)}', space=vmem, size = 0x12000, scoped, tag = 'internal scratch']
  %s0 = inlined_call_operand.vmem [shape: bf16[2,10,10,128], index: 0, kind: input, shape index: {}, may-alias: {0,1,2}]
  %s1 = inlined_call_operand.vmem [shape: bf16[2,10,10,128], index: 1, kind: input, shape index: {}, may-alias: {0,1,2}]
  %s2 = inlined_call_operand.vmem [shape: bf16[2,10,10,128], index: 2, kind: input, shape index: {}, may-alias: {0,1,2}]
  %s3 = inlined_call_operand.vmem [shape: bf16[3,3,128,128], index: 3, kind: input, shape index: {}]
  %s4 = inlined_call_operand.vmem [shape: f32[1,128], index: 4, kind: input, shape index: {}]
  %s5 = inlined_call_operand.vmem [shape: bf16[2,8,8,128], index: 5, kind: output, shape index: {}]
  %s6 = sld [smem:[#allocation0]]
  $region53: #{_encoder_forward_impl.15} parent=0
    _
  %s8 = ssub.s32 1, %s6
  %s9 = scalar_select 0, %s8, %s6
  loop: start=0, step=1, limit=18
  $region2: #{_encoder_forward_impl.15} parent=0 // loop_pre_header
    _
  $region3: #{_encoder_forward_impl.15} parent=0 // loop_header
    %s11 = sphi 0, %s15
    %p12 = scmp.ge.s32.totalorder %s11, 18
    %s18 = sphi 0, %s30
    %s19 = sphi 0, %s26
    %s20 = sphi 0, %s18
    %s21 = sphi 0, %s19
    %s22 = sphi 0, %s20
    %s23 = sphi 0, %s21
    %s35 = sphi 0, %s37
    %s38 = sphi 0, %s35
    %s39 = sphi 0, %s38
    %s55 = sphi 0, %s39
    %s65 = sphi 0, %s67
    %s68 = sphi 0, %s65
    %s69 = sphi 0, %s68
    %s85 = sphi 0, %s69
    %s95 = sphi 0, %s97
    %s98 = sphi 0, %s95
    %s99 = sphi 0, %s98
    %s115 = sphi 0, %s99
    %s119 = sphi 0, %s119
    %s121 = sphi 0, %s119
    %s122 = sphi 0, %s121
    %s136 = sphi 0, %s122
    %s140 = sphi 0, %s140
    %s142 = sphi 0, %s140
    %s143 = sphi 0, %s142
    %s157 = sphi 0, %s143
    %s165 = sphi 0, %s167
    %s168 = sphi 0, %s165
    %s169 = sphi 0, %s168
    %s185 = sphi 0, %s169
  $region4: #{_encoder_forward_impl.15} parent=0 // loop_header_branch
    %14 = sbr.rel (%p12) target = $region8
  $region5: #{_encoder_forward_impl.15} parent=0 // loop_body
    %s16 = ssub.s32 %s11, 1
    %s17 = ssub.s32 %s11, 2
    %s24 = sadd.s32 1, %s19
    %p25 = scmp.ge.s32.totalorder %s24, 8
    %s26 = scalar_select %p25, 0, %s24
    %s27 = sadd.s32 1, %s18
    %s28 = scalar_select %p25, %s27, %s18
    %p29 = scmp.ge.s32.totalorder %s28, 2
    %s30 = scalar_select %p29, 0, %s28
    %s31 = ssub.s32 %s18, %s30
    %s32 = ssub.s32 %s19, %s26
    %s33 = sor.u32 %s31, %s32
    %p34 = scmp.eq.s32.totalorder %s33, 0
    %s36 = sadd.s32 %s35, 1
    %s37 = scalar_select %p34, %s35, %s36
    %p40 = pneg %p34
    %p41 = scmp.eq.s32.totalorder %s11, 15
    %p42 = por %p40, %p41
    %p43 = scmp.ne.s32.totalorder %s35, %s38
    %p44 = scmp.eq.s32.totalorder %s11, 0
    %p45 = por %p43, %p44
    %p46 = scmp.ne.s32.totalorder %s35, %s38
    %p47 = scmp.eq.s32.totalorder %s16, 15
    %p48 = por %p46, %p47
    %p49 = scmp.ne.s32.totalorder %s38, %s39
    %p50 = scmp.eq.s32.totalorder %s16, 0
    %p51 = por %p49, %p50
    %p52 = scmp.ne.s32.totalorder %s38, %s39
    %p53 = scmp.eq.s32.totalorder %s17, 15
    %p54 = por %p52, %p53
    %p56 = scmp.ne.s32.totalorder %s39, %s55
    %p57 = scmp.eq.s32.totalorder %s17, 0
    %p58 = por %p56, %p57
    %s59 = sadd.s32 %s19, 1
    %s60 = sadd.s32 %s26, 1
    %s61 = ssub.s32 %s18, %s30
    %s62 = ssub.s32 %s59, %s60
    %s63 = sor.u32 %s61, %s62
    %p64 = scmp.eq.s32.totalorder %s63, 0
    %s66 = sadd.s32 %s65, 1
    %s67 = scalar_select %p64, %s65, %s66
    %p70 = pneg %p64
    %p71 = scmp.eq.s32.totalorder %s11, 15
    %p72 = por %p70, %p71
    %p73 = scmp.ne.s32.totalorder %s65, %s68
    %p74 = scmp.eq.s32.totalorder %s11, 0
    %p75 = por %p73, %p74
    %p76 = scmp.ne.s32.totalorder %s65, %s68
    %p77 = scmp.eq.s32.totalorder %s16, 15
    %p78 = por %p76, %p77
    %p79 = scmp.ne.s32.totalorder %s68, %s69
    %p80 = scmp.eq.s32.totalorder %s16, 0
    %p81 = por %p79, %p80
    %p82 = scmp.ne.s32.totalorder %s68, %s69
    %p83 = scmp.eq.s32.totalorder %s17, 15
    %p84 = por %p82, %p83
    %p86 = scmp.ne.s32.totalorder %s69, %s85
    %p87 = scmp.eq.s32.totalorder %s17, 0
    %p88 = por %p86, %p87
    %s89 = sadd.s32 %s19, 2
    %s90 = sadd.s32 %s26, 2
    %s91 = ssub.s32 %s18, %s30
    %s92 = ssub.s32 %s89, %s90
    %s93 = sor.u32 %s91, %s92
    %p94 = scmp.eq.s32.totalorder %s93, 0
    %s96 = sadd.s32 %s95, 1
    %s97 = scalar_select %p94, %s95, %s96
    %p100 = pneg %p94
    %p101 = scmp.eq.s32.totalorder %s11, 15
    %p102 = por %p100, %p101
    %p103 = scmp.ne.s32.totalorder %s95, %s98
    %p104 = scmp.eq.s32.totalorder %s11, 0
    %p105 = por %p103, %p104
    %p106 = scmp.ne.s32.totalorder %s95, %s98
    %p107 = scmp.eq.s32.totalorder %s16, 15
    %p108 = por %p106, %p107
    %p109 = scmp.ne.s32.totalorder %s98, %s99
    %p110 = scmp.eq.s32.totalorder %s16, 0
    %p111 = por %p109, %p110
    %p112 = scmp.ne.s32.totalorder %s98, %s99
    %p113 = scmp.eq.s32.totalorder %s17, 15
    %p114 = por %p112, %p113
    %p116 = scmp.ne.s32.totalorder %s99, %s115
    %p117 = scmp.eq.s32.totalorder %s17, 0
    %p118 = por %p116, %p117
    %s120 = sadd.s32 %s119, 1
    %p123 = scmp.eq.s32.totalorder %s11, 15
    %p124 = scmp.ne.s32.totalorder %s119, %s121
    %p125 = scmp.eq.s32.totalorder %s11, 0
    %p126 = por %p124, %p125
    %p127 = scmp.ne.s32.totalorder %s119, %s121
    %p128 = scmp.eq.s32.totalorder %s16, 15
    %p129 = por %p127, %p128
    %p130 = scmp.ne.s32.totalorder %s121, %s122
    %p131 = scmp.eq.s32.totalorder %s16, 0
    %p132 = por %p130, %p131
    %p133 = scmp.ne.s32.totalorder %s121, %s122
    %p134 = scmp.eq.s32.totalorder %s17, 15
    %p135 = por %p133, %p134
    %p137 = scmp.ne.s32.totalorder %s122, %s136
    %p138 = scmp.eq.s32.totalorder %s17, 0
    %p139 = por %p137, %p138
    %s141 = sadd.s32 %s140, 1
    %p144 = scmp.eq.s32.totalorder %s11, 15
    %p145 = scmp.ne.s32.totalorder %s140, %s142
    %p146 = scmp.eq.s32.totalorder %s11, 0
    %p147 = por %p145, %p146
    %p148 = scmp.ne.s32.totalorder %s140, %s142
    %p149 = scmp.eq.s32.totalorder %s16, 15
    %p150 = por %p148, %p149
    %p151 = scmp.ne.s32.totalorder %s142, %s143
    %p152 = scmp.eq.s32.totalorder %s16, 0
    %p153 = por %p151, %p152
    %p154 = scmp.ne.s32.totalorder %s142, %s143
    %p155 = scmp.eq.s32.totalorder %s17, 15
    %p156 = por %p154, %p155
    %p158 = scmp.ne.s32.totalorder %s143, %s157
    %p159 = scmp.eq.s32.totalorder %s17, 0
    %p160 = por %p158, %p159
    %s161 = ssub.s32 %s18, %s30
    %s162 = ssub.s32 %s19, %s26
    %s163 = sor.u32 %s161, %s162
    %p164 = scmp.eq.s32.totalorder %s163, 0
    %s166 = sadd.s32 %s165, 1
    %s167 = scalar_select %p164, %s165, %s166
    %p170 = pneg %p164
    %p171 = scmp.eq.s32.totalorder %s11, 15
    %p172 = por %p170, %p171
    %p173 = scmp.ne.s32.totalorder %s165, %s168
    %p174 = scmp.eq.s32.totalorder %s11, 0
    %p175 = por %p173, %p174
    %p176 = scmp.ne.s32.totalorder %s165, %s168
    %p177 = scmp.eq.s32.totalorder %s16, 15
    %p178 = por %p176, %p177
    %p179 = scmp.ne.s32.totalorder %s168, %s169
    %p180 = scmp.eq.s32.totalorder %s16, 0
    %p181 = por %p179, %p180
    %p182 = scmp.ne.s32.totalorder %s168, %s169
    %p183 = scmp.eq.s32.totalorder %s17, 15
    %p184 = por %p182, %p183
    %p186 = scmp.ne.s32.totalorder %s169, %s185
    %p187 = scmp.eq.s32.totalorder %s17, 0
    %p188 = por %p186, %p187
    %p189 = scmp.le.s32.totalorder 1, %s11
    %p190 = scmp.lt.s32.totalorder %s11, 17
    %p191 = pnand %p189, %p190
    %p192 = pneg %p191
    // Predicated region
    $region9: #{_encoder_forward_impl.15} parent=5 // pred_check
      _
    $region10: #{_encoder_forward_impl.15} parent=5 // pred_check_branch
      %194 = sbr.rel (%p191) target = $region12
    $region11: #{_encoder_forward_impl.15} parent=5 // pred_region
      %s195 = ssub.s32 %s11, 1
      // Predicated region
      $region13: #{_encoder_forward_impl.15} parent=11 // pred_check
        %p196 = pneg %p132
      $region14: #{_encoder_forward_impl.15} parent=11 // pred_check_branch
        %198 = sbr.rel (%p196) target = $region16
      $region15: #{_encoder_forward_impl.15} parent=11 // pred_region
        _
      $region16: #{_encoder_forward_impl.15} parent=11 // pred_fallthru
        _
      // Predicated region
      $region17: #{_encoder_forward_impl.15} parent=11 // pred_check
        %p199 = pneg %p153
      $region18: #{_encoder_forward_impl.15} parent=11 // pred_check_branch
        %201 = sbr.rel (%p199) target = $region20
      $region19: #{_encoder_forward_impl.15} parent=11 // pred_region
        _
      $region20: #{_encoder_forward_impl.15} parent=11 // pred_fallthru
        _
    $region12: #{_encoder_forward_impl.15} parent=5 // pred_fallthru
      _
    %p202 = scmp.lt.s32.totalorder %s11, 16
    // Predicated region
    $region21: #{_encoder_forward_impl.15} parent=5 // pred_check
      %p203 = pneg %p202
    $region22: #{_encoder_forward_impl.15} parent=5 // pred_check_branch
      %205 = sbr.rel (%p203) target = $region24
    $region23: #{_encoder_forward_impl.15} parent=5 // pred_region
      // Predicated region
      $region25: #{_encoder_forward_impl.15} parent=23 // pred_check
        %p206 = pneg %p45
      $region26: #{_encoder_forward_impl.15} parent=23 // pred_check_branch
        %208 = sbr.rel (%p206) target = $region28
      $region27: #{_encoder_forward_impl.15} parent=23 // pred_region
        %p209 = scmp.lt.s32.totalorder %s18, 1
        %s210 = scalar_select %p209, %s18, 1
        %p211 = scmp.lt.s32.totalorder %s19, 9
        %s212 = scalar_select %p211, %s19, 9
        %s213 = smul.addr %s212, 2
        %s214 = smul.addr %s210, 20
        %s215 = sadd.s32 %s213, %s214
        %s216 = smul.addr %s215, 4
        %s217 = scalar_lea.vmem %s0, %s216
      $region28: #{_encoder_forward_impl.15} parent=23 // pred_fallthru
        _
      // Predicated region
      $region29: #{_encoder_forward_impl.15} parent=23 // pred_check
        %p218 = pneg %p75
      $region30: #{_encoder_forward_impl.15} parent=23 // pred_check_branch
        %220 = sbr.rel (%p218) target = $region32
      $region31: #{_encoder_forward_impl.15} parent=23 // pred_region
        %s221 = sadd.s32 %s19, 1
        %p222 = scmp.lt.s32.totalorder %s18, 1
        %s223 = scalar_select %p222, %s18, 1
        %p224 = scmp.lt.s32.totalorder %s221, 9
        %s225 = scalar_select %p224, %s221, 9
        %s226 = smul.addr %s225, 2
        %s227 = smul.addr %s223, 20
        %s228 = sadd.s32 %s226, %s227
        %s229 = smul.addr %s228, 4
        %s230 = scalar_lea.vmem %s1, %s229
        %s231 = sadd.s32 %s19, 1
      $region32: #{_encoder_forward_impl.15} parent=23 // pred_fallthru
        _
      // Predicated region
      $region33: #{_encoder_forward_impl.15} parent=23 // pred_check
        %p232 = pneg %p105
      $region34: #{_encoder_forward_impl.15} parent=23 // pred_check_branch
        %234 = sbr.rel (%p232) target = $region36
      $region35: #{_encoder_forward_impl.15} parent=23 // pred_region
        %s235 = sadd.s32 %s19, 2
        %p236 = scmp.lt.s32.totalorder %s18, 1
        %s237 = scalar_select %p236, %s18, 1
        %p238 = scmp.lt.s32.totalorder %s235, 9
        %s239 = scalar_select %p238, %s235, 9
        %s240 = smul.addr %s239, 2
        %s241 = smul.addr %s237, 20
        %s242 = sadd.s32 %s240, %s241
        %s243 = smul.addr %s242, 4
        %s244 = scalar_lea.vmem %s2, %s243
        %s245 = sadd.s32 %s19, 2
      $region36: #{_encoder_forward_impl.15} parent=23 // pred_fallthru
        _
    $region24: #{_encoder_forward_impl.15} parent=5 // pred_fallthru
      _
    %p246 = scmp.le.s32.totalorder 1, %s11
    %p247 = scmp.lt.s32.totalorder %s11, 17
    %p248 = pnand %p246, %p247
    %p249 = pneg %p248
    // Predicated region
    $region37: #{_encoder_forward_impl.15} parent=5 // pred_check
      _
    $region38: #{_encoder_forward_impl.15} parent=5 // pred_check_branch
      %251 = sbr.rel (%p248) target = $region40
    $region39: #{_encoder_forward_impl.15} parent=5 // pred_region
      %s252 = ssub.s32 %s11, 1
      %p253 = scmp.lt.s32.totalorder %s20, 1
      %s254 = scalar_select %p253, %s20, 1
      %p255 = scmp.lt.s32.totalorder %s21, 9
      %s256 = scalar_select %p255, %s21, 9
      %s257 = smul.addr %s256, 2
      %s258 = smul.addr %s254, 20
      %s259 = sadd.s32 %s257, %s258
      %s260 = smul.addr %s259, 4
      %s261 = scalar_lea.vmem %s0, %s260
      %p262 = pneg %p51
      %p263 = pneg %p48
      %s264 = sadd.s32 %s21, 1
      %p265 = scmp.lt.s32.totalorder %s20, 1
      %s266 = scalar_select %p265, %s20, 1
      %p267 = scmp.lt.s32.totalorder %s264, 9
      %s268 = scalar_select %p267, %s264, 9
      %s269 = smul.addr %s268, 2
      %s270 = smul.addr %s266, 20
      %s271 = sadd.s32 %s269, %s270
      %s272 = smul.addr %s271, 4
      %s273 = scalar_lea.vmem %s1, %s272
      %p274 = pneg %p81
      %p275 = pneg %p78
      %s276 = sadd.s32 %s21, 2
      %p277 = scmp.lt.s32.totalorder %s20, 1
      %s278 = scalar_select %p277, %s20, 1
      %p279 = scmp.lt.s32.totalorder %s276, 9
      %s280 = scalar_select %p279, %s276, 9
      %s281 = smul.addr %s280, 2
      %s282 = smul.addr %s278, 20
      %s283 = sadd.s32 %s281, %s282
      %s284 = smul.addr %s283, 4
      %s285 = scalar_lea.vmem %s2, %s284
      %p286 = pneg %p111
      %p287 = pneg %p108
      %p288 = pneg %p132
      %p289 = pneg %p129
      %p290 = pneg %p153
      %p291 = pneg %p150
      %p292 = pneg %p181
      %p293 = pneg %p178
      %p294 = scmp.lt.s32.totalorder %s20, 1
      %s295 = scalar_select %p294, %s20, 1
      %p296 = scmp.lt.s32.totalorder %s21, 7
      %s297 = scalar_select %p296, %s21, 7
      %s298 = smul.addr %s295, 8
      %s299 = sadd.s32 %s297, %s298
      %s300 = smul.addr %s299, 4
      %s301 = scalar_lea.vmem %s5, %s300
      %p302 = scmp.lt.s32.totalorder %s20, 1
      %s303 = scalar_select %p302, %s20, 1
      %p304 = scmp.lt.s32.totalorder %s21, 9
      %s305 = scalar_select %p304, %s21, 9
      %s306 = smul.addr %s305, 2
      %s307 = smul.addr %s303, 20
      %s308 = sadd.s32 %s306, %s307
      %s309 = smul.addr %s308, 4
      %s310 = scalar_lea.vmem %s0, %s309
      %s311 = sadd.s32 %s21, 1
      %p312 = scmp.lt.s32.totalorder %s20, 1
      %s313 = scalar_select %p312, %s20, 1
      %p314 = scmp.lt.s32.totalorder %s311, 9
      %s315 = scalar_select %p314, %s311, 9
      %s316 = smul.addr %s315, 2
      %s317 = smul.addr %s313, 20
      %s318 = sadd.s32 %s316, %s317
      %s319 = smul.addr %s318, 4
      %s320 = scalar_lea.vmem %s1, %s319
      %s321 = sadd.s32 %s21, 1
      %s322 = sadd.s32 %s21, 2
      %p323 = scmp.lt.s32.totalorder %s20, 1
      %s324 = scalar_select %p323, %s20, 1
      %p325 = scmp.lt.s32.totalorder %s322, 9
      %s326 = scalar_select %p325, %s322, 9
      %s327 = smul.addr %s326, 2
      %s328 = smul.addr %s324, 20
      %s329 = sadd.s32 %s327, %s328
      %s330 = smul.addr %s329, 4
      %s331 = scalar_lea.vmem %s2, %s330
      %s332 = sadd.s32 %s21, 2
      %p333 = scmp.lt.s32.totalorder %s20, 1
      %s334 = scalar_select %p333, %s20, 1
      %p335 = scmp.lt.s32.totalorder %s21, 7
      %s336 = scalar_select %p335, %s21, 7
      %s337 = smul.addr %s334, 8
      %s338 = sadd.s32 %s336, %s337
      %s339 = smul.addr %s338, 4
      %s340 = scalar_lea.vmem %s5, %s339
      %v342 = vld [vmem:[%s310] sm:$0xf]
      %v343 = vld [vmem:[%s310 + $0x4] sm:$0x1]
      %v344 = vld [vmem:[%s320] sm:$0xf]
      %v345 = vld [vmem:[%s320 + $0x4] sm:$0x1]
      %v346 = vld [vmem:[%s331] sm:$0xf]
      %v347 = vld [vmem:[%s331 + $0x4] sm:$0x1]
      %v348 = vld [vmem:[%s3] sm:$0xf]
      %v349 = vld [vmem:[%s3 + $0x4] sm:$0xf]
      %v350 = vld [vmem:[%s3 + $0x8] sm:$0xf]
      %v351 = vld [vmem:[%s3 + $0xc] sm:$0xf]
      %v352 = vld [vmem:[%s3 + $0x10] sm:$0xf]
      %v353 = vld [vmem:[%s3 + $0x14] sm:$0xf]
      %v354 = vld [vmem:[%s3 + $0x18] sm:$0xf]
      %v355 = vld [vmem:[%s3 + $0x1c] sm:$0xf]
      %v356 = vld [vmem:[%s3 + $0x20] sm:$0xf]
      %v357 = vld [vmem:[%s3 + $0x24] sm:$0xf]
      %v358 = vld [vmem:[%s3 + $0x28] sm:$0xf]
      %v359 = vld [vmem:[%s3 + $0x2c] sm:$0xf]
      %v360 = vld [vmem:[%s3 + $0x30] sm:$0xf]
      %v361 = vld [vmem:[%s3 + $0x34] sm:$0xf]
      %v362 = vld [vmem:[%s3 + $0x38] sm:$0xf]
      %v363 = vld [vmem:[%s3 + $0x3c] sm:$0xf]
      %s364 = scalar_lea.vmem %s3, 64
      %v365 = vld [vmem:[%s364] sm:$0xf]
      %v366 = vld [vmem:[%s364 + $0x4] sm:$0xf]
      %v367 = vld [vmem:[%s364 + $0x8] sm:$0xf]
      %v368 = vld [vmem:[%s364 + $0xc] sm:$0xf]
      %v369 = vld [vmem:[%s364 + $0x10] sm:$0xf]
      %v370 = vld [vmem:[%s364 + $0x14] sm:$0xf]
      %v371 = vld [vmem:[%s364 + $0x18] sm:$0xf]
      %v372 = vld [vmem:[%s364 + $0x1c] sm:$0xf]
      %v373 = vld [vmem:[%s364 + $0x20] sm:$0xf]
      %v374 = vld [vmem:[%s364 + $0x24] sm:$0xf]
      %v375 = vld [vmem:[%s364 + $0x28] sm:$0xf]
      %v376 = vld [vmem:[%s364 + $0x2c] sm:$0xf]
      %v377 = vld [vmem:[%s364 + $0x30] sm:$0xf]
      %v378 = vld [vmem:[%s364 + $0x34] sm:$0xf]
      %v379 = vld [vmem:[%s364 + $0x38] sm:$0xf]
      %v380 = vld [vmem:[%s364 + $0x3c] sm:$0xf]
      %v383 = vunpack.c.l.b16 %v342
      %v384 = vunpack.c.l.b16 %v343
      %v385 = vpack.c.b16 %v384, %v383
      %v387 = vshrl.u32 %v385, 16
      %v389 = vshll.u32 %v385, 16
      %v391 = vrot.slane %v389, 1
      %v392 = vor.u32 %v387, %v391
      %v410 = vunpack.c.l.b16 %v365
      %v411 = vunpack.c.l.b16 %v366
      %v412 = vunpack.c.l.b16 %v367
      %v413 = vunpack.c.l.b16 %v368
      %v414 = vunpack.c.l.b16 %v369
      %v415 = vunpack.c.l.b16 %v370
      %v416 = vunpack.c.l.b16 %v371
      %v417 = vunpack.c.l.b16 %v372
      %v418 = vunpack.c.l.b16 %v373
      %v419 = vunpack.c.l.b16 %v374
      %v420 = vunpack.c.l.b16 %v375
      %v421 = vunpack.c.l.b16 %v376
      %v422 = vunpack.c.l.b16 %v377
      %v423 = vunpack.c.l.b16 %v378
      %v424 = vunpack.c.l.b16 %v379
      %v425 = vunpack.c.l.b16 %v380
      %v426 = vpack.c.b16 %v411, %v410
      %v427 = vpack.c.b16 %v413, %v412
      %v428 = vpack.c.b16 %v415, %v414
      %v429 = vpack.c.b16 %v417, %v416
      %v430 = vpack.c.b16 %v419, %v418
      %v431 = vpack.c.b16 %v421, %v420
      %v432 = vpack.c.b16 %v423, %v422
      %v433 = vpack.c.b16 %v425, %v424
      %442 = vmatprep.subr.bf16.mxu0 0
      %443 = vmatpush1.bf16.msra.mxu0 %v426
      %444 = vmatprep.subr.bf16.mxu0 0
      %445 = vmatpush1.bf16.msra.mxu0 %v427
      %446 = vmatprep.subr.bf16.mxu0 0
      %447 = vmatpush1.bf16.msra.mxu0 %v428
      %448 = vmatprep.subr.bf16.mxu0 0
      %449 = vmatpush1.bf16.msra.mxu0 %v429
      %450 = vmatprep.subr.bf16.mxu0 0
      %451 = vmatpush1.bf16.msra.mxu0 %v430
      %452 = vmatprep.subr.bf16.mxu0 0
      %453 = vmatpush1.bf16.msra.mxu0 %v431
      %454 = vmatprep.subr.bf16.mxu0 0
      %455 = vmatpush1.bf16.msra.mxu0 %v432
      %456 = vmatprep.subr.bf16.mxu0 0
      %457 = vmatpush1.bf16.msra.mxu0 %v433
      %458 = vmatprep.subr.bf16.mxu0 0
      %459 = vmatpush1.bf16.msra.mxu0 0
      %460 = vmatprep.subr.bf16.mxu0 0
      %461 = vmatpush1.bf16.msra.mxu0 0
      %462 = vmatprep.subr.bf16.mxu0 0
      %463 = vmatpush1.bf16.msra.mxu0 0
      %464 = vmatprep.subr.bf16.mxu0 0
      %465 = vmatpush1.bf16.msra.mxu0 0
      %466 = vmatprep.subr.bf16.mxu0 0
      %467 = vmatpush1.bf16.msra.mxu0 0
      %468 = vmatprep.subr.bf16.mxu0 0
      %469 = vmatpush1.bf16.msra.mxu0 0
      %470 = vmatprep.subr.bf16.mxu0 0
      %471 = vmatpush1.bf16.msra.mxu0 0
      %472 = vmatprep.subr.bf16.mxu0 0
      %473 = vmatpush1.bf16.msra.mxu0 0
      %474 = vmatprep.mubr.bf16.mxu0 0
      %475 = vmatmul.mubr.bf16.gmra.mrb[0].mxu0 %v392
      %v476 = vpop.f32.mrb[0].mxu0
      %v477 = vadd.f32 0.0, %v476
      %v478 = vpop.f32.mrb[0].mxu0
      %v479 = vpop.f32.mrb[0].mxu0
      %v480 = vpop.f32.mrb[0].mxu0
      %481 = vdwg.mxu0
      %v498 = vunpack.c.l.b16 %v348
      %v499 = vunpack.c.l.b16 %v349
      %v500 = vunpack.c.l.b16 %v350
      %v501 = vunpack.c.l.b16 %v351
      %v502 = vunpack.c.l.b16 %v352
      %v503 = vunpack.c.l.b16 %v353
      %v504 = vunpack.c.l.b16 %v354
      %v505 = vunpack.c.l.b16 %v355
      %v506 = vunpack.c.l.b16 %v356
      %v507 = vunpack.c.l.b16 %v357
      %v508 = vunpack.c.l.b16 %v358
      %v509 = vunpack.c.l.b16 %v359
      %v510 = vunpack.c.l.b16 %v360
      %v511 = vunpack.c.l.b16 %v361
      %v512 = vunpack.c.l.b16 %v362
      %v513 = vunpack.c.l.b16 %v363
      %v514 = vpack.c.b16 %v499, %v498
      %v515 = vpack.c.b16 %v501, %v500
      %v516 = vpack.c.b16 %v503, %v502
      %v517 = vpack.c.b16 %v505, %v504
      %v518 = vpack.c.b16 %v507, %v506
      %v519 = vpack.c.b16 %v509, %v508
      %v520 = vpack.c.b16 %v511, %v510
      %v521 = vpack.c.b16 %v513, %v512
      %530 = vmatprep.subr.bf16.mxu0 0
      %531 = vmatpush1.bf16.msra.mxu0 %v514
      %532 = vmatprep.subr.bf16.mxu0 0
      %533 = vmatpush1.bf16.msra.mxu0 %v515
      %534 = vmatprep.subr.bf16.mxu0 0
      %535 = vmatpush1.bf16.msra.mxu0 %v516
      %536 = vmatprep.subr.bf16.mxu0 0
      %537 = vmatpush1.bf16.msra.mxu0 %v517
      %538 = vmatprep.subr.bf16.mxu0 0
      %539 = vmatpush1.bf16.msra.mxu0 %v518
      %540 = vmatprep.subr.bf16.mxu0 0
      %541 = vmatpush1.bf16.msra.mxu0 %v519
      %542 = vmatprep.subr.bf16.mxu0 0
      %543 = vmatpush1.bf16.msra.mxu0 %v520
      %544 = vmatprep.subr.bf16.mxu0 0
      %545 = vmatpush1.bf16.msra.mxu0 %v521
      %546 = vmatprep.subr.bf16.mxu0 0
      %547 = vmatpush1.bf16.msra.mxu0 0
      %548 = vmatprep.subr.bf16.mxu0 0
      %549 = vmatpush1.bf16.msra.mxu0 0
      %550 = vmatprep.subr.bf16.mxu0 0
      %551 = vmatpush1.bf16.msra.mxu0 0
      %552 = vmatprep.subr.bf16.mxu0 0
      %553 = vmatpush1.bf16.msra.mxu0 0
      %554 = vmatprep.subr.bf16.mxu0 0
      %555 = vmatpush1.bf16.msra.mxu0 0
      %556 = vmatprep.subr.bf16.mxu0 0
      %557 = vmatpush1.bf16.msra.mxu0 0
      %558 = vmatprep.subr.bf16.mxu0 0
      %559 = vmatpush1.bf16.msra.mxu0 0
      %560 = vmatprep.subr.bf16.mxu0 0
      %561 = vmatpush1.bf16.msra.mxu0 0
      %562 = vmatprep.mubr.bf16.mxu0 0
      %563 = vmatmul.mubr.bf16.gmra.mrb[0].mxu0 %v342
      %v564 = vpop.f32.mrb[0].mxu0
      %v565 = vadd.f32 %v477, %v564
      %v566 = vpop.f32.mrb[0].mxu0
      %v567 = vpop.f32.mrb[0].mxu0
      %v568 = vpop.f32.mrb[0].mxu0
      %569 = vdwg.mxu0
      %s570 = scalar_lea.vmem %s3, 128
      %v571 = vld [vmem:[%s570] sm:$0xf]
      %v572 = vld [vmem:[%s570 + $0x4] sm:$0xf]
      %v573 = vld [vmem:[%s570 + $0x8] sm:$0xf]
      %v574 = vld [vmem:[%s570 + $0xc] sm:$0xf]
      %v575 = vld [vmem:[%s570 + $0x10] sm:$0xf]
      %v576 = vld [vmem:[%s570 + $0x14] sm:$0xf]
      %v577 = vld [vmem:[%s570 + $0x18] sm:$0xf]
      %v578 = vld [vmem:[%s570 + $0x1c] sm:$0xf]
      %v579 = vld [vmem:[%s570 + $0x20] sm:$0xf]
      %v580 = vld [vmem:[%s570 + $0x24] sm:$0xf]
      %v581 = vld [vmem:[%s570 + $0x28] sm:$0xf]
      %v582 = vld [vmem:[%s570 + $0x2c] sm:$0xf]
      %v583 = vld [vmem:[%s570 + $0x30] sm:$0xf]
      %v584 = vld [vmem:[%s570 + $0x34] sm:$0xf]
      %v585 = vld [vmem:[%s570 + $0x38] sm:$0xf]
      %v586 = vld [vmem:[%s570 + $0x3c] sm:$0xf]
      %v587 = vrot.slane %v385, 1
      %v605 = vunpack.c.l.b16 %v571
      %v606 = vunpack.c.l.b16 %v572
      %v607 = vunpack.c.l.b16 %v573
      %v608 = vunpack.c.l.b16 %v574
      %v609 = vunpack.c.l.b16 %v575
      %v610 = vunpack.c.l.b16 %v576
      %v611 = vunpack.c.l.b16 %v577
      %v612 = vunpack.c.l.b16 %v578
      %v613 = vunpack.c.l.b16 %v579
      %v614 = vunpack.c.l.b16 %v580
      %v615 = vunpack.c.l.b16 %v581
      %v616 = vunpack.c.l.b16 %v582
      %v617 = vunpack.c.l.b16 %v583
      %v618 = vunpack.c.l.b16 %v584
      %v619 = vunpack.c.l.b16 %v585
      %v620 = vunpack.c.l.b16 %v586
      %v621 = vpack.c.b16 %v606, %v605
      %v622 = vpack.c.b16 %v608, %v607
      %v623 = vpack.c.b16 %v610, %v609
      %v624 = vpack.c.b16 %v612, %v611
      %v625 = vpack.c.b16 %v614, %v613
      %v626 = vpack.c.b16 %v616, %v615
      %v627 = vpack.c.b16 %v618, %v617
      %v628 = vpack.c.b16 %v620, %v619
      %637 = vmatprep.subr.bf16.mxu0 0
      %638 = vmatpush1.bf16.msra.mxu0 %v621
      %639 = vmatprep.subr.bf16.mxu0 0
      %640 = vmatpush1.bf16.msra.mxu0 %v622
      %641 = vmatprep.subr.bf16.mxu0 0
      %642 = vmatpush1.bf16.msra.mxu0 %v623
      %643 = vmatprep.subr.bf16.mxu0 0
      %644 = vmatpush1.bf16.msra.mxu0 %v624
      %645 = vmatprep.subr.bf16.mxu0 0
      %646 = vmatpush1.bf16.msra.mxu0 %v625
      %647 = vmatprep.subr.bf16.mxu0 0
      %648 = vmatpush1.bf16.msra.mxu0 %v626
      %649 = vmatprep.subr.bf16.mxu0 0
      %650 = vmatpush1.bf16.msra.mxu0 %v627
      %651 = vmatprep.subr.bf16.mxu0 0
      %652 = vmatpush1.bf16.msra.mxu0 %v628
      %653 = vmatprep.subr.bf16.mxu0 0
      %654 = vmatpush1.bf16.msra.mxu0 0
      %655 = vmatprep.subr.bf16.mxu0 0
      %656 = vmatpush1.bf16.msra.mxu0 0
      %657 = vmatprep.subr.bf16.mxu0 0
      %658 = vmatpush1.bf16.msra.mxu0 0
      %659 = vmatprep.subr.bf16.mxu0 0
      %660 = vmatpush1.bf16.msra.mxu0 0
      %661 = vmatprep.subr.bf16.mxu0 0
      %662 = vmatpush1.bf16.msra.mxu0 0
      %663 = vmatprep.subr.bf16.mxu0 0
      %664 = vmatpush1.bf16.msra.mxu0 0
      %665 = vmatprep.subr.bf16.mxu0 0
      %666 = vmatpush1.bf16.msra.mxu0 0
      %667 = vmatprep.subr.bf16.mxu0 0
      %668 = vmatpush1.bf16.msra.mxu0 0
      %669 = vmatprep.mubr.bf16.mxu0 0
      %670 = vmatmul.mubr.bf16.gmra.mrb[0].mxu0 %v587
      %v671 = vpop.f32.mrb[0].mxu0
      %v672 = vadd.f32 0.0, %v671
      %v673 = vpop.f32.mrb[0].mxu0
      %v674 = vpop.f32.mrb[0].mxu0
      %v675 = vpop.f32.mrb[0].mxu0
      %676 = vdwg.mxu0
      %v677 = vadd.f32 %v565, %v672
      %s678 = scalar_lea.vmem %s3, 192
      %v679 = vld [vmem:[%s678] sm:$0xf]
      %v680 = vld [vmem:[%s678 + $0x4] sm:$0xf]
      %v681 = vld [vmem:[%s678 + $0x8] sm:$0xf]
      %v682 = vld [vmem:[%s678 + $0xc] sm:$0xf]
      %v683 = vld [vmem:[%s678 + $0x10] sm:$0xf]
      %v684 = vld [vmem:[%s678 + $0x14] sm:$0xf]
      %v685 = vld [vmem:[%s678 + $0x18] sm:$0xf]
      %v686 = vld [vmem:[%s678 + $0x1c] sm:$0xf]
      %v687 = vld [vmem:[%s678 + $0x20] sm:$0xf]
      %v688 = vld [vmem:[%s678 + $0x24] sm:$0xf]
      %v689 = vld [vmem:[%s678 + $0x28] sm:$0xf]
      %v690 = vld [vmem:[%s678 + $0x2c] sm:$0xf]
      %v691 = vld [vmem:[%s678 + $0x30] sm:$0xf]
      %v692 = vld [vmem:[%s678 + $0x34] sm:$0xf]
      %v693 = vld [vmem:[%s678 + $0x38] sm:$0xf]
      %v694 = vld [vmem:[%s678 + $0x3c] sm:$0xf]
      %v711 = vunpack.c.l.b16 %v679
      %v712 = vunpack.c.l.b16 %v680
      %v713 = vunpack.c.l.b16 %v681
      %v714 = vunpack.c.l.b16 %v682
      %v715 = vunpack.c.l.b16 %v683
      %v716 = vunpack.c.l.b16 %v684
      %v717 = vunpack.c.l.b16 %v685
      %v718 = vunpack.c.l.b16 %v686
      %v719 = vunpack.c.l.b16 %v687
      %v720 = vunpack.c.l.b16 %v688
      %v721 = vunpack.c.l.b16 %v689
      %v722 = vunpack.c.l.b16 %v690
      %v723 = vunpack.c.l.b16 %v691
      %v724 = vunpack.c.l.b16 %v692
      %v725 = vunpack.c.l.b16 %v693
      %v726 = vunpack.c.l.b16 %v694
      %v727 = vpack.c.b16 %v712, %v711
      %v728 = vpack.c.b16 %v714, %v713
      %v729 = vpack.c.b16 %v716, %v715
      %v730 = vpack.c.b16 %v718, %v717
      %v731 = vpack.c.b16 %v720, %v719
      %v732 = vpack.c.b16 %v722, %v721
      %v733 = vpack.c.b16 %v724, %v723
      %v734 = vpack.c.b16 %v726, %v725
      %743 = vmatprep.subr.bf16.mxu0 0
      %744 = vmatpush1.bf16.msra.mxu0 %v727
      %745 = vmatprep.subr.bf16.mxu0 0
      %746 = vmatpush1.bf16.msra.mxu0 %v728
      %747 = vmatprep.subr.bf16.mxu0 0
      %748 = vmatpush1.bf16.msra.mxu0 %v729
      %749 = vmatprep.subr.bf16.mxu0 0
      %750 = vmatpush1.bf16.msra.mxu0 %v730
      %751 = vmatprep.subr.bf16.mxu0 0
      %752 = vmatpush1.bf16.msra.mxu0 %v731
      %753 = vmatprep.subr.bf16.mxu0 0
      %754 = vmatpush1.bf16.msra.mxu0 %v732
      %755 = vmatprep.subr.bf16.mxu0 0
      %756 = vmatpush1.bf16.msra.mxu0 %v733
      %757 = vmatprep.subr.bf16.mxu0 0
      %758 = vmatpush1.bf16.msra.mxu0 %v734
      %759 = vmatprep.subr.bf16.mxu0 0
      %760 = vmatpush1.bf16.msra.mxu0 0
      %761 = vmatprep.subr.bf16.mxu0 0
      %762 = vmatpush1.bf16.msra.mxu0 0
      %763 = vmatprep.subr.bf16.mxu0 0
      %764 = vmatpush1.bf16.msra.mxu0 0
      %765 = vmatprep.subr.bf16.mxu0 0
      %766 = vmatpush1.bf16.msra.mxu0 0
      %767 = vmatprep.subr.bf16.mxu0 0
      %768 = vmatpush1.bf16.msra.mxu0 0
      %769 = vmatprep.subr.bf16.mxu0 0
      %770 = vmatpush1.bf16.msra.mxu0 0
      %771 = vmatprep.subr.bf16.mxu0 0
      %772 = vmatpush1.bf16.msra.mxu0 0
      %773 = vmatprep.subr.bf16.mxu0 0
      %774 = vmatpush1.bf16.msra.mxu0 0
      %775 = vmatprep.mubr.bf16.mxu0 0
      %776 = vmatmul.mubr.bf16.gmra.mrb[0].mxu0 %v344
      %v777 = vpop.f32.mrb[0].mxu0
      %v778 = vadd.f32 0.0, %v777
      %v779 = vpop.f32.mrb[0].mxu0
      %v780 = vpop.f32.mrb[0].mxu0
      %v781 = vpop.f32.mrb[0].mxu0
      %782 = vdwg.mxu0
      %v783 = vadd.f32 %v677, %v778
      %s784 = scalar_lea.vmem %s3, 256
      %v785 = vld [vmem:[%s784] sm:$0xf]
      %v786 = vld [vmem:[%s784 + $0x4] sm:$0xf]
      %v787 = vld [vmem:[%s784 + $0x8] sm:$0xf]
      %v788 = vld [vmem:[%s784 + $0xc] sm:$0xf]
      %v789 = vld [vmem:[%s784 + $0x10] sm:$0xf]
      %v790 = vld [vmem:[%s784 + $0x14] sm:$0xf]
      %v791 = vld [vmem:[%s784 + $0x18] sm:$0xf]
      %v792 = vld [vmem:[%s784 + $0x1c] sm:$0xf]
      %v793 = vld [vmem:[%s784 + $0x20] sm:$0xf]
      %v794 = vld [vmem:[%s784 + $0x24] sm:$0xf]
      %v795 = vld [vmem:[%s784 + $0x28] sm:$0xf]
      %v796 = vld [vmem:[%s784 + $0x2c] sm:$0xf]
      %v797 = vld [vmem:[%s784 + $0x30] sm:$0xf]
      %v798 = vld [vmem:[%s784 + $0x34] sm:$0xf]
      %v799 = vld [vmem:[%s784 + $0x38] sm:$0xf]
      %v800 = vld [vmem:[%s784 + $0x3c] sm:$0xf]
      %v803 = vunpack.c.l.b16 %v344
      %v804 = vunpack.c.l.b16 %v345
      %v805 = vpack.c.b16 %v804, %v803
      %v807 = vshrl.u32 %v805, 16
      %v809 = vshll.u32 %v805, 16
      %v811 = vrot.slane %v809, 1
      %v812 = vor.u32 %v807, %v811
      %v830 = vunpack.c.l.b16 %v785
      %v831 = vunpack.c.l.b16 %v786
      %v832 = vunpack.c.l.b16 %v787
      %v833 = vunpack.c.l.b16 %v788
      %v834 = vunpack.c.l.b16 %v789
      %v835 = vunpack.c.l.b16 %v790
      %v836 = vunpack.c.l.b16 %v791
      %v837 = vunpack.c.l.b16 %v792
      %v838 = vunpack.c.l.b16 %v793
      %v839 = vunpack.c.l.b16 %v794
      %v840 = vunpack.c.l.b16 %v795
      %v841 = vunpack.c.l.b16 %v796
      %v842 = vunpack.c.l.b16 %v797
      %v843 = vunpack.c.l.b16 %v798
      %v844 = vunpack.c.l.b16 %v799
      %v845 = vunpack.c.l.b16 %v800
      %v846 = vpack.c.b16 %v831, %v830
      %v847 = vpack.c.b16 %v833, %v832
      %v848 = vpack.c.b16 %v835, %v834
      %v849 = vpack.c.b16 %v837, %v836
      %v850 = vpack.c.b16 %v839, %v838
      %v851 = vpack.c.b16 %v841, %v840
      %v852 = vpack.c.b16 %v843, %v842
      %v853 = vpack.c.b16 %v845, %v844
      %862 = vmatprep.subr.bf16.mxu0 0
      %863 = vmatpush1.bf16.msra.mxu0 %v846
      %864 = vmatprep.subr.bf16.mxu0 0
      %865 = vmatpush1.bf16.msra.mxu0 %v847
      %866 = vmatprep.subr.bf16.mxu0 0
      %867 = vmatpush1.bf16.msra.mxu0 %v848
      %868 = vmatprep.subr.bf16.mxu0 0
      %869 = vmatpush1.bf16.msra.mxu0 %v849
      %870 = vmatprep.subr.bf16.mxu0 0
      %871 = vmatpush1.bf16.msra.mxu0 %v850
      %872 = vmatprep.subr.bf16.mxu0 0
      %873 = vmatpush1.bf16.msra.mxu0 %v851
      %874 = vmatprep.subr.bf16.mxu0 0
      %875 = vmatpush1.bf16.msra.mxu0 %v852
      %876 = vmatprep.subr.bf16.mxu0 0
      %877 = vmatpush1.bf16.msra.mxu0 %v853
      %878 = vmatprep.subr.bf16.mxu0 0
      %879 = vmatpush1.bf16.msra.mxu0 0
      %880 = vmatprep.subr.bf16.mxu0 0
      %881 = vmatpush1.bf16.msra.mxu0 0
      %882 = vmatprep.subr.bf16.mxu0 0
      %883 = vmatpush1.bf16.msra.mxu0 0
      %884 = vmatprep.subr.bf16.mxu0 0
      %885 = vmatpush1.bf16.msra.mxu0 0
      %886 = vmatprep.subr.bf16.mxu0 0
      %887 = vmatpush1.bf16.msra.mxu0 0
      %888 = vmatprep.subr.bf16.mxu0 0
      %889 = vmatpush1.bf16.msra.mxu0 0
      %890 = vmatprep.subr.bf16.mxu0 0
      %891 = vmatpush1.bf16.msra.mxu0 0
      %892 = vmatprep.subr.bf16.mxu0 0
      %893 = vmatpush1.bf16.msra.mxu0 0
      %894 = vmatprep.mubr.bf16.mxu0 0
      %895 = vmatmul.mubr.bf16.gmra.mrb[0].mxu0 %v812
      %v896 = vpop.f32.mrb[0].mxu0
      %v897 = vadd.f32 0.0, %v896
      %v898 = vpop.f32.mrb[0].mxu0
      %v899 = vpop.f32.mrb[0].mxu0
      %v900 = vpop.f32.mrb[0].mxu0
      %901 = vdwg.mxu0
      %v902 = vadd.f32 %v783, %v897
      %s903 = scalar_lea.vmem %s3, 320
      %v904 = vld [vmem:[%s903] sm:$0xf]
      %v905 = vld [vmem:[%s903 + $0x4] sm:$0xf]
      %v906 = vld [vmem:[%s903 + $0x8] sm:$0xf]
      %v907 = vld [vmem:[%s903 + $0xc] sm:$0xf]
      %v908 = vld [vmem:[%s903 + $0x10] sm:$0xf]
      %v909 = vld [vmem:[%s903 + $0x14] sm:$0xf]
      %v910 = vld [vmem:[%s903 + $0x18] sm:$0xf]
      %v911 = vld [vmem:[%s903 + $0x1c] sm:$0xf]
      %v912 = vld [vmem:[%s903 + $0x20] sm:$0xf]
      %v913 = vld [vmem:[%s903 + $0x24] sm:$0xf]
      %v914 = vld [vmem:[%s903 + $0x28] sm:$0xf]
      %v915 = vld [vmem:[%s903 + $0x2c] sm:$0xf]
      %v916 = vld [vmem:[%s903 + $0x30] sm:$0xf]
      %v917 = vld [vmem:[%s903 + $0x34] sm:$0xf]
      %v918 = vld [vmem:[%s903 + $0x38] sm:$0xf]
      %v919 = vld [vmem:[%s903 + $0x3c] sm:$0xf]
      %v920 = vrot.slane %v805, 1
      %v938 = vunpack.c.l.b16 %v904
      %v939 = vunpack.c.l.b16 %v905
      %v940 = vunpack.c.l.b16 %v906
      %v941 = vunpack.c.l.b16 %v907
      %v942 = vunpack.c.l.b16 %v908
      %v943 = vunpack.c.l.b16 %v909
      %v944 = vunpack.c.l.b16 %v910
      %v945 = vunpack.c.l.b16 %v911
      %v946 = vunpack.c.l.b16 %v912
      %v947 = vunpack.c.l.b16 %v913
      %v948 = vunpack.c.l.b16 %v914
      %v949 = vunpack.c.l.b16 %v915
      %v950 = vunpack.c.l.b16 %v916
      %v951 = vunpack.c.l.b16 %v917
      %v952 = vunpack.c.l.b16 %v918
      %v953 = vunpack.c.l.b16 %v919
      %v954 = vpack.c.b16 %v939, %v938
      %v955 = vpack.c.b16 %v941, %v940
      %v956 = vpack.c.b16 %v943, %v942
      %v957 = vpack.c.b16 %v945, %v944
      %v958 = vpack.c.b16 %v947, %v946
      %v959 = vpack.c.b16 %v949, %v948
      %v960 = vpack.c.b16 %v951, %v950
      %v961 = vpack.c.b16 %v953, %v952
      %970 = vmatprep.subr.bf16.mxu0 0
      %971 = vmatpush1.bf16.msra.mxu0 %v954
      %972 = vmatprep.subr.bf16.mxu0 0
      %973 = vmatpush1.bf16.msra.mxu0 %v955
      %974 = vmatprep.subr.bf16.mxu0 0
      %975 = vmatpush1.bf16.msra.mxu0 %v956
      %976 = vmatprep.subr.bf16.mxu0 0
      %977 = vmatpush1.bf16.msra.mxu0 %v957
      %978 = vmatprep.subr.bf16.mxu0 0
      %979 = vmatpush1.bf16.msra.mxu0 %v958
      %980 = vmatprep.subr.bf16.mxu0 0
      %981 = vmatpush1.bf16.msra.mxu0 %v959
      %982 = vmatprep.subr.bf16.mxu0 0
      %983 = vmatpush1.bf16.msra.mxu0 %v960
      %984 = vmatprep.subr.bf16.mxu0 0
      %985 = vmatpush1.bf16.msra.mxu0 %v961
      %986 = vmatprep.subr.bf16.mxu0 0
      %987 = vmatpush1.bf16.msra.mxu0 0
      %988 = vmatprep.subr.bf16.mxu0 0
      %989 = vmatpush1.bf16.msra.mxu0 0
      %990 = vmatprep.subr.bf16.mxu0 0
      %991 = vmatpush1.bf16.msra.mxu0 0
      %992 = vmatprep.subr.bf16.mxu0 0
      %993 = vmatpush1.bf16.msra.mxu0 0
      %994 = vmatprep.subr.bf16.mxu0 0
      %995 = vmatpush1.bf16.msra.mxu0 0
      %996 = vmatprep.subr.bf16.mxu0 0
      %997 = vmatpush1.bf16.msra.mxu0 0
      %998 = vmatprep.subr.bf16.mxu0 0
      %999 = vmatpush1.bf16.msra.mxu0 0
      %1000 = vmatprep.subr.bf16.mxu0 0
      %1001 = vmatpush1.bf16.msra.mxu0 0
      %1002 = vmatprep.mubr.bf16.mxu0 0
      %1003 = vmatmul.mubr.bf16.gmra.mrb[0].mxu0 %v920
      %v1004 = vpop.f32.mrb[0].mxu0
      %v1005 = vadd.f32 0.0, %v1004
      %v1006 = vpop.f32.mrb[0].mxu0
      %v1007 = vpop.f32.mrb[0].mxu0
      %v1008 = vpop.f32.mrb[0].mxu0
      %1009 = vdwg.mxu0
      %v1010 = vadd.f32 %v902, %v1005
      %s1011 = scalar_lea.vmem %s3, 384
      %v1012 = vld [vmem:[%s1011] sm:$0xf]
      %v1013 = vld [vmem:[%s1011 + $0x4] sm:$0xf]
      %v1014 = vld [vmem:[%s1011 + $0x8] sm:$0xf]
      %v1015 = vld [vmem:[%s1011 + $0xc] sm:$0xf]
      %v1016 = vld [vmem:[%s1011 + $0x10] sm:$0xf]
      %v1017 = vld [vmem:[%s1011 + $0x14] sm:$0xf]
      %v1018 = vld [vmem:[%s1011 + $0x18] sm:$0xf]
      %v1019 = vld [vmem:[%s1011 + $0x1c] sm:$0xf]
      %v1020 = vld [vmem:[%s1011 + $0x20] sm:$0xf]
      %v1021 = vld [vmem:[%s1011 + $0x24] sm:$0xf]
      %v1022 = vld [vmem:[%s1011 + $0x28] sm:$0xf]
      %v1023 = vld [vmem:[%s1011 + $0x2c] sm:$0xf]
      %v1024 = vld [vmem:[%s1011 + $0x30] sm:$0xf]
      %v1025 = vld [vmem:[%s1011 + $0x34] sm:$0xf]
      %v1026 = vld [vmem:[%s1011 + $0x38] sm:$0xf]
      %v1027 = vld [vmem:[%s1011 + $0x3c] sm:$0xf]
      %v1044 = vunpack.c.l.b16 %v1012
      %v1045 = vunpack.c.l.b16 %v1013
      %v1046 = vunpack.c.l.b16 %v1014
      %v1047 = vunpack.c.l.b16 %v1015
      %v1048 = vunpack.c.l.b16 %v1016
      %v1049 = vunpack.c.l.b16 %v1017
      %v1050 = vunpack.c.l.b16 %v1018
      %v1051 = vunpack.c.l.b16 %v1019
      %v1052 = vunpack.c.l.b16 %v1020
      %v1053 = vunpack.c.l.b16 %v1021
      %v1054 = vunpack.c.l.b16 %v1022
      %v1055 = vunpack.c.l.b16 %v1023
      %v1056 = vunpack.c.l.b16 %v1024
      %v1057 = vunpack.c.l.b16 %v1025
      %v1058 = vunpack.c.l.b16 %v1026
      %v1059 = vunpack.c.l.b16 %v1027
      %v1060 = vpack.c.b16 %v1045, %v1044
      %v1061 = vpack.c.b16 %v1047, %v1046
      %v1062 = vpack.c.b16 %v1049, %v1048
      %v1063 = vpack.c.b16 %v1051, %v1050
      %v1064 = vpack.c.b16 %v1053, %v1052
      %v1065 = vpack.c.b16 %v1055, %v1054
      %v1066 = vpack.c.b16 %v1057, %v1056
      %v1067 = vpack.c.b16 %v1059, %v1058
      %1076 = vmatprep.subr.bf16.mxu0 0
      %1077 = vmatpush1.bf16.msra.mxu0 %v1060
      %1078 = vmatprep.subr.bf16.mxu0 0
      %1079 = vmatpush1.bf16.msra.mxu0 %v1061
      %1080 = vmatprep.subr.bf16.mxu0 0
      %1081 = vmatpush1.bf16.msra.mxu0 %v1062
      %1082 = vmatprep.subr.bf16.mxu0 0
      %1083 = vmatpush1.bf16.msra.mxu0 %v1063
      %1084 = vmatprep.subr.bf16.mxu0 0
      %1085 = vmatpush1.bf16.msra.mxu0 %v1064
      %1086 = vmatprep.subr.bf16.mxu0 0
      %1087 = vmatpush1.bf16.msra.mxu0 %v1065
      %1088 = vmatprep.subr.bf16.mxu0 0
      %1089 = vmatpush1.bf16.msra.mxu0 %v1066
      %1090 = vmatprep.subr.bf16.mxu0 0
      %1091 = vmatpush1.bf16.msra.mxu0 %v1067
      %1092 = vmatprep.subr.bf16.mxu0 0
      %1093 = vmatpush1.bf16.msra.mxu0 0
      %1094 = vmatprep.subr.bf16.mxu0 0
      %1095 = vmatpush1.bf16.msra.mxu0 0
      %1096 = vmatprep.subr.bf16.mxu0 0
      %1097 = vmatpush1.bf16.msra.mxu0 0
      %1098 = vmatprep.subr.bf16.mxu0 0
      %1099 = vmatpush1.bf16.msra.mxu0 0
      %1100 = vmatprep.subr.bf16.mxu0 0
      %1101 = vmatpush1.bf16.msra.mxu0 0
      %1102 = vmatprep.subr.bf16.mxu0 0
      %1103 = vmatpush1.bf16.msra.mxu0 0
      %1104 = vmatprep.subr.bf16.mxu0 0
      %1105 = vmatpush1.bf16.msra.mxu0 0
      %1106 = vmatprep.subr.bf16.mxu0 0
      %1107 = vmatpush1.bf16.msra.mxu0 0
      %1108 = vmatprep.mubr.bf16.mxu0 0
      %1109 = vmatmul.mubr.bf16.gmra.mrb[0].mxu0 %v346
      %v1110 = vpop.f32.mrb[0].mxu0
      %v1111 = vadd.f32 0.0, %v1110
      %v1112 = vpop.f32.mrb[0].mxu0
      %v1113 = vpop.f32.mrb[0].mxu0
      %v1114 = vpop.f32.mrb[0].mxu0
      %1115 = vdwg.mxu0
      %v1116 = vadd.f32 %v1010, %v1111
      %s1117 = scalar_lea.vmem %s3, 448
      %v1118 = vld [vmem:[%s1117] sm:$0xf]
      %v1119 = vld [vmem:[%s1117 + $0x4] sm:$0xf]
      %v1120 = vld [vmem:[%s1117 + $0x8] sm:$0xf]
      %v1121 = vld [vmem:[%s1117 + $0xc] sm:$0xf]
      %v1122 = vld [vmem:[%s1117 + $0x10] sm:$0xf]
      %v1123 = vld [vmem:[%s1117 + $0x14] sm:$0xf]
      %v1124 = vld [vmem:[%s1117 + $0x18] sm:$0xf]
      %v1125 = vld [vmem:[%s1117 + $0x1c] sm:$0xf]
      %v1126 = vld [vmem:[%s1117 + $0x20] sm:$0xf]
      %v1127 = vld [vmem:[%s1117 + $0x24] sm:$0xf]
      %v1128 = vld [vmem:[%s1117 + $0x28] sm:$0xf]
      %v1129 = vld [vmem:[%s1117 + $0x2c] sm:$0xf]
      %v1130 = vld [vmem:[%s1117 + $0x30] sm:$0xf]
      %v1131 = vld [vmem:[%s1117 + $0x34] sm:$0xf]
      %v1132 = vld [vmem:[%s1117 + $0x38] sm:$0xf]
      %v1133 = vld [vmem:[%s1117 + $0x3c] sm:$0xf]
      %v1136 = vunpack.c.l.b16 %v346
      %v1137 = vunpack.c.l.b16 %v347
      %v1138 = vpack.c.b16 %v1137, %v1136
      %v1140 = vshrl.u32 %v1138, 16
      %v1142 = vshll.u32 %v1138, 16
      %v1144 = vrot.slane %v1142, 1
      %v1145 = vor.u32 %v1140, %v1144
      %v1163 = vunpack.c.l.b16 %v1118
      %v1164 = vunpack.c.l.b16 %v1119
      %v1165 = vunpack.c.l.b16 %v1120
      %v1166 = vunpack.c.l.b16 %v1121
      %v1167 = vunpack.c.l.b16 %v1122
      %v1168 = vunpack.c.l.b16 %v1123
      %v1169 = vunpack.c.l.b16 %v1124
      %v1170 = vunpack.c.l.b16 %v1125
      %v1171 = vunpack.c.l.b16 %v1126
      %v1172 = vunpack.c.l.b16 %v1127
      %v1173 = vunpack.c.l.b16 %v1128
      %v1174 = vunpack.c.l.b16 %v1129
      %v1175 = vunpack.c.l.b16 %v1130
      %v1176 = vunpack.c.l.b16 %v1131
      %v1177 = vunpack.c.l.b16 %v1132
      %v1178 = vunpack.c.l.b16 %v1133
      %v1179 = vpack.c.b16 %v1164, %v1163
      %v1180 = vpack.c.b16 %v1166, %v1165
      %v1181 = vpack.c.b16 %v1168, %v1167
      %v1182 = vpack.c.b16 %v1170, %v1169
      %v1183 = vpack.c.b16 %v1172, %v1171
      %v1184 = vpack.c.b16 %v1174, %v1173
      %v1185 = vpack.c.b16 %v1176, %v1175
      %v1186 = vpack.c.b16 %v1178, %v1177
      %1195 = vmatprep.subr.bf16.mxu0 0
      %1196 = vmatpush1.bf16.msra.mxu0 %v1179
      %1197 = vmatprep.subr.bf16.mxu0 0
      %1198 = vmatpush1.bf16.msra.mxu0 %v1180
      %1199 = vmatprep.subr.bf16.mxu0 0
      %1200 = vmatpush1.bf16.msra.mxu0 %v1181
      %1201 = vmatprep.subr.bf16.mxu0 0
      %1202 = vmatpush1.bf16.msra.mxu0 %v1182
      %1203 = vmatprep.subr.bf16.mxu0 0
      %1204 = vmatpush1.bf16.msra.mxu0 %v1183
      %1205 = vmatprep.subr.bf16.mxu0 0
      %1206 = vmatpush1.bf16.msra.mxu0 %v1184
      %1207 = vmatprep.subr.bf16.mxu0 0
      %1208 = vmatpush1.bf16.msra.mxu0 %v1185
      %1209 = vmatprep.subr.bf16.mxu0 0
      %1210 = vmatpush1.bf16.msra.mxu0 %v1186
      %1211 = vmatprep.subr.bf16.mxu0 0
      %1212 = vmatpush1.bf16.msra.mxu0 0
      %1213 = vmatprep.subr.bf16.mxu0 0
      %1214 = vmatpush1.bf16.msra.mxu0 0
      %1215 = vmatprep.subr.bf16.mxu0 0
      %1216 = vmatpush1.bf16.msra.mxu0 0
      %1217 = vmatprep.subr.bf16.mxu0 0
      %1218 = vmatpush1.bf16.msra.mxu0 0
      %1219 = vmatprep.subr.bf16.mxu0 0
      %1220 = vmatpush1.bf16.msra.mxu0 0
      %1221 = vmatprep.subr.bf16.mxu0 0
      %1222 = vmatpush1.bf16.msra.mxu0 0
      %1223 = vmatprep.subr.bf16.mxu0 0
      %1224 = vmatpush1.bf16.msra.mxu0 0
      %1225 = vmatprep.subr.bf16.mxu0 0
      %1226 = vmatpush1.bf16.msra.mxu0 0
      %1227 = vmatprep.mubr.bf16.mxu0 0
      %1228 = vmatmul.mubr.bf16.gmra.mrb[0].mxu0 %v1145
      %v1229 = vpop.f32.mrb[0].mxu0
      %v1230 = vadd.f32 0.0, %v1229
      %v1231 = vpop.f32.mrb[0].mxu0
      %v1232 = vpop.f32.mrb[0].mxu0
      %v1233 = vpop.f32.mrb[0].mxu0
      %1234 = vdwg.mxu0
      %v1235 = vadd.f32 %v1116, %v1230
      %s1236 = scalar_lea.vmem %s3, 512
      %v1237 = vld [vmem:[%s1236] sm:$0xf]
      %v1238 = vld [vmem:[%s1236 + $0x4] sm:$0xf]
      %v1239 = vld [vmem:[%s1236 + $0x8] sm:$0xf]
      %v1240 = vld [vmem:[%s1236 + $0xc] sm:$0xf]
      %v1241 = vld [vmem:[%s1236 + $0x10] sm:$0xf]
      %v1242 = vld [vmem:[%s1236 + $0x14] sm:$0xf]
      %v1243 = vld [vmem:[%s1236 + $0x18] sm:$0xf]
      %v1244 = vld [vmem:[%s1236 + $0x1c] sm:$0xf]
      %v1245 = vld [vmem:[%s1236 + $0x20] sm:$0xf]
      %v1246 = vld [vmem:[%s1236 + $0x24] sm:$0xf]
      %v1247 = vld [vmem:[%s1236 + $0x28] sm:$0xf]
      %v1248 = vld [vmem:[%s1236 + $0x2c] sm:$0xf]
      %v1249 = vld [vmem:[%s1236 + $0x30] sm:$0xf]
      %v1250 = vld [vmem:[%s1236 + $0x34] sm:$0xf]
      %v1251 = vld [vmem:[%s1236 + $0x38] sm:$0xf]
      %v1252 = vld [vmem:[%s1236 + $0x3c] sm:$0xf]
      %v1253 = vrot.slane %v1138, 1
      %v1271 = vunpack.c.l.b16 %v1237
      %v1272 = vunpack.c.l.b16 %v1238
      %v1273 = vunpack.c.l.b16 %v1239
      %v1274 = vunpack.c.l.b16 %v1240
      %v1275 = vunpack.c.l.b16 %v1241
      %v1276 = vunpack.c.l.b16 %v1242
      %v1277 = vunpack.c.l.b16 %v1243
      %v1278 = vunpack.c.l.b16 %v1244
      %v1279 = vunpack.c.l.b16 %v1245
      %v1280 = vunpack.c.l.b16 %v1246
      %v1281 = vunpack.c.l.b16 %v1247
      %v1282 = vunpack.c.l.b16 %v1248
      %v1283 = vunpack.c.l.b16 %v1249
      %v1284 = vunpack.c.l.b16 %v1250
      %v1285 = vunpack.c.l.b16 %v1251
      %v1286 = vunpack.c.l.b16 %v1252
      %v1287 = vpack.c.b16 %v1272, %v1271
      %v1288 = vpack.c.b16 %v1274, %v1273
      %v1289 = vpack.c.b16 %v1276, %v1275
      %v1290 = vpack.c.b16 %v1278, %v1277
      %v1291 = vpack.c.b16 %v1280, %v1279
      %v1292 = vpack.c.b16 %v1282, %v1281
      %v1293 = vpack.c.b16 %v1284, %v1283
      %v1294 = vpack.c.b16 %v1286, %v1285
      %1303 = vmatprep.subr.bf16.mxu0 0
      %1304 = vmatpush1.bf16.msra.mxu0 %v1287
      %1305 = vmatprep.subr.bf16.mxu0 0
      %1306 = vmatpush1.bf16.msra.mxu0 %v1288
      %1307 = vmatprep.subr.bf16.mxu0 0
      %1308 = vmatpush1.bf16.msra.mxu0 %v1289
      %1309 = vmatprep.subr.bf16.mxu0 0
      %1310 = vmatpush1.bf16.msra.mxu0 %v1290
      %1311 = vmatprep.subr.bf16.mxu0 0
      %1312 = vmatpush1.bf16.msra.mxu0 %v1291
      %1313 = vmatprep.subr.bf16.mxu0 0
      %1314 = vmatpush1.bf16.msra.mxu0 %v1292
      %1315 = vmatprep.subr.bf16.mxu0 0
      %1316 = vmatpush1.bf16.msra.mxu0 %v1293
      %1317 = vmatprep.subr.bf16.mxu0 0
      %1318 = vmatpush1.bf16.msra.mxu0 %v1294
      %1319 = vmatprep.subr.bf16.mxu0 0
      %1320 = vmatpush1.bf16.msra.mxu0 0
      %1321 = vmatprep.subr.bf16.mxu0 0
      %1322 = vmatpush1.bf16.msra.mxu0 0
      %1323 = vmatprep.subr.bf16.mxu0 0
      %1324 = vmatpush1.bf16.msra.mxu0 0
      %1325 = vmatprep.subr.bf16.mxu0 0
      %1326 = vmatpush1.bf16.msra.mxu0 0
      %1327 = vmatprep.subr.bf16.mxu0 0
      %1328 = vmatpush1.bf16.msra.mxu0 0
      %1329 = vmatprep.subr.bf16.mxu0 0
      %1330 = vmatpush1.bf16.msra.mxu0 0
      %1331 = vmatprep.subr.bf16.mxu0 0
      %1332 = vmatpush1.bf16.msra.mxu0 0
      %1333 = vmatprep.subr.bf16.mxu0 0
      %1334 = vmatpush1.bf16.msra.mxu0 0
      %1335 = vmatprep.mubr.bf16.mxu0 0
      %1336 = vmatmul.mubr.bf16.gmra.mrb[0].mxu0 %v1253
      %v1337 = vpop.f32.mrb[0].mxu0
      %v1338 = vadd.f32 0.0, %v1337
      %v1339 = vpop.f32.mrb[0].mxu0
      %v1340 = vpop.f32.mrb[0].mxu0
      %v1341 = vpop.f32.mrb[0].mxu0
      %1342 = vdwg.mxu0
      %v1343 = vadd.f32 %v1235, %v1338
      %v1344 = vld [vmem:[%s4] sm:$0x1]
      %v1346 = vlaneseq
      %v1347 = vshrl.u32 %v1346, 7
      %v1348 = vsub.s32 0, %v1347
      %v1349 = vrot.slane %v1344, %v1348
      %v1351 = vadd.f32 %v1343, %v1349
      %v1352 = vmax.f32 %v1351, 0.0
      %v1353 = vpack.c.bf16 %v1352, %v1352
      %1354 = vst [vmem:[%s340] sm:$0xf] %v1353
      %p1355 = scmp.lt.s32.totalorder %s20, 1
      %s1356 = scalar_select %p1355, %s20, 1
      %p1357 = scmp.lt.s32.totalorder %s21, 7
      %s1358 = scalar_select %p1357, %s21, 7
      %s1359 = smul.addr %s1356, 8
      %s1360 = sadd.s32 %s1358, %s1359
      %s1361 = smul.addr %s1360, 4
      %s1362 = scalar_lea.vmem %s5, %s1361
      // Predicated region
      $region41: #{_encoder_forward_impl.15} parent=39 // pred_check
        %p1363 = pneg %p178
      $region42: #{_encoder_forward_impl.15} parent=39 // pred_check_branch
        %1365 = sbr.rel (%p1363) target = $region44
      $region43: #{_encoder_forward_impl.15} parent=39 // pred_region
        _
      $region44: #{_encoder_forward_impl.15} parent=39 // pred_fallthru
        _
    $region40: #{_encoder_forward_impl.15} parent=5 // pred_fallthru
      _
    %p1366 = scmp.le.s32.totalorder 2, %s11
    // Predicated region
    $region45: #{_encoder_forward_impl.15} parent=5 // pred_check
      %p1367 = pneg %p1366
    $region46: #{_encoder_forward_impl.15} parent=5 // pred_check_branch
      %1369 = sbr.rel (%p1367) target = $region48
    $region47: #{_encoder_forward_impl.15} parent=5 // pred_region
      %s1370 = ssub.s32 %s11, 2
      // Predicated region
      $region49: #{_encoder_forward_impl.15} parent=47 // pred_check
        %p1371 = pneg %p184
      $region50: #{_encoder_forward_impl.15} parent=47 // pred_check_branch
        %1373 = sbr.rel (%p1371) target = $region52
      $region51: #{_encoder_forward_impl.15} parent=47 // pred_region
        %p1374 = scmp.lt.s32.totalorder %s22, 1
        %s1375 = scalar_select %p1374, %s22, 1
        %p1376 = scmp.lt.s32.totalorder %s23, 7
        %s1377 = scalar_select %p1376, %s23, 7
        %s1378 = smul.addr %s1375, 8
        %s1379 = sadd.s32 %s1377, %s1378
        %s1380 = smul.addr %s1379, 4
        %s1381 = scalar_lea.vmem %s5, %s1380
      $region52: #{_encoder_forward_impl.15} parent=47 // pred_fallthru
        _
    $region48: #{_encoder_forward_impl.15} parent=5 // pred_fallthru
      _
  $region6: #{_encoder_forward_impl.15} parent=0 // loop_footer
    %s15 = sadd.s32 1, %s11
  $region7: #{_encoder_forward_impl.15} parent=0 // loop_footer_branch
    %10 = sbr.rel target = $region3
  $region8: #{_encoder_forward_impl.15} parent=0 // loop_exit
    _

// kernel: _encoder_forward_impl.19
$region0: #{_encoder_forward_impl.19}
  #allocation0 [shape = 'u32[]', space=smem, size = 0x4, offset = 0x4, fixed_abs, tag = 'smem constant byte address 0x4 - core index']
  #allocation1 [shape = 'u32[144,128]{1,0:T(1,128)}', space=vmem, size = 0x12000, scoped, tag = 'internal scratch']
  %s0 = inlined_call_operand.vmem [shape: bf16[2,6,6,128], index: 0, kind: input, shape index: {}, may-alias: {0,1,2}]
  %s1 = inlined_call_operand.vmem [shape: bf16[2,6,6,128], index: 1, kind: input, shape index: {}, may-alias: {0,1,2}]
  %s2 = inlined_call_operand.vmem [shape: bf16[2,6,6,128], index: 2, kind: input, shape index: {}, may-alias: {0,1,2}]
  %s3 = inlined_call_operand.vmem [shape: bf16[3,3,128,128], index: 3, kind: input, shape index: {}]
  %s4 = inlined_call_operand.vmem [shape: f32[1,128], index: 4, kind: input, shape index: {}]
  %s5 = inlined_call_operand.vmem [shape: bf16[2,4,4,128], index: 5, kind: output, shape index: {}]
  %s6 = sld [smem:[#allocation0]]
  $region53: #{_encoder_forward_impl.19} parent=0
    _
  %s8 = ssub.s32 1, %s6
  %s9 = scalar_select 0, %s8, %s6
  loop: start=0, step=1, limit=10
  $region2: #{_encoder_forward_impl.19} parent=0 // loop_pre_header
    _
  $region3: #{_encoder_forward_impl.19} parent=0 // loop_header
    %s11 = sphi 0, %s15
    %p12 = scmp.ge.s32.totalorder %s11, 10
    %s18 = sphi 0, %s30
    %s19 = sphi 0, %s26
    %s20 = sphi 0, %s18
    %s21 = sphi 0, %s19
    %s22 = sphi 0, %s20
    %s23 = sphi 0, %s21
    %s35 = sphi 0, %s37
    %s38 = sphi 0, %s35
    %s39 = sphi 0, %s38
    %s55 = sphi 0, %s39
    %s65 = sphi 0, %s67
    %s68 = sphi 0, %s65
    %s69 = sphi 0, %s68
    %s85 = sphi 0, %s69
    %s95 = sphi 0, %s97
    %s98 = sphi 0, %s95
    %s99 = sphi 0, %s98
    %s115 = sphi 0, %s99
    %s119 = sphi 0, %s119
    %s121 = sphi 0, %s119
    %s122 = sphi 0, %s121
    %s136 = sphi 0, %s122
    %s140 = sphi 0, %s140
    %s142 = sphi 0, %s140
    %s143 = sphi 0, %s142
    %s157 = sphi 0, %s143
    %s165 = sphi 0, %s167
    %s168 = sphi 0, %s165
    %s169 = sphi 0, %s168
    %s185 = sphi 0, %s169
  $region4: #{_encoder_forward_impl.19} parent=0 // loop_header_branch
    %14 = sbr.rel (%p12) target = $region8
  $region5: #{_encoder_forward_impl.19} parent=0 // loop_body
    %s16 = ssub.s32 %s11, 1
    %s17 = ssub.s32 %s11, 2
    %s24 = sadd.s32 1, %s19
    %p25 = scmp.ge.s32.totalorder %s24, 4
    %s26 = scalar_select %p25, 0, %s24
    %s27 = sadd.s32 1, %s18
    %s28 = scalar_select %p25, %s27, %s18
    %p29 = scmp.ge.s32.totalorder %s28, 2
    %s30 = scalar_select %p29, 0, %s28
    %s31 = ssub.s32 %s18, %s30
    %s32 = ssub.s32 %s19, %s26
    %s33 = sor.u32 %s31, %s32
    %p34 = scmp.eq.s32.totalorder %s33, 0
    %s36 = sadd.s32 %s35, 1
    %s37 = scalar_select %p34, %s35, %s36
    %p40 = pneg %p34
    %p41 = scmp.eq.s32.totalorder %s11, 7
    %p42 = por %p40, %p41
    %p43 = scmp.ne.s32.totalorder %s35, %s38
    %p44 = scmp.eq.s32.totalorder %s11, 0
    %p45 = por %p43, %p44
    %p46 = scmp.ne.s32.totalorder %s35, %s38
    %p47 = scmp.eq.s32.totalorder %s16, 7
    %p48 = por %p46, %p47
    %p49 = scmp.ne.s32.totalorder %s38, %s39
    %p50 = scmp.eq.s32.totalorder %s16, 0
    %p51 = por %p49, %p50
    %p52 = scmp.ne.s32.totalorder %s38, %s39
    %p53 = scmp.eq.s32.totalorder %s17, 7
    %p54 = por %p52, %p53
    %p56 = scmp.ne.s32.totalorder %s39, %s55
    %p57 = scmp.eq.s32.totalorder %s17, 0
    %p58 = por %p56, %p57
    %s59 = sadd.s32 %s19, 1
    %s60 = sadd.s32 %s26, 1
    %s61 = ssub.s32 %s18, %s30
    %s62 = ssub.s32 %s59, %s60
    %s63 = sor.u32 %s61, %s62
    %p64 = scmp.eq.s32.totalorder %s63, 0
    %s66 = sadd.s32 %s65, 1
    %s67 = scalar_select %p64, %s65, %s66
    %p70 = pneg %p64
    %p71 = scmp.eq.s32.totalorder %s11, 7
    %p72 = por %p70, %p71
    %p73 = scmp.ne.s32.totalorder %s65, %s68
    %p74 = scmp.eq.s32.totalorder %s11, 0
    %p75 = por %p73, %p74
    %p76 = scmp.ne.s32.totalorder %s65, %s68
    %p77 = scmp.eq.s32.totalorder %s16, 7
    %p78 = por %p76, %p77
    %p79 = scmp.ne.s32.totalorder %s68, %s69
    %p80 = scmp.eq.s32.totalorder %s16, 0
    %p81 = por %p79, %p80
    %p82 = scmp.ne.s32.totalorder %s68, %s69
    %p83 = scmp.eq.s32.totalorder %s17, 7
    %p84 = por %p82, %p83
    %p86 = scmp.ne.s32.totalorder %s69, %s85
    %p87 = scmp.eq.s32.totalorder %s17, 0
    %p88 = por %p86, %p87
    %s89 = sadd.s32 %s19, 2
    %s90 = sadd.s32 %s26, 2
    %s91 = ssub.s32 %s18, %s30
    %s92 = ssub.s32 %s89, %s90
    %s93 = sor.u32 %s91, %s92
    %p94 = scmp.eq.s32.totalorder %s93, 0
    %s96 = sadd.s32 %s95, 1
    %s97 = scalar_select %p94, %s95, %s96
    %p100 = pneg %p94
    %p101 = scmp.eq.s32.totalorder %s11, 7
    %p102 = por %p100, %p101
    %p103 = scmp.ne.s32.totalorder %s95, %s98
    %p104 = scmp.eq.s32.totalorder %s11, 0
    %p105 = por %p103, %p104
    %p106 = scmp.ne.s32.totalorder %s95, %s98
    %p107 = scmp.eq.s32.totalorder %s16, 7
    %p108 = por %p106, %p107
    %p109 = scmp.ne.s32.totalorder %s98, %s99
    %p110 = scmp.eq.s32.totalorder %s16, 0
    %p111 = por %p109, %p110
    %p112 = scmp.ne.s32.totalorder %s98, %s99
    %p113 = scmp.eq.s32.totalorder %s17, 7
    %p114 = por %p112, %p113
    %p116 = scmp.ne.s32.totalorder %s99, %s115
    %p117 = scmp.eq.s32.totalorder %s17, 0
    %p118 = por %p116, %p117
    %s120 = sadd.s32 %s119, 1
    %p123 = scmp.eq.s32.totalorder %s11, 7
    %p124 = scmp.ne.s32.totalorder %s119, %s121
    %p125 = scmp.eq.s32.totalorder %s11, 0
    %p126 = por %p124, %p125
    %p127 = scmp.ne.s32.totalorder %s119, %s121
    %p128 = scmp.eq.s32.totalorder %s16, 7
    %p129 = por %p127, %p128
    %p130 = scmp.ne.s32.totalorder %s121, %s122
    %p131 = scmp.eq.s32.totalorder %s16, 0
    %p132 = por %p130, %p131
    %p133 = scmp.ne.s32.totalorder %s121, %s122
    %p134 = scmp.eq.s32.totalorder %s17, 7
    %p135 = por %p133, %p134
    %p137 = scmp.ne.s32.totalorder %s122, %s136
    %p138 = scmp.eq.s32.totalorder %s17, 0
    %p139 = por %p137, %p138
    %s141 = sadd.s32 %s140, 1
    %p144 = scmp.eq.s32.totalorder %s11, 7
    %p145 = scmp.ne.s32.totalorder %s140, %s142
    %p146 = scmp.eq.s32.totalorder %s11, 0
    %p147 = por %p145, %p146
    %p148 = scmp.ne.s32.totalorder %s140, %s142
    %p149 = scmp.eq.s32.totalorder %s16, 7
    %p150 = por %p148, %p149
    %p151 = scmp.ne.s32.totalorder %s142, %s143
    %p152 = scmp.eq.s32.totalorder %s16, 0
    %p153 = por %p151, %p152
    %p154 = scmp.ne.s32.totalorder %s142, %s143
    %p155 = scmp.eq.s32.totalorder %s17, 7
    %p156 = por %p154, %p155
    %p158 = scmp.ne.s32.totalorder %s143, %s157
    %p159 = scmp.eq.s32.totalorder %s17, 0
    %p160 = por %p158, %p159
    %s161 = ssub.s32 %s18, %s30
    %s162 = ssub.s32 %s19, %s26
    %s163 = sor.u32 %s161, %s162
    %p164 = scmp.eq.s32.totalorder %s163, 0
    %s166 = sadd.s32 %s165, 1
    %s167 = scalar_select %p164, %s165, %s166
    %p170 = pneg %p164
    %p171 = scmp.eq.s32.totalorder %s11, 7
    %p172 = por %p170, %p171
    %p173 = scmp.ne.s32.totalorder %s165, %s168
    %p174 = scmp.eq.s32.totalorder %s11, 0
    %p175 = por %p173, %p174
    %p176 = scmp.ne.s32.totalorder %s165, %s168
    %p177 = scmp.eq.s32.totalorder %s16, 7
    %p178 = por %p176, %p177
    %p179 = scmp.ne.s32.totalorder %s168, %s169
    %p180 = scmp.eq.s32.totalorder %s16, 0
    %p181 = por %p179, %p180
    %p182 = scmp.ne.s32.totalorder %s168, %s169
    %p183 = scmp.eq.s32.totalorder %s17, 7
    %p184 = por %p182, %p183
    %p186 = scmp.ne.s32.totalorder %s169, %s185
    %p187 = scmp.eq.s32.totalorder %s17, 0
    %p188 = por %p186, %p187
    %p189 = scmp.le.s32.totalorder 1, %s11
    %p190 = scmp.lt.s32.totalorder %s11, 9
    %p191 = pnand %p189, %p190
    %p192 = pneg %p191
    // Predicated region
    $region9: #{_encoder_forward_impl.19} parent=5 // pred_check
      _
    $region10: #{_encoder_forward_impl.19} parent=5 // pred_check_branch
      %194 = sbr.rel (%p191) target = $region12
    $region11: #{_encoder_forward_impl.19} parent=5 // pred_region
      %s195 = ssub.s32 %s11, 1
      // Predicated region
      $region13: #{_encoder_forward_impl.19} parent=11 // pred_check
        %p196 = pneg %p132
      $region14: #{_encoder_forward_impl.19} parent=11 // pred_check_branch
        %198 = sbr.rel (%p196) target = $region16
      $region15: #{_encoder_forward_impl.19} parent=11 // pred_region
        _
      $region16: #{_encoder_forward_impl.19} parent=11 // pred_fallthru
        _
      // Predicated region
      $region17: #{_encoder_forward_impl.19} parent=11 // pred_check
        %p199 = pneg %p153
      $region18: #{_encoder_forward_impl.19} parent=11 // pred_check_branch
        %201 = sbr.rel (%p199) target = $region20
      $region19: #{_encoder_forward_impl.19} parent=11 // pred_region
        _
      $region20: #{_encoder_forward_impl.19} parent=11 // pred_fallthru
        _
    $region12: #{_encoder_forward_impl.19} parent=5 // pred_fallthru
      _
    %p202 = scmp.lt.s32.totalorder %s11, 8
    // Predicated region
    $region21: #{_encoder_forward_impl.19} parent=5 // pred_check
      %p203 = pneg %p202
    $region22: #{_encoder_forward_impl.19} parent=5 // pred_check_branch
      %205 = sbr.rel (%p203) target = $region24
    $region23: #{_encoder_forward_impl.19} parent=5 // pred_region
      // Predicated region
      $region25: #{_encoder_forward_impl.19} parent=23 // pred_check
        %p206 = pneg %p45
      $region26: #{_encoder_forward_impl.19} parent=23 // pred_check_branch
        %208 = sbr.rel (%p206) target = $region28
      $region27: #{_encoder_forward_impl.19} parent=23 // pred_region
        %p209 = scmp.lt.s32.totalorder %s18, 1
        %s210 = scalar_select %p209, %s18, 1
        %p211 = scmp.lt.s32.totalorder %s19, 5
        %s212 = scalar_select %p211, %s19, 5
        %s213 = smul.addr %s210, 6
        %s214 = sadd.s32 %s212, %s213
        %s215 = smul.addr %s214, 4
        %s216 = scalar_lea.vmem %s0, %s215
      $region28: #{_encoder_forward_impl.19} parent=23 // pred_fallthru
        _
      // Predicated region
      $region29: #{_encoder_forward_impl.19} parent=23 // pred_check
        %p217 = pneg %p75
      $region30: #{_encoder_forward_impl.19} parent=23 // pred_check_branch
        %219 = sbr.rel (%p217) target = $region32
      $region31: #{_encoder_forward_impl.19} parent=23 // pred_region
        %s220 = sadd.s32 %s19, 1
        %p221 = scmp.lt.s32.totalorder %s18, 1
        %s222 = scalar_select %p221, %s18, 1
        %p223 = scmp.lt.s32.totalorder %s220, 5
        %s224 = scalar_select %p223, %s220, 5
        %s225 = smul.addr %s222, 6
        %s226 = sadd.s32 %s224, %s225
        %s227 = smul.addr %s226, 4
        %s228 = scalar_lea.vmem %s1, %s227
        %s229 = sadd.s32 %s19, 1
      $region32: #{_encoder_forward_impl.19} parent=23 // pred_fallthru
        _
      // Predicated region
      $region33: #{_encoder_forward_impl.19} parent=23 // pred_check
        %p230 = pneg %p105
      $region34: #{_encoder_forward_impl.19} parent=23 // pred_check_branch
        %232 = sbr.rel (%p230) target = $region36
      $region35: #{_encoder_forward_impl.19} parent=23 // pred_region
        %s233 = sadd.s32 %s19, 2
        %p234 = scmp.lt.s32.totalorder %s18, 1
        %s235 = scalar_select %p234, %s18, 1
        %p236 = scmp.lt.s32.totalorder %s233, 5
        %s237 = scalar_select %p236, %s233, 5
        %s238 = smul.addr %s235, 6
        %s239 = sadd.s32 %s237, %s238
        %s240 = smul.addr %s239, 4
        %s241 = scalar_lea.vmem %s2, %s240
        %s242 = sadd.s32 %s19, 2
      $region36: #{_encoder_forward_impl.19} parent=23 // pred_fallthru
        _
    $region24: #{_encoder_forward_impl.19} parent=5 // pred_fallthru
      _
    %p243 = scmp.le.s32.totalorder 1, %s11
    %p244 = scmp.lt.s32.totalorder %s11, 9
    %p245 = pnand %p243, %p244
    %p246 = pneg %p245
    // Predicated region
    $region37: #{_encoder_forward_impl.19} parent=5 // pred_check
      _
    $region38: #{_encoder_forward_impl.19} parent=5 // pred_check_branch
      %248 = sbr.rel (%p245) target = $region40
    $region39: #{_encoder_forward_impl.19} parent=5 // pred_region
      %s249 = ssub.s32 %s11, 1
      %p250 = scmp.lt.s32.totalorder %s20, 1
      %s251 = scalar_select %p250, %s20, 1
      %p252 = scmp.lt.s32.totalorder %s21, 5
      %s253 = scalar_select %p252, %s21, 5
      %s254 = smul.addr %s251, 6
      %s255 = sadd.s32 %s253, %s254
      %s256 = smul.addr %s255, 4
      %s257 = scalar_lea.vmem %s0, %s256
      %p258 = pneg %p51
      %p259 = pneg %p48
      %s260 = sadd.s32 %s21, 1
      %p261 = scmp.lt.s32.totalorder %s20, 1
      %s262 = scalar_select %p261, %s20, 1
      %p263 = scmp.lt.s32.totalorder %s260, 5
      %s264 = scalar_select %p263, %s260, 5
      %s265 = smul.addr %s262, 6
      %s266 = sadd.s32 %s264, %s265
      %s267 = smul.addr %s266, 4
      %s268 = scalar_lea.vmem %s1, %s267
      %p269 = pneg %p81
      %p270 = pneg %p78
      %s271 = sadd.s32 %s21, 2
      %p272 = scmp.lt.s32.totalorder %s20, 1
      %s273 = scalar_select %p272, %s20, 1
      %p274 = scmp.lt.s32.totalorder %s271, 5
      %s275 = scalar_select %p274, %s271, 5
      %s276 = smul.addr %s273, 6
      %s277 = sadd.s32 %s275, %s276
      %s278 = smul.addr %s277, 4
      %s279 = scalar_lea.vmem %s2, %s278
      %p280 = pneg %p111
      %p281 = pneg %p108
      %p282 = pneg %p132
      %p283 = pneg %p129
      %p284 = pneg %p153
      %p285 = pneg %p150
      %p286 = pneg %p181
      %p287 = pneg %p178
      %p288 = scmp.lt.s32.totalorder %s20, 1
      %s289 = scalar_select %p288, %s20, 1
      %p290 = scmp.lt.s32.totalorder %s21, 3
      %s291 = scalar_select %p290, %s21, 3
      %s292 = smul.addr %s289, 4
      %s293 = sadd.s32 %s291, %s292
      %s294 = smul.addr %s293, 2
      %s295 = scalar_lea.vmem %s5, %s294
      %p296 = scmp.lt.s32.totalorder %s20, 1
      %s297 = scalar_select %p296, %s20, 1
      %p298 = scmp.lt.s32.totalorder %s21, 5
      %s299 = scalar_select %p298, %s21, 5
      %s300 = smul.addr %s297, 6
      %s301 = sadd.s32 %s299, %s300
      %s302 = smul.addr %s301, 4
      %s303 = scalar_lea.vmem %s0, %s302
      %s304 = sadd.s32 %s21, 1
      %p305 = scmp.lt.s32.totalorder %s20, 1
      %s306 = scalar_select %p305, %s20, 1
      %p307 = scmp.lt.s32.totalorder %s304, 5
      %s308 = scalar_select %p307, %s304, 5
      %s309 = smul.addr %s306, 6
      %s310 = sadd.s32 %s308, %s309
      %s311 = smul.addr %s310, 4
      %s312 = scalar_lea.vmem %s1, %s311
      %s313 = sadd.s32 %s21, 1
      %s314 = sadd.s32 %s21, 2
      %p315 = scmp.lt.s32.totalorder %s20, 1
      %s316 = scalar_select %p315, %s20, 1
      %p317 = scmp.lt.s32.totalorder %s314, 5
      %s318 = scalar_select %p317, %s314, 5
      %s319 = smul.addr %s316, 6
      %s320 = sadd.s32 %s318, %s319
      %s321 = smul.addr %s320, 4
      %s322 = scalar_lea.vmem %s2, %s321
      %s323 = sadd.s32 %s21, 2
      %p324 = scmp.lt.s32.totalorder %s20, 1
      %s325 = scalar_select %p324, %s20, 1
      %p326 = scmp.lt.s32.totalorder %s21, 3
      %s327 = scalar_select %p326, %s21, 3
      %s328 = smul.addr %s325, 4
      %s329 = sadd.s32 %s327, %s328
      %s330 = smul.addr %s329, 2
      %s331 = scalar_lea.vmem %s5, %s330
      %v333 = vld [vmem:[%s303] sm:$0x7]
      %v334 = vld [vmem:[%s312] sm:$0x7]
      %v335 = vld [vmem:[%s322] sm:$0x7]
      %v336 = vld [vmem:[%s3] sm:$0xf]
      %v337 = vld [vmem:[%s3 + $0x4] sm:$0xf]
      %v338 = vld [vmem:[%s3 + $0x8] sm:$0xf]
      %v339 = vld [vmem:[%s3 + $0xc] sm:$0xf]
      %v340 = vld [vmem:[%s3 + $0x10] sm:$0xf]
      %v341 = vld [vmem:[%s3 + $0x14] sm:$0xf]
      %v342 = vld [vmem:[%s3 + $0x18] sm:$0xf]
      %v343 = vld [vmem:[%s3 + $0x1c] sm:$0xf]
      %v344 = vld [vmem:[%s3 + $0x20] sm:$0xf]
      %v345 = vld [vmem:[%s3 + $0x24] sm:$0xf]
      %v346 = vld [vmem:[%s3 + $0x28] sm:$0xf]
      %v347 = vld [vmem:[%s3 + $0x2c] sm:$0xf]
      %v348 = vld [vmem:[%s3 + $0x30] sm:$0xf]
      %v349 = vld [vmem:[%s3 + $0x34] sm:$0xf]
      %v350 = vld [vmem:[%s3 + $0x38] sm:$0xf]
      %v351 = vld [vmem:[%s3 + $0x3c] sm:$0xf]
      %s352 = scalar_lea.vmem %s3, 64
      %v353 = vld [vmem:[%s352] sm:$0xf]
      %v354 = vld [vmem:[%s352 + $0x4] sm:$0xf]
      %v355 = vld [vmem:[%s352 + $0x8] sm:$0xf]
      %v356 = vld [vmem:[%s352 + $0xc] sm:$0xf]
      %v357 = vld [vmem:[%s352 + $0x10] sm:$0xf]
      %v358 = vld [vmem:[%s352 + $0x14] sm:$0xf]
      %v359 = vld [vmem:[%s352 + $0x18] sm:$0xf]
      %v360 = vld [vmem:[%s352 + $0x1c] sm:$0xf]
      %v361 = vld [vmem:[%s352 + $0x20] sm:$0xf]
      %v362 = vld [vmem:[%s352 + $0x24] sm:$0xf]
      %v363 = vld [vmem:[%s352 + $0x28] sm:$0xf]
      %v364 = vld [vmem:[%s352 + $0x2c] sm:$0xf]
      %v365 = vld [vmem:[%s352 + $0x30] sm:$0xf]
      %v366 = vld [vmem:[%s352 + $0x34] sm:$0xf]
      %v367 = vld [vmem:[%s352 + $0x38] sm:$0xf]
      %v368 = vld [vmem:[%s352 + $0x3c] sm:$0xf]
      %v370 = vunpack.c.l.b16 %v333
      %v371 = vpack.c.b16 %v370, %v370
      %v373 = vshrl.u32 %v371, 16
      %v375 = vshll.u32 %v371, 16
      %v377 = vrot.slane %v375, 1
      %v378 = vor.u32 %v373, %v377
      %v396 = vunpack.c.l.b16 %v353
      %v397 = vunpack.c.l.b16 %v354
      %v398 = vunpack.c.l.b16 %v355
      %v399 = vunpack.c.l.b16 %v356
      %v400 = vunpack.c.l.b16 %v357
      %v401 = vunpack.c.l.b16 %v358
      %v402 = vunpack.c.l.b16 %v359
      %v403 = vunpack.c.l.b16 %v360
      %v404 = vunpack.c.l.b16 %v361
      %v405 = vunpack.c.l.b16 %v362
      %v406 = vunpack.c.l.b16 %v363
      %v407 = vunpack.c.l.b16 %v364
      %v408 = vunpack.c.l.b16 %v365
      %v409 = vunpack.c.l.b16 %v366
      %v410 = vunpack.c.l.b16 %v367
      %v411 = vunpack.c.l.b16 %v368
      %v412 = vpack.c.b16 %v397, %v396
      %v413 = vpack.c.b16 %v399, %v398
      %v414 = vpack.c.b16 %v401, %v400
      %v415 = vpack.c.b16 %v403, %v402
      %v416 = vpack.c.b16 %v405, %v404
      %v417 = vpack.c.b16 %v407, %v406
      %v418 = vpack.c.b16 %v409, %v408
      %v419 = vpack.c.b16 %v411, %v410
      %428 = vmatprep.subr.bf16.mxu0 0
      %429 = vmatpush1.bf16.msra.mxu0 %v412
      %430 = vmatprep.subr.bf16.mxu0 0
      %431 = vmatpush1.bf16.msra.mxu0 %v413
      %432 = vmatprep.subr.bf16.mxu0 0
      %433 = vmatpush1.bf16.msra.mxu0 %v414
      %434 = vmatprep.subr.bf16.mxu0 0
      %435 = vmatpush1.bf16.msra.mxu0 %v415
      %436 = vmatprep.subr.bf16.mxu0 0
      %437 = vmatpush1.bf16.msra.mxu0 %v416
      %438 = vmatprep.subr.bf16.mxu0 0
      %439 = vmatpush1.bf16.msra.mxu0 %v417
      %440 = vmatprep.subr.bf16.mxu0 0
      %441 = vmatpush1.bf16.msra.mxu0 %v418
      %442 = vmatprep.subr.bf16.mxu0 0
      %443 = vmatpush1.bf16.msra.mxu0 %v419
      %444 = vmatprep.subr.bf16.mxu0 0
      %445 = vmatpush1.bf16.msra.mxu0 0
      %446 = vmatprep.subr.bf16.mxu0 0
      %447 = vmatpush1.bf16.msra.mxu0 0
      %448 = vmatprep.subr.bf16.mxu0 0
      %449 = vmatpush1.bf16.msra.mxu0 0
      %450 = vmatprep.subr.bf16.mxu0 0
      %451 = vmatpush1.bf16.msra.mxu0 0
      %452 = vmatprep.subr.bf16.mxu0 0
      %453 = vmatpush1.bf16.msra.mxu0 0
      %454 = vmatprep.subr.bf16.mxu0 0
      %455 = vmatpush1.bf16.msra.mxu0 0
      %456 = vmatprep.subr.bf16.mxu0 0
      %457 = vmatpush1.bf16.msra.mxu0 0
      %458 = vmatprep.subr.bf16.mxu0 0
      %459 = vmatpush1.bf16.msra.mxu0 0
      %460 = vmatprep.mubr.bf16.mxu0 0
      %461 = vmatmul.mubr.bf16.gmra.mrb[0].mxu0 %v378
      %v462 = vpop.f32.mrb[0].mxu0
      %v463 = vadd.f32 0.0, %v462
      %v464 = vpop.f32.mrb[0].mxu0
      %v465 = vpop.f32.mrb[0].mxu0
      %v466 = vpop.f32.mrb[0].mxu0
      %467 = vdwg.mxu0
      %v484 = vunpack.c.l.b16 %v336
      %v485 = vunpack.c.l.b16 %v337
      %v486 = vunpack.c.l.b16 %v338
      %v487 = vunpack.c.l.b16 %v339
      %v488 = vunpack.c.l.b16 %v340
      %v489 = vunpack.c.l.b16 %v341
      %v490 = vunpack.c.l.b16 %v342
      %v491 = vunpack.c.l.b16 %v343
      %v492 = vunpack.c.l.b16 %v344
      %v493 = vunpack.c.l.b16 %v345
      %v494 = vunpack.c.l.b16 %v346
      %v495 = vunpack.c.l.b16 %v347
      %v496 = vunpack.c.l.b16 %v348
      %v497 = vunpack.c.l.b16 %v349
      %v498 = vunpack.c.l.b16 %v350
      %v499 = vunpack.c.l.b16 %v351
      %v500 = vpack.c.b16 %v485, %v484
      %v501 = vpack.c.b16 %v487, %v486
      %v502 = vpack.c.b16 %v489, %v488
      %v503 = vpack.c.b16 %v491, %v490
      %v504 = vpack.c.b16 %v493, %v492
      %v505 = vpack.c.b16 %v495, %v494
      %v506 = vpack.c.b16 %v497, %v496
      %v507 = vpack.c.b16 %v499, %v498
      %516 = vmatprep.subr.bf16.mxu0 0
      %517 = vmatpush1.bf16.msra.mxu0 %v500
      %518 = vmatprep.subr.bf16.mxu0 0
      %519 = vmatpush1.bf16.msra.mxu0 %v501
      %520 = vmatprep.subr.bf16.mxu0 0
      %521 = vmatpush1.bf16.msra.mxu0 %v502
      %522 = vmatprep.subr.bf16.mxu0 0
      %523 = vmatpush1.bf16.msra.mxu0 %v503
      %524 = vmatprep.subr.bf16.mxu0 0
      %525 = vmatpush1.bf16.msra.mxu0 %v504
      %526 = vmatprep.subr.bf16.mxu0 0
      %527 = vmatpush1.bf16.msra.mxu0 %v505
      %528 = vmatprep.subr.bf16.mxu0 0
      %529 = vmatpush1.bf16.msra.mxu0 %v506
      %530 = vmatprep.subr.bf16.mxu0 0
      %531 = vmatpush1.bf16.msra.mxu0 %v507
      %532 = vmatprep.subr.bf16.mxu0 0
      %533 = vmatpush1.bf16.msra.mxu0 0
      %534 = vmatprep.subr.bf16.mxu0 0
      %535 = vmatpush1.bf16.msra.mxu0 0
      %536 = vmatprep.subr.bf16.mxu0 0
      %537 = vmatpush1.bf16.msra.mxu0 0
      %538 = vmatprep.subr.bf16.mxu0 0
      %539 = vmatpush1.bf16.msra.mxu0 0
      %540 = vmatprep.subr.bf16.mxu0 0
      %541 = vmatpush1.bf16.msra.mxu0 0
      %542 = vmatprep.subr.bf16.mxu0 0
      %543 = vmatpush1.bf16.msra.mxu0 0
      %544 = vmatprep.subr.bf16.mxu0 0
      %545 = vmatpush1.bf16.msra.mxu0 0
      %546 = vmatprep.subr.bf16.mxu0 0
      %547 = vmatpush1.bf16.msra.mxu0 0
      %548 = vmatprep.mubr.bf16.mxu0 0
      %549 = vmatmul.mubr.bf16.gmra.mrb[0].mxu0 %v333
      %v550 = vpop.f32.mrb[0].mxu0
      %v551 = vadd.f32 %v463, %v550
      %v552 = vpop.f32.mrb[0].mxu0
      %v553 = vpop.f32.mrb[0].mxu0
      %v554 = vpop.f32.mrb[0].mxu0
      %555 = vdwg.mxu0
      %s556 = scalar_lea.vmem %s3, 128
      %v557 = vld [vmem:[%s556] sm:$0xf]
      %v558 = vld [vmem:[%s556 + $0x4] sm:$0xf]
      %v559 = vld [vmem:[%s556 + $0x8] sm:$0xf]
      %v560 = vld [vmem:[%s556 + $0xc] sm:$0xf]
      %v561 = vld [vmem:[%s556 + $0x10] sm:$0xf]
      %v562 = vld [vmem:[%s556 + $0x14] sm:$0xf]
      %v563 = vld [vmem:[%s556 + $0x18] sm:$0xf]
      %v564 = vld [vmem:[%s556 + $0x1c] sm:$0xf]
      %v565 = vld [vmem:[%s556 + $0x20] sm:$0xf]
      %v566 = vld [vmem:[%s556 + $0x24] sm:$0xf]
      %v567 = vld [vmem:[%s556 + $0x28] sm:$0xf]
      %v568 = vld [vmem:[%s556 + $0x2c] sm:$0xf]
      %v569 = vld [vmem:[%s556 + $0x30] sm:$0xf]
      %v570 = vld [vmem:[%s556 + $0x34] sm:$0xf]
      %v571 = vld [vmem:[%s556 + $0x38] sm:$0xf]
      %v572 = vld [vmem:[%s556 + $0x3c] sm:$0xf]
      %v573 = vrot.slane %v371, 1
      %v591 = vunpack.c.l.b16 %v557
      %v592 = vunpack.c.l.b16 %v558
      %v593 = vunpack.c.l.b16 %v559
      %v594 = vunpack.c.l.b16 %v560
      %v595 = vunpack.c.l.b16 %v561
      %v596 = vunpack.c.l.b16 %v562
      %v597 = vunpack.c.l.b16 %v563
      %v598 = vunpack.c.l.b16 %v564
      %v599 = vunpack.c.l.b16 %v565
      %v600 = vunpack.c.l.b16 %v566
      %v601 = vunpack.c.l.b16 %v567
      %v602 = vunpack.c.l.b16 %v568
      %v603 = vunpack.c.l.b16 %v569
      %v604 = vunpack.c.l.b16 %v570
      %v605 = vunpack.c.l.b16 %v571
      %v606 = vunpack.c.l.b16 %v572
      %v607 = vpack.c.b16 %v592, %v591
      %v608 = vpack.c.b16 %v594, %v593
      %v609 = vpack.c.b16 %v596, %v595
      %v610 = vpack.c.b16 %v598, %v597
      %v611 = vpack.c.b16 %v600, %v599
      %v612 = vpack.c.b16 %v602, %v601
      %v613 = vpack.c.b16 %v604, %v603
      %v614 = vpack.c.b16 %v606, %v605
      %623 = vmatprep.subr.bf16.mxu0 0
      %624 = vmatpush1.bf16.msra.mxu0 %v607
      %625 = vmatprep.subr.bf16.mxu0 0
      %626 = vmatpush1.bf16.msra.mxu0 %v608
      %627 = vmatprep.subr.bf16.mxu0 0
      %628 = vmatpush1.bf16.msra.mxu0 %v609
      %629 = vmatprep.subr.bf16.mxu0 0
      %630 = vmatpush1.bf16.msra.mxu0 %v610
      %631 = vmatprep.subr.bf16.mxu0 0
      %632 = vmatpush1.bf16.msra.mxu0 %v611
      %633 = vmatprep.subr.bf16.mxu0 0
      %634 = vmatpush1.bf16.msra.mxu0 %v612
      %635 = vmatprep.subr.bf16.mxu0 0
      %636 = vmatpush1.bf16.msra.mxu0 %v613
      %637 = vmatprep.subr.bf16.mxu0 0
      %638 = vmatpush1.bf16.msra.mxu0 %v614
      %639 = vmatprep.subr.bf16.mxu0 0
      %640 = vmatpush1.bf16.msra.mxu0 0
      %641 = vmatprep.subr.bf16.mxu0 0
      %642 = vmatpush1.bf16.msra.mxu0 0
      %643 = vmatprep.subr.bf16.mxu0 0
      %644 = vmatpush1.bf16.msra.mxu0 0
      %645 = vmatprep.subr.bf16.mxu0 0
      %646 = vmatpush1.bf16.msra.mxu0 0
      %647 = vmatprep.subr.bf16.mxu0 0
      %648 = vmatpush1.bf16.msra.mxu0 0
      %649 = vmatprep.subr.bf16.mxu0 0
      %650 = vmatpush1.bf16.msra.mxu0 0
      %651 = vmatprep.subr.bf16.mxu0 0
      %652 = vmatpush1.bf16.msra.mxu0 0
      %653 = vmatprep.subr.bf16.mxu0 0
      %654 = vmatpush1.bf16.msra.mxu0 0
      %655 = vmatprep.mubr.bf16.mxu0 0
      %656 = vmatmul.mubr.bf16.gmra.mrb[0].mxu0 %v573
      %v657 = vpop.f32.mrb[0].mxu0
      %v658 = vadd.f32 0.0, %v657
      %v659 = vpop.f32.mrb[0].mxu0
      %v660 = vpop.f32.mrb[0].mxu0
      %v661 = vpop.f32.mrb[0].mxu0
      %662 = vdwg.mxu0
      %v663 = vadd.f32 %v551, %v658
      %s664 = scalar_lea.vmem %s3, 192
      %v665 = vld [vmem:[%s664] sm:$0xf]
      %v666 = vld [vmem:[%s664 + $0x4] sm:$0xf]
      %v667 = vld [vmem:[%s664 + $0x8] sm:$0xf]
      %v668 = vld [vmem:[%s664 + $0xc] sm:$0xf]
      %v669 = vld [vmem:[%s664 + $0x10] sm:$0xf]
      %v670 = vld [vmem:[%s664 + $0x14] sm:$0xf]
      %v671 = vld [vmem:[%s664 + $0x18] sm:$0xf]
      %v672 = vld [vmem:[%s664 + $0x1c] sm:$0xf]
      %v673 = vld [vmem:[%s664 + $0x20] sm:$0xf]
      %v674 = vld [vmem:[%s664 + $0x24] sm:$0xf]
      %v675 = vld [vmem:[%s664 + $0x28] sm:$0xf]
      %v676 = vld [vmem:[%s664 + $0x2c] sm:$0xf]
      %v677 = vld [vmem:[%s664 + $0x30] sm:$0xf]
      %v678 = vld [vmem:[%s664 + $0x34] sm:$0xf]
      %v679 = vld [vmem:[%s664 + $0x38] sm:$0xf]
      %v680 = vld [vmem:[%s664 + $0x3c] sm:$0xf]
      %v697 = vunpack.c.l.b16 %v665
      %v698 = vunpack.c.l.b16 %v666
      %v699 = vunpack.c.l.b16 %v667
      %v700 = vunpack.c.l.b16 %v668
      %v701 = vunpack.c.l.b16 %v669
      %v702 = vunpack.c.l.b16 %v670
      %v703 = vunpack.c.l.b16 %v671
      %v704 = vunpack.c.l.b16 %v672
      %v705 = vunpack.c.l.b16 %v673
      %v706 = vunpack.c.l.b16 %v674
      %v707 = vunpack.c.l.b16 %v675
      %v708 = vunpack.c.l.b16 %v676
      %v709 = vunpack.c.l.b16 %v677
      %v710 = vunpack.c.l.b16 %v678
      %v711 = vunpack.c.l.b16 %v679
      %v712 = vunpack.c.l.b16 %v680
      %v713 = vpack.c.b16 %v698, %v697
      %v714 = vpack.c.b16 %v700, %v699
      %v715 = vpack.c.b16 %v702, %v701
      %v716 = vpack.c.b16 %v704, %v703
      %v717 = vpack.c.b16 %v706, %v705
      %v718 = vpack.c.b16 %v708, %v707
      %v719 = vpack.c.b16 %v710, %v709
      %v720 = vpack.c.b16 %v712, %v711
      %729 = vmatprep.subr.bf16.mxu0 0
      %730 = vmatpush1.bf16.msra.mxu0 %v713
      %731 = vmatprep.subr.bf16.mxu0 0
      %732 = vmatpush1.bf16.msra.mxu0 %v714
      %733 = vmatprep.subr.bf16.mxu0 0
      %734 = vmatpush1.bf16.msra.mxu0 %v715
      %735 = vmatprep.subr.bf16.mxu0 0
      %736 = vmatpush1.bf16.msra.mxu0 %v716
      %737 = vmatprep.subr.bf16.mxu0 0
      %738 = vmatpush1.bf16.msra.mxu0 %v717
      %739 = vmatprep.subr.bf16.mxu0 0
      %740 = vmatpush1.bf16.msra.mxu0 %v718
      %741 = vmatprep.subr.bf16.mxu0 0
      %742 = vmatpush1.bf16.msra.mxu0 %v719
      %743 = vmatprep.subr.bf16.mxu0 0
      %744 = vmatpush1.bf16.msra.mxu0 %v720
      %745 = vmatprep.subr.bf16.mxu0 0
      %746 = vmatpush1.bf16.msra.mxu0 0
      %747 = vmatprep.subr.bf16.mxu0 0
      %748 = vmatpush1.bf16.msra.mxu0 0
      %749 = vmatprep.subr.bf16.mxu0 0
      %750 = vmatpush1.bf16.msra.mxu0 0
      %751 = vmatprep.subr.bf16.mxu0 0
      %752 = vmatpush1.bf16.msra.mxu0 0
      %753 = vmatprep.subr.bf16.mxu0 0
      %754 = vmatpush1.bf16.msra.mxu0 0
      %755 = vmatprep.subr.bf16.mxu0 0
      %756 = vmatpush1.bf16.msra.mxu0 0
      %757 = vmatprep.subr.bf16.mxu0 0
      %758 = vmatpush1.bf16.msra.mxu0 0
      %759 = vmatprep.subr.bf16.mxu0 0
      %760 = vmatpush1.bf16.msra.mxu0 0
      %761 = vmatprep.mubr.bf16.mxu0 0
      %762 = vmatmul.mubr.bf16.gmra.mrb[0].mxu0 %v334
      %v763 = vpop.f32.mrb[0].mxu0
      %v764 = vadd.f32 0.0, %v763
      %v765 = vpop.f32.mrb[0].mxu0
      %v766 = vpop.f32.mrb[0].mxu0
      %v767 = vpop.f32.mrb[0].mxu0
      %768 = vdwg.mxu0
      %v769 = vadd.f32 %v663, %v764
      %s770 = scalar_lea.vmem %s3, 256
      %v771 = vld [vmem:[%s770] sm:$0xf]
      %v772 = vld [vmem:[%s770 + $0x4] sm:$0xf]
      %v773 = vld [vmem:[%s770 + $0x8] sm:$0xf]
      %v774 = vld [vmem:[%s770 + $0xc] sm:$0xf]
      %v775 = vld [vmem:[%s770 + $0x10] sm:$0xf]
      %v776 = vld [vmem:[%s770 + $0x14] sm:$0xf]
      %v777 = vld [vmem:[%s770 + $0x18] sm:$0xf]
      %v778 = vld [vmem:[%s770 + $0x1c] sm:$0xf]
      %v779 = vld [vmem:[%s770 + $0x20] sm:$0xf]
      %v780 = vld [vmem:[%s770 + $0x24] sm:$0xf]
      %v781 = vld [vmem:[%s770 + $0x28] sm:$0xf]
      %v782 = vld [vmem:[%s770 + $0x2c] sm:$0xf]
      %v783 = vld [vmem:[%s770 + $0x30] sm:$0xf]
      %v784 = vld [vmem:[%s770 + $0x34] sm:$0xf]
      %v785 = vld [vmem:[%s770 + $0x38] sm:$0xf]
      %v786 = vld [vmem:[%s770 + $0x3c] sm:$0xf]
      %v788 = vunpack.c.l.b16 %v334
      %v789 = vpack.c.b16 %v788, %v788
      %v791 = vshrl.u32 %v789, 16
      %v793 = vshll.u32 %v789, 16
      %v795 = vrot.slane %v793, 1
      %v796 = vor.u32 %v791, %v795
      %v814 = vunpack.c.l.b16 %v771
      %v815 = vunpack.c.l.b16 %v772
      %v816 = vunpack.c.l.b16 %v773
      %v817 = vunpack.c.l.b16 %v774
      %v818 = vunpack.c.l.b16 %v775
      %v819 = vunpack.c.l.b16 %v776
      %v820 = vunpack.c.l.b16 %v777
      %v821 = vunpack.c.l.b16 %v778
      %v822 = vunpack.c.l.b16 %v779
      %v823 = vunpack.c.l.b16 %v780
      %v824 = vunpack.c.l.b16 %v781
      %v825 = vunpack.c.l.b16 %v782
      %v826 = vunpack.c.l.b16 %v783
      %v827 = vunpack.c.l.b16 %v784
      %v828 = vunpack.c.l.b16 %v785
      %v829 = vunpack.c.l.b16 %v786
      %v830 = vpack.c.b16 %v815, %v814
      %v831 = vpack.c.b16 %v817, %v816
      %v832 = vpack.c.b16 %v819, %v818
      %v833 = vpack.c.b16 %v821, %v820
      %v834 = vpack.c.b16 %v823, %v822
      %v835 = vpack.c.b16 %v825, %v824
      %v836 = vpack.c.b16 %v827, %v826
      %v837 = vpack.c.b16 %v829, %v828
      %846 = vmatprep.subr.bf16.mxu0 0
      %847 = vmatpush1.bf16.msra.mxu0 %v830
      %848 = vmatprep.subr.bf16.mxu0 0
      %849 = vmatpush1.bf16.msra.mxu0 %v831
      %850 = vmatprep.subr.bf16.mxu0 0
      %851 = vmatpush1.bf16.msra.mxu0 %v832
      %852 = vmatprep.subr.bf16.mxu0 0
      %853 = vmatpush1.bf16.msra.mxu0 %v833
      %854 = vmatprep.subr.bf16.mxu0 0
      %855 = vmatpush1.bf16.msra.mxu0 %v834
      %856 = vmatprep.subr.bf16.mxu0 0
      %857 = vmatpush1.bf16.msra.mxu0 %v835
      %858 = vmatprep.subr.bf16.mxu0 0
      %859 = vmatpush1.bf16.msra.mxu0 %v836
      %860 = vmatprep.subr.bf16.mxu0 0
      %861 = vmatpush1.bf16.msra.mxu0 %v837
      %862 = vmatprep.subr.bf16.mxu0 0
      %863 = vmatpush1.bf16.msra.mxu0 0
      %864 = vmatprep.subr.bf16.mxu0 0
      %865 = vmatpush1.bf16.msra.mxu0 0
      %866 = vmatprep.subr.bf16.mxu0 0
      %867 = vmatpush1.bf16.msra.mxu0 0
      %868 = vmatprep.subr.bf16.mxu0 0
      %869 = vmatpush1.bf16.msra.mxu0 0
      %870 = vmatprep.subr.bf16.mxu0 0
      %871 = vmatpush1.bf16.msra.mxu0 0
      %872 = vmatprep.subr.bf16.mxu0 0
      %873 = vmatpush1.bf16.msra.mxu0 0
      %874 = vmatprep.subr.bf16.mxu0 0
      %875 = vmatpush1.bf16.msra.mxu0 0
      %876 = vmatprep.subr.bf16.mxu0 0
      %877 = vmatpush1.bf16.msra.mxu0 0
      %878 = vmatprep.mubr.bf16.mxu0 0
      %879 = vmatmul.mubr.bf16.gmra.mrb[0].mxu0 %v796
      %v880 = vpop.f32.mrb[0].mxu0
      %v881 = vadd.f32 0.0, %v880
      %v882 = vpop.f32.mrb[0].mxu0
      %v883 = vpop.f32.mrb[0].mxu0
      %v884 = vpop.f32.mrb[0].mxu0
      %885 = vdwg.mxu0
      %v886 = vadd.f32 %v769, %v881
      %s887 = scalar_lea.vmem %s3, 320
      %v888 = vld [vmem:[%s887] sm:$0xf]
      %v889 = vld [vmem:[%s887 + $0x4] sm:$0xf]
      %v890 = vld [vmem:[%s887 + $0x8] sm:$0xf]
      %v891 = vld [vmem:[%s887 + $0xc] sm:$0xf]
      %v892 = vld [vmem:[%s887 + $0x10] sm:$0xf]
      %v893 = vld [vmem:[%s887 + $0x14] sm:$0xf]
      %v894 = vld [vmem:[%s887 + $0x18] sm:$0xf]
      %v895 = vld [vmem:[%s887 + $0x1c] sm:$0xf]
      %v896 = vld [vmem:[%s887 + $0x20] sm:$0xf]
      %v897 = vld [vmem:[%s887 + $0x24] sm:$0xf]
      %v898 = vld [vmem:[%s887 + $0x28] sm:$0xf]
      %v899 = vld [vmem:[%s887 + $0x2c] sm:$0xf]
      %v900 = vld [vmem:[%s887 + $0x30] sm:$0xf]
      %v901 = vld [vmem:[%s887 + $0x34] sm:$0xf]
      %v902 = vld [vmem:[%s887 + $0x38] sm:$0xf]
      %v903 = vld [vmem:[%s887 + $0x3c] sm:$0xf]
      %v904 = vrot.slane %v789, 1
      %v922 = vunpack.c.l.b16 %v888
      %v923 = vunpack.c.l.b16 %v889
      %v924 = vunpack.c.l.b16 %v890
      %v925 = vunpack.c.l.b16 %v891
      %v926 = vunpack.c.l.b16 %v892
      %v927 = vunpack.c.l.b16 %v893
      %v928 = vunpack.c.l.b16 %v894
      %v929 = vunpack.c.l.b16 %v895
      %v930 = vunpack.c.l.b16 %v896
      %v931 = vunpack.c.l.b16 %v897
      %v932 = vunpack.c.l.b16 %v898
      %v933 = vunpack.c.l.b16 %v899
      %v934 = vunpack.c.l.b16 %v900
      %v935 = vunpack.c.l.b16 %v901
      %v936 = vunpack.c.l.b16 %v902
      %v937 = vunpack.c.l.b16 %v903
      %v938 = vpack.c.b16 %v923, %v922
      %v939 = vpack.c.b16 %v925, %v924
      %v940 = vpack.c.b16 %v927, %v926
      %v941 = vpack.c.b16 %v929, %v928
      %v942 = vpack.c.b16 %v931, %v930
      %v943 = vpack.c.b16 %v933, %v932
      %v944 = vpack.c.b16 %v935, %v934
      %v945 = vpack.c.b16 %v937, %v936
      %954 = vmatprep.subr.bf16.mxu0 0
      %955 = vmatpush1.bf16.msra.mxu0 %v938
      %956 = vmatprep.subr.bf16.mxu0 0
      %957 = vmatpush1.bf16.msra.mxu0 %v939
      %958 = vmatprep.subr.bf16.mxu0 0
      %959 = vmatpush1.bf16.msra.mxu0 %v940
      %960 = vmatprep.subr.bf16.mxu0 0
      %961 = vmatpush1.bf16.msra.mxu0 %v941
      %962 = vmatprep.subr.bf16.mxu0 0
      %963 = vmatpush1.bf16.msra.mxu0 %v942
      %964 = vmatprep.subr.bf16.mxu0 0
      %965 = vmatpush1.bf16.msra.mxu0 %v943
      %966 = vmatprep.subr.bf16.mxu0 0
      %967 = vmatpush1.bf16.msra.mxu0 %v944
      %968 = vmatprep.subr.bf16.mxu0 0
      %969 = vmatpush1.bf16.msra.mxu0 %v945
      %970 = vmatprep.subr.bf16.mxu0 0
      %971 = vmatpush1.bf16.msra.mxu0 0
      %972 = vmatprep.subr.bf16.mxu0 0
      %973 = vmatpush1.bf16.msra.mxu0 0
      %974 = vmatprep.subr.bf16.mxu0 0
      %975 = vmatpush1.bf16.msra.mxu0 0
      %976 = vmatprep.subr.bf16.mxu0 0
      %977 = vmatpush1.bf16.msra.mxu0 0
      %978 = vmatprep.subr.bf16.mxu0 0
      %979 = vmatpush1.bf16.msra.mxu0 0
      %980 = vmatprep.subr.bf16.mxu0 0
      %981 = vmatpush1.bf16.msra.mxu0 0
      %982 = vmatprep.subr.bf16.mxu0 0
      %983 = vmatpush1.bf16.msra.mxu0 0
      %984 = vmatprep.subr.bf16.mxu0 0
      %985 = vmatpush1.bf16.msra.mxu0 0
      %986 = vmatprep.mubr.bf16.mxu0 0
      %987 = vmatmul.mubr.bf16.gmra.mrb[0].mxu0 %v904
      %v988 = vpop.f32.mrb[0].mxu0
      %v989 = vadd.f32 0.0, %v988
      %v990 = vpop.f32.mrb[0].mxu0
      %v991 = vpop.f32.mrb[0].mxu0
      %v992 = vpop.f32.mrb[0].mxu0
      %993 = vdwg.mxu0
      %v994 = vadd.f32 %v886, %v989
      %s995 = scalar_lea.vmem %s3, 384
      %v996 = vld [vmem:[%s995] sm:$0xf]
      %v997 = vld [vmem:[%s995 + $0x4] sm:$0xf]
      %v998 = vld [vmem:[%s995 + $0x8] sm:$0xf]
      %v999 = vld [vmem:[%s995 + $0xc] sm:$0xf]
      %v1000 = vld [vmem:[%s995 + $0x10] sm:$0xf]
      %v1001 = vld [vmem:[%s995 + $0x14] sm:$0xf]
      %v1002 = vld [vmem:[%s995 + $0x18] sm:$0xf]
      %v1003 = vld [vmem:[%s995 + $0x1c] sm:$0xf]
      %v1004 = vld [vmem:[%s995 + $0x20] sm:$0xf]
      %v1005 = vld [vmem:[%s995 + $0x24] sm:$0xf]
      %v1006 = vld [vmem:[%s995 + $0x28] sm:$0xf]
      %v1007 = vld [vmem:[%s995 + $0x2c] sm:$0xf]
      %v1008 = vld [vmem:[%s995 + $0x30] sm:$0xf]
      %v1009 = vld [vmem:[%s995 + $0x34] sm:$0xf]
      %v1010 = vld [vmem:[%s995 + $0x38] sm:$0xf]
      %v1011 = vld [vmem:[%s995 + $0x3c] sm:$0xf]
      %v1028 = vunpack.c.l.b16 %v996
      %v1029 = vunpack.c.l.b16 %v997
      %v1030 = vunpack.c.l.b16 %v998
      %v1031 = vunpack.c.l.b16 %v999
      %v1032 = vunpack.c.l.b16 %v1000
      %v1033 = vunpack.c.l.b16 %v1001
      %v1034 = vunpack.c.l.b16 %v1002
      %v1035 = vunpack.c.l.b16 %v1003
      %v1036 = vunpack.c.l.b16 %v1004
      %v1037 = vunpack.c.l.b16 %v1005
      %v1038 = vunpack.c.l.b16 %v1006
      %v1039 = vunpack.c.l.b16 %v1007
      %v1040 = vunpack.c.l.b16 %v1008
      %v1041 = vunpack.c.l.b16 %v1009
      %v1042 = vunpack.c.l.b16 %v1010
      %v1043 = vunpack.c.l.b16 %v1011
      %v1044 = vpack.c.b16 %v1029, %v1028
      %v1045 = vpack.c.b16 %v1031, %v1030
      %v1046 = vpack.c.b16 %v1033, %v1032
      %v1047 = vpack.c.b16 %v1035, %v1034
      %v1048 = vpack.c.b16 %v1037, %v1036
      %v1049 = vpack.c.b16 %v1039, %v1038
      %v1050 = vpack.c.b16 %v1041, %v1040
      %v1051 = vpack.c.b16 %v1043, %v1042
      %1060 = vmatprep.subr.bf16.mxu0 0
      %1061 = vmatpush1.bf16.msra.mxu0 %v1044
      %1062 = vmatprep.subr.bf16.mxu0 0
      %1063 = vmatpush1.bf16.msra.mxu0 %v1045
      %1064 = vmatprep.subr.bf16.mxu0 0
      %1065 = vmatpush1.bf16.msra.mxu0 %v1046
      %1066 = vmatprep.subr.bf16.mxu0 0
      %1067 = vmatpush1.bf16.msra.mxu0 %v1047
      %1068 = vmatprep.subr.bf16.mxu0 0
      %1069 = vmatpush1.bf16.msra.mxu0 %v1048
      %1070 = vmatprep.subr.bf16.mxu0 0
      %1071 = vmatpush1.bf16.msra.mxu0 %v1049
      %1072 = vmatprep.subr.bf16.mxu0 0
      %1073 = vmatpush1.bf16.msra.mxu0 %v1050
      %1074 = vmatprep.subr.bf16.mxu0 0
      %1075 = vmatpush1.bf16.msra.mxu0 %v1051
      %1076 = vmatprep.subr.bf16.mxu0 0
      %1077 = vmatpush1.bf16.msra.mxu0 0
      %1078 = vmatprep.subr.bf16.mxu0 0
      %1079 = vmatpush1.bf16.msra.mxu0 0
      %1080 = vmatprep.subr.bf16.mxu0 0
      %1081 = vmatpush1.bf16.msra.mxu0 0
      %1082 = vmatprep.subr.bf16.mxu0 0
      %1083 = vmatpush1.bf16.msra.mxu0 0
      %1084 = vmatprep.subr.bf16.mxu0 0
      %1085 = vmatpush1.bf16.msra.mxu0 0
      %1086 = vmatprep.subr.bf16.mxu0 0
      %1087 = vmatpush1.bf16.msra.mxu0 0
      %1088 = vmatprep.subr.bf16.mxu0 0
      %1089 = vmatpush1.bf16.msra.mxu0 0
      %1090 = vmatprep.subr.bf16.mxu0 0
      %1091 = vmatpush1.bf16.msra.mxu0 0
      %1092 = vmatprep.mubr.bf16.mxu0 0
      %1093 = vmatmul.mubr.bf16.gmra.mrb[0].mxu0 %v335
      %v1094 = vpop.f32.mrb[0].mxu0
      %v1095 = vadd.f32 0.0, %v1094
      %v1096 = vpop.f32.mrb[0].mxu0
      %v1097 = vpop.f32.mrb[0].mxu0
      %v1098 = vpop.f32.mrb[0].mxu0
      %1099 = vdwg.mxu0
      %v1100 = vadd.f32 %v994, %v1095
      %s1101 = scalar_lea.vmem %s3, 448
      %v1102 = vld [vmem:[%s1101] sm:$0xf]
      %v1103 = vld [vmem:[%s1101 + $0x4] sm:$0xf]
      %v1104 = vld [vmem:[%s1101 + $0x8] sm:$0xf]
      %v1105 = vld [vmem:[%s1101 + $0xc] sm:$0xf]
      %v1106 = vld [vmem:[%s1101 + $0x10] sm:$0xf]
      %v1107 = vld [vmem:[%s1101 + $0x14] sm:$0xf]
      %v1108 = vld [vmem:[%s1101 + $0x18] sm:$0xf]
      %v1109 = vld [vmem:[%s1101 + $0x1c] sm:$0xf]
      %v1110 = vld [vmem:[%s1101 + $0x20] sm:$0xf]
      %v1111 = vld [vmem:[%s1101 + $0x24] sm:$0xf]
      %v1112 = vld [vmem:[%s1101 + $0x28] sm:$0xf]
      %v1113 = vld [vmem:[%s1101 + $0x2c] sm:$0xf]
      %v1114 = vld [vmem:[%s1101 + $0x30] sm:$0xf]
      %v1115 = vld [vmem:[%s1101 + $0x34] sm:$0xf]
      %v1116 = vld [vmem:[%s1101 + $0x38] sm:$0xf]
      %v1117 = vld [vmem:[%s1101 + $0x3c] sm:$0xf]
      %v1119 = vunpack.c.l.b16 %v335
      %v1120 = vpack.c.b16 %v1119, %v1119
      %v1122 = vshrl.u32 %v1120, 16
      %v1124 = vshll.u32 %v1120, 16
      %v1126 = vrot.slane %v1124, 1
      %v1127 = vor.u32 %v1122, %v1126
      %v1145 = vunpack.c.l.b16 %v1102
      %v1146 = vunpack.c.l.b16 %v1103
      %v1147 = vunpack.c.l.b16 %v1104
      %v1148 = vunpack.c.l.b16 %v1105
      %v1149 = vunpack.c.l.b16 %v1106
      %v1150 = vunpack.c.l.b16 %v1107
      %v1151 = vunpack.c.l.b16 %v1108
      %v1152 = vunpack.c.l.b16 %v1109
      %v1153 = vunpack.c.l.b16 %v1110
      %v1154 = vunpack.c.l.b16 %v1111
      %v1155 = vunpack.c.l.b16 %v1112
      %v1156 = vunpack.c.l.b16 %v1113
      %v1157 = vunpack.c.l.b16 %v1114
      %v1158 = vunpack.c.l.b16 %v1115
      %v1159 = vunpack.c.l.b16 %v1116
      %v1160 = vunpack.c.l.b16 %v1117
      %v1161 = vpack.c.b16 %v1146, %v1145
      %v1162 = vpack.c.b16 %v1148, %v1147
      %v1163 = vpack.c.b16 %v1150, %v1149
      %v1164 = vpack.c.b16 %v1152, %v1151
      %v1165 = vpack.c.b16 %v1154, %v1153
      %v1166 = vpack.c.b16 %v1156, %v1155
      %v1167 = vpack.c.b16 %v1158, %v1157
      %v1168 = vpack.c.b16 %v1160, %v1159
      %1177 = vmatprep.subr.bf16.mxu0 0
      %1178 = vmatpush1.bf16.msra.mxu0 %v1161
      %1179 = vmatprep.subr.bf16.mxu0 0
      %1180 = vmatpush1.bf16.msra.mxu0 %v1162
      %1181 = vmatprep.subr.bf16.mxu0 0
      %1182 = vmatpush1.bf16.msra.mxu0 %v1163
      %1183 = vmatprep.subr.bf16.mxu0 0
      %1184 = vmatpush1.bf16.msra.mxu0 %v1164
      %1185 = vmatprep.subr.bf16.mxu0 0
      %1186 = vmatpush1.bf16.msra.mxu0 %v1165
      %1187 = vmatprep.subr.bf16.mxu0 0
      %1188 = vmatpush1.bf16.msra.mxu0 %v1166
      %1189 = vmatprep.subr.bf16.mxu0 0
      %1190 = vmatpush1.bf16.msra.mxu0 %v1167
      %1191 = vmatprep.subr.bf16.mxu0 0
      %1192 = vmatpush1.bf16.msra.mxu0 %v1168
      %1193 = vmatprep.subr.bf16.mxu0 0
      %1194 = vmatpush1.bf16.msra.mxu0 0
      %1195 = vmatprep.subr.bf16.mxu0 0
      %1196 = vmatpush1.bf16.msra.mxu0 0
      %1197 = vmatprep.subr.bf16.mxu0 0
      %1198 = vmatpush1.bf16.msra.mxu0 0
      %1199 = vmatprep.subr.bf16.mxu0 0
      %1200 = vmatpush1.bf16.msra.mxu0 0
      %1201 = vmatprep.subr.bf16.mxu0 0
      %1202 = vmatpush1.bf16.msra.mxu0 0
      %1203 = vmatprep.subr.bf16.mxu0 0
      %1204 = vmatpush1.bf16.msra.mxu0 0
      %1205 = vmatprep.subr.bf16.mxu0 0
      %1206 = vmatpush1.bf16.msra.mxu0 0
      %1207 = vmatprep.subr.bf16.mxu0 0
      %1208 = vmatpush1.bf16.msra.mxu0 0
      %1209 = vmatprep.mubr.bf16.mxu0 0
      %1210 = vmatmul.mubr.bf16.gmra.mrb[0].mxu0 %v1127
      %v1211 = vpop.f32.mrb[0].mxu0
      %v1212 = vadd.f32 0.0, %v1211
      %v1213 = vpop.f32.mrb[0].mxu0
      %v1214 = vpop.f32.mrb[0].mxu0
      %v1215 = vpop.f32.mrb[0].mxu0
      %1216 = vdwg.mxu0
      %v1217 = vadd.f32 %v1100, %v1212
      %s1218 = scalar_lea.vmem %s3, 512
      %v1219 = vld [vmem:[%s1218] sm:$0xf]
      %v1220 = vld [vmem:[%s1218 + $0x4] sm:$0xf]
      %v1221 = vld [vmem:[%s1218 + $0x8] sm:$0xf]
      %v1222 = vld [vmem:[%s1218 + $0xc] sm:$0xf]
      %v1223 = vld [vmem:[%s1218 + $0x10] sm:$0xf]
      %v1224 = vld [vmem:[%s1218 + $0x14] sm:$0xf]
      %v1225 = vld [vmem:[%s1218 + $0x18] sm:$0xf]
      %v1226 = vld [vmem:[%s1218 + $0x1c] sm:$0xf]
      %v1227 = vld [vmem:[%s1218 + $0x20] sm:$0xf]
      %v1228 = vld [vmem:[%s1218 + $0x24] sm:$0xf]
      %v1229 = vld [vmem:[%s1218 + $0x28] sm:$0xf]
      %v1230 = vld [vmem:[%s1218 + $0x2c] sm:$0xf]
      %v1231 = vld [vmem:[%s1218 + $0x30] sm:$0xf]
      %v1232 = vld [vmem:[%s1218 + $0x34] sm:$0xf]
      %v1233 = vld [vmem:[%s1218 + $0x38] sm:$0xf]
      %v1234 = vld [vmem:[%s1218 + $0x3c] sm:$0xf]
      %v1235 = vrot.slane %v1120, 1
      %v1253 = vunpack.c.l.b16 %v1219
      %v1254 = vunpack.c.l.b16 %v1220
      %v1255 = vunpack.c.l.b16 %v1221
      %v1256 = vunpack.c.l.b16 %v1222
      %v1257 = vunpack.c.l.b16 %v1223
      %v1258 = vunpack.c.l.b16 %v1224
      %v1259 = vunpack.c.l.b16 %v1225
      %v1260 = vunpack.c.l.b16 %v1226
      %v1261 = vunpack.c.l.b16 %v1227
      %v1262 = vunpack.c.l.b16 %v1228
      %v1263 = vunpack.c.l.b16 %v1229
      %v1264 = vunpack.c.l.b16 %v1230
      %v1265 = vunpack.c.l.b16 %v1231
      %v1266 = vunpack.c.l.b16 %v1232
      %v1267 = vunpack.c.l.b16 %v1233
      %v1268 = vunpack.c.l.b16 %v1234
      %v1269 = vpack.c.b16 %v1254, %v1253
      %v1270 = vpack.c.b16 %v1256, %v1255
      %v1271 = vpack.c.b16 %v1258, %v1257
      %v1272 = vpack.c.b16 %v1260, %v1259
      %v1273 = vpack.c.b16 %v1262, %v1261
      %v1274 = vpack.c.b16 %v1264, %v1263
      %v1275 = vpack.c.b16 %v1266, %v1265
      %v1276 = vpack.c.b16 %v1268, %v1267
      %1285 = vmatprep.subr.bf16.mxu0 0
      %1286 = vmatpush1.bf16.msra.mxu0 %v1269
      %1287 = vmatprep.subr.bf16.mxu0 0
      %1288 = vmatpush1.bf16.msra.mxu0 %v1270
      %1289 = vmatprep.subr.bf16.mxu0 0
      %1290 = vmatpush1.bf16.msra.mxu0 %v1271
      %1291 = vmatprep.subr.bf16.mxu0 0
      %1292 = vmatpush1.bf16.msra.mxu0 %v1272
      %1293 = vmatprep.subr.bf16.mxu0 0
      %1294 = vmatpush1.bf16.msra.mxu0 %v1273
      %1295 = vmatprep.subr.bf16.mxu0 0
      %1296 = vmatpush1.bf16.msra.mxu0 %v1274
      %1297 = vmatprep.subr.bf16.mxu0 0
      %1298 = vmatpush1.bf16.msra.mxu0 %v1275
      %1299 = vmatprep.subr.bf16.mxu0 0
      %1300 = vmatpush1.bf16.msra.mxu0 %v1276
      %1301 = vmatprep.subr.bf16.mxu0 0
      %1302 = vmatpush1.bf16.msra.mxu0 0
      %1303 = vmatprep.subr.bf16.mxu0 0
      %1304 = vmatpush1.bf16.msra.mxu0 0
      %1305 = vmatprep.subr.bf16.mxu0 0
      %1306 = vmatpush1.bf16.msra.mxu0 0
      %1307 = vmatprep.subr.bf16.mxu0 0
      %1308 = vmatpush1.bf16.msra.mxu0 0
      %1309 = vmatprep.subr.bf16.mxu0 0
      %1310 = vmatpush1.bf16.msra.mxu0 0
      %1311 = vmatprep.subr.bf16.mxu0 0
      %1312 = vmatpush1.bf16.msra.mxu0 0
      %1313 = vmatprep.subr.bf16.mxu0 0
      %1314 = vmatpush1.bf16.msra.mxu0 0
      %1315 = vmatprep.subr.bf16.mxu0 0
      %1316 = vmatpush1.bf16.msra.mxu0 0
      %1317 = vmatprep.mubr.bf16.mxu0 0
      %1318 = vmatmul.mubr.bf16.gmra.mrb[0].mxu0 %v1235
      %v1319 = vpop.f32.mrb[0].mxu0
      %v1320 = vadd.f32 0.0, %v1319
      %v1321 = vpop.f32.mrb[0].mxu0
      %v1322 = vpop.f32.mrb[0].mxu0
      %v1323 = vpop.f32.mrb[0].mxu0
      %1324 = vdwg.mxu0
      %v1325 = vadd.f32 %v1217, %v1320
      %v1326 = vld [vmem:[%s4] sm:$0x1]
      %v1328 = vlaneseq
      %v1329 = vshrl.u32 %v1328, 7
      %v1330 = vsub.s32 0, %v1329
      %v1331 = vrot.slane %v1326, %v1330
      %v1333 = vadd.f32 %v1325, %v1331
      %v1334 = vmax.f32 %v1333, 0.0
      %v1335 = vpack.c.bf16 %v1334, %v1334
      %1336 = vst [vmem:[%s331] sm:$0x3] %v1335
      %p1337 = scmp.lt.s32.totalorder %s20, 1
      %s1338 = scalar_select %p1337, %s20, 1
      %p1339 = scmp.lt.s32.totalorder %s21, 3
      %s1340 = scalar_select %p1339, %s21, 3
      %s1341 = smul.addr %s1338, 4
      %s1342 = sadd.s32 %s1340, %s1341
      %s1343 = smul.addr %s1342, 2
      %s1344 = scalar_lea.vmem %s5, %s1343
      // Predicated region
      $region41: #{_encoder_forward_impl.19} parent=39 // pred_check
        %p1345 = pneg %p178
      $region42: #{_encoder_forward_impl.19} parent=39 // pred_check_branch
        %1347 = sbr.rel (%p1345) target = $region44
      $region43: #{_encoder_forward_impl.19} parent=39 // pred_region
        _
      $region44: #{_encoder_forward_impl.19} parent=39 // pred_fallthru
        _
    $region40: #{_encoder_forward_impl.19} parent=5 // pred_fallthru
      _
    %p1348 = scmp.le.s32.totalorder 2, %s11
    // Predicated region
    $region45: #{_encoder_forward_impl.19} parent=5 // pred_check
      %p1349 = pneg %p1348
    $region46: #{_encoder_forward_impl.19} parent=5 // pred_check_branch
      %1351 = sbr.rel (%p1349) target = $region48
    $region47: #{_encoder_forward_impl.19} parent=5 // pred_region
      %s1352 = ssub.s32 %s11, 2
      // Predicated region
      $region49: #{_encoder_forward_impl.19} parent=47 // pred_check
        %p1353 = pneg %p184
      $region50: #{_encoder_forward_impl.19} parent=47 // pred_check_branch
        %1355 = sbr.rel (%p1353) target = $region52
      $region51: #{_encoder_forward_impl.19} parent=47 // pred_region
        %p1356 = scmp.lt.s32.totalorder %s22, 1
        %s1357 = scalar_select %p1356, %s22, 1
        %p1358 = scmp.lt.s32.totalorder %s23, 3
        %s1359 = scalar_select %p1358, %s23, 3
        %s1360 = smul.addr %s1357, 4
        %s1361 = sadd.s32 %s1359, %s1360
        %s1362 = smul.addr %s1361, 2
        %s1363 = scalar_lea.vmem %s5, %s1362
      $region52: #{_encoder_forward_impl.19} parent=47 // pred_fallthru
        _
    $region48: #{_encoder_forward_impl.19} parent=5 // pred_fallthru
      _
  $region6: #{_encoder_forward_impl.19} parent=0 // loop_footer
    %s15 = sadd.s32 1, %s11
  $region7: #{_encoder_forward_impl.19} parent=0 // loop_footer_branch
    %10 = sbr.rel target = $region3
  $region8: #{_encoder_forward_impl.19} parent=0 // loop_exit
    _

</llo_original>
